<compile_context>
chip_gen: v6e
topology: v6e:2x2x1
jax: 0.10.0
libtpu: 0.0.40
codegen_flags: <defaults>
</compile_context>

<pallas_src>
import jax
import jax.numpy as jnp
from jax import lax
from jax.experimental import pallas as pl
from jax.experimental.pallas import tpu as pltpu

EPS = 1e-5

_VMEM_LIMIT = 32 * 1024 * 1024  # fits v5e/v6e/v7x; worst-case resident weights ~11 MiB


# ---------------- Pallas kernels ----------------

def conv_bn_relu_pool_kernel(xe_ref, xo_ref, w_ref, sh_ref, o_ref):
    """Fused 3x3 conv (pad=1) + BN(scale folded into w) + shift + ReLU + 2x2 maxpool
    for one image.

    xe_ref/xo_ref: (1, Ho+1, Cin*Wp)  even/odd padded input rows, lane = ci*Wp + w
    w_ref:         (6, Cin*Wp, Cout*Wo) structured weights, index k = j*3 + kh
    sh_ref:        (1, Cout*Wo)       per-channel shift broadcast over wo
    o_ref:         (1, Ho, Cout*Wo)   pooled output, lane = co*Wo + wo
    """
    Ho = o_ref.shape[1]

    e0 = xe_ref[0, 0:Ho, :]        # original padded rows 0,2,...,2Ho-2
    e1 = xe_ref[0, 1:Ho + 1, :]    # original padded rows 2,4,...,2Ho
    o0 = xo_ref[0, 0:Ho, :]        # original padded rows 1,3,...,2Ho-1
    o1 = xo_ref[0, 1:Ho + 1, :]    # original padded rows 3,5,...,2Ho+1

    def mm(a, k):
        return jnp.dot(a, w_ref[k], preferred_element_type=jnp.float32)

    # acc_ij = conv output at rows 2ho+i, cols 2wo+j (weight index k = j*3 + kh)
    acc00 = mm(e0, 0) + mm(o0, 1) + mm(e1, 2)
    acc01 = mm(e0, 3) + mm(o0, 4) + mm(e1, 5)
    acc10 = mm(o0, 0) + mm(e1, 1) + mm(o1, 2)
    acc11 = mm(o0, 3) + mm(e1, 4) + mm(o1, 5)

    m = jnp.maximum(jnp.maximum(acc00, acc01), jnp.maximum(acc10, acc11))
    o_ref[0] = jnp.maximum(m + sh_ref[...], 0.0)


def mlp_kernel(x_ref, w1_ref, b1_ref, w2_ref, b2_ref, o_ref):
    # fc1 + ReLU + fc2 fused; dropout(p=0.25) is identity in inference mode.
    h = jnp.dot(x_ref[...], w1_ref[...], preferred_element_type=jnp.float32) + b1_ref[...]
    h = jnp.maximum(h, 0.0)
    o_ref[...] = jnp.dot(h, w2_ref[...], preferred_element_type=jnp.float32) + b2_ref[...]


# ---------------- pallas_call wrappers ----------------

def conv_bn_relu_pool(xe, xo, wmats, shift_row):
    N, Hi, K = xe.shape          # Hi = Ho + 1
    Ho = Hi - 1
    CWo = wmats.shape[2]
    return pl.pallas_call(
        conv_bn_relu_pool_kernel,
        out_shape=jax.ShapeDtypeStruct((N, Ho, CWo), jnp.float32),
        grid=(N,),
        in_specs=[
            pl.BlockSpec((1, Hi, K), lambda n: (n, 0, 0)),
            pl.BlockSpec((1, Hi, K), lambda n: (n, 0, 0)),
            pl.BlockSpec((6, K, CWo), lambda n: (0, 0, 0)),   # resident weights
            pl.BlockSpec((1, CWo), lambda n: (0, 0)),          # resident shift
        ],
        out_specs=pl.BlockSpec((1, Ho, CWo), lambda n: (n, 0, 0)),
        compiler_params=pltpu.CompilerParams(
            dimension_semantics=("parallel",),
            vmem_limit_bytes=_VMEM_LIMIT),
    )(xe, xo, wmats, shift_row)


def mlp(x, w1, b1, w2, b2):
    N, K = x.shape
    H = w1.shape[1]
    O = w2.shape[1]
    bm = N if N <= 256 else 256
    return pl.pallas_call(
        mlp_kernel,
        out_shape=jax.ShapeDtypeStruct((N, O), jnp.float32),
        grid=(pl.cdiv(N, bm),),
        in_specs=[
            pl.BlockSpec((bm, K), lambda i: (i, 0)),
            pl.BlockSpec((K, H), lambda i: (0, 0)),
            pl.BlockSpec((1, H), lambda i: (0, 0)),
            pl.BlockSpec((H, O), lambda i: (0, 0)),
            pl.BlockSpec((1, O), lambda i: (0, 0)),
        ],
        out_specs=pl.BlockSpec((bm, O), lambda i: (i, 0)),
        compiler_params=pltpu.CompilerParams(
            dimension_semantics=("parallel",),
            vmem_limit_bytes=_VMEM_LIMIT),
    )(x, w1, b1, w2, b2)


# ---------------- one-time parameter preparation (outside hot path) ----------------

def build_conv_pool_weights(k_oihw, scale, Wp, Wo):
    """Structured conv+pool weights.
    Returns (6, Cin*Wp, Cout*Wo) with index k = j*3 + kh and
      W[k][ci*Wp + w_in, co*Wo + wo] = scale[co]*K[co,ci,kh,kw]  where w_in = 2wo+j+kw.
    """
    Cout, Cin, KH, KW = k_oihw.shape
    ks = k_oihw.astype(jnp.float32) * scale[:, None, None, None]
    w_in = jnp.arange(Wp)[:, None]
    wo = jnp.arange(Wo)[None, :]
    mats = []
    for j in range(2):
        for kh in range(KH):
            m = jnp.zeros((Cin, Wp, Cout, Wo), jnp.float32)
            for kw in range(KW):
                sel = (w_in == (2 * wo + j + kw)).astype(jnp.float32)     # (Wp, Wo)
                m = m + (ks[:, :, kh, kw].T)[:, None, :, None] * sel[None, :, None, :]
            mats.append(m.reshape(Cin * Wp, Cout * Wo))
    return jnp.stack(mats, 0)


def prepare_params(p):
    prep = {}
    # stage 1: fold BN1 (inference) + conv bias
    s1 = p["g1"] / jnp.sqrt(p["rv1"] + EPS)
    sh1 = p["be1"] - s1 * p["rm1"] + s1 * p["b1"]
    prep["w1m"] = build_conv_pool_weights(p["w1"], s1, Wp=30, Wo=14)     # (6, 30, 448)
    prep["sh1"] = jnp.repeat(sh1, 14).reshape(1, 32 * 14)
    # stage 2: fold BN2 + conv bias
    s2 = p["g2"] / jnp.sqrt(p["rv2"] + EPS)
    sh2 = p["be2"] - s2 * p["rm2"] + s2 * p["b2"]
    prep["w2m"] = build_conv_pool_weights(p["w2"], s2, Wp=16, Wo=7)      # (6, 512, 448)
    prep["sh2"] = jnp.repeat(sh2, 7).reshape(1, 64 * 7)
    # fc1: torch flatten order is co*49 + ho*7 + wo; kernel flatten is ho*448 + co*7 + wo
    wf1 = p["wf1"].reshape(256, 64, 7, 7)                 # (out, co, ho, wo)
    wf1 = jnp.transpose(wf1, (2, 1, 3, 0)).reshape(7 * 64 * 7, 256)      # (3136, 256)
    prep["wf1"] = wf1
    prep["bf1"] = p["bf1"].reshape(1, 256)
    prep["wf2"] = p["wf2"].T                              # (256, 17)
    prep["bf2"] = p["bf2"].reshape(1, 17)
    return prep


# ---------------- forward ----------------

def cnn_b_forward(x_nchw, prep):
    N = x_nchw.shape[0]

    # ---- stage 1: conv1+bn1+relu+pool ----
    x = x_nchw.reshape(N, 28, 28)                          # Cin = 1
    xp = jnp.pad(x, ((0, 0), (1, 1), (1, 1)))              # (N, 30, 30), lane = w
    h1 = conv_bn_relu_pool(xp[:, 0::2, :], xp[:, 1::2, :], prep["w1m"], prep["sh1"])
    # h1: (N, 14, 32*14), lane = co*14 + wo

    # ---- stage 2: conv2+bn2+relu+pool ----
    h1 = h1.reshape(N, 14, 32, 14)                         # (n, h, ci, w)
    xp2 = jnp.pad(h1, ((0, 0), (1, 1), (0, 0), (1, 1))).reshape(N, 16, 32 * 16)
    h2 = conv_bn_relu_pool(xp2[:, 0::2, :], xp2[:, 1::2, :], prep["w2m"], prep["sh2"])
    # h2: (N, 7, 64*7), flatten -> ho*448 + co*7 + wo (wf1 pre-permuted to match)

    flat = h2.reshape(N, 7 * 64 * 7)

    # ---- fc1 + relu + (dropout=identity) + fc2, fused ----
    return mlp(flat, prep["wf1"], prep["bf1"], prep["wf2"], prep["bf2"])


# ---------------- init & reference ----------------

def init_params(key):
    ks = jax.random.split(key, 18)
    n = lambda k, s: jax.random.normal(k, s, jnp.float32)
    p = {}
    p["w1"] = 0.1 * n(ks[0], (32, 1, 3, 3))
    p["b1"] = 0.1 * n(ks[1], (32,))
    p["g1"] = 1.0 + 0.1 * n(ks[2], (32,))
    p["be1"] = 0.1 * n(ks[3], (32,))
    p["rm1"] = 0.1 * n(ks[4], (32,))
    p["rv1"] = 1.0 + 0.1 * jnp.abs(n(ks[5], (32,)))
    p["w2"] = 0.05 * n(ks[6], (64, 32, 3, 3))
    p["b2"] = 0.1 * n(ks[7], (64,))
    p["g2"] = 1.0 + 0.1 * n(ks[8], (64,))
    p["be2"] = 0.1 * n(ks[9], (64,))
    p["rm2"] = 0.1 * n(ks[10], (64,))
    p["rv2"] = 1.0 + 0.1 * jnp.abs(n(ks[11], (64,)))
    p["wf1"] = 0.02 * n(ks[12], (256, 64 * 7 * 7))
    p["bf1"] = 0.1 * n(ks[13], (256,))
    p["wf2"] = 0.05 * n(ks[14], (17, 256))
    p["bf2"] = 0.1 * n(ks[15], (17,))
    return p


def reference_forward(x, p):
    """Plain-JAX (NCHW) reference reproducing the PyTorch forward (inference mode)."""
    hp = lax.Precision.HIGHEST

    def conv(x, w, b):
        y = lax.conv_general_dilated(x, w, (1, 1), ((1, 1), (1, 1)),
                                     dimension_numbers=("NCHW", "OIHW", "NCHW"),
                                     precision=hp)
        return y + b[None, :, None, None]

    def bn(x, g, be, rm, rv):
        return (g[None, :, None, None] * (x - rm[None, :, None, None])
                / jnp.sqrt(rv[None, :, None, None] + EPS) + be[None, :, None, None])

    def pool(x):
        return lax.reduce_window(x, -jnp.inf, lax.max, (1, 1, 2, 2), (1, 1, 2, 2), "VALID")

    y = pool(jnp.maximum(bn(conv(x, p["w1"], p["b1"]),
                            p["g1"], p["be1"], p["rm1"], p["rv1"]), 0.0))
    y = pool(jnp.maximum(bn(conv(y, p["w2"], p["b2"]),
                            p["g2"], p["be2"], p["rm2"], p["rv2"]), 0.0))
    y = y.reshape(x.shape[0], -1)
    y = jnp.maximum(jnp.dot(y, p["wf1"].T, precision=hp) + p["bf1"], 0.0)
    y = jnp.dot(y, p["wf2"].T, precision=hp) + p["bf2"]
    return y


if __name__ == "__main__":
    key = jax.random.PRNGKey(0)
    kx, kp = jax.random.split(key)
    params = init_params(kp)
    prep = prepare_params(params)   # one-time BN fold / weight restructuring
    # 28x28 input is implied by fc1 = Linear(64*7*7, 256) after two 2x2 pools.
    x = jax.random.normal(kx, (2, 1, 28, 28), jnp.float32)  # NCHW, like PyTorch

    fwd = jax.jit(cnn_b_forward)
    out = jax.block_until_ready(fwd(x, prep))

    assert out.shape == (2, 17) and out.dtype == jnp.float32
    assert bool(jnp.all(jnp.isfinite(out)))

    ref = reference_forward(x, params)
    assert jnp.allclose(out, ref, rtol=5e-2, atol=5e-2), (out, ref)

    print("KERNEL_OK")
</pallas_src>

<mosaic_0001>
module attributes {stable_mosaic.version = 11 : i64} {
  func.func @conv_bn_relu_pool_kernel(%arg0: i32, %arg1: memref<1x15x30xf32, #tpu.memory_space<vmem>>, %arg2: memref<1x15x30xf32, #tpu.memory_space<vmem>>, %arg3: memref<6x30x448xf32, #tpu.memory_space<vmem>>, %arg4: memref<1x448xf32, #tpu.memory_space<vmem>>, %arg5: memref<1x14x448xf32, #tpu.memory_space<vmem>>) attributes {dimension_semantics = [#tpu.dimension_semantics<parallel>], iteration_bounds = array<i64: 2>, scalar_prefetch = 0 : i64, scratch_operands = 0 : i64, tpu.core_type = #tpu.core_type<tc>, window_params = [{transform_indices = @transform_0, window_bounds = array<i64: 1, 15, 30>}, {transform_indices = @transform_1, window_bounds = array<i64: 1, 15, 30>}, {pipeline_mode = #tpu.pipeline_mode<synchronous>, transform_indices = @transform_2, window_bounds = array<i64: 6, 30, 448>}, {pipeline_mode = #tpu.pipeline_mode<synchronous>, transform_indices = @transform_3, window_bounds = array<i64: 1, 448>}, {transform_indices = @transform_4, window_bounds = array<i64: 1, 14, 448>}]} {
    %c0 = arith.constant 0 : index
    %c0_0 = arith.constant 0 : index
    %c0_1 = arith.constant 0 : index
    %0 = vector.load %arg1[%c0, %c0_0, %c0_1] : memref<1x15x30xf32, #tpu.memory_space<vmem>>, vector<1x14x30xf32>
    %1 = vector.shape_cast %0 : vector<1x14x30xf32> to vector<14x30xf32>
    %c0_2 = arith.constant 0 : index
    %c1 = arith.constant 1 : index
    %c0_3 = arith.constant 0 : index
    %2 = vector.load %arg1[%c0_2, %c1, %c0_3] : memref<1x15x30xf32, #tpu.memory_space<vmem>>, vector<1x14x30xf32>
    %3 = vector.shape_cast %2 : vector<1x14x30xf32> to vector<14x30xf32>
    %c0_4 = arith.constant 0 : index
    %c0_5 = arith.constant 0 : index
    %c0_6 = arith.constant 0 : index
    %4 = vector.load %arg2[%c0_4, %c0_5, %c0_6] : memref<1x15x30xf32, #tpu.memory_space<vmem>>, vector<1x14x30xf32>
    %5 = vector.shape_cast %4 : vector<1x14x30xf32> to vector<14x30xf32>
    %c0_7 = arith.constant 0 : index
    %c1_8 = arith.constant 1 : index
    %c0_9 = arith.constant 0 : index
    %6 = vector.load %arg2[%c0_7, %c1_8, %c0_9] : memref<1x15x30xf32, #tpu.memory_space<vmem>>, vector<1x14x30xf32>
    %7 = vector.shape_cast %6 : vector<1x14x30xf32> to vector<14x30xf32>
    %c0_10 = arith.constant 0 : index
    %c0_11 = arith.constant 0 : index
    %c0_12 = arith.constant 0 : index
    %8 = vector.load %arg3[%c0_10, %c0_11, %c0_12] : memref<6x30x448xf32, #tpu.memory_space<vmem>>, vector<1x30x448xf32>
    %9 = vector.shape_cast %8 : vector<1x30x448xf32> to vector<30x448xf32>
    %cst = arith.constant dense<0.000000e+00> : vector<14x448xf32>
    %10 = tpu.matmul %1, %9, %cst {dimension_numbers = #tpu.dot_dimension_numbers<[1], [0], [0], [1], [0, 0, 1, 1], [], []>} : vector<14x30xf32>, vector<30x448xf32>, vector<14x448xf32> -> vector<14x448xf32>
    %c1_13 = arith.constant 1 : index
    %c0_14 = arith.constant 0 : index
    %c0_15 = arith.constant 0 : index
    %11 = vector.load %arg3[%c1_13, %c0_14, %c0_15] : memref<6x30x448xf32, #tpu.memory_space<vmem>>, vector<1x30x448xf32>
    %12 = vector.shape_cast %11 : vector<1x30x448xf32> to vector<30x448xf32>
    %cst_16 = arith.constant dense<0.000000e+00> : vector<14x448xf32>
    %13 = tpu.matmul %5, %12, %cst_16 {dimension_numbers = #tpu.dot_dimension_numbers<[1], [0], [0], [1], [0, 0, 1, 1], [], []>} : vector<14x30xf32>, vector<30x448xf32>, vector<14x448xf32> -> vector<14x448xf32>
    %14 = arith.addf %10, %13 : vector<14x448xf32>
    %c2 = arith.constant 2 : index
    %c0_17 = arith.constant 0 : index
    %c0_18 = arith.constant 0 : index
    %15 = vector.load %arg3[%c2, %c0_17, %c0_18] : memref<6x30x448xf32, #tpu.memory_space<vmem>>, vector<1x30x448xf32>
    %16 = vector.shape_cast %15 : vector<1x30x448xf32> to vector<30x448xf32>
    %cst_19 = arith.constant dense<0.000000e+00> : vector<14x448xf32>
    %17 = tpu.matmul %3, %16, %cst_19 {dimension_numbers = #tpu.dot_dimension_numbers<[1], [0], [0], [1], [0, 0, 1, 1], [], []>} : vector<14x30xf32>, vector<30x448xf32>, vector<14x448xf32> -> vector<14x448xf32>
    %18 = arith.addf %14, %17 : vector<14x448xf32>
    %c3 = arith.constant 3 : index
    %c0_20 = arith.constant 0 : index
    %c0_21 = arith.constant 0 : index
    %19 = vector.load %arg3[%c3, %c0_20, %c0_21] : memref<6x30x448xf32, #tpu.memory_space<vmem>>, vector<1x30x448xf32>
    %20 = vector.shape_cast %19 : vector<1x30x448xf32> to vector<30x448xf32>
    %cst_22 = arith.constant dense<0.000000e+00> : vector<14x448xf32>
    %21 = tpu.matmul %1, %20, %cst_22 {dimension_numbers = #tpu.dot_dimension_numbers<[1], [0], [0], [1], [0, 0, 1, 1], [], []>} : vector<14x30xf32>, vector<30x448xf32>, vector<14x448xf32> -> vector<14x448xf32>
    %c4 = arith.constant 4 : index
    %c0_23 = arith.constant 0 : index
    %c0_24 = arith.constant 0 : index
    %22 = vector.load %arg3[%c4, %c0_23, %c0_24] : memref<6x30x448xf32, #tpu.memory_space<vmem>>, vector<1x30x448xf32>
    %23 = vector.shape_cast %22 : vector<1x30x448xf32> to vector<30x448xf32>
    %cst_25 = arith.constant dense<0.000000e+00> : vector<14x448xf32>
    %24 = tpu.matmul %5, %23, %cst_25 {dimension_numbers = #tpu.dot_dimension_numbers<[1], [0], [0], [1], [0, 0, 1, 1], [], []>} : vector<14x30xf32>, vector<30x448xf32>, vector<14x448xf32> -> vector<14x448xf32>
    %25 = arith.addf %21, %24 : vector<14x448xf32>
    %c5 = arith.constant 5 : index
    %c0_26 = arith.constant 0 : index
    %c0_27 = arith.constant 0 : index
    %26 = vector.load %arg3[%c5, %c0_26, %c0_27] : memref<6x30x448xf32, #tpu.memory_space<vmem>>, vector<1x30x448xf32>
    %27 = vector.shape_cast %26 : vector<1x30x448xf32> to vector<30x448xf32>
    %cst_28 = arith.constant dense<0.000000e+00> : vector<14x448xf32>
    %28 = tpu.matmul %3, %27, %cst_28 {dimension_numbers = #tpu.dot_dimension_numbers<[1], [0], [0], [1], [0, 0, 1, 1], [], []>} : vector<14x30xf32>, vector<30x448xf32>, vector<14x448xf32> -> vector<14x448xf32>
    %29 = arith.addf %25, %28 : vector<14x448xf32>
    %c0_29 = arith.constant 0 : index
    %c0_30 = arith.constant 0 : index
    %c0_31 = arith.constant 0 : index
    %30 = vector.load %arg3[%c0_29, %c0_30, %c0_31] : memref<6x30x448xf32, #tpu.memory_space<vmem>>, vector<1x30x448xf32>
    %31 = vector.shape_cast %30 : vector<1x30x448xf32> to vector<30x448xf32>
    %cst_32 = arith.constant dense<0.000000e+00> : vector<14x448xf32>
    %32 = tpu.matmul %5, %31, %cst_32 {dimension_numbers = #tpu.dot_dimension_numbers<[1], [0], [0], [1], [0, 0, 1, 1], [], []>} : vector<14x30xf32>, vector<30x448xf32>, vector<14x448xf32> -> vector<14x448xf32>
    %c1_33 = arith.constant 1 : index
    %c0_34 = arith.constant 0 : index
    %c0_35 = arith.constant 0 : index
    %33 = vector.load %arg3[%c1_33, %c0_34, %c0_35] : memref<6x30x448xf32, #tpu.memory_space<vmem>>, vector<1x30x448xf32>
    %34 = vector.shape_cast %33 : vector<1x30x448xf32> to vector<30x448xf32>
    %cst_36 = arith.constant dense<0.000000e+00> : vector<14x448xf32>
    %35 = tpu.matmul %3, %34, %cst_36 {dimension_numbers = #tpu.dot_dimension_numbers<[1], [0], [0], [1], [0, 0, 1, 1], [], []>} : vector<14x30xf32>, vector<30x448xf32>, vector<14x448xf32> -> vector<14x448xf32>
    %36 = arith.addf %32, %35 : vector<14x448xf32>
    %c2_37 = arith.constant 2 : index
    %c0_38 = arith.constant 0 : index
    %c0_39 = arith.constant 0 : index
    %37 = vector.load %arg3[%c2_37, %c0_38, %c0_39] : memref<6x30x448xf32, #tpu.memory_space<vmem>>, vector<1x30x448xf32>
    %38 = vector.shape_cast %37 : vector<1x30x448xf32> to vector<30x448xf32>
    %cst_40 = arith.constant dense<0.000000e+00> : vector<14x448xf32>
    %39 = tpu.matmul %7, %38, %cst_40 {dimension_numbers = #tpu.dot_dimension_numbers<[1], [0], [0], [1], [0, 0, 1, 1], [], []>} : vector<14x30xf32>, vector<30x448xf32>, vector<14x448xf32> -> vector<14x448xf32>
    %40 = arith.addf %36, %39 : vector<14x448xf32>
    %c3_41 = arith.constant 3 : index
    %c0_42 = arith.constant 0 : index
    %c0_43 = arith.constant 0 : index
    %41 = vector.load %arg3[%c3_41, %c0_42, %c0_43] : memref<6x30x448xf32, #tpu.memory_space<vmem>>, vector<1x30x448xf32>
    %42 = vector.shape_cast %41 : vector<1x30x448xf32> to vector<30x448xf32>
    %cst_44 = arith.constant dense<0.000000e+00> : vector<14x448xf32>
    %43 = tpu.matmul %5, %42, %cst_44 {dimension_numbers = #tpu.dot_dimension_numbers<[1], [0], [0], [1], [0, 0, 1, 1], [], []>} : vector<14x30xf32>, vector<30x448xf32>, vector<14x448xf32> -> vector<14x448xf32>
    %c4_45 = arith.constant 4 : index
    %c0_46 = arith.constant 0 : index
    %c0_47 = arith.constant 0 : index
    %44 = vector.load %arg3[%c4_45, %c0_46, %c0_47] : memref<6x30x448xf32, #tpu.memory_space<vmem>>, vector<1x30x448xf32>
    %45 = vector.shape_cast %44 : vector<1x30x448xf32> to vector<30x448xf32>
    %cst_48 = arith.constant dense<0.000000e+00> : vector<14x448xf32>
    %46 = tpu.matmul %3, %45, %cst_48 {dimension_numbers = #tpu.dot_dimension_numbers<[1], [0], [0], [1], [0, 0, 1, 1], [], []>} : vector<14x30xf32>, vector<30x448xf32>, vector<14x448xf32> -> vector<14x448xf32>
    %47 = arith.addf %43, %46 : vector<14x448xf32>
    %c5_49 = arith.constant 5 : index
    %c0_50 = arith.constant 0 : index
    %c0_51 = arith.constant 0 : index
    %48 = vector.load %arg3[%c5_49, %c0_50, %c0_51] : memref<6x30x448xf32, #tpu.memory_space<vmem>>, vector<1x30x448xf32>
    %49 = vector.shape_cast %48 : vector<1x30x448xf32> to vector<30x448xf32>
    %cst_52 = arith.constant dense<0.000000e+00> : vector<14x448xf32>
    %50 = tpu.matmul %7, %49, %cst_52 {dimension_numbers = #tpu.dot_dimension_numbers<[1], [0], [0], [1], [0, 0, 1, 1], [], []>} : vector<14x30xf32>, vector<30x448xf32>, vector<14x448xf32> -> vector<14x448xf32>
    %51 = arith.addf %47, %50 : vector<14x448xf32>
    %52 = arith.maximumf %18, %29 : vector<14x448xf32>
    %53 = arith.maximumf %40, %51 : vector<14x448xf32>
    %54 = arith.maximumf %52, %53 : vector<14x448xf32>
    %c0_53 = arith.constant 0 : index
    %c0_54 = arith.constant 0 : index
    %55 = vector.load %arg4[%c0_53, %c0_54] : memref<1x448xf32, #tpu.memory_space<vmem>>, vector<1x448xf32>
    %56 = vector.broadcast %55 : vector<1x448xf32> to vector<14x448xf32>
    %57 = arith.addf %54, %56 : vector<14x448xf32>
    %cst_55 = arith.constant 0.000000e+00 : f32
    %58 = vector.broadcast %cst_55 : f32 to vector<14x448xf32>
    %59 = arith.maximumf %57, %58 : vector<14x448xf32>
    %c0_56 = arith.constant 0 : index
    %c0_57 = arith.constant 0 : index
    %c0_58 = arith.constant 0 : index
    %60 = vector.load %arg5[%c0_56, %c0_57, %c0_58] : memref<1x14x448xf32, #tpu.memory_space<vmem>>, vector<1x14x448xf32>
    %61 = vector.shape_cast %60 : vector<1x14x448xf32> to vector<14x448xf32>
    %62 = vector.shape_cast %59 : vector<14x448xf32> to vector<1x14x448xf32>
    tpu.vector_store %arg5[%c0_56, %c0_57, %c0_58], %62 {strides = array<i32>} : memref<1x14x448xf32, #tpu.memory_space<vmem>>, vector<1x14x448xf32>,
    return
  }
  func.func @transform_0(%arg0: i32) -> (i32, i32, i32) {
    %c0_i32 = arith.constant 0 : i32
    %c0_i32_0 = arith.constant 0 : i32
    %c0_i32_1 = arith.constant 0 : i32
    return %arg0, %c0_i32, %c0_i32_0 : i32, i32, i32
  }
  func.func @transform_1(%arg0: i32) -> (i32, i32, i32) {
    %c0_i32 = arith.constant 0 : i32
    %c0_i32_0 = arith.constant 0 : i32
    %c0_i32_1 = arith.constant 0 : i32
    return %arg0, %c0_i32, %c0_i32_0 : i32, i32, i32
  }
  func.func @transform_2(%arg0: i32) -> (i32, i32, i32) {
    %c0_i32 = arith.constant 0 : i32
    %c0_i32_0 = arith.constant 0 : i32
    %c0_i32_1 = arith.constant 0 : i32
    %c0_i32_2 = arith.constant 0 : i32
    return %c0_i32, %c0_i32_0, %c0_i32_1 : i32, i32, i32
  }
  func.func @transform_3(%arg0: i32) -> (i32, i32) {
    %c0_i32 = arith.constant 0 : i32
    %c0_i32_0 = arith.constant 0 : i32
    %c0_i32_1 = arith.constant 0 : i32
    return %c0_i32, %c0_i32_0 : i32, i32
  }
  func.func @transform_4(%arg0: i32) -> (i32, i32, i32) {
    %c0_i32 = arith.constant 0 : i32
    %c0_i32_0 = arith.constant 0 : i32
    %c0_i32_1 = arith.constant 0 : i32
    return %arg0, %c0_i32, %c0_i32_0 : i32, i32, i32
  }
}

module attributes {stable_mosaic.version = 11 : i64} {
  func.func @conv_bn_relu_pool_kernel(%arg0: i32, %arg1: memref<1x8x512xf32, #tpu.memory_space<vmem>>, %arg2: memref<1x8x512xf32, #tpu.memory_space<vmem>>, %arg3: memref<6x512x448xf32, #tpu.memory_space<vmem>>, %arg4: memref<1x448xf32, #tpu.memory_space<vmem>>, %arg5: memref<1x7x448xf32, #tpu.memory_space<vmem>>) attributes {dimension_semantics = [#tpu.dimension_semantics<parallel>], iteration_bounds = array<i64: 2>, scalar_prefetch = 0 : i64, scratch_operands = 0 : i64, tpu.core_type = #tpu.core_type<tc>, window_params = [{transform_indices = @transform_0, window_bounds = array<i64: 1, 8, 512>}, {transform_indices = @transform_1, window_bounds = array<i64: 1, 8, 512>}, {pipeline_mode = #tpu.pipeline_mode<synchronous>, transform_indices = @transform_2, window_bounds = array<i64: 6, 512, 448>}, {pipeline_mode = #tpu.pipeline_mode<synchronous>, transform_indices = @transform_3, window_bounds = array<i64: 1, 448>}, {transform_indices = @transform_4, window_bounds = array<i64: 1, 7, 448>}]} {
    %c0 = arith.constant 0 : index
    %c0_0 = arith.constant 0 : index
    %c0_1 = arith.constant 0 : index
    %0 = vector.load %arg1[%c0, %c0_0, %c0_1] : memref<1x8x512xf32, #tpu.memory_space<vmem>>, vector<1x7x512xf32>
    %1 = vector.shape_cast %0 : vector<1x7x512xf32> to vector<7x512xf32>
    %c0_2 = arith.constant 0 : index
    %c1 = arith.constant 1 : index
    %c0_3 = arith.constant 0 : index
    %2 = vector.load %arg1[%c0_2, %c1, %c0_3] : memref<1x8x512xf32, #tpu.memory_space<vmem>>, vector<1x7x512xf32>
    %3 = vector.shape_cast %2 : vector<1x7x512xf32> to vector<7x512xf32>
    %c0_4 = arith.constant 0 : index
    %c0_5 = arith.constant 0 : index
    %c0_6 = arith.constant 0 : index
    %4 = vector.load %arg2[%c0_4, %c0_5, %c0_6] : memref<1x8x512xf32, #tpu.memory_space<vmem>>, vector<1x7x512xf32>
    %5 = vector.shape_cast %4 : vector<1x7x512xf32> to vector<7x512xf32>
    %c0_7 = arith.constant 0 : index
    %c1_8 = arith.constant 1 : index
    %c0_9 = arith.constant 0 : index
    %6 = vector.load %arg2[%c0_7, %c1_8, %c0_9] : memref<1x8x512xf32, #tpu.memory_space<vmem>>, vector<1x7x512xf32>
    %7 = vector.shape_cast %6 : vector<1x7x512xf32> to vector<7x512xf32>
    %c0_10 = arith.constant 0 : index
    %c0_11 = arith.constant 0 : index
    %c0_12 = arith.constant 0 : index
    %8 = vector.load %arg3[%c0_10, %c0_11, %c0_12] : memref<6x512x448xf32, #tpu.memory_space<vmem>>, vector<1x512x448xf32>
    %9 = vector.shape_cast %8 : vector<1x512x448xf32> to vector<512x448xf32>
    %cst = arith.constant dense<0.000000e+00> : vector<7x448xf32>
    %10 = tpu.matmul %1, %9, %cst {dimension_numbers = #tpu.dot_dimension_numbers<[1], [0], [0], [1], [0, 0, 1, 1], [], []>} : vector<7x512xf32>, vector<512x448xf32>, vector<7x448xf32> -> vector<7x448xf32>
    %c1_13 = arith.constant 1 : index
    %c0_14 = arith.constant 0 : index
    %c0_15 = arith.constant 0 : index
    %11 = vector.load %arg3[%c1_13, %c0_14, %c0_15] : memref<6x512x448xf32, #tpu.memory_space<vmem>>, vector<1x512x448xf32>
    %12 = vector.shape_cast %11 : vector<1x512x448xf32> to vector<512x448xf32>
    %cst_16 = arith.constant dense<0.000000e+00> : vector<7x448xf32>
    %13 = tpu.matmul %5, %12, %cst_16 {dimension_numbers = #tpu.dot_dimension_numbers<[1], [0], [0], [1], [0, 0, 1, 1], [], []>} : vector<7x512xf32>, vector<512x448xf32>, vector<7x448xf32> -> vector<7x448xf32>
    %14 = arith.addf %10, %13 : vector<7x448xf32>
    %c2 = arith.constant 2 : index
    %c0_17 = arith.constant 0 : index
    %c0_18 = arith.constant 0 : index
    %15 = vector.load %arg3[%c2, %c0_17, %c0_18] : memref<6x512x448xf32, #tpu.memory_space<vmem>>, vector<1x512x448xf32>
    %16 = vector.shape_cast %15 : vector<1x512x448xf32> to vector<512x448xf32>
    %cst_19 = arith.constant dense<0.000000e+00> : vector<7x448xf32>
    %17 = tpu.matmul %3, %16, %cst_19 {dimension_numbers = #tpu.dot_dimension_numbers<[1], [0], [0], [1], [0, 0, 1, 1], [], []>} : vector<7x512xf32>, vector<512x448xf32>, vector<7x448xf32> -> vector<7x448xf32>
    %18 = arith.addf %14, %17 : vector<7x448xf32>
    %c3 = arith.constant 3 : index
    %c0_20 = arith.constant 0 : index
    %c0_21 = arith.constant 0 : index
    %19 = vector.load %arg3[%c3, %c0_20, %c0_21] : memref<6x512x448xf32, #tpu.memory_space<vmem>>, vector<1x512x448xf32>
    %20 = vector.shape_cast %19 : vector<1x512x448xf32> to vector<512x448xf32>
    %cst_22 = arith.constant dense<0.000000e+00> : vector<7x448xf32>
    %21 = tpu.matmul %1, %20, %cst_22 {dimension_numbers = #tpu.dot_dimension_numbers<[1], [0], [0], [1], [0, 0, 1, 1], [], []>} : vector<7x512xf32>, vector<512x448xf32>, vector<7x448xf32> -> vector<7x448xf32>
    %c4 = arith.constant 4 : index
    %c0_23 = arith.constant 0 : index
    %c0_24 = arith.constant 0 : index
    %22 = vector.load %arg3[%c4, %c0_23, %c0_24] : memref<6x512x448xf32, #tpu.memory_space<vmem>>, vector<1x512x448xf32>
    %23 = vector.shape_cast %22 : vector<1x512x448xf32> to vector<512x448xf32>
    %cst_25 = arith.constant dense<0.000000e+00> : vector<7x448xf32>
    %24 = tpu.matmul %5, %23, %cst_25 {dimension_numbers = #tpu.dot_dimension_numbers<[1], [0], [0], [1], [0, 0, 1, 1], [], []>} : vector<7x512xf32>, vector<512x448xf32>, vector<7x448xf32> -> vector<7x448xf32>
    %25 = arith.addf %21, %24 : vector<7x448xf32>
    %c5 = arith.constant 5 : index
    %c0_26 = arith.constant 0 : index
    %c0_27 = arith.constant 0 : index
    %26 = vector.load %arg3[%c5, %c0_26, %c0_27] : memref<6x512x448xf32, #tpu.memory_space<vmem>>, vector<1x512x448xf32>
    %27 = vector.shape_cast %26 : vector<1x512x448xf32> to vector<512x448xf32>
    %cst_28 = arith.constant dense<0.000000e+00> : vector<7x448xf32>
    %28 = tpu.matmul %3, %27, %cst_28 {dimension_numbers = #tpu.dot_dimension_numbers<[1], [0], [0], [1], [0, 0, 1, 1], [], []>} : vector<7x512xf32>, vector<512x448xf32>, vector<7x448xf32> -> vector<7x448xf32>
    %29 = arith.addf %25, %28 : vector<7x448xf32>
    %c0_29 = arith.constant 0 : index
    %c0_30 = arith.constant 0 : index
    %c0_31 = arith.constant 0 : index
    %30 = vector.load %arg3[%c0_29, %c0_30, %c0_31] : memref<6x512x448xf32, #tpu.memory_space<vmem>>, vector<1x512x448xf32>
    %31 = vector.shape_cast %30 : vector<1x512x448xf32> to vector<512x448xf32>
    %cst_32 = arith.constant dense<0.000000e+00> : vector<7x448xf32>
    %32 = tpu.matmul %5, %31, %cst_32 {dimension_numbers = #tpu.dot_dimension_numbers<[1], [0], [0], [1], [0, 0, 1, 1], [], []>} : vector<7x512xf32>, vector<512x448xf32>, vector<7x448xf32> -> vector<7x448xf32>
    %c1_33 = arith.constant 1 : index
    %c0_34 = arith.constant 0 : index
    %c0_35 = arith.constant 0 : index
    %33 = vector.load %arg3[%c1_33, %c0_34, %c0_35] : memref<6x512x448xf32, #tpu.memory_space<vmem>>, vector<1x512x448xf32>
    %34 = vector.shape_cast %33 : vector<1x512x448xf32> to vector<512x448xf32>
    %cst_36 = arith.constant dense<0.000000e+00> : vector<7x448xf32>
    %35 = tpu.matmul %3, %34, %cst_36 {dimension_numbers = #tpu.dot_dimension_numbers<[1], [0], [0], [1], [0, 0, 1, 1], [], []>} : vector<7x512xf32>, vector<512x448xf32>, vector<7x448xf32> -> vector<7x448xf32>
    %36 = arith.addf %32, %35 : vector<7x448xf32>
    %c2_37 = arith.constant 2 : index
    %c0_38 = arith.constant 0 : index
    %c0_39 = arith.constant 0 : index
    %37 = vector.load %arg3[%c2_37, %c0_38, %c0_39] : memref<6x512x448xf32, #tpu.memory_space<vmem>>, vector<1x512x448xf32>
    %38 = vector.shape_cast %37 : vector<1x512x448xf32> to vector<512x448xf32>
    %cst_40 = arith.constant dense<0.000000e+00> : vector<7x448xf32>
    %39 = tpu.matmul %7, %38, %cst_40 {dimension_numbers = #tpu.dot_dimension_numbers<[1], [0], [0], [1], [0, 0, 1, 1], [], []>} : vector<7x512xf32>, vector<512x448xf32>, vector<7x448xf32> -> vector<7x448xf32>
    %40 = arith.addf %36, %39 : vector<7x448xf32>
    %c3_41 = arith.constant 3 : index
    %c0_42 = arith.constant 0 : index
    %c0_43 = arith.constant 0 : index
    %41 = vector.load %arg3[%c3_41, %c0_42, %c0_43] : memref<6x512x448xf32, #tpu.memory_space<vmem>>, vector<1x512x448xf32>
    %42 = vector.shape_cast %41 : vector<1x512x448xf32> to vector<512x448xf32>
    %cst_44 = arith.constant dense<0.000000e+00> : vector<7x448xf32>
    %43 = tpu.matmul %5, %42, %cst_44 {dimension_numbers = #tpu.dot_dimension_numbers<[1], [0], [0], [1], [0, 0, 1, 1], [], []>} : vector<7x512xf32>, vector<512x448xf32>, vector<7x448xf32> -> vector<7x448xf32>
    %c4_45 = arith.constant 4 : index
    %c0_46 = arith.constant 0 : index
    %c0_47 = arith.constant 0 : index
    %44 = vector.load %arg3[%c4_45, %c0_46, %c0_47] : memref<6x512x448xf32, #tpu.memory_space<vmem>>, vector<1x512x448xf32>
    %45 = vector.shape_cast %44 : vector<1x512x448xf32> to vector<512x448xf32>
    %cst_48 = arith.constant dense<0.000000e+00> : vector<7x448xf32>
    %46 = tpu.matmul %3, %45, %cst_48 {dimension_numbers = #tpu.dot_dimension_numbers<[1], [0], [0], [1], [0, 0, 1, 1], [], []>} : vector<7x512xf32>, vector<512x448xf32>, vector<7x448xf32> -> vector<7x448xf32>
    %47 = arith.addf %43, %46 : vector<7x448xf32>
    %c5_49 = arith.constant 5 : index
    %c0_50 = arith.constant 0 : index
    %c0_51 = arith.constant 0 : index
    %48 = vector.load %arg3[%c5_49, %c0_50, %c0_51] : memref<6x512x448xf32, #tpu.memory_space<vmem>>, vector<1x512x448xf32>
    %49 = vector.shape_cast %48 : vector<1x512x448xf32> to vector<512x448xf32>
    %cst_52 = arith.constant dense<0.000000e+00> : vector<7x448xf32>
    %50 = tpu.matmul %7, %49, %cst_52 {dimension_numbers = #tpu.dot_dimension_numbers<[1], [0], [0], [1], [0, 0, 1, 1], [], []>} : vector<7x512xf32>, vector<512x448xf32>, vector<7x448xf32> -> vector<7x448xf32>
    %51 = arith.addf %47, %50 : vector<7x448xf32>
    %52 = arith.maximumf %18, %29 : vector<7x448xf32>
    %53 = arith.maximumf %40, %51 : vector<7x448xf32>
    %54 = arith.maximumf %52, %53 : vector<7x448xf32>
    %c0_53 = arith.constant 0 : index
    %c0_54 = arith.constant 0 : index
    %55 = vector.load %arg4[%c0_53, %c0_54] : memref<1x448xf32, #tpu.memory_space<vmem>>, vector<1x448xf32>
    %56 = vector.broadcast %55 : vector<1x448xf32> to vector<7x448xf32>
    %57 = arith.addf %54, %56 : vector<7x448xf32>
    %cst_55 = arith.constant 0.000000e+00 : f32
    %58 = vector.broadcast %cst_55 : f32 to vector<7x448xf32>
    %59 = arith.maximumf %57, %58 : vector<7x448xf32>
    %c0_56 = arith.constant 0 : index
    %c0_57 = arith.constant 0 : index
    %c0_58 = arith.constant 0 : index
    %60 = vector.load %arg5[%c0_56, %c0_57, %c0_58] : memref<1x7x448xf32, #tpu.memory_space<vmem>>, vector<1x7x448xf32>
    %61 = vector.shape_cast %60 : vector<1x7x448xf32> to vector<7x448xf32>
    %62 = vector.shape_cast %59 : vector<7x448xf32> to vector<1x7x448xf32>
    tpu.vector_store %arg5[%c0_56, %c0_57, %c0_58], %62 {strides = array<i32>} : memref<1x7x448xf32, #tpu.memory_space<vmem>>, vector<1x7x448xf32>,
    return
  }
  func.func @transform_0(%arg0: i32) -> (i32, i32, i32) {
    %c0_i32 = arith.constant 0 : i32
    %c0_i32_0 = arith.constant 0 : i32
    %c0_i32_1 = arith.constant 0 : i32
    return %arg0, %c0_i32, %c0_i32_0 : i32, i32, i32
  }
  func.func @transform_1(%arg0: i32) -> (i32, i32, i32) {
    %c0_i32 = arith.constant 0 : i32
    %c0_i32_0 = arith.constant 0 : i32
    %c0_i32_1 = arith.constant 0 : i32
    return %arg0, %c0_i32, %c0_i32_0 : i32, i32, i32
  }
  func.func @transform_2(%arg0: i32) -> (i32, i32, i32) {
    %c0_i32 = arith.constant 0 : i32
    %c0_i32_0 = arith.constant 0 : i32
    %c0_i32_1 = arith.constant 0 : i32
    %c0_i32_2 = arith.constant 0 : i32
    return %c0_i32, %c0_i32_0, %c0_i32_1 : i32, i32, i32
  }
  func.func @transform_3(%arg0: i32) -> (i32, i32) {
    %c0_i32 = arith.constant 0 : i32
    %c0_i32_0 = arith.constant 0 : i32
    %c0_i32_1 = arith.constant 0 : i32
    return %c0_i32, %c0_i32_0 : i32, i32
  }
  func.func @transform_4(%arg0: i32) -> (i32, i32, i32) {
    %c0_i32 = arith.constant 0 : i32
    %c0_i32_0 = arith.constant 0 : i32
    %c0_i32_1 = arith.constant 0 : i32
    return %arg0, %c0_i32, %c0_i32_0 : i32, i32, i32
  }
}

module attributes {stable_mosaic.version = 11 : i64} {
  func.func @mlp_kernel(%arg0: i32, %arg1: memref<2x3136xf32, #tpu.memory_space<vmem>>, %arg2: memref<3136x256xf32, #tpu.memory_space<vmem>>, %arg3: memref<1x256xf32, #tpu.memory_space<vmem>>, %arg4: memref<256x17xf32, #tpu.memory_space<vmem>>, %arg5: memref<1x17xf32, #tpu.memory_space<vmem>>, %arg6: memref<2x17xf32, #tpu.memory_space<vmem>>) attributes {dimension_semantics = [#tpu.dimension_semantics<parallel>], iteration_bounds = array<i64: 1>, scalar_prefetch = 0 : i64, scratch_operands = 0 : i64, tpu.core_type = #tpu.core_type<tc>, window_params = [{transform_indices = @transform_0, window_bounds = array<i64: 2, 3136>}, {pipeline_mode = #tpu.pipeline_mode<synchronous>, transform_indices = @transform_1, window_bounds = array<i64: 3136, 256>}, {pipeline_mode = #tpu.pipeline_mode<synchronous>, transform_indices = @transform_2, window_bounds = array<i64: 1, 256>}, {pipeline_mode = #tpu.pipeline_mode<synchronous>, transform_indices = @transform_3, window_bounds = array<i64: 256, 17>}, {pipeline_mode = #tpu.pipeline_mode<synchronous>, transform_indices = @transform_4, window_bounds = array<i64: 1, 17>}, {transform_indices = @transform_5, window_bounds = array<i64: 2, 17>}]} {
    %c0 = arith.constant 0 : index
    %c0_0 = arith.constant 0 : index
    %0 = vector.load %arg1[%c0, %c0_0] : memref<2x3136xf32, #tpu.memory_space<vmem>>, vector<2x3136xf32>
    %c0_1 = arith.constant 0 : index
    %c0_2 = arith.constant 0 : index
    %1 = vector.load %arg2[%c0_1, %c0_2] : memref<3136x256xf32, #tpu.memory_space<vmem>>, vector<3136x256xf32>
    %cst = arith.constant dense<0.000000e+00> : vector<2x256xf32>
    %2 = tpu.matmul %0, %1, %cst {dimension_numbers = #tpu.dot_dimension_numbers<[1], [0], [0], [1], [0, 0, 1, 1], [], []>} : vector<2x3136xf32>, vector<3136x256xf32>, vector<2x256xf32> -> vector<2x256xf32>
    %c0_3 = arith.constant 0 : index
    %c0_4 = arith.constant 0 : index
    %3 = vector.load %arg3[%c0_3, %c0_4] : memref<1x256xf32, #tpu.memory_space<vmem>>, vector<1x256xf32>
    %4 = vector.broadcast %3 : vector<1x256xf32> to vector<2x256xf32>
    %5 = arith.addf %2, %4 : vector<2x256xf32>
    %cst_5 = arith.constant 0.000000e+00 : f32
    %6 = vector.broadcast %cst_5 : f32 to vector<2x256xf32>
    %7 = arith.maximumf %5, %6 : vector<2x256xf32>
    %c0_6 = arith.constant 0 : index
    %c0_7 = arith.constant 0 : index
    %8 = vector.load %arg4[%c0_6, %c0_7] : memref<256x17xf32, #tpu.memory_space<vmem>>, vector<256x17xf32>
    %cst_8 = arith.constant dense<0.000000e+00> : vector<2x17xf32>
    %9 = tpu.matmul %7, %8, %cst_8 {dimension_numbers = #tpu.dot_dimension_numbers<[1], [0], [0], [1], [0, 0, 1, 1], [], []>} : vector<2x256xf32>, vector<256x17xf32>, vector<2x17xf32> -> vector<2x17xf32>
    %c0_9 = arith.constant 0 : index
    %c0_10 = arith.constant 0 : index
    %10 = vector.load %arg5[%c0_9, %c0_10] : memref<1x17xf32, #tpu.memory_space<vmem>>, vector<1x17xf32>
    %11 = vector.broadcast %10 : vector<1x17xf32> to vector<2x17xf32>
    %12 = arith.addf %9, %11 : vector<2x17xf32>
    %c0_11 = arith.constant 0 : index
    %c0_12 = arith.constant 0 : index
    %13 = vector.load %arg6[%c0_11, %c0_12] : memref<2x17xf32, #tpu.memory_space<vmem>>, vector<2x17xf32>
    tpu.vector_store %arg6[%c0_11, %c0_12], %12 {strides = array<i32>} : memref<2x17xf32, #tpu.memory_space<vmem>>, vector<2x17xf32>,
    return
  }
  func.func @transform_0(%arg0: i32) -> (i32, i32) {
    %c0_i32 = arith.constant 0 : i32
    %c0_i32_0 = arith.constant 0 : i32
    return %arg0, %c0_i32 : i32, i32
  }
  func.func @transform_1(%arg0: i32) -> (i32, i32) {
    %c0_i32 = arith.constant 0 : i32
    %c0_i32_0 = arith.constant 0 : i32
    %c0_i32_1 = arith.constant 0 : i32
    return %c0_i32, %c0_i32_0 : i32, i32
  }
  func.func @transform_2(%arg0: i32) -> (i32, i32) {
    %c0_i32 = arith.constant 0 : i32
    %c0_i32_0 = arith.constant 0 : i32
    %c0_i32_1 = arith.constant 0 : i32
    return %c0_i32, %c0_i32_0 : i32, i32
  }
  func.func @transform_3(%arg0: i32) -> (i32, i32) {
    %c0_i32 = arith.constant 0 : i32
    %c0_i32_0 = arith.constant 0 : i32
    %c0_i32_1 = arith.constant 0 : i32
    return %c0_i32, %c0_i32_0 : i32, i32
  }
  func.func @transform_4(%arg0: i32) -> (i32, i32) {
    %c0_i32 = arith.constant 0 : i32
    %c0_i32_0 = arith.constant 0 : i32
    %c0_i32_1 = arith.constant 0 : i32
    return %c0_i32, %c0_i32_0 : i32, i32
  }
  func.func @transform_5(%arg0: i32) -> (i32, i32) {
    %c0_i32 = arith.constant 0 : i32
    %c0_i32_0 = arith.constant 0 : i32
    return %arg0, %c0_i32 : i32, i32
  }
}

</mosaic_0001>

<llo_original>
// kernel: cnn_b_forward.3
$region0: #{cnn_b_forward.3}
  #allocation0 [shape = 'u32[]', space=smem, size = 0x4, offset = 0x4, fixed_abs, tag = 'smem constant byte address 0x4 - core index']
  #allocation1 [shape = 'u32[144,128]{1,0:T(1,128)}', space=vmem, size = 0x12000, scoped, tag = 'internal scratch']
  %s0 = inlined_call_operand.vmem [shape: f32[2,15,30], index: 0, kind: input, shape index: {}]
  %s1 = inlined_call_operand.vmem [shape: f32[2,15,30], index: 1, kind: input, shape index: {}]
  %s2 = inlined_call_operand.hbm [shape: f32[6,30,448], index: 2, kind: input, shape index: {}]
  %s3 = inlined_call_operand.hbm [shape: f32[1,448], index: 3, kind: input, shape index: {}]
  %s4 = inlined_call_operand.vmem [shape: f32[2,14,448], index: 4, kind: output, shape index: {}]
  %s5 = sld [smem:[#allocation0]]
  $region57: #{cnn_b_forward.3} parent=0
    _
  %s7 = ssub.s32 1, %s5
  %s8 = scalar_select 0, %s7, %s5
  $region1: #{cnn_b_forward.3} parent=0
    #allocation2 [shape = 'u8[393216]{0}', space=vmem, size = 0x60000, scoped, tag = 'input window, operand 2, single buffered']
    #allocation3 [shape = 's32[2]{0}', space=sflag, size = 0x8, scoped, tag = 'scoped memory for cnn_b_forward.3']
    #allocation4 [shape = 'u8[2048]{0}', space=vmem, size = 0x800, scoped, tag = 'input window, operand 3, single buffered']
    #allocation5 [shape = 's32[1]{0}', space=sflag, size = 0x4, scoped, tag = 'scoped memory for cnn_b_forward.3']
    %9 = vsyncpa [#allocation3], 0
    %10 = vsyncpa [#allocation5], 0
    loop: start=0, step=1, limit=4
    $region2: #{cnn_b_forward.3} parent=1 // loop_pre_header
      _
    $region3: #{cnn_b_forward.3} parent=1 // loop_header
      %s12 = sphi 0, %s16
      %p13 = scmp.ge.s32.totalorder %s12, 4
      %s22 = sphi 0, %s24
      %s25 = sphi 0, %s22
      %s26 = sphi 0, %s25
      %s42 = sphi 0, %s26
      %s48 = sphi 0, %s50
      %s51 = sphi 0, %s48
      %s52 = sphi 0, %s51
      %s68 = sphi 0, %s52
      %s72 = sphi 0, %s72
      %s74 = sphi 0, %s72
      %s75 = sphi 0, %s74
      %s89 = sphi 0, %s75
      %s93 = sphi 0, %s93
      %s95 = sphi 0, %s93
      %s96 = sphi 0, %s95
      %s110 = sphi 0, %s96
      %s116 = sphi 0, %s118
      %s119 = sphi 0, %s116
      %s120 = sphi 0, %s119
      %s136 = sphi 0, %s120
    $region4: #{cnn_b_forward.3} parent=1 // loop_header_branch
      %15 = sbr.rel (%p13) target = $region8
    $region5: #{cnn_b_forward.3} parent=1 // loop_body
      %s17 = ssub.s32 %s12, 1
      %s18 = ssub.s32 %s12, 2
      %s19 = sadd.s32 %s12, 1
      %s20 = ssub.s32 %s12, %s19
      %p21 = scmp.eq.s32.totalorder %s20, 0
      %s23 = sadd.s32 %s22, 1
      %s24 = scalar_select %p21, %s22, %s23
      %p27 = pneg %p21
      %p28 = scmp.eq.s32.totalorder %s12, 1
      %p29 = por %p27, %p28
      %p30 = scmp.ne.s32.totalorder %s22, %s25
      %p31 = scmp.eq.s32.totalorder %s12, 0
      %p32 = por %p30, %p31
      %p33 = scmp.ne.s32.totalorder %s22, %s25
      %p34 = scmp.eq.s32.totalorder %s17, 1
      %p35 = por %p33, %p34
      %p36 = scmp.ne.s32.totalorder %s25, %s26
      %p37 = scmp.eq.s32.totalorder %s17, 0
      %p38 = por %p36, %p37
      %p39 = scmp.ne.s32.totalorder %s25, %s26
      %p40 = scmp.eq.s32.totalorder %s18, 1
      %p41 = por %p39, %p40
      %p43 = scmp.ne.s32.totalorder %s26, %s42
      %p44 = scmp.eq.s32.totalorder %s18, 0
      %p45 = por %p43, %p44
      %s46 = ssub.s32 %s12, %s19
      %p47 = scmp.eq.s32.totalorder %s46, 0
      %s49 = sadd.s32 %s48, 1
      %s50 = scalar_select %p47, %s48, %s49
      %p53 = pneg %p47
      %p54 = scmp.eq.s32.totalorder %s12, 1
      %p55 = por %p53, %p54
      %p56 = scmp.ne.s32.totalorder %s48, %s51
      %p57 = scmp.eq.s32.totalorder %s12, 0
      %p58 = por %p56, %p57
      %p59 = scmp.ne.s32.totalorder %s48, %s51
      %p60 = scmp.eq.s32.totalorder %s17, 1
      %p61 = por %p59, %p60
      %p62 = scmp.ne.s32.totalorder %s51, %s52
      %p63 = scmp.eq.s32.totalorder %s17, 0
      %p64 = por %p62, %p63
      %p65 = scmp.ne.s32.totalorder %s51, %s52
      %p66 = scmp.eq.s32.totalorder %s18, 1
      %p67 = por %p65, %p66
      %p69 = scmp.ne.s32.totalorder %s52, %s68
      %p70 = scmp.eq.s32.totalorder %s18, 0
      %p71 = por %p69, %p70
      %s73 = sadd.s32 %s72, 1
      %p76 = scmp.eq.s32.totalorder %s12, 1
      %p77 = scmp.ne.s32.totalorder %s72, %s74
      %p78 = scmp.eq.s32.totalorder %s12, 0
      %p79 = por %p77, %p78
      %p80 = scmp.ne.s32.totalorder %s72, %s74
      %p81 = scmp.eq.s32.totalorder %s17, 1
      %p82 = por %p80, %p81
      %p83 = scmp.ne.s32.totalorder %s74, %s75
      %p84 = scmp.eq.s32.totalorder %s17, 0
      %p85 = por %p83, %p84
      %p86 = scmp.ne.s32.totalorder %s74, %s75
      %p87 = scmp.eq.s32.totalorder %s18, 1
      %p88 = por %p86, %p87
      %p90 = scmp.ne.s32.totalorder %s75, %s89
      %p91 = scmp.eq.s32.totalorder %s18, 0
      %p92 = por %p90, %p91
      %s94 = sadd.s32 %s93, 1
      %p97 = scmp.eq.s32.totalorder %s12, 1
      %p98 = scmp.ne.s32.totalorder %s93, %s95
      %p99 = scmp.eq.s32.totalorder %s12, 0
      %p100 = por %p98, %p99
      %p101 = scmp.ne.s32.totalorder %s93, %s95
      %p102 = scmp.eq.s32.totalorder %s17, 1
      %p103 = por %p101, %p102
      %p104 = scmp.ne.s32.totalorder %s95, %s96
      %p105 = scmp.eq.s32.totalorder %s17, 0
      %p106 = por %p104, %p105
      %p107 = scmp.ne.s32.totalorder %s95, %s96
      %p108 = scmp.eq.s32.totalorder %s18, 1
      %p109 = por %p107, %p108
      %p111 = scmp.ne.s32.totalorder %s96, %s110
      %p112 = scmp.eq.s32.totalorder %s18, 0
      %p113 = por %p111, %p112
      %s114 = ssub.s32 %s12, %s19
      %p115 = scmp.eq.s32.totalorder %s114, 0
      %s117 = sadd.s32 %s116, 1
      %s118 = scalar_select %p115, %s116, %s117
      %p121 = pneg %p115
      %p122 = scmp.eq.s32.totalorder %s12, 1
      %p123 = por %p121, %p122
      %p124 = scmp.ne.s32.totalorder %s116, %s119
      %p125 = scmp.eq.s32.totalorder %s12, 0
      %p126 = por %p124, %p125
      %p127 = scmp.ne.s32.totalorder %s116, %s119
      %p128 = scmp.eq.s32.totalorder %s17, 1
      %p129 = por %p127, %p128
      %p130 = scmp.ne.s32.totalorder %s119, %s120
      %p131 = scmp.eq.s32.totalorder %s17, 0
      %p132 = por %p130, %p131
      %p133 = scmp.ne.s32.totalorder %s119, %s120
      %p134 = scmp.eq.s32.totalorder %s18, 1
      %p135 = por %p133, %p134
      %p137 = scmp.ne.s32.totalorder %s120, %s136
      %p138 = scmp.eq.s32.totalorder %s18, 0
      %p139 = por %p137, %p138
      %p140 = scmp.le.s32.totalorder 1, %s12
      %p141 = scmp.lt.s32.totalorder %s12, 3
      %p142 = pnand %p140, %p141
      %p143 = pneg %p142
      // Predicated region
      $region9: #{cnn_b_forward.3} parent=5 // pred_check
        _
      $region10: #{cnn_b_forward.3} parent=5 // pred_check_branch
        %145 = sbr.rel (%p142) target = $region12
      $region11: #{cnn_b_forward.3} parent=5 // pred_region
        %s146 = ssub.s32 %s12, 1
        // Predicated region
        $region13: #{cnn_b_forward.3} parent=11 // pred_check
          %p147 = pneg %p85
        $region14: #{cnn_b_forward.3} parent=11 // pred_check_branch
          %149 = sbr.rel (%p147) target = $region16
        $region15: #{cnn_b_forward.3} parent=11 // pred_region
          %s151 = ssub.s32 12288, 12288
          %152 = vsyncadd [#allocation3], %s151
          %s153 = sshll.u32 [#allocation2], 4
          %s154 = int_to_ptr.vmem [resolvable:$true] %s153
          %159 = dma.hbm_to_vmem [thread:$0]  %s2, 12288, %s154, [#allocation3], 512, 512, 32
        $region16: #{cnn_b_forward.3} parent=11 // pred_fallthru
          _
        // Predicated region
        $region17: #{cnn_b_forward.3} parent=11 // pred_check
          %p160 = pneg %p106
        $region18: #{cnn_b_forward.3} parent=11 // pred_check_branch
          %162 = sbr.rel (%p160) target = $region20
        $region19: #{cnn_b_forward.3} parent=11 // pred_region
          %s164 = ssub.s32 64, 64
          %165 = vsyncadd [#allocation5], %s164
          %s167 = sshll.u32 [#allocation4], 4
          %s168 = int_to_ptr.vmem [resolvable:$true] %s167
          %170 = dma.hbm_to_vmem [thread:$0]  %s3, 64, %s168, [#allocation5]
        $region20: #{cnn_b_forward.3} parent=11 // pred_fallthru
          _
      $region12: #{cnn_b_forward.3} parent=5 // pred_fallthru
        _
      %p171 = scmp.lt.s32.totalorder %s12, 2
      // Predicated region
      $region21: #{cnn_b_forward.3} parent=5 // pred_check
        %p172 = pneg %p171
      $region22: #{cnn_b_forward.3} parent=5 // pred_check_branch
        %174 = sbr.rel (%p172) target = $region24
      $region23: #{cnn_b_forward.3} parent=5 // pred_region
        // Predicated region
        $region25: #{cnn_b_forward.3} parent=23 // pred_check
          %p175 = pneg %p32
        $region26: #{cnn_b_forward.3} parent=23 // pred_check_branch
          %177 = sbr.rel (%p175) target = $region28
        $region27: #{cnn_b_forward.3} parent=23 // pred_region
          %p178 = scmp.lt.s32.totalorder %s12, 1
          %s179 = scalar_select %p178, %s12, 1
          %s180 = smul.addr %s179, 2
          %s181 = smul.addr %s180, 8
          %s182 = scalar_lea.vmem %s0, %s181
        $region28: #{cnn_b_forward.3} parent=23 // pred_fallthru
          _
        // Predicated region
        $region29: #{cnn_b_forward.3} parent=23 // pred_check
          %p183 = pneg %p58
        $region30: #{cnn_b_forward.3} parent=23 // pred_check_branch
          %185 = sbr.rel (%p183) target = $region32
        $region31: #{cnn_b_forward.3} parent=23 // pred_region
          %p186 = scmp.lt.s32.totalorder %s12, 1
          %s187 = scalar_select %p186, %s12, 1
          %s188 = smul.addr %s187, 2
          %s189 = smul.addr %s188, 8
          %s190 = scalar_lea.vmem %s1, %s189
        $region32: #{cnn_b_forward.3} parent=23 // pred_fallthru
          _
      $region24: #{cnn_b_forward.3} parent=5 // pred_fallthru
        _
      %p191 = scmp.le.s32.totalorder 1, %s12
      %p192 = scmp.lt.s32.totalorder %s12, 3
      %p193 = pnand %p191, %p192
      %p194 = pneg %p193
      // Predicated region
      $region33: #{cnn_b_forward.3} parent=5 // pred_check
        _
      $region34: #{cnn_b_forward.3} parent=5 // pred_check_branch
        %196 = sbr.rel (%p193) target = $region36
      $region35: #{cnn_b_forward.3} parent=5 // pred_region
        %s197 = ssub.s32 %s12, 1
        // Predicated region
        $region37: #{cnn_b_forward.3} parent=35 // pred_check
          %p198 = pneg %p85
        $region38: #{cnn_b_forward.3} parent=35 // pred_check_branch
          %200 = sbr.rel (%p198) target = $region40
        $region39: #{cnn_b_forward.3} parent=35 // pred_region
          %201 = dma.done [#allocation3], 12288
        $region40: #{cnn_b_forward.3} parent=35 // pred_fallthru
          _
        // Predicated region
        $region41: #{cnn_b_forward.3} parent=35 // pred_check
          %p202 = pneg %p106
        $region42: #{cnn_b_forward.3} parent=35 // pred_check_branch
          %204 = sbr.rel (%p202) target = $region44
        $region43: #{cnn_b_forward.3} parent=35 // pred_region
          %205 = dma.done [#allocation5], 64
        $region44: #{cnn_b_forward.3} parent=35 // pred_fallthru
          _
        %p206 = scmp.lt.s32.totalorder %s17, 1
        %s207 = scalar_select %p206, %s17, 1
        %s208 = smul.addr %s207, 2
        %s209 = smul.addr %s208, 8
        %s210 = scalar_lea.vmem %s0, %s209
        %p211 = pneg %p38
        %p212 = pneg %p35
        %p213 = scmp.lt.s32.totalorder %s17, 1
        %s214 = scalar_select %p213, %s17, 1
        %s215 = smul.addr %s214, 2
        %s216 = smul.addr %s215, 8
        %s217 = scalar_lea.vmem %s1, %s216
        %p218 = pneg %p64
        %p219 = pneg %p61
        %p220 = pneg %p85
        %p221 = pneg %p82
        %p222 = pneg %p106
        %p223 = pneg %p103
        %p224 = pneg %p132
        %p225 = pneg %p129
        %p226 = scmp.lt.s32.totalorder %s17, 1
        %s227 = scalar_select %p226, %s17, 1
        %s228 = smul.addr %s227, 8
        %s229 = smul.addr %s228, 8
        %s230 = scalar_lea.vmem %s4, %s229
        %p231 = scmp.lt.s32.totalorder %s17, 1
        %s232 = scalar_select %p231, %s17, 1
        %s233 = smul.addr %s232, 2
        %s234 = smul.addr %s233, 8
        %s235 = scalar_lea.vmem %s0, %s234
        %p236 = scmp.lt.s32.totalorder %s17, 1
        %s237 = scalar_select %p236, %s17, 1
        %s238 = smul.addr %s237, 2
        %s239 = smul.addr %s238, 8
        %s240 = scalar_lea.vmem %s1, %s239
        %p241 = scmp.lt.s32.totalorder %s17, 1
        %s242 = scalar_select %p241, %s17, 1
        %s243 = smul.addr %s242, 8
        %s244 = smul.addr %s243, 8
        %s245 = scalar_lea.vmem %s4, %s244
        %v246 = vld [vmem:[%s235] sm:$0xff]
        %v247 = vld [vmem:[%s235 + $0x8] sm:$0x3f]
        %v248 = vld [vmem:[%s235 + $0x1] sm:$0xff]
        %v249 = vld [vmem:[%s235 + $0x9] sm:$0x3f]
        %v250 = vld [vmem:[%s240] sm:$0xff]
        %v251 = vld [vmem:[%s240 + $0x8] sm:$0x3f]
        %v252 = vld [vmem:[%s240 + $0x1] sm:$0xff]
        %v253 = vld [vmem:[%s240 + $0x9] sm:$0x3f]
        %v254 = vld [vmem:[#allocation2] sm:$0xff]
        %v255 = vld [vmem:[#allocation2 + $0x8] sm:$0xff]
        %v256 = vld [vmem:[#allocation2 + $0x10] sm:$0xff]
        %v257 = vld [vmem:[#allocation2 + $0x18] sm:$0xff]
        %v258 = vld [vmem:[#allocation2 + $0x20] sm:$0xff]
        %v259 = vld [vmem:[#allocation2 + $0x28] sm:$0xff]
        %v260 = vld [vmem:[#allocation2 + $0x30] sm:$0xff]
        %v261 = vld [vmem:[#allocation2 + $0x38] sm:$0xff]
        %v262 = vld [vmem:[#allocation2 + $0x40] sm:$0xff]
        %v263 = vld [vmem:[#allocation2 + $0x48] sm:$0xff]
        %v264 = vld [vmem:[#allocation2 + $0x50] sm:$0xff]
        %v265 = vld [vmem:[#allocation2 + $0x58] sm:$0xff]
        %v266 = vld [vmem:[#allocation2 + $0x60] sm:$0x3f]
        %v267 = vld [vmem:[#allocation2 + $0x68] sm:$0x3f]
        %v268 = vld [vmem:[#allocation2 + $0x70] sm:$0x3f]
        %v269 = vld [vmem:[#allocation2 + $0x78] sm:$0x3f]
        %s270 = scalar_lea.vmem [#allocation2], 128
        %v271 = vld [vmem:[%s270] sm:$0xff]
        %v272 = vld [vmem:[%s270 + $0x8] sm:$0xff]
        %v273 = vld [vmem:[%s270 + $0x10] sm:$0xff]
        %v274 = vld [vmem:[%s270 + $0x18] sm:$0xff]
        %v275 = vld [vmem:[%s270 + $0x20] sm:$0xff]
        %v276 = vld [vmem:[%s270 + $0x28] sm:$0xff]
        %v277 = vld [vmem:[%s270 + $0x30] sm:$0xff]
        %v278 = vld [vmem:[%s270 + $0x38] sm:$0xff]
        %v279 = vld [vmem:[%s270 + $0x40] sm:$0xff]
        %v280 = vld [vmem:[%s270 + $0x48] sm:$0xff]
        %v281 = vld [vmem:[%s270 + $0x50] sm:$0xff]
        %v282 = vld [vmem:[%s270 + $0x58] sm:$0xff]
        %v283 = vld [vmem:[%s270 + $0x60] sm:$0x3f]
        %v284 = vld [vmem:[%s270 + $0x68] sm:$0x3f]
        %v285 = vld [vmem:[%s270 + $0x70] sm:$0x3f]
        %v286 = vld [vmem:[%s270 + $0x78] sm:$0x3f]
        %vm287 = vcmask 244736
        %v289 = vsel %vm287, %v250, 0
        %v292 = vsel %vm287, %v251, 0
        %vm294 = vcmask 1045504
        %v296 = vsel %vm294, %v283, 0
        %v299 = vsel %vm294, %v284, 0
        %v302 = vsel %vm294, %v285, 0
        %v305 = vsel %vm294, %v286, 0
        %307 = vmatprep.subr.mxu0 0.0
        %308 = vmatpush1.msra.mxu0 0.0
        %309 = vmatprep.subr.mxu0 0.0
        %310 = vmatpush1.msra.mxu0 0.0
        %311 = vmatprep.subr.mxu0 0.0
        %312 = vmatpush1.msra.mxu0 0.0
        %313 = vmatprep.subr.mxu0 0.0
        %314 = vmatpush1.msra.mxu0 0.0
        %315 = vmatprep.subr.mxu0 0.0
        %316 = vmatpush1.msra.mxu0 0.0
        %317 = vmatprep.subr.mxu0 0.0
        %318 = vmatpush1.msra.mxu0 0.0
        %319 = vmatprep.subr.mxu0 0.0
        %320 = vmatpush1.msra.mxu0 0.0
        %321 = vmatprep.subr.mxu0 0.0
        %322 = vmatpush1.msra.mxu0 0.0
        %323 = vmatprep.subr.mxu0 0.0
        %324 = vmatpush1.msra.mxu0 0.0
        %325 = vmatprep.subr.mxu0 0.0
        %326 = vmatpush1.msra.mxu0 0.0
        %327 = vmatprep.subr.mxu0 0.0
        %328 = vmatpush1.msra.mxu0 0.0
        %329 = vmatprep.subr.mxu0 0.0
        %330 = vmatpush1.msra.mxu0 0.0
        %331 = vmatprep.subr.mxu0 %v299
        %332 = vmatpush1.msra.mxu0 %v296
        %333 = vmatprep.subr.mxu0 %v280
        %334 = vmatpush1.msra.mxu0 %v279
        %335 = vmatprep.subr.mxu0 %v276
        %336 = vmatpush1.msra.mxu0 %v275
        %337 = vmatprep.subr.mxu0 %v272
        %338 = vmatpush1.msra.mxu0 %v271
        %339 = vmatprep.subr.mxu0 0.0
        %340 = vmatpush2.msra.mxu0 0.0
        %341 = vmatprep.subr.mxu0 0.0
        %342 = vmatpush2.msra.mxu0 0.0
        %343 = vmatprep.subr.mxu0 0.0
        %344 = vmatpush2.msra.mxu0 0.0
        %345 = vmatprep.subr.mxu0 0.0
        %346 = vmatpush2.msra.mxu0 0.0
        %347 = vmatprep.subr.mxu0 0.0
        %348 = vmatpush2.msra.mxu0 0.0
        %349 = vmatprep.subr.mxu0 0.0
        %350 = vmatpush2.msra.mxu0 0.0
        %351 = vmatprep.subr.mxu0 0.0
        %352 = vmatpush2.msra.mxu0 0.0
        %353 = vmatprep.subr.mxu0 0.0
        %354 = vmatpush2.msra.mxu0 0.0
        %355 = vmatprep.subr.mxu0 0.0
        %356 = vmatpush2.msra.mxu0 0.0
        %357 = vmatprep.subr.mxu0 0.0
        %358 = vmatpush2.msra.mxu0 0.0
        %359 = vmatprep.subr.mxu0 0.0
        %360 = vmatpush2.msra.mxu0 0.0
        %361 = vmatprep.subr.mxu0 0.0
        %362 = vmatpush2.msra.mxu0 0.0
        %363 = vmatprep.subr.mxu0 0.0
        %364 = vmatpush2.msra.mxu0 0.0
        %365 = vmatprep.subr.mxu0 0.0
        %366 = vmatpush2.msra.mxu0 0.0
        %367 = vmatprep.subr.mxu0 0.0
        %368 = vmatpush2.msra.mxu0 0.0
        %369 = vmatprep.subr.mxu0 0.0
        %370 = vmatpush2.msra.mxu0 0.0
        %371 = vmatprep.mubr.f32.mxu0 0.0
        %372 = vmatmul.mubr.f32.gmra.mxu0 %v289
        %v373 = vpop.f32.mrf.mxu0
        %v374 = vadd.f32 0.0, %v373
        %v375 = vpop.f32.mrf.mxu0
        %v376 = vadd.f32 0.0, %v375
        %377 = vmatprep.mubr.f32.mxu0 0.0
        %378 = vmatmul.mubr.f32.gmra.mxu0 %v292
        %v379 = vpop.f32.mrf.mxu0
        %v380 = vadd.f32 0.0, %v379
        %v381 = vpop.f32.mrf.mxu0
        %v382 = vadd.f32 0.0, %v381
        %383 = vdwg.mxu0
        %384 = vmatprep.subr.mxu0 0.0
        %385 = vmatpush1.msra.mxu0 0.0
        %386 = vmatprep.subr.mxu0 0.0
        %387 = vmatpush1.msra.mxu0 0.0
        %388 = vmatprep.subr.mxu0 0.0
        %389 = vmatpush1.msra.mxu0 0.0
        %390 = vmatprep.subr.mxu0 0.0
        %391 = vmatpush1.msra.mxu0 0.0
        %392 = vmatprep.subr.mxu0 0.0
        %393 = vmatpush1.msra.mxu0 0.0
        %394 = vmatprep.subr.mxu0 0.0
        %395 = vmatpush1.msra.mxu0 0.0
        %396 = vmatprep.subr.mxu0 0.0
        %397 = vmatpush1.msra.mxu0 0.0
        %398 = vmatprep.subr.mxu0 0.0
        %399 = vmatpush1.msra.mxu0 0.0
        %400 = vmatprep.subr.mxu0 0.0
        %401 = vmatpush1.msra.mxu0 0.0
        %402 = vmatprep.subr.mxu0 0.0
        %403 = vmatpush1.msra.mxu0 0.0
        %404 = vmatprep.subr.mxu0 0.0
        %405 = vmatpush1.msra.mxu0 0.0
        %406 = vmatprep.subr.mxu0 0.0
        %407 = vmatpush1.msra.mxu0 0.0
        %408 = vmatprep.subr.mxu0 %v305
        %409 = vmatpush1.msra.mxu0 %v302
        %410 = vmatprep.subr.mxu0 %v282
        %411 = vmatpush1.msra.mxu0 %v281
        %412 = vmatprep.subr.mxu0 %v278
        %413 = vmatpush1.msra.mxu0 %v277
        %414 = vmatprep.subr.mxu0 %v274
        %415 = vmatpush1.msra.mxu0 %v273
        %416 = vmatprep.subr.mxu0 0.0
        %417 = vmatpush2.msra.mxu0 0.0
        %418 = vmatprep.subr.mxu0 0.0
        %419 = vmatpush2.msra.mxu0 0.0
        %420 = vmatprep.subr.mxu0 0.0
        %421 = vmatpush2.msra.mxu0 0.0
        %422 = vmatprep.subr.mxu0 0.0
        %423 = vmatpush2.msra.mxu0 0.0
        %424 = vmatprep.subr.mxu0 0.0
        %425 = vmatpush2.msra.mxu0 0.0
        %426 = vmatprep.subr.mxu0 0.0
        %427 = vmatpush2.msra.mxu0 0.0
        %428 = vmatprep.subr.mxu0 0.0
        %429 = vmatpush2.msra.mxu0 0.0
        %430 = vmatprep.subr.mxu0 0.0
        %431 = vmatpush2.msra.mxu0 0.0
        %432 = vmatprep.subr.mxu0 0.0
        %433 = vmatpush2.msra.mxu0 0.0
        %434 = vmatprep.subr.mxu0 0.0
        %435 = vmatpush2.msra.mxu0 0.0
        %436 = vmatprep.subr.mxu0 0.0
        %437 = vmatpush2.msra.mxu0 0.0
        %438 = vmatprep.subr.mxu0 0.0
        %439 = vmatpush2.msra.mxu0 0.0
        %440 = vmatprep.subr.mxu0 0.0
        %441 = vmatpush2.msra.mxu0 0.0
        %442 = vmatprep.subr.mxu0 0.0
        %443 = vmatpush2.msra.mxu0 0.0
        %444 = vmatprep.subr.mxu0 0.0
        %445 = vmatpush2.msra.mxu0 0.0
        %446 = vmatprep.subr.mxu0 0.0
        %447 = vmatpush2.msra.mxu0 0.0
        %448 = vmatprep.mubr.f32.mxu0 0.0
        %449 = vmatmul.mubr.f32.gmra.mxu0 %v289
        %v450 = vpop.f32.mrf.mxu0
        %v451 = vadd.f32 0.0, %v450
        %v452 = vpop.f32.mrf.mxu0
        %v453 = vadd.f32 0.0, %v452
        %454 = vmatprep.mubr.f32.mxu0 0.0
        %455 = vmatmul.mubr.f32.gmra.mxu0 %v292
        %v456 = vpop.f32.mrf.mxu0
        %v457 = vadd.f32 0.0, %v456
        %v458 = vpop.f32.mrf.mxu0
        %v459 = vadd.f32 0.0, %v458
        %460 = vdwg.mxu0
        %v462 = vsel %vm287, %v246, 0
        %v465 = vsel %vm287, %v247, 0
        %v468 = vsel %vm294, %v266, 0
        %v471 = vsel %vm294, %v267, 0
        %v474 = vsel %vm294, %v268, 0
        %v477 = vsel %vm294, %v269, 0
        %479 = vmatprep.subr.mxu0 0.0
        %480 = vmatpush1.msra.mxu0 0.0
        %481 = vmatprep.subr.mxu0 0.0
        %482 = vmatpush1.msra.mxu0 0.0
        %483 = vmatprep.subr.mxu0 0.0
        %484 = vmatpush1.msra.mxu0 0.0
        %485 = vmatprep.subr.mxu0 0.0
        %486 = vmatpush1.msra.mxu0 0.0
        %487 = vmatprep.subr.mxu0 0.0
        %488 = vmatpush1.msra.mxu0 0.0
        %489 = vmatprep.subr.mxu0 0.0
        %490 = vmatpush1.msra.mxu0 0.0
        %491 = vmatprep.subr.mxu0 0.0
        %492 = vmatpush1.msra.mxu0 0.0
        %493 = vmatprep.subr.mxu0 0.0
        %494 = vmatpush1.msra.mxu0 0.0
        %495 = vmatprep.subr.mxu0 0.0
        %496 = vmatpush1.msra.mxu0 0.0
        %497 = vmatprep.subr.mxu0 0.0
        %498 = vmatpush1.msra.mxu0 0.0
        %499 = vmatprep.subr.mxu0 0.0
        %500 = vmatpush1.msra.mxu0 0.0
        %501 = vmatprep.subr.mxu0 0.0
        %502 = vmatpush1.msra.mxu0 0.0
        %503 = vmatprep.subr.mxu0 %v471
        %504 = vmatpush1.msra.mxu0 %v468
        %505 = vmatprep.subr.mxu0 %v263
        %506 = vmatpush1.msra.mxu0 %v262
        %507 = vmatprep.subr.mxu0 %v259
        %508 = vmatpush1.msra.mxu0 %v258
        %509 = vmatprep.subr.mxu0 %v255
        %510 = vmatpush1.msra.mxu0 %v254
        %511 = vmatprep.subr.mxu0 0.0
        %512 = vmatpush2.msra.mxu0 0.0
        %513 = vmatprep.subr.mxu0 0.0
        %514 = vmatpush2.msra.mxu0 0.0
        %515 = vmatprep.subr.mxu0 0.0
        %516 = vmatpush2.msra.mxu0 0.0
        %517 = vmatprep.subr.mxu0 0.0
        %518 = vmatpush2.msra.mxu0 0.0
        %519 = vmatprep.subr.mxu0 0.0
        %520 = vmatpush2.msra.mxu0 0.0
        %521 = vmatprep.subr.mxu0 0.0
        %522 = vmatpush2.msra.mxu0 0.0
        %523 = vmatprep.subr.mxu0 0.0
        %524 = vmatpush2.msra.mxu0 0.0
        %525 = vmatprep.subr.mxu0 0.0
        %526 = vmatpush2.msra.mxu0 0.0
        %527 = vmatprep.subr.mxu0 0.0
        %528 = vmatpush2.msra.mxu0 0.0
        %529 = vmatprep.subr.mxu0 0.0
        %530 = vmatpush2.msra.mxu0 0.0
        %531 = vmatprep.subr.mxu0 0.0
        %532 = vmatpush2.msra.mxu0 0.0
        %533 = vmatprep.subr.mxu0 0.0
        %534 = vmatpush2.msra.mxu0 0.0
        %535 = vmatprep.subr.mxu0 0.0
        %536 = vmatpush2.msra.mxu0 0.0
        %537 = vmatprep.subr.mxu0 0.0
        %538 = vmatpush2.msra.mxu0 0.0
        %539 = vmatprep.subr.mxu0 0.0
        %540 = vmatpush2.msra.mxu0 0.0
        %541 = vmatprep.subr.mxu0 0.0
        %542 = vmatpush2.msra.mxu0 0.0
        %543 = vmatprep.mubr.f32.mxu0 0.0
        %544 = vmatmul.mubr.f32.gmra.mxu0 %v462
        %v545 = vpop.f32.mrf.mxu0
        %v546 = vadd.f32 %v374, %v545
        %v547 = vpop.f32.mrf.mxu0
        %v548 = vadd.f32 %v376, %v547
        %549 = vmatprep.mubr.f32.mxu0 0.0
        %550 = vmatmul.mubr.f32.gmra.mxu0 %v465
        %v551 = vpop.f32.mrf.mxu0
        %v552 = vadd.f32 %v380, %v551
        %v553 = vpop.f32.mrf.mxu0
        %v554 = vadd.f32 %v382, %v553
        %555 = vdwg.mxu0
        %556 = vmatprep.subr.mxu0 0.0
        %557 = vmatpush1.msra.mxu0 0.0
        %558 = vmatprep.subr.mxu0 0.0
        %559 = vmatpush1.msra.mxu0 0.0
        %560 = vmatprep.subr.mxu0 0.0
        %561 = vmatpush1.msra.mxu0 0.0
        %562 = vmatprep.subr.mxu0 0.0
        %563 = vmatpush1.msra.mxu0 0.0
        %564 = vmatprep.subr.mxu0 0.0
        %565 = vmatpush1.msra.mxu0 0.0
        %566 = vmatprep.subr.mxu0 0.0
        %567 = vmatpush1.msra.mxu0 0.0
        %568 = vmatprep.subr.mxu0 0.0
        %569 = vmatpush1.msra.mxu0 0.0
        %570 = vmatprep.subr.mxu0 0.0
        %571 = vmatpush1.msra.mxu0 0.0
        %572 = vmatprep.subr.mxu0 0.0
        %573 = vmatpush1.msra.mxu0 0.0
        %574 = vmatprep.subr.mxu0 0.0
        %575 = vmatpush1.msra.mxu0 0.0
        %576 = vmatprep.subr.mxu0 0.0
        %577 = vmatpush1.msra.mxu0 0.0
        %578 = vmatprep.subr.mxu0 0.0
        %579 = vmatpush1.msra.mxu0 0.0
        %580 = vmatprep.subr.mxu0 %v477
        %581 = vmatpush1.msra.mxu0 %v474
        %582 = vmatprep.subr.mxu0 %v265
        %583 = vmatpush1.msra.mxu0 %v264
        %584 = vmatprep.subr.mxu0 %v261
        %585 = vmatpush1.msra.mxu0 %v260
        %586 = vmatprep.subr.mxu0 %v257
        %587 = vmatpush1.msra.mxu0 %v256
        %588 = vmatprep.subr.mxu0 0.0
        %589 = vmatpush2.msra.mxu0 0.0
        %590 = vmatprep.subr.mxu0 0.0
        %591 = vmatpush2.msra.mxu0 0.0
        %592 = vmatprep.subr.mxu0 0.0
        %593 = vmatpush2.msra.mxu0 0.0
        %594 = vmatprep.subr.mxu0 0.0
        %595 = vmatpush2.msra.mxu0 0.0
        %596 = vmatprep.subr.mxu0 0.0
        %597 = vmatpush2.msra.mxu0 0.0
        %598 = vmatprep.subr.mxu0 0.0
        %599 = vmatpush2.msra.mxu0 0.0
        %600 = vmatprep.subr.mxu0 0.0
        %601 = vmatpush2.msra.mxu0 0.0
        %602 = vmatprep.subr.mxu0 0.0
        %603 = vmatpush2.msra.mxu0 0.0
        %604 = vmatprep.subr.mxu0 0.0
        %605 = vmatpush2.msra.mxu0 0.0
        %606 = vmatprep.subr.mxu0 0.0
        %607 = vmatpush2.msra.mxu0 0.0
        %608 = vmatprep.subr.mxu0 0.0
        %609 = vmatpush2.msra.mxu0 0.0
        %610 = vmatprep.subr.mxu0 0.0
        %611 = vmatpush2.msra.mxu0 0.0
        %612 = vmatprep.subr.mxu0 0.0
        %613 = vmatpush2.msra.mxu0 0.0
        %614 = vmatprep.subr.mxu0 0.0
        %615 = vmatpush2.msra.mxu0 0.0
        %616 = vmatprep.subr.mxu0 0.0
        %617 = vmatpush2.msra.mxu0 0.0
        %618 = vmatprep.subr.mxu0 0.0
        %619 = vmatpush2.msra.mxu0 0.0
        %620 = vmatprep.mubr.f32.mxu0 0.0
        %621 = vmatmul.mubr.f32.gmra.mxu0 %v462
        %v622 = vpop.f32.mrf.mxu0
        %v623 = vadd.f32 %v451, %v622
        %v624 = vpop.f32.mrf.mxu0
        %v625 = vadd.f32 %v453, %v624
        %626 = vmatprep.mubr.f32.mxu0 0.0
        %627 = vmatmul.mubr.f32.gmra.mxu0 %v465
        %v628 = vpop.f32.mrf.mxu0
        %v629 = vadd.f32 %v457, %v628
        %v630 = vpop.f32.mrf.mxu0
        %v631 = vadd.f32 %v459, %v630
        %632 = vdwg.mxu0
        %s633 = scalar_lea.vmem [#allocation2], 256
        %v634 = vld [vmem:[%s633] sm:$0xff]
        %v635 = vld [vmem:[%s633 + $0x8] sm:$0xff]
        %v636 = vld [vmem:[%s633 + $0x10] sm:$0xff]
        %v637 = vld [vmem:[%s633 + $0x18] sm:$0xff]
        %v638 = vld [vmem:[%s633 + $0x20] sm:$0xff]
        %v639 = vld [vmem:[%s633 + $0x28] sm:$0xff]
        %v640 = vld [vmem:[%s633 + $0x30] sm:$0xff]
        %v641 = vld [vmem:[%s633 + $0x38] sm:$0xff]
        %v642 = vld [vmem:[%s633 + $0x40] sm:$0xff]
        %v643 = vld [vmem:[%s633 + $0x48] sm:$0xff]
        %v644 = vld [vmem:[%s633 + $0x50] sm:$0xff]
        %v645 = vld [vmem:[%s633 + $0x58] sm:$0xff]
        %v646 = vld [vmem:[%s633 + $0x60] sm:$0x3f]
        %v647 = vld [vmem:[%s633 + $0x68] sm:$0x3f]
        %v648 = vld [vmem:[%s633 + $0x70] sm:$0x3f]
        %v649 = vld [vmem:[%s633 + $0x78] sm:$0x3f]
        %v651 = vsel %vm287, %v248, 0
        %v654 = vsel %vm287, %v249, 0
        %v657 = vsel %vm294, %v646, 0
        %v660 = vsel %vm294, %v647, 0
        %v663 = vsel %vm294, %v648, 0
        %v666 = vsel %vm294, %v649, 0
        %668 = vmatprep.subr.mxu0 0.0
        %669 = vmatpush1.msra.mxu0 0.0
        %670 = vmatprep.subr.mxu0 0.0
        %671 = vmatpush1.msra.mxu0 0.0
        %672 = vmatprep.subr.mxu0 0.0
        %673 = vmatpush1.msra.mxu0 0.0
        %674 = vmatprep.subr.mxu0 0.0
        %675 = vmatpush1.msra.mxu0 0.0
        %676 = vmatprep.subr.mxu0 0.0
        %677 = vmatpush1.msra.mxu0 0.0
        %678 = vmatprep.subr.mxu0 0.0
        %679 = vmatpush1.msra.mxu0 0.0
        %680 = vmatprep.subr.mxu0 0.0
        %681 = vmatpush1.msra.mxu0 0.0
        %682 = vmatprep.subr.mxu0 0.0
        %683 = vmatpush1.msra.mxu0 0.0
        %684 = vmatprep.subr.mxu0 0.0
        %685 = vmatpush1.msra.mxu0 0.0
        %686 = vmatprep.subr.mxu0 0.0
        %687 = vmatpush1.msra.mxu0 0.0
        %688 = vmatprep.subr.mxu0 0.0
        %689 = vmatpush1.msra.mxu0 0.0
        %690 = vmatprep.subr.mxu0 0.0
        %691 = vmatpush1.msra.mxu0 0.0
        %692 = vmatprep.subr.mxu0 %v660
        %693 = vmatpush1.msra.mxu0 %v657
        %694 = vmatprep.subr.mxu0 %v643
        %695 = vmatpush1.msra.mxu0 %v642
        %696 = vmatprep.subr.mxu0 %v639
        %697 = vmatpush1.msra.mxu0 %v638
        %698 = vmatprep.subr.mxu0 %v635
        %699 = vmatpush1.msra.mxu0 %v634
        %700 = vmatprep.subr.mxu0 0.0
        %701 = vmatpush2.msra.mxu0 0.0
        %702 = vmatprep.subr.mxu0 0.0
        %703 = vmatpush2.msra.mxu0 0.0
        %704 = vmatprep.subr.mxu0 0.0
        %705 = vmatpush2.msra.mxu0 0.0
        %706 = vmatprep.subr.mxu0 0.0
        %707 = vmatpush2.msra.mxu0 0.0
        %708 = vmatprep.subr.mxu0 0.0
        %709 = vmatpush2.msra.mxu0 0.0
        %710 = vmatprep.subr.mxu0 0.0
        %711 = vmatpush2.msra.mxu0 0.0
        %712 = vmatprep.subr.mxu0 0.0
        %713 = vmatpush2.msra.mxu0 0.0
        %714 = vmatprep.subr.mxu0 0.0
        %715 = vmatpush2.msra.mxu0 0.0
        %716 = vmatprep.subr.mxu0 0.0
        %717 = vmatpush2.msra.mxu0 0.0
        %718 = vmatprep.subr.mxu0 0.0
        %719 = vmatpush2.msra.mxu0 0.0
        %720 = vmatprep.subr.mxu0 0.0
        %721 = vmatpush2.msra.mxu0 0.0
        %722 = vmatprep.subr.mxu0 0.0
        %723 = vmatpush2.msra.mxu0 0.0
        %724 = vmatprep.subr.mxu0 0.0
        %725 = vmatpush2.msra.mxu0 0.0
        %726 = vmatprep.subr.mxu0 0.0
        %727 = vmatpush2.msra.mxu0 0.0
        %728 = vmatprep.subr.mxu0 0.0
        %729 = vmatpush2.msra.mxu0 0.0
        %730 = vmatprep.subr.mxu0 0.0
        %731 = vmatpush2.msra.mxu0 0.0
        %732 = vmatprep.mubr.f32.mxu0 0.0
        %733 = vmatmul.mubr.f32.gmra.mxu0 %v651
        %v734 = vpop.f32.mrf.mxu0
        %v735 = vadd.f32 0.0, %v734
        %v736 = vpop.f32.mrf.mxu0
        %v737 = vadd.f32 0.0, %v736
        %738 = vmatprep.mubr.f32.mxu0 0.0
        %739 = vmatmul.mubr.f32.gmra.mxu0 %v654
        %v740 = vpop.f32.mrf.mxu0
        %v741 = vadd.f32 0.0, %v740
        %v742 = vpop.f32.mrf.mxu0
        %v743 = vadd.f32 0.0, %v742
        %744 = vdwg.mxu0
        %745 = vmatprep.subr.mxu0 0.0
        %746 = vmatpush1.msra.mxu0 0.0
        %747 = vmatprep.subr.mxu0 0.0
        %748 = vmatpush1.msra.mxu0 0.0
        %749 = vmatprep.subr.mxu0 0.0
        %750 = vmatpush1.msra.mxu0 0.0
        %751 = vmatprep.subr.mxu0 0.0
        %752 = vmatpush1.msra.mxu0 0.0
        %753 = vmatprep.subr.mxu0 0.0
        %754 = vmatpush1.msra.mxu0 0.0
        %755 = vmatprep.subr.mxu0 0.0
        %756 = vmatpush1.msra.mxu0 0.0
        %757 = vmatprep.subr.mxu0 0.0
        %758 = vmatpush1.msra.mxu0 0.0
        %759 = vmatprep.subr.mxu0 0.0
        %760 = vmatpush1.msra.mxu0 0.0
        %761 = vmatprep.subr.mxu0 0.0
        %762 = vmatpush1.msra.mxu0 0.0
        %763 = vmatprep.subr.mxu0 0.0
        %764 = vmatpush1.msra.mxu0 0.0
        %765 = vmatprep.subr.mxu0 0.0
        %766 = vmatpush1.msra.mxu0 0.0
        %767 = vmatprep.subr.mxu0 0.0
        %768 = vmatpush1.msra.mxu0 0.0
        %769 = vmatprep.subr.mxu0 %v666
        %770 = vmatpush1.msra.mxu0 %v663
        %771 = vmatprep.subr.mxu0 %v645
        %772 = vmatpush1.msra.mxu0 %v644
        %773 = vmatprep.subr.mxu0 %v641
        %774 = vmatpush1.msra.mxu0 %v640
        %775 = vmatprep.subr.mxu0 %v637
        %776 = vmatpush1.msra.mxu0 %v636
        %777 = vmatprep.subr.mxu0 0.0
        %778 = vmatpush2.msra.mxu0 0.0
        %779 = vmatprep.subr.mxu0 0.0
        %780 = vmatpush2.msra.mxu0 0.0
        %781 = vmatprep.subr.mxu0 0.0
        %782 = vmatpush2.msra.mxu0 0.0
        %783 = vmatprep.subr.mxu0 0.0
        %784 = vmatpush2.msra.mxu0 0.0
        %785 = vmatprep.subr.mxu0 0.0
        %786 = vmatpush2.msra.mxu0 0.0
        %787 = vmatprep.subr.mxu0 0.0
        %788 = vmatpush2.msra.mxu0 0.0
        %789 = vmatprep.subr.mxu0 0.0
        %790 = vmatpush2.msra.mxu0 0.0
        %791 = vmatprep.subr.mxu0 0.0
        %792 = vmatpush2.msra.mxu0 0.0
        %793 = vmatprep.subr.mxu0 0.0
        %794 = vmatpush2.msra.mxu0 0.0
        %795 = vmatprep.subr.mxu0 0.0
        %796 = vmatpush2.msra.mxu0 0.0
        %797 = vmatprep.subr.mxu0 0.0
        %798 = vmatpush2.msra.mxu0 0.0
        %799 = vmatprep.subr.mxu0 0.0
        %800 = vmatpush2.msra.mxu0 0.0
        %801 = vmatprep.subr.mxu0 0.0
        %802 = vmatpush2.msra.mxu0 0.0
        %803 = vmatprep.subr.mxu0 0.0
        %804 = vmatpush2.msra.mxu0 0.0
        %805 = vmatprep.subr.mxu0 0.0
        %806 = vmatpush2.msra.mxu0 0.0
        %807 = vmatprep.subr.mxu0 0.0
        %808 = vmatpush2.msra.mxu0 0.0
        %809 = vmatprep.mubr.f32.mxu0 0.0
        %810 = vmatmul.mubr.f32.gmra.mxu0 %v651
        %v811 = vpop.f32.mrf.mxu0
        %v812 = vadd.f32 0.0, %v811
        %v813 = vpop.f32.mrf.mxu0
        %v814 = vadd.f32 0.0, %v813
        %815 = vmatprep.mubr.f32.mxu0 0.0
        %816 = vmatmul.mubr.f32.gmra.mxu0 %v654
        %v817 = vpop.f32.mrf.mxu0
        %v818 = vadd.f32 0.0, %v817
        %v819 = vpop.f32.mrf.mxu0
        %v820 = vadd.f32 0.0, %v819
        %821 = vdwg.mxu0
        %v822 = vadd.f32 %v546, %v735
        %v823 = vadd.f32 %v548, %v737
        %v824 = vadd.f32 %v623, %v812
        %v825 = vadd.f32 %v625, %v814
        %v826 = vadd.f32 %v552, %v741
        %v827 = vadd.f32 %v554, %v743
        %v828 = vadd.f32 %v629, %v818
        %v829 = vadd.f32 %v631, %v820
        %s830 = scalar_lea.vmem [#allocation2], 384
        %v831 = vld [vmem:[%s830] sm:$0xff]
        %v832 = vld [vmem:[%s830 + $0x8] sm:$0xff]
        %v833 = vld [vmem:[%s830 + $0x10] sm:$0xff]
        %v834 = vld [vmem:[%s830 + $0x18] sm:$0xff]
        %v835 = vld [vmem:[%s830 + $0x20] sm:$0xff]
        %v836 = vld [vmem:[%s830 + $0x28] sm:$0xff]
        %v837 = vld [vmem:[%s830 + $0x30] sm:$0xff]
        %v838 = vld [vmem:[%s830 + $0x38] sm:$0xff]
        %v839 = vld [vmem:[%s830 + $0x40] sm:$0xff]
        %v840 = vld [vmem:[%s830 + $0x48] sm:$0xff]
        %v841 = vld [vmem:[%s830 + $0x50] sm:$0xff]
        %v842 = vld [vmem:[%s830 + $0x58] sm:$0xff]
        %v843 = vld [vmem:[%s830 + $0x60] sm:$0x3f]
        %v844 = vld [vmem:[%s830 + $0x68] sm:$0x3f]
        %v845 = vld [vmem:[%s830 + $0x70] sm:$0x3f]
        %v846 = vld [vmem:[%s830 + $0x78] sm:$0x3f]
        %s847 = scalar_lea.vmem [#allocation2], 512
        %v848 = vld [vmem:[%s847] sm:$0xff]
        %v849 = vld [vmem:[%s847 + $0x8] sm:$0xff]
        %v850 = vld [vmem:[%s847 + $0x10] sm:$0xff]
        %v851 = vld [vmem:[%s847 + $0x18] sm:$0xff]
        %v852 = vld [vmem:[%s847 + $0x20] sm:$0xff]
        %v853 = vld [vmem:[%s847 + $0x28] sm:$0xff]
        %v854 = vld [vmem:[%s847 + $0x30] sm:$0xff]
        %v855 = vld [vmem:[%s847 + $0x38] sm:$0xff]
        %v856 = vld [vmem:[%s847 + $0x40] sm:$0xff]
        %v857 = vld [vmem:[%s847 + $0x48] sm:$0xff]
        %v858 = vld [vmem:[%s847 + $0x50] sm:$0xff]
        %v859 = vld [vmem:[%s847 + $0x58] sm:$0xff]
        %v860 = vld [vmem:[%s847 + $0x60] sm:$0x3f]
        %v861 = vld [vmem:[%s847 + $0x68] sm:$0x3f]
        %v862 = vld [vmem:[%s847 + $0x70] sm:$0x3f]
        %v863 = vld [vmem:[%s847 + $0x78] sm:$0x3f]
        %v865 = vsel %vm294, %v860, 0
        %v868 = vsel %vm294, %v861, 0
        %v871 = vsel %vm294, %v862, 0
        %v874 = vsel %vm294, %v863, 0
        %876 = vmatprep.subr.mxu0 0.0
        %877 = vmatpush1.msra.mxu0 0.0
        %878 = vmatprep.subr.mxu0 0.0
        %879 = vmatpush1.msra.mxu0 0.0
        %880 = vmatprep.subr.mxu0 0.0
        %881 = vmatpush1.msra.mxu0 0.0
        %882 = vmatprep.subr.mxu0 0.0
        %883 = vmatpush1.msra.mxu0 0.0
        %884 = vmatprep.subr.mxu0 0.0
        %885 = vmatpush1.msra.mxu0 0.0
        %886 = vmatprep.subr.mxu0 0.0
        %887 = vmatpush1.msra.mxu0 0.0
        %888 = vmatprep.subr.mxu0 0.0
        %889 = vmatpush1.msra.mxu0 0.0
        %890 = vmatprep.subr.mxu0 0.0
        %891 = vmatpush1.msra.mxu0 0.0
        %892 = vmatprep.subr.mxu0 0.0
        %893 = vmatpush1.msra.mxu0 0.0
        %894 = vmatprep.subr.mxu0 0.0
        %895 = vmatpush1.msra.mxu0 0.0
        %896 = vmatprep.subr.mxu0 0.0
        %897 = vmatpush1.msra.mxu0 0.0
        %898 = vmatprep.subr.mxu0 0.0
        %899 = vmatpush1.msra.mxu0 0.0
        %900 = vmatprep.subr.mxu0 %v868
        %901 = vmatpush1.msra.mxu0 %v865
        %902 = vmatprep.subr.mxu0 %v857
        %903 = vmatpush1.msra.mxu0 %v856
        %904 = vmatprep.subr.mxu0 %v853
        %905 = vmatpush1.msra.mxu0 %v852
        %906 = vmatprep.subr.mxu0 %v849
        %907 = vmatpush1.msra.mxu0 %v848
        %908 = vmatprep.subr.mxu0 0.0
        %909 = vmatpush2.msra.mxu0 0.0
        %910 = vmatprep.subr.mxu0 0.0
        %911 = vmatpush2.msra.mxu0 0.0
        %912 = vmatprep.subr.mxu0 0.0
        %913 = vmatpush2.msra.mxu0 0.0
        %914 = vmatprep.subr.mxu0 0.0
        %915 = vmatpush2.msra.mxu0 0.0
        %916 = vmatprep.subr.mxu0 0.0
        %917 = vmatpush2.msra.mxu0 0.0
        %918 = vmatprep.subr.mxu0 0.0
        %919 = vmatpush2.msra.mxu0 0.0
        %920 = vmatprep.subr.mxu0 0.0
        %921 = vmatpush2.msra.mxu0 0.0
        %922 = vmatprep.subr.mxu0 0.0
        %923 = vmatpush2.msra.mxu0 0.0
        %924 = vmatprep.subr.mxu0 0.0
        %925 = vmatpush2.msra.mxu0 0.0
        %926 = vmatprep.subr.mxu0 0.0
        %927 = vmatpush2.msra.mxu0 0.0
        %928 = vmatprep.subr.mxu0 0.0
        %929 = vmatpush2.msra.mxu0 0.0
        %930 = vmatprep.subr.mxu0 0.0
        %931 = vmatpush2.msra.mxu0 0.0
        %932 = vmatprep.subr.mxu0 0.0
        %933 = vmatpush2.msra.mxu0 0.0
        %934 = vmatprep.subr.mxu0 0.0
        %935 = vmatpush2.msra.mxu0 0.0
        %936 = vmatprep.subr.mxu0 0.0
        %937 = vmatpush2.msra.mxu0 0.0
        %938 = vmatprep.subr.mxu0 0.0
        %939 = vmatpush2.msra.mxu0 0.0
        %940 = vmatprep.mubr.f32.mxu0 0.0
        %941 = vmatmul.mubr.f32.gmra.mxu0 %v289
        %v942 = vpop.f32.mrf.mxu0
        %v943 = vadd.f32 0.0, %v942
        %v944 = vpop.f32.mrf.mxu0
        %v945 = vadd.f32 0.0, %v944
        %946 = vmatprep.mubr.f32.mxu0 0.0
        %947 = vmatmul.mubr.f32.gmra.mxu0 %v292
        %v948 = vpop.f32.mrf.mxu0
        %v949 = vadd.f32 0.0, %v948
        %v950 = vpop.f32.mrf.mxu0
        %v951 = vadd.f32 0.0, %v950
        %952 = vdwg.mxu0
        %953 = vmatprep.subr.mxu0 0.0
        %954 = vmatpush1.msra.mxu0 0.0
        %955 = vmatprep.subr.mxu0 0.0
        %956 = vmatpush1.msra.mxu0 0.0
        %957 = vmatprep.subr.mxu0 0.0
        %958 = vmatpush1.msra.mxu0 0.0
        %959 = vmatprep.subr.mxu0 0.0
        %960 = vmatpush1.msra.mxu0 0.0
        %961 = vmatprep.subr.mxu0 0.0
        %962 = vmatpush1.msra.mxu0 0.0
        %963 = vmatprep.subr.mxu0 0.0
        %964 = vmatpush1.msra.mxu0 0.0
        %965 = vmatprep.subr.mxu0 0.0
        %966 = vmatpush1.msra.mxu0 0.0
        %967 = vmatprep.subr.mxu0 0.0
        %968 = vmatpush1.msra.mxu0 0.0
        %969 = vmatprep.subr.mxu0 0.0
        %970 = vmatpush1.msra.mxu0 0.0
        %971 = vmatprep.subr.mxu0 0.0
        %972 = vmatpush1.msra.mxu0 0.0
        %973 = vmatprep.subr.mxu0 0.0
        %974 = vmatpush1.msra.mxu0 0.0
        %975 = vmatprep.subr.mxu0 0.0
        %976 = vmatpush1.msra.mxu0 0.0
        %977 = vmatprep.subr.mxu0 %v874
        %978 = vmatpush1.msra.mxu0 %v871
        %979 = vmatprep.subr.mxu0 %v859
        %980 = vmatpush1.msra.mxu0 %v858
        %981 = vmatprep.subr.mxu0 %v855
        %982 = vmatpush1.msra.mxu0 %v854
        %983 = vmatprep.subr.mxu0 %v851
        %984 = vmatpush1.msra.mxu0 %v850
        %985 = vmatprep.subr.mxu0 0.0
        %986 = vmatpush2.msra.mxu0 0.0
        %987 = vmatprep.subr.mxu0 0.0
        %988 = vmatpush2.msra.mxu0 0.0
        %989 = vmatprep.subr.mxu0 0.0
        %990 = vmatpush2.msra.mxu0 0.0
        %991 = vmatprep.subr.mxu0 0.0
        %992 = vmatpush2.msra.mxu0 0.0
        %993 = vmatprep.subr.mxu0 0.0
        %994 = vmatpush2.msra.mxu0 0.0
        %995 = vmatprep.subr.mxu0 0.0
        %996 = vmatpush2.msra.mxu0 0.0
        %997 = vmatprep.subr.mxu0 0.0
        %998 = vmatpush2.msra.mxu0 0.0
        %999 = vmatprep.subr.mxu0 0.0
        %1000 = vmatpush2.msra.mxu0 0.0
        %1001 = vmatprep.subr.mxu0 0.0
        %1002 = vmatpush2.msra.mxu0 0.0
        %1003 = vmatprep.subr.mxu0 0.0
        %1004 = vmatpush2.msra.mxu0 0.0
        %1005 = vmatprep.subr.mxu0 0.0
        %1006 = vmatpush2.msra.mxu0 0.0
        %1007 = vmatprep.subr.mxu0 0.0
        %1008 = vmatpush2.msra.mxu0 0.0
        %1009 = vmatprep.subr.mxu0 0.0
        %1010 = vmatpush2.msra.mxu0 0.0
        %1011 = vmatprep.subr.mxu0 0.0
        %1012 = vmatpush2.msra.mxu0 0.0
        %1013 = vmatprep.subr.mxu0 0.0
        %1014 = vmatpush2.msra.mxu0 0.0
        %1015 = vmatprep.subr.mxu0 0.0
        %1016 = vmatpush2.msra.mxu0 0.0
        %1017 = vmatprep.mubr.f32.mxu0 0.0
        %1018 = vmatmul.mubr.f32.gmra.mxu0 %v289
        %v1019 = vpop.f32.mrf.mxu0
        %v1020 = vadd.f32 0.0, %v1019
        %v1021 = vpop.f32.mrf.mxu0
        %v1022 = vadd.f32 0.0, %v1021
        %1023 = vmatprep.mubr.f32.mxu0 0.0
        %1024 = vmatmul.mubr.f32.gmra.mxu0 %v292
        %v1025 = vpop.f32.mrf.mxu0
        %v1026 = vadd.f32 0.0, %v1025
        %v1027 = vpop.f32.mrf.mxu0
        %v1028 = vadd.f32 0.0, %v1027
        %1029 = vdwg.mxu0
        %v1031 = vsel %vm294, %v843, 0
        %v1034 = vsel %vm294, %v844, 0
        %v1037 = vsel %vm294, %v845, 0
        %v1040 = vsel %vm294, %v846, 0
        %1042 = vmatprep.subr.mxu0 0.0
        %1043 = vmatpush1.msra.mxu0 0.0
        %1044 = vmatprep.subr.mxu0 0.0
        %1045 = vmatpush1.msra.mxu0 0.0
        %1046 = vmatprep.subr.mxu0 0.0
        %1047 = vmatpush1.msra.mxu0 0.0
        %1048 = vmatprep.subr.mxu0 0.0
        %1049 = vmatpush1.msra.mxu0 0.0
        %1050 = vmatprep.subr.mxu0 0.0
        %1051 = vmatpush1.msra.mxu0 0.0
        %1052 = vmatprep.subr.mxu0 0.0
        %1053 = vmatpush1.msra.mxu0 0.0
        %1054 = vmatprep.subr.mxu0 0.0
        %1055 = vmatpush1.msra.mxu0 0.0
        %1056 = vmatprep.subr.mxu0 0.0
        %1057 = vmatpush1.msra.mxu0 0.0
        %1058 = vmatprep.subr.mxu0 0.0
        %1059 = vmatpush1.msra.mxu0 0.0
        %1060 = vmatprep.subr.mxu0 0.0
        %1061 = vmatpush1.msra.mxu0 0.0
        %1062 = vmatprep.subr.mxu0 0.0
        %1063 = vmatpush1.msra.mxu0 0.0
        %1064 = vmatprep.subr.mxu0 0.0
        %1065 = vmatpush1.msra.mxu0 0.0
        %1066 = vmatprep.subr.mxu0 %v1034
        %1067 = vmatpush1.msra.mxu0 %v1031
        %1068 = vmatprep.subr.mxu0 %v840
        %1069 = vmatpush1.msra.mxu0 %v839
        %1070 = vmatprep.subr.mxu0 %v836
        %1071 = vmatpush1.msra.mxu0 %v835
        %1072 = vmatprep.subr.mxu0 %v832
        %1073 = vmatpush1.msra.mxu0 %v831
        %1074 = vmatprep.subr.mxu0 0.0
        %1075 = vmatpush2.msra.mxu0 0.0
        %1076 = vmatprep.subr.mxu0 0.0
        %1077 = vmatpush2.msra.mxu0 0.0
        %1078 = vmatprep.subr.mxu0 0.0
        %1079 = vmatpush2.msra.mxu0 0.0
        %1080 = vmatprep.subr.mxu0 0.0
        %1081 = vmatpush2.msra.mxu0 0.0
        %1082 = vmatprep.subr.mxu0 0.0
        %1083 = vmatpush2.msra.mxu0 0.0
        %1084 = vmatprep.subr.mxu0 0.0
        %1085 = vmatpush2.msra.mxu0 0.0
        %1086 = vmatprep.subr.mxu0 0.0
        %1087 = vmatpush2.msra.mxu0 0.0
        %1088 = vmatprep.subr.mxu0 0.0
        %1089 = vmatpush2.msra.mxu0 0.0
        %1090 = vmatprep.subr.mxu0 0.0
        %1091 = vmatpush2.msra.mxu0 0.0
        %1092 = vmatprep.subr.mxu0 0.0
        %1093 = vmatpush2.msra.mxu0 0.0
        %1094 = vmatprep.subr.mxu0 0.0
        %1095 = vmatpush2.msra.mxu0 0.0
        %1096 = vmatprep.subr.mxu0 0.0
        %1097 = vmatpush2.msra.mxu0 0.0
        %1098 = vmatprep.subr.mxu0 0.0
        %1099 = vmatpush2.msra.mxu0 0.0
        %1100 = vmatprep.subr.mxu0 0.0
        %1101 = vmatpush2.msra.mxu0 0.0
        %1102 = vmatprep.subr.mxu0 0.0
        %1103 = vmatpush2.msra.mxu0 0.0
        %1104 = vmatprep.subr.mxu0 0.0
        %1105 = vmatpush2.msra.mxu0 0.0
        %1106 = vmatprep.mubr.f32.mxu0 0.0
        %1107 = vmatmul.mubr.f32.gmra.mxu0 %v462
        %v1108 = vpop.f32.mrf.mxu0
        %v1109 = vadd.f32 %v943, %v1108
        %v1110 = vpop.f32.mrf.mxu0
        %v1111 = vadd.f32 %v945, %v1110
        %1112 = vmatprep.mubr.f32.mxu0 0.0
        %1113 = vmatmul.mubr.f32.gmra.mxu0 %v465
        %v1114 = vpop.f32.mrf.mxu0
        %v1115 = vadd.f32 %v949, %v1114
        %v1116 = vpop.f32.mrf.mxu0
        %v1117 = vadd.f32 %v951, %v1116
        %1118 = vdwg.mxu0
        %1119 = vmatprep.subr.mxu0 0.0
        %1120 = vmatpush1.msra.mxu0 0.0
        %1121 = vmatprep.subr.mxu0 0.0
        %1122 = vmatpush1.msra.mxu0 0.0
        %1123 = vmatprep.subr.mxu0 0.0
        %1124 = vmatpush1.msra.mxu0 0.0
        %1125 = vmatprep.subr.mxu0 0.0
        %1126 = vmatpush1.msra.mxu0 0.0
        %1127 = vmatprep.subr.mxu0 0.0
        %1128 = vmatpush1.msra.mxu0 0.0
        %1129 = vmatprep.subr.mxu0 0.0
        %1130 = vmatpush1.msra.mxu0 0.0
        %1131 = vmatprep.subr.mxu0 0.0
        %1132 = vmatpush1.msra.mxu0 0.0
        %1133 = vmatprep.subr.mxu0 0.0
        %1134 = vmatpush1.msra.mxu0 0.0
        %1135 = vmatprep.subr.mxu0 0.0
        %1136 = vmatpush1.msra.mxu0 0.0
        %1137 = vmatprep.subr.mxu0 0.0
        %1138 = vmatpush1.msra.mxu0 0.0
        %1139 = vmatprep.subr.mxu0 0.0
        %1140 = vmatpush1.msra.mxu0 0.0
        %1141 = vmatprep.subr.mxu0 0.0
        %1142 = vmatpush1.msra.mxu0 0.0
        %1143 = vmatprep.subr.mxu0 %v1040
        %1144 = vmatpush1.msra.mxu0 %v1037
        %1145 = vmatprep.subr.mxu0 %v842
        %1146 = vmatpush1.msra.mxu0 %v841
        %1147 = vmatprep.subr.mxu0 %v838
        %1148 = vmatpush1.msra.mxu0 %v837
        %1149 = vmatprep.subr.mxu0 %v834
        %1150 = vmatpush1.msra.mxu0 %v833
        %1151 = vmatprep.subr.mxu0 0.0
        %1152 = vmatpush2.msra.mxu0 0.0
        %1153 = vmatprep.subr.mxu0 0.0
        %1154 = vmatpush2.msra.mxu0 0.0
        %1155 = vmatprep.subr.mxu0 0.0
        %1156 = vmatpush2.msra.mxu0 0.0
        %1157 = vmatprep.subr.mxu0 0.0
        %1158 = vmatpush2.msra.mxu0 0.0
        %1159 = vmatprep.subr.mxu0 0.0
        %1160 = vmatpush2.msra.mxu0 0.0
        %1161 = vmatprep.subr.mxu0 0.0
        %1162 = vmatpush2.msra.mxu0 0.0
        %1163 = vmatprep.subr.mxu0 0.0
        %1164 = vmatpush2.msra.mxu0 0.0
        %1165 = vmatprep.subr.mxu0 0.0
        %1166 = vmatpush2.msra.mxu0 0.0
        %1167 = vmatprep.subr.mxu0 0.0
        %1168 = vmatpush2.msra.mxu0 0.0
        %1169 = vmatprep.subr.mxu0 0.0
        %1170 = vmatpush2.msra.mxu0 0.0
        %1171 = vmatprep.subr.mxu0 0.0
        %1172 = vmatpush2.msra.mxu0 0.0
        %1173 = vmatprep.subr.mxu0 0.0
        %1174 = vmatpush2.msra.mxu0 0.0
        %1175 = vmatprep.subr.mxu0 0.0
        %1176 = vmatpush2.msra.mxu0 0.0
        %1177 = vmatprep.subr.mxu0 0.0
        %1178 = vmatpush2.msra.mxu0 0.0
        %1179 = vmatprep.subr.mxu0 0.0
        %1180 = vmatpush2.msra.mxu0 0.0
        %1181 = vmatprep.subr.mxu0 0.0
        %1182 = vmatpush2.msra.mxu0 0.0
        %1183 = vmatprep.mubr.f32.mxu0 0.0
        %1184 = vmatmul.mubr.f32.gmra.mxu0 %v462
        %v1185 = vpop.f32.mrf.mxu0
        %v1186 = vadd.f32 %v1020, %v1185
        %v1187 = vpop.f32.mrf.mxu0
        %v1188 = vadd.f32 %v1022, %v1187
        %1189 = vmatprep.mubr.f32.mxu0 0.0
        %1190 = vmatmul.mubr.f32.gmra.mxu0 %v465
        %v1191 = vpop.f32.mrf.mxu0
        %v1192 = vadd.f32 %v1026, %v1191
        %v1193 = vpop.f32.mrf.mxu0
        %v1194 = vadd.f32 %v1028, %v1193
        %1195 = vdwg.mxu0
        %s1196 = scalar_lea.vmem [#allocation2], 640
        %v1197 = vld [vmem:[%s1196] sm:$0xff]
        %v1198 = vld [vmem:[%s1196 + $0x8] sm:$0xff]
        %v1199 = vld [vmem:[%s1196 + $0x10] sm:$0xff]
        %v1200 = vld [vmem:[%s1196 + $0x18] sm:$0xff]
        %v1201 = vld [vmem:[%s1196 + $0x20] sm:$0xff]
        %v1202 = vld [vmem:[%s1196 + $0x28] sm:$0xff]
        %v1203 = vld [vmem:[%s1196 + $0x30] sm:$0xff]
        %v1204 = vld [vmem:[%s1196 + $0x38] sm:$0xff]
        %v1205 = vld [vmem:[%s1196 + $0x40] sm:$0xff]
        %v1206 = vld [vmem:[%s1196 + $0x48] sm:$0xff]
        %v1207 = vld [vmem:[%s1196 + $0x50] sm:$0xff]
        %v1208 = vld [vmem:[%s1196 + $0x58] sm:$0xff]
        %v1209 = vld [vmem:[%s1196 + $0x60] sm:$0x3f]
        %v1210 = vld [vmem:[%s1196 + $0x68] sm:$0x3f]
        %v1211 = vld [vmem:[%s1196 + $0x70] sm:$0x3f]
        %v1212 = vld [vmem:[%s1196 + $0x78] sm:$0x3f]
        %v1214 = vsel %vm294, %v1209, 0
        %v1217 = vsel %vm294, %v1210, 0
        %v1220 = vsel %vm294, %v1211, 0
        %v1223 = vsel %vm294, %v1212, 0
        %1225 = vmatprep.subr.mxu0 0.0
        %1226 = vmatpush1.msra.mxu0 0.0
        %1227 = vmatprep.subr.mxu0 0.0
        %1228 = vmatpush1.msra.mxu0 0.0
        %1229 = vmatprep.subr.mxu0 0.0
        %1230 = vmatpush1.msra.mxu0 0.0
        %1231 = vmatprep.subr.mxu0 0.0
        %1232 = vmatpush1.msra.mxu0 0.0
        %1233 = vmatprep.subr.mxu0 0.0
        %1234 = vmatpush1.msra.mxu0 0.0
        %1235 = vmatprep.subr.mxu0 0.0
        %1236 = vmatpush1.msra.mxu0 0.0
        %1237 = vmatprep.subr.mxu0 0.0
        %1238 = vmatpush1.msra.mxu0 0.0
        %1239 = vmatprep.subr.mxu0 0.0
        %1240 = vmatpush1.msra.mxu0 0.0
        %1241 = vmatprep.subr.mxu0 0.0
        %1242 = vmatpush1.msra.mxu0 0.0
        %1243 = vmatprep.subr.mxu0 0.0
        %1244 = vmatpush1.msra.mxu0 0.0
        %1245 = vmatprep.subr.mxu0 0.0
        %1246 = vmatpush1.msra.mxu0 0.0
        %1247 = vmatprep.subr.mxu0 0.0
        %1248 = vmatpush1.msra.mxu0 0.0
        %1249 = vmatprep.subr.mxu0 %v1217
        %1250 = vmatpush1.msra.mxu0 %v1214
        %1251 = vmatprep.subr.mxu0 %v1206
        %1252 = vmatpush1.msra.mxu0 %v1205
        %1253 = vmatprep.subr.mxu0 %v1202
        %1254 = vmatpush1.msra.mxu0 %v1201
        %1255 = vmatprep.subr.mxu0 %v1198
        %1256 = vmatpush1.msra.mxu0 %v1197
        %1257 = vmatprep.subr.mxu0 0.0
        %1258 = vmatpush2.msra.mxu0 0.0
        %1259 = vmatprep.subr.mxu0 0.0
        %1260 = vmatpush2.msra.mxu0 0.0
        %1261 = vmatprep.subr.mxu0 0.0
        %1262 = vmatpush2.msra.mxu0 0.0
        %1263 = vmatprep.subr.mxu0 0.0
        %1264 = vmatpush2.msra.mxu0 0.0
        %1265 = vmatprep.subr.mxu0 0.0
        %1266 = vmatpush2.msra.mxu0 0.0
        %1267 = vmatprep.subr.mxu0 0.0
        %1268 = vmatpush2.msra.mxu0 0.0
        %1269 = vmatprep.subr.mxu0 0.0
        %1270 = vmatpush2.msra.mxu0 0.0
        %1271 = vmatprep.subr.mxu0 0.0
        %1272 = vmatpush2.msra.mxu0 0.0
        %1273 = vmatprep.subr.mxu0 0.0
        %1274 = vmatpush2.msra.mxu0 0.0
        %1275 = vmatprep.subr.mxu0 0.0
        %1276 = vmatpush2.msra.mxu0 0.0
        %1277 = vmatprep.subr.mxu0 0.0
        %1278 = vmatpush2.msra.mxu0 0.0
        %1279 = vmatprep.subr.mxu0 0.0
        %1280 = vmatpush2.msra.mxu0 0.0
        %1281 = vmatprep.subr.mxu0 0.0
        %1282 = vmatpush2.msra.mxu0 0.0
        %1283 = vmatprep.subr.mxu0 0.0
        %1284 = vmatpush2.msra.mxu0 0.0
        %1285 = vmatprep.subr.mxu0 0.0
        %1286 = vmatpush2.msra.mxu0 0.0
        %1287 = vmatprep.subr.mxu0 0.0
        %1288 = vmatpush2.msra.mxu0 0.0
        %1289 = vmatprep.mubr.f32.mxu0 0.0
        %1290 = vmatmul.mubr.f32.gmra.mxu0 %v651
        %v1291 = vpop.f32.mrf.mxu0
        %v1292 = vadd.f32 0.0, %v1291
        %v1293 = vpop.f32.mrf.mxu0
        %v1294 = vadd.f32 0.0, %v1293
        %1295 = vmatprep.mubr.f32.mxu0 0.0
        %1296 = vmatmul.mubr.f32.gmra.mxu0 %v654
        %v1297 = vpop.f32.mrf.mxu0
        %v1298 = vadd.f32 0.0, %v1297
        %v1299 = vpop.f32.mrf.mxu0
        %v1300 = vadd.f32 0.0, %v1299
        %1301 = vdwg.mxu0
        %1302 = vmatprep.subr.mxu0 0.0
        %1303 = vmatpush1.msra.mxu0 0.0
        %1304 = vmatprep.subr.mxu0 0.0
        %1305 = vmatpush1.msra.mxu0 0.0
        %1306 = vmatprep.subr.mxu0 0.0
        %1307 = vmatpush1.msra.mxu0 0.0
        %1308 = vmatprep.subr.mxu0 0.0
        %1309 = vmatpush1.msra.mxu0 0.0
        %1310 = vmatprep.subr.mxu0 0.0
        %1311 = vmatpush1.msra.mxu0 0.0
        %1312 = vmatprep.subr.mxu0 0.0
        %1313 = vmatpush1.msra.mxu0 0.0
        %1314 = vmatprep.subr.mxu0 0.0
        %1315 = vmatpush1.msra.mxu0 0.0
        %1316 = vmatprep.subr.mxu0 0.0
        %1317 = vmatpush1.msra.mxu0 0.0
        %1318 = vmatprep.subr.mxu0 0.0
        %1319 = vmatpush1.msra.mxu0 0.0
        %1320 = vmatprep.subr.mxu0 0.0
        %1321 = vmatpush1.msra.mxu0 0.0
        %1322 = vmatprep.subr.mxu0 0.0
        %1323 = vmatpush1.msra.mxu0 0.0
        %1324 = vmatprep.subr.mxu0 0.0
        %1325 = vmatpush1.msra.mxu0 0.0
        %1326 = vmatprep.subr.mxu0 %v1223
        %1327 = vmatpush1.msra.mxu0 %v1220
        %1328 = vmatprep.subr.mxu0 %v1208
        %1329 = vmatpush1.msra.mxu0 %v1207
        %1330 = vmatprep.subr.mxu0 %v1204
        %1331 = vmatpush1.msra.mxu0 %v1203
        %1332 = vmatprep.subr.mxu0 %v1200
        %1333 = vmatpush1.msra.mxu0 %v1199
        %1334 = vmatprep.subr.mxu0 0.0
        %1335 = vmatpush2.msra.mxu0 0.0
        %1336 = vmatprep.subr.mxu0 0.0
        %1337 = vmatpush2.msra.mxu0 0.0
        %1338 = vmatprep.subr.mxu0 0.0
        %1339 = vmatpush2.msra.mxu0 0.0
        %1340 = vmatprep.subr.mxu0 0.0
        %1341 = vmatpush2.msra.mxu0 0.0
        %1342 = vmatprep.subr.mxu0 0.0
        %1343 = vmatpush2.msra.mxu0 0.0
        %1344 = vmatprep.subr.mxu0 0.0
        %1345 = vmatpush2.msra.mxu0 0.0
        %1346 = vmatprep.subr.mxu0 0.0
        %1347 = vmatpush2.msra.mxu0 0.0
        %1348 = vmatprep.subr.mxu0 0.0
        %1349 = vmatpush2.msra.mxu0 0.0
        %1350 = vmatprep.subr.mxu0 0.0
        %1351 = vmatpush2.msra.mxu0 0.0
        %1352 = vmatprep.subr.mxu0 0.0
        %1353 = vmatpush2.msra.mxu0 0.0
        %1354 = vmatprep.subr.mxu0 0.0
        %1355 = vmatpush2.msra.mxu0 0.0
        %1356 = vmatprep.subr.mxu0 0.0
        %1357 = vmatpush2.msra.mxu0 0.0
        %1358 = vmatprep.subr.mxu0 0.0
        %1359 = vmatpush2.msra.mxu0 0.0
        %1360 = vmatprep.subr.mxu0 0.0
        %1361 = vmatpush2.msra.mxu0 0.0
        %1362 = vmatprep.subr.mxu0 0.0
        %1363 = vmatpush2.msra.mxu0 0.0
        %1364 = vmatprep.subr.mxu0 0.0
        %1365 = vmatpush2.msra.mxu0 0.0
        %1366 = vmatprep.mubr.f32.mxu0 0.0
        %1367 = vmatmul.mubr.f32.gmra.mxu0 %v651
        %v1368 = vpop.f32.mrf.mxu0
        %v1369 = vadd.f32 0.0, %v1368
        %v1370 = vpop.f32.mrf.mxu0
        %v1371 = vadd.f32 0.0, %v1370
        %1372 = vmatprep.mubr.f32.mxu0 0.0
        %1373 = vmatmul.mubr.f32.gmra.mxu0 %v654
        %v1374 = vpop.f32.mrf.mxu0
        %v1375 = vadd.f32 0.0, %v1374
        %v1376 = vpop.f32.mrf.mxu0
        %v1377 = vadd.f32 0.0, %v1376
        %1378 = vdwg.mxu0
        %v1379 = vadd.f32 %v1109, %v1292
        %v1380 = vadd.f32 %v1111, %v1294
        %v1381 = vadd.f32 %v1186, %v1369
        %v1382 = vadd.f32 %v1188, %v1371
        %v1383 = vadd.f32 %v1115, %v1298
        %v1384 = vadd.f32 %v1117, %v1300
        %v1385 = vadd.f32 %v1192, %v1375
        %v1386 = vadd.f32 %v1194, %v1377
        %1387 = vmatprep.subr.mxu0 0.0
        %1388 = vmatpush1.msra.mxu0 0.0
        %1389 = vmatprep.subr.mxu0 0.0
        %1390 = vmatpush1.msra.mxu0 0.0
        %1391 = vmatprep.subr.mxu0 0.0
        %1392 = vmatpush1.msra.mxu0 0.0
        %1393 = vmatprep.subr.mxu0 0.0
        %1394 = vmatpush1.msra.mxu0 0.0
        %1395 = vmatprep.subr.mxu0 0.0
        %1396 = vmatpush1.msra.mxu0 0.0
        %1397 = vmatprep.subr.mxu0 0.0
        %1398 = vmatpush1.msra.mxu0 0.0
        %1399 = vmatprep.subr.mxu0 0.0
        %1400 = vmatpush1.msra.mxu0 0.0
        %1401 = vmatprep.subr.mxu0 0.0
        %1402 = vmatpush1.msra.mxu0 0.0
        %1403 = vmatprep.subr.mxu0 0.0
        %1404 = vmatpush1.msra.mxu0 0.0
        %1405 = vmatprep.subr.mxu0 0.0
        %1406 = vmatpush1.msra.mxu0 0.0
        %1407 = vmatprep.subr.mxu0 0.0
        %1408 = vmatpush1.msra.mxu0 0.0
        %1409 = vmatprep.subr.mxu0 0.0
        %1410 = vmatpush1.msra.mxu0 0.0
        %1411 = vmatprep.subr.mxu0 %v299
        %1412 = vmatpush1.msra.mxu0 %v296
        %1413 = vmatprep.subr.mxu0 %v280
        %1414 = vmatpush1.msra.mxu0 %v279
        %1415 = vmatprep.subr.mxu0 %v276
        %1416 = vmatpush1.msra.mxu0 %v275
        %1417 = vmatprep.subr.mxu0 %v272
        %1418 = vmatpush1.msra.mxu0 %v271
        %1419 = vmatprep.subr.mxu0 0.0
        %1420 = vmatpush2.msra.mxu0 0.0
        %1421 = vmatprep.subr.mxu0 0.0
        %1422 = vmatpush2.msra.mxu0 0.0
        %1423 = vmatprep.subr.mxu0 0.0
        %1424 = vmatpush2.msra.mxu0 0.0
        %1425 = vmatprep.subr.mxu0 0.0
        %1426 = vmatpush2.msra.mxu0 0.0
        %1427 = vmatprep.subr.mxu0 0.0
        %1428 = vmatpush2.msra.mxu0 0.0
        %1429 = vmatprep.subr.mxu0 0.0
        %1430 = vmatpush2.msra.mxu0 0.0
        %1431 = vmatprep.subr.mxu0 0.0
        %1432 = vmatpush2.msra.mxu0 0.0
        %1433 = vmatprep.subr.mxu0 0.0
        %1434 = vmatpush2.msra.mxu0 0.0
        %1435 = vmatprep.subr.mxu0 0.0
        %1436 = vmatpush2.msra.mxu0 0.0
        %1437 = vmatprep.subr.mxu0 0.0
        %1438 = vmatpush2.msra.mxu0 0.0
        %1439 = vmatprep.subr.mxu0 0.0
        %1440 = vmatpush2.msra.mxu0 0.0
        %1441 = vmatprep.subr.mxu0 0.0
        %1442 = vmatpush2.msra.mxu0 0.0
        %1443 = vmatprep.subr.mxu0 0.0
        %1444 = vmatpush2.msra.mxu0 0.0
        %1445 = vmatprep.subr.mxu0 0.0
        %1446 = vmatpush2.msra.mxu0 0.0
        %1447 = vmatprep.subr.mxu0 0.0
        %1448 = vmatpush2.msra.mxu0 0.0
        %1449 = vmatprep.subr.mxu0 0.0
        %1450 = vmatpush2.msra.mxu0 0.0
        %1451 = vmatprep.mubr.f32.mxu0 0.0
        %1452 = vmatmul.mubr.f32.gmra.mxu0 %v651
        %v1453 = vpop.f32.mrf.mxu0
        %v1454 = vadd.f32 0.0, %v1453
        %v1455 = vpop.f32.mrf.mxu0
        %v1456 = vadd.f32 0.0, %v1455
        %1457 = vmatprep.mubr.f32.mxu0 0.0
        %1458 = vmatmul.mubr.f32.gmra.mxu0 %v654
        %v1459 = vpop.f32.mrf.mxu0
        %v1460 = vadd.f32 0.0, %v1459
        %v1461 = vpop.f32.mrf.mxu0
        %v1462 = vadd.f32 0.0, %v1461
        %1463 = vdwg.mxu0
        %1464 = vmatprep.subr.mxu0 0.0
        %1465 = vmatpush1.msra.mxu0 0.0
        %1466 = vmatprep.subr.mxu0 0.0
        %1467 = vmatpush1.msra.mxu0 0.0
        %1468 = vmatprep.subr.mxu0 0.0
        %1469 = vmatpush1.msra.mxu0 0.0
        %1470 = vmatprep.subr.mxu0 0.0
        %1471 = vmatpush1.msra.mxu0 0.0
        %1472 = vmatprep.subr.mxu0 0.0
        %1473 = vmatpush1.msra.mxu0 0.0
        %1474 = vmatprep.subr.mxu0 0.0
        %1475 = vmatpush1.msra.mxu0 0.0
        %1476 = vmatprep.subr.mxu0 0.0
        %1477 = vmatpush1.msra.mxu0 0.0
        %1478 = vmatprep.subr.mxu0 0.0
        %1479 = vmatpush1.msra.mxu0 0.0
        %1480 = vmatprep.subr.mxu0 0.0
        %1481 = vmatpush1.msra.mxu0 0.0
        %1482 = vmatprep.subr.mxu0 0.0
        %1483 = vmatpush1.msra.mxu0 0.0
        %1484 = vmatprep.subr.mxu0 0.0
        %1485 = vmatpush1.msra.mxu0 0.0
        %1486 = vmatprep.subr.mxu0 0.0
        %1487 = vmatpush1.msra.mxu0 0.0
        %1488 = vmatprep.subr.mxu0 %v305
        %1489 = vmatpush1.msra.mxu0 %v302
        %1490 = vmatprep.subr.mxu0 %v282
        %1491 = vmatpush1.msra.mxu0 %v281
        %1492 = vmatprep.subr.mxu0 %v278
        %1493 = vmatpush1.msra.mxu0 %v277
        %1494 = vmatprep.subr.mxu0 %v274
        %1495 = vmatpush1.msra.mxu0 %v273
        %1496 = vmatprep.subr.mxu0 0.0
        %1497 = vmatpush2.msra.mxu0 0.0
        %1498 = vmatprep.subr.mxu0 0.0
        %1499 = vmatpush2.msra.mxu0 0.0
        %1500 = vmatprep.subr.mxu0 0.0
        %1501 = vmatpush2.msra.mxu0 0.0
        %1502 = vmatprep.subr.mxu0 0.0
        %1503 = vmatpush2.msra.mxu0 0.0
        %1504 = vmatprep.subr.mxu0 0.0
        %1505 = vmatpush2.msra.mxu0 0.0
        %1506 = vmatprep.subr.mxu0 0.0
        %1507 = vmatpush2.msra.mxu0 0.0
        %1508 = vmatprep.subr.mxu0 0.0
        %1509 = vmatpush2.msra.mxu0 0.0
        %1510 = vmatprep.subr.mxu0 0.0
        %1511 = vmatpush2.msra.mxu0 0.0
        %1512 = vmatprep.subr.mxu0 0.0
        %1513 = vmatpush2.msra.mxu0 0.0
        %1514 = vmatprep.subr.mxu0 0.0
        %1515 = vmatpush2.msra.mxu0 0.0
        %1516 = vmatprep.subr.mxu0 0.0
        %1517 = vmatpush2.msra.mxu0 0.0
        %1518 = vmatprep.subr.mxu0 0.0
        %1519 = vmatpush2.msra.mxu0 0.0
        %1520 = vmatprep.subr.mxu0 0.0
        %1521 = vmatpush2.msra.mxu0 0.0
        %1522 = vmatprep.subr.mxu0 0.0
        %1523 = vmatpush2.msra.mxu0 0.0
        %1524 = vmatprep.subr.mxu0 0.0
        %1525 = vmatpush2.msra.mxu0 0.0
        %1526 = vmatprep.subr.mxu0 0.0
        %1527 = vmatpush2.msra.mxu0 0.0
        %1528 = vmatprep.mubr.f32.mxu0 0.0
        %1529 = vmatmul.mubr.f32.gmra.mxu0 %v651
        %v1530 = vpop.f32.mrf.mxu0
        %v1531 = vadd.f32 0.0, %v1530
        %v1532 = vpop.f32.mrf.mxu0
        %v1533 = vadd.f32 0.0, %v1532
        %1534 = vmatprep.mubr.f32.mxu0 0.0
        %1535 = vmatmul.mubr.f32.gmra.mxu0 %v654
        %v1536 = vpop.f32.mrf.mxu0
        %v1537 = vadd.f32 0.0, %v1536
        %v1538 = vpop.f32.mrf.mxu0
        %v1539 = vadd.f32 0.0, %v1538
        %1540 = vdwg.mxu0
        %1541 = vmatprep.subr.mxu0 0.0
        %1542 = vmatpush1.msra.mxu0 0.0
        %1543 = vmatprep.subr.mxu0 0.0
        %1544 = vmatpush1.msra.mxu0 0.0
        %1545 = vmatprep.subr.mxu0 0.0
        %1546 = vmatpush1.msra.mxu0 0.0
        %1547 = vmatprep.subr.mxu0 0.0
        %1548 = vmatpush1.msra.mxu0 0.0
        %1549 = vmatprep.subr.mxu0 0.0
        %1550 = vmatpush1.msra.mxu0 0.0
        %1551 = vmatprep.subr.mxu0 0.0
        %1552 = vmatpush1.msra.mxu0 0.0
        %1553 = vmatprep.subr.mxu0 0.0
        %1554 = vmatpush1.msra.mxu0 0.0
        %1555 = vmatprep.subr.mxu0 0.0
        %1556 = vmatpush1.msra.mxu0 0.0
        %1557 = vmatprep.subr.mxu0 0.0
        %1558 = vmatpush1.msra.mxu0 0.0
        %1559 = vmatprep.subr.mxu0 0.0
        %1560 = vmatpush1.msra.mxu0 0.0
        %1561 = vmatprep.subr.mxu0 0.0
        %1562 = vmatpush1.msra.mxu0 0.0
        %1563 = vmatprep.subr.mxu0 0.0
        %1564 = vmatpush1.msra.mxu0 0.0
        %1565 = vmatprep.subr.mxu0 %v471
        %1566 = vmatpush1.msra.mxu0 %v468
        %1567 = vmatprep.subr.mxu0 %v263
        %1568 = vmatpush1.msra.mxu0 %v262
        %1569 = vmatprep.subr.mxu0 %v259
        %1570 = vmatpush1.msra.mxu0 %v258
        %1571 = vmatprep.subr.mxu0 %v255
        %1572 = vmatpush1.msra.mxu0 %v254
        %1573 = vmatprep.subr.mxu0 0.0
        %1574 = vmatpush2.msra.mxu0 0.0
        %1575 = vmatprep.subr.mxu0 0.0
        %1576 = vmatpush2.msra.mxu0 0.0
        %1577 = vmatprep.subr.mxu0 0.0
        %1578 = vmatpush2.msra.mxu0 0.0
        %1579 = vmatprep.subr.mxu0 0.0
        %1580 = vmatpush2.msra.mxu0 0.0
        %1581 = vmatprep.subr.mxu0 0.0
        %1582 = vmatpush2.msra.mxu0 0.0
        %1583 = vmatprep.subr.mxu0 0.0
        %1584 = vmatpush2.msra.mxu0 0.0
        %1585 = vmatprep.subr.mxu0 0.0
        %1586 = vmatpush2.msra.mxu0 0.0
        %1587 = vmatprep.subr.mxu0 0.0
        %1588 = vmatpush2.msra.mxu0 0.0
        %1589 = vmatprep.subr.mxu0 0.0
        %1590 = vmatpush2.msra.mxu0 0.0
        %1591 = vmatprep.subr.mxu0 0.0
        %1592 = vmatpush2.msra.mxu0 0.0
        %1593 = vmatprep.subr.mxu0 0.0
        %1594 = vmatpush2.msra.mxu0 0.0
        %1595 = vmatprep.subr.mxu0 0.0
        %1596 = vmatpush2.msra.mxu0 0.0
        %1597 = vmatprep.subr.mxu0 0.0
        %1598 = vmatpush2.msra.mxu0 0.0
        %1599 = vmatprep.subr.mxu0 0.0
        %1600 = vmatpush2.msra.mxu0 0.0
        %1601 = vmatprep.subr.mxu0 0.0
        %1602 = vmatpush2.msra.mxu0 0.0
        %1603 = vmatprep.subr.mxu0 0.0
        %1604 = vmatpush2.msra.mxu0 0.0
        %1605 = vmatprep.mubr.f32.mxu0 0.0
        %1606 = vmatmul.mubr.f32.gmra.mxu0 %v289
        %v1607 = vpop.f32.mrf.mxu0
        %v1608 = vadd.f32 %v1454, %v1607
        %v1609 = vpop.f32.mrf.mxu0
        %v1610 = vadd.f32 %v1456, %v1609
        %1611 = vmatprep.mubr.f32.mxu0 0.0
        %1612 = vmatmul.mubr.f32.gmra.mxu0 %v292
        %v1613 = vpop.f32.mrf.mxu0
        %v1614 = vadd.f32 %v1460, %v1613
        %v1615 = vpop.f32.mrf.mxu0
        %v1616 = vadd.f32 %v1462, %v1615
        %1617 = vdwg.mxu0
        %1618 = vmatprep.subr.mxu0 0.0
        %1619 = vmatpush1.msra.mxu0 0.0
        %1620 = vmatprep.subr.mxu0 0.0
        %1621 = vmatpush1.msra.mxu0 0.0
        %1622 = vmatprep.subr.mxu0 0.0
        %1623 = vmatpush1.msra.mxu0 0.0
        %1624 = vmatprep.subr.mxu0 0.0
        %1625 = vmatpush1.msra.mxu0 0.0
        %1626 = vmatprep.subr.mxu0 0.0
        %1627 = vmatpush1.msra.mxu0 0.0
        %1628 = vmatprep.subr.mxu0 0.0
        %1629 = vmatpush1.msra.mxu0 0.0
        %1630 = vmatprep.subr.mxu0 0.0
        %1631 = vmatpush1.msra.mxu0 0.0
        %1632 = vmatprep.subr.mxu0 0.0
        %1633 = vmatpush1.msra.mxu0 0.0
        %1634 = vmatprep.subr.mxu0 0.0
        %1635 = vmatpush1.msra.mxu0 0.0
        %1636 = vmatprep.subr.mxu0 0.0
        %1637 = vmatpush1.msra.mxu0 0.0
        %1638 = vmatprep.subr.mxu0 0.0
        %1639 = vmatpush1.msra.mxu0 0.0
        %1640 = vmatprep.subr.mxu0 0.0
        %1641 = vmatpush1.msra.mxu0 0.0
        %1642 = vmatprep.subr.mxu0 %v477
        %1643 = vmatpush1.msra.mxu0 %v474
        %1644 = vmatprep.subr.mxu0 %v265
        %1645 = vmatpush1.msra.mxu0 %v264
        %1646 = vmatprep.subr.mxu0 %v261
        %1647 = vmatpush1.msra.mxu0 %v260
        %1648 = vmatprep.subr.mxu0 %v257
        %1649 = vmatpush1.msra.mxu0 %v256
        %1650 = vmatprep.subr.mxu0 0.0
        %1651 = vmatpush2.msra.mxu0 0.0
        %1652 = vmatprep.subr.mxu0 0.0
        %1653 = vmatpush2.msra.mxu0 0.0
        %1654 = vmatprep.subr.mxu0 0.0
        %1655 = vmatpush2.msra.mxu0 0.0
        %1656 = vmatprep.subr.mxu0 0.0
        %1657 = vmatpush2.msra.mxu0 0.0
        %1658 = vmatprep.subr.mxu0 0.0
        %1659 = vmatpush2.msra.mxu0 0.0
        %1660 = vmatprep.subr.mxu0 0.0
        %1661 = vmatpush2.msra.mxu0 0.0
        %1662 = vmatprep.subr.mxu0 0.0
        %1663 = vmatpush2.msra.mxu0 0.0
        %1664 = vmatprep.subr.mxu0 0.0
        %1665 = vmatpush2.msra.mxu0 0.0
        %1666 = vmatprep.subr.mxu0 0.0
        %1667 = vmatpush2.msra.mxu0 0.0
        %1668 = vmatprep.subr.mxu0 0.0
        %1669 = vmatpush2.msra.mxu0 0.0
        %1670 = vmatprep.subr.mxu0 0.0
        %1671 = vmatpush2.msra.mxu0 0.0
        %1672 = vmatprep.subr.mxu0 0.0
        %1673 = vmatpush2.msra.mxu0 0.0
        %1674 = vmatprep.subr.mxu0 0.0
        %1675 = vmatpush2.msra.mxu0 0.0
        %1676 = vmatprep.subr.mxu0 0.0
        %1677 = vmatpush2.msra.mxu0 0.0
        %1678 = vmatprep.subr.mxu0 0.0
        %1679 = vmatpush2.msra.mxu0 0.0
        %1680 = vmatprep.subr.mxu0 0.0
        %1681 = vmatpush2.msra.mxu0 0.0
        %1682 = vmatprep.mubr.f32.mxu0 0.0
        %1683 = vmatmul.mubr.f32.gmra.mxu0 %v289
        %v1684 = vpop.f32.mrf.mxu0
        %v1685 = vadd.f32 %v1531, %v1684
        %v1686 = vpop.f32.mrf.mxu0
        %v1687 = vadd.f32 %v1533, %v1686
        %1688 = vmatprep.mubr.f32.mxu0 0.0
        %1689 = vmatmul.mubr.f32.gmra.mxu0 %v292
        %v1690 = vpop.f32.mrf.mxu0
        %v1691 = vadd.f32 %v1537, %v1690
        %v1692 = vpop.f32.mrf.mxu0
        %v1693 = vadd.f32 %v1539, %v1692
        %1694 = vdwg.mxu0
        %v1696 = vsel %vm287, %v252, 0
        %v1699 = vsel %vm287, %v253, 0
        %1701 = vmatprep.subr.mxu0 0.0
        %1702 = vmatpush1.msra.mxu0 0.0
        %1703 = vmatprep.subr.mxu0 0.0
        %1704 = vmatpush1.msra.mxu0 0.0
        %1705 = vmatprep.subr.mxu0 0.0
        %1706 = vmatpush1.msra.mxu0 0.0
        %1707 = vmatprep.subr.mxu0 0.0
        %1708 = vmatpush1.msra.mxu0 0.0
        %1709 = vmatprep.subr.mxu0 0.0
        %1710 = vmatpush1.msra.mxu0 0.0
        %1711 = vmatprep.subr.mxu0 0.0
        %1712 = vmatpush1.msra.mxu0 0.0
        %1713 = vmatprep.subr.mxu0 0.0
        %1714 = vmatpush1.msra.mxu0 0.0
        %1715 = vmatprep.subr.mxu0 0.0
        %1716 = vmatpush1.msra.mxu0 0.0
        %1717 = vmatprep.subr.mxu0 0.0
        %1718 = vmatpush1.msra.mxu0 0.0
        %1719 = vmatprep.subr.mxu0 0.0
        %1720 = vmatpush1.msra.mxu0 0.0
        %1721 = vmatprep.subr.mxu0 0.0
        %1722 = vmatpush1.msra.mxu0 0.0
        %1723 = vmatprep.subr.mxu0 0.0
        %1724 = vmatpush1.msra.mxu0 0.0
        %1725 = vmatprep.subr.mxu0 %v660
        %1726 = vmatpush1.msra.mxu0 %v657
        %1727 = vmatprep.subr.mxu0 %v643
        %1728 = vmatpush1.msra.mxu0 %v642
        %1729 = vmatprep.subr.mxu0 %v639
        %1730 = vmatpush1.msra.mxu0 %v638
        %1731 = vmatprep.subr.mxu0 %v635
        %1732 = vmatpush1.msra.mxu0 %v634
        %1733 = vmatprep.subr.mxu0 0.0
        %1734 = vmatpush2.msra.mxu0 0.0
        %1735 = vmatprep.subr.mxu0 0.0
        %1736 = vmatpush2.msra.mxu0 0.0
        %1737 = vmatprep.subr.mxu0 0.0
        %1738 = vmatpush2.msra.mxu0 0.0
        %1739 = vmatprep.subr.mxu0 0.0
        %1740 = vmatpush2.msra.mxu0 0.0
        %1741 = vmatprep.subr.mxu0 0.0
        %1742 = vmatpush2.msra.mxu0 0.0
        %1743 = vmatprep.subr.mxu0 0.0
        %1744 = vmatpush2.msra.mxu0 0.0
        %1745 = vmatprep.subr.mxu0 0.0
        %1746 = vmatpush2.msra.mxu0 0.0
        %1747 = vmatprep.subr.mxu0 0.0
        %1748 = vmatpush2.msra.mxu0 0.0
        %1749 = vmatprep.subr.mxu0 0.0
        %1750 = vmatpush2.msra.mxu0 0.0
        %1751 = vmatprep.subr.mxu0 0.0
        %1752 = vmatpush2.msra.mxu0 0.0
        %1753 = vmatprep.subr.mxu0 0.0
        %1754 = vmatpush2.msra.mxu0 0.0
        %1755 = vmatprep.subr.mxu0 0.0
        %1756 = vmatpush2.msra.mxu0 0.0
        %1757 = vmatprep.subr.mxu0 0.0
        %1758 = vmatpush2.msra.mxu0 0.0
        %1759 = vmatprep.subr.mxu0 0.0
        %1760 = vmatpush2.msra.mxu0 0.0
        %1761 = vmatprep.subr.mxu0 0.0
        %1762 = vmatpush2.msra.mxu0 0.0
        %1763 = vmatprep.subr.mxu0 0.0
        %1764 = vmatpush2.msra.mxu0 0.0
        %1765 = vmatprep.mubr.f32.mxu0 0.0
        %1766 = vmatmul.mubr.f32.gmra.mxu0 %v1696
        %v1767 = vpop.f32.mrf.mxu0
        %v1768 = vadd.f32 0.0, %v1767
        %v1769 = vpop.f32.mrf.mxu0
        %v1770 = vadd.f32 0.0, %v1769
        %1771 = vmatprep.mubr.f32.mxu0 0.0
        %1772 = vmatmul.mubr.f32.gmra.mxu0 %v1699
        %v1773 = vpop.f32.mrf.mxu0
        %v1774 = vadd.f32 0.0, %v1773
        %v1775 = vpop.f32.mrf.mxu0
        %v1776 = vadd.f32 0.0, %v1775
        %1777 = vdwg.mxu0
        %1778 = vmatprep.subr.mxu0 0.0
        %1779 = vmatpush1.msra.mxu0 0.0
        %1780 = vmatprep.subr.mxu0 0.0
        %1781 = vmatpush1.msra.mxu0 0.0
        %1782 = vmatprep.subr.mxu0 0.0
        %1783 = vmatpush1.msra.mxu0 0.0
        %1784 = vmatprep.subr.mxu0 0.0
        %1785 = vmatpush1.msra.mxu0 0.0
        %1786 = vmatprep.subr.mxu0 0.0
        %1787 = vmatpush1.msra.mxu0 0.0
        %1788 = vmatprep.subr.mxu0 0.0
        %1789 = vmatpush1.msra.mxu0 0.0
        %1790 = vmatprep.subr.mxu0 0.0
        %1791 = vmatpush1.msra.mxu0 0.0
        %1792 = vmatprep.subr.mxu0 0.0
        %1793 = vmatpush1.msra.mxu0 0.0
        %1794 = vmatprep.subr.mxu0 0.0
        %1795 = vmatpush1.msra.mxu0 0.0
        %1796 = vmatprep.subr.mxu0 0.0
        %1797 = vmatpush1.msra.mxu0 0.0
        %1798 = vmatprep.subr.mxu0 0.0
        %1799 = vmatpush1.msra.mxu0 0.0
        %1800 = vmatprep.subr.mxu0 0.0
        %1801 = vmatpush1.msra.mxu0 0.0
        %1802 = vmatprep.subr.mxu0 %v666
        %1803 = vmatpush1.msra.mxu0 %v663
        %1804 = vmatprep.subr.mxu0 %v645
        %1805 = vmatpush1.msra.mxu0 %v644
        %1806 = vmatprep.subr.mxu0 %v641
        %1807 = vmatpush1.msra.mxu0 %v640
        %1808 = vmatprep.subr.mxu0 %v637
        %1809 = vmatpush1.msra.mxu0 %v636
        %1810 = vmatprep.subr.mxu0 0.0
        %1811 = vmatpush2.msra.mxu0 0.0
        %1812 = vmatprep.subr.mxu0 0.0
        %1813 = vmatpush2.msra.mxu0 0.0
        %1814 = vmatprep.subr.mxu0 0.0
        %1815 = vmatpush2.msra.mxu0 0.0
        %1816 = vmatprep.subr.mxu0 0.0
        %1817 = vmatpush2.msra.mxu0 0.0
        %1818 = vmatprep.subr.mxu0 0.0
        %1819 = vmatpush2.msra.mxu0 0.0
        %1820 = vmatprep.subr.mxu0 0.0
        %1821 = vmatpush2.msra.mxu0 0.0
        %1822 = vmatprep.subr.mxu0 0.0
        %1823 = vmatpush2.msra.mxu0 0.0
        %1824 = vmatprep.subr.mxu0 0.0
        %1825 = vmatpush2.msra.mxu0 0.0
        %1826 = vmatprep.subr.mxu0 0.0
        %1827 = vmatpush2.msra.mxu0 0.0
        %1828 = vmatprep.subr.mxu0 0.0
        %1829 = vmatpush2.msra.mxu0 0.0
        %1830 = vmatprep.subr.mxu0 0.0
        %1831 = vmatpush2.msra.mxu0 0.0
        %1832 = vmatprep.subr.mxu0 0.0
        %1833 = vmatpush2.msra.mxu0 0.0
        %1834 = vmatprep.subr.mxu0 0.0
        %1835 = vmatpush2.msra.mxu0 0.0
        %1836 = vmatprep.subr.mxu0 0.0
        %1837 = vmatpush2.msra.mxu0 0.0
        %1838 = vmatprep.subr.mxu0 0.0
        %1839 = vmatpush2.msra.mxu0 0.0
        %1840 = vmatprep.subr.mxu0 0.0
        %1841 = vmatpush2.msra.mxu0 0.0
        %1842 = vmatprep.mubr.f32.mxu0 0.0
        %1843 = vmatmul.mubr.f32.gmra.mxu0 %v1696
        %v1844 = vpop.f32.mrf.mxu0
        %v1845 = vadd.f32 0.0, %v1844
        %v1846 = vpop.f32.mrf.mxu0
        %v1847 = vadd.f32 0.0, %v1846
        %1848 = vmatprep.mubr.f32.mxu0 0.0
        %1849 = vmatmul.mubr.f32.gmra.mxu0 %v1699
        %v1850 = vpop.f32.mrf.mxu0
        %v1851 = vadd.f32 0.0, %v1850
        %v1852 = vpop.f32.mrf.mxu0
        %v1853 = vadd.f32 0.0, %v1852
        %1854 = vdwg.mxu0
        %v1855 = vadd.f32 %v1608, %v1768
        %v1856 = vadd.f32 %v1610, %v1770
        %v1857 = vadd.f32 %v1685, %v1845
        %v1858 = vadd.f32 %v1687, %v1847
        %v1859 = vadd.f32 %v1614, %v1774
        %v1860 = vadd.f32 %v1616, %v1776
        %v1861 = vadd.f32 %v1691, %v1851
        %v1862 = vadd.f32 %v1693, %v1853
        %1863 = vmatprep.subr.mxu0 0.0
        %1864 = vmatpush1.msra.mxu0 0.0
        %1865 = vmatprep.subr.mxu0 0.0
        %1866 = vmatpush1.msra.mxu0 0.0
        %1867 = vmatprep.subr.mxu0 0.0
        %1868 = vmatpush1.msra.mxu0 0.0
        %1869 = vmatprep.subr.mxu0 0.0
        %1870 = vmatpush1.msra.mxu0 0.0
        %1871 = vmatprep.subr.mxu0 0.0
        %1872 = vmatpush1.msra.mxu0 0.0
        %1873 = vmatprep.subr.mxu0 0.0
        %1874 = vmatpush1.msra.mxu0 0.0
        %1875 = vmatprep.subr.mxu0 0.0
        %1876 = vmatpush1.msra.mxu0 0.0
        %1877 = vmatprep.subr.mxu0 0.0
        %1878 = vmatpush1.msra.mxu0 0.0
        %1879 = vmatprep.subr.mxu0 0.0
        %1880 = vmatpush1.msra.mxu0 0.0
        %1881 = vmatprep.subr.mxu0 0.0
        %1882 = vmatpush1.msra.mxu0 0.0
        %1883 = vmatprep.subr.mxu0 0.0
        %1884 = vmatpush1.msra.mxu0 0.0
        %1885 = vmatprep.subr.mxu0 0.0
        %1886 = vmatpush1.msra.mxu0 0.0
        %1887 = vmatprep.subr.mxu0 %v868
        %1888 = vmatpush1.msra.mxu0 %v865
        %1889 = vmatprep.subr.mxu0 %v857
        %1890 = vmatpush1.msra.mxu0 %v856
        %1891 = vmatprep.subr.mxu0 %v853
        %1892 = vmatpush1.msra.mxu0 %v852
        %1893 = vmatprep.subr.mxu0 %v849
        %1894 = vmatpush1.msra.mxu0 %v848
        %1895 = vmatprep.subr.mxu0 0.0
        %1896 = vmatpush2.msra.mxu0 0.0
        %1897 = vmatprep.subr.mxu0 0.0
        %1898 = vmatpush2.msra.mxu0 0.0
        %1899 = vmatprep.subr.mxu0 0.0
        %1900 = vmatpush2.msra.mxu0 0.0
        %1901 = vmatprep.subr.mxu0 0.0
        %1902 = vmatpush2.msra.mxu0 0.0
        %1903 = vmatprep.subr.mxu0 0.0
        %1904 = vmatpush2.msra.mxu0 0.0
        %1905 = vmatprep.subr.mxu0 0.0
        %1906 = vmatpush2.msra.mxu0 0.0
        %1907 = vmatprep.subr.mxu0 0.0
        %1908 = vmatpush2.msra.mxu0 0.0
        %1909 = vmatprep.subr.mxu0 0.0
        %1910 = vmatpush2.msra.mxu0 0.0
        %1911 = vmatprep.subr.mxu0 0.0
        %1912 = vmatpush2.msra.mxu0 0.0
        %1913 = vmatprep.subr.mxu0 0.0
        %1914 = vmatpush2.msra.mxu0 0.0
        %1915 = vmatprep.subr.mxu0 0.0
        %1916 = vmatpush2.msra.mxu0 0.0
        %1917 = vmatprep.subr.mxu0 0.0
        %1918 = vmatpush2.msra.mxu0 0.0
        %1919 = vmatprep.subr.mxu0 0.0
        %1920 = vmatpush2.msra.mxu0 0.0
        %1921 = vmatprep.subr.mxu0 0.0
        %1922 = vmatpush2.msra.mxu0 0.0
        %1923 = vmatprep.subr.mxu0 0.0
        %1924 = vmatpush2.msra.mxu0 0.0
        %1925 = vmatprep.subr.mxu0 0.0
        %1926 = vmatpush2.msra.mxu0 0.0
        %1927 = vmatprep.mubr.f32.mxu0 0.0
        %1928 = vmatmul.mubr.f32.gmra.mxu0 %v651
        %v1929 = vpop.f32.mrf.mxu0
        %v1930 = vadd.f32 0.0, %v1929
        %v1931 = vpop.f32.mrf.mxu0
        %v1932 = vadd.f32 0.0, %v1931
        %1933 = vmatprep.mubr.f32.mxu0 0.0
        %1934 = vmatmul.mubr.f32.gmra.mxu0 %v654
        %v1935 = vpop.f32.mrf.mxu0
        %v1936 = vadd.f32 0.0, %v1935
        %v1937 = vpop.f32.mrf.mxu0
        %v1938 = vadd.f32 0.0, %v1937
        %1939 = vdwg.mxu0
        %1940 = vmatprep.subr.mxu0 0.0
        %1941 = vmatpush1.msra.mxu0 0.0
        %1942 = vmatprep.subr.mxu0 0.0
        %1943 = vmatpush1.msra.mxu0 0.0
        %1944 = vmatprep.subr.mxu0 0.0
        %1945 = vmatpush1.msra.mxu0 0.0
        %1946 = vmatprep.subr.mxu0 0.0
        %1947 = vmatpush1.msra.mxu0 0.0
        %1948 = vmatprep.subr.mxu0 0.0
        %1949 = vmatpush1.msra.mxu0 0.0
        %1950 = vmatprep.subr.mxu0 0.0
        %1951 = vmatpush1.msra.mxu0 0.0
        %1952 = vmatprep.subr.mxu0 0.0
        %1953 = vmatpush1.msra.mxu0 0.0
        %1954 = vmatprep.subr.mxu0 0.0
        %1955 = vmatpush1.msra.mxu0 0.0
        %1956 = vmatprep.subr.mxu0 0.0
        %1957 = vmatpush1.msra.mxu0 0.0
        %1958 = vmatprep.subr.mxu0 0.0
        %1959 = vmatpush1.msra.mxu0 0.0
        %1960 = vmatprep.subr.mxu0 0.0
        %1961 = vmatpush1.msra.mxu0 0.0
        %1962 = vmatprep.subr.mxu0 0.0
        %1963 = vmatpush1.msra.mxu0 0.0
        %1964 = vmatprep.subr.mxu0 %v874
        %1965 = vmatpush1.msra.mxu0 %v871
        %1966 = vmatprep.subr.mxu0 %v859
        %1967 = vmatpush1.msra.mxu0 %v858
        %1968 = vmatprep.subr.mxu0 %v855
        %1969 = vmatpush1.msra.mxu0 %v854
        %1970 = vmatprep.subr.mxu0 %v851
        %1971 = vmatpush1.msra.mxu0 %v850
        %1972 = vmatprep.subr.mxu0 0.0
        %1973 = vmatpush2.msra.mxu0 0.0
        %1974 = vmatprep.subr.mxu0 0.0
        %1975 = vmatpush2.msra.mxu0 0.0
        %1976 = vmatprep.subr.mxu0 0.0
        %1977 = vmatpush2.msra.mxu0 0.0
        %1978 = vmatprep.subr.mxu0 0.0
        %1979 = vmatpush2.msra.mxu0 0.0
        %1980 = vmatprep.subr.mxu0 0.0
        %1981 = vmatpush2.msra.mxu0 0.0
        %1982 = vmatprep.subr.mxu0 0.0
        %1983 = vmatpush2.msra.mxu0 0.0
        %1984 = vmatprep.subr.mxu0 0.0
        %1985 = vmatpush2.msra.mxu0 0.0
        %1986 = vmatprep.subr.mxu0 0.0
        %1987 = vmatpush2.msra.mxu0 0.0
        %1988 = vmatprep.subr.mxu0 0.0
        %1989 = vmatpush2.msra.mxu0 0.0
        %1990 = vmatprep.subr.mxu0 0.0
        %1991 = vmatpush2.msra.mxu0 0.0
        %1992 = vmatprep.subr.mxu0 0.0
        %1993 = vmatpush2.msra.mxu0 0.0
        %1994 = vmatprep.subr.mxu0 0.0
        %1995 = vmatpush2.msra.mxu0 0.0
        %1996 = vmatprep.subr.mxu0 0.0
        %1997 = vmatpush2.msra.mxu0 0.0
        %1998 = vmatprep.subr.mxu0 0.0
        %1999 = vmatpush2.msra.mxu0 0.0
        %2000 = vmatprep.subr.mxu0 0.0
        %2001 = vmatpush2.msra.mxu0 0.0
        %2002 = vmatprep.subr.mxu0 0.0
        %2003 = vmatpush2.msra.mxu0 0.0
        %2004 = vmatprep.mubr.f32.mxu0 0.0
        %2005 = vmatmul.mubr.f32.gmra.mxu0 %v651
        %v2006 = vpop.f32.mrf.mxu0
        %v2007 = vadd.f32 0.0, %v2006
        %v2008 = vpop.f32.mrf.mxu0
        %v2009 = vadd.f32 0.0, %v2008
        %2010 = vmatprep.mubr.f32.mxu0 0.0
        %2011 = vmatmul.mubr.f32.gmra.mxu0 %v654
        %v2012 = vpop.f32.mrf.mxu0
        %v2013 = vadd.f32 0.0, %v2012
        %v2014 = vpop.f32.mrf.mxu0
        %v2015 = vadd.f32 0.0, %v2014
        %2016 = vdwg.mxu0
        %2017 = vmatprep.subr.mxu0 0.0
        %2018 = vmatpush1.msra.mxu0 0.0
        %2019 = vmatprep.subr.mxu0 0.0
        %2020 = vmatpush1.msra.mxu0 0.0
        %2021 = vmatprep.subr.mxu0 0.0
        %2022 = vmatpush1.msra.mxu0 0.0
        %2023 = vmatprep.subr.mxu0 0.0
        %2024 = vmatpush1.msra.mxu0 0.0
        %2025 = vmatprep.subr.mxu0 0.0
        %2026 = vmatpush1.msra.mxu0 0.0
        %2027 = vmatprep.subr.mxu0 0.0
        %2028 = vmatpush1.msra.mxu0 0.0
        %2029 = vmatprep.subr.mxu0 0.0
        %2030 = vmatpush1.msra.mxu0 0.0
        %2031 = vmatprep.subr.mxu0 0.0
        %2032 = vmatpush1.msra.mxu0 0.0
        %2033 = vmatprep.subr.mxu0 0.0
        %2034 = vmatpush1.msra.mxu0 0.0
        %2035 = vmatprep.subr.mxu0 0.0
        %2036 = vmatpush1.msra.mxu0 0.0
        %2037 = vmatprep.subr.mxu0 0.0
        %2038 = vmatpush1.msra.mxu0 0.0
        %2039 = vmatprep.subr.mxu0 0.0
        %2040 = vmatpush1.msra.mxu0 0.0
        %2041 = vmatprep.subr.mxu0 %v1034
        %2042 = vmatpush1.msra.mxu0 %v1031
        %2043 = vmatprep.subr.mxu0 %v840
        %2044 = vmatpush1.msra.mxu0 %v839
        %2045 = vmatprep.subr.mxu0 %v836
        %2046 = vmatpush1.msra.mxu0 %v835
        %2047 = vmatprep.subr.mxu0 %v832
        %2048 = vmatpush1.msra.mxu0 %v831
        %2049 = vmatprep.subr.mxu0 0.0
        %2050 = vmatpush2.msra.mxu0 0.0
        %2051 = vmatprep.subr.mxu0 0.0
        %2052 = vmatpush2.msra.mxu0 0.0
        %2053 = vmatprep.subr.mxu0 0.0
        %2054 = vmatpush2.msra.mxu0 0.0
        %2055 = vmatprep.subr.mxu0 0.0
        %2056 = vmatpush2.msra.mxu0 0.0
        %2057 = vmatprep.subr.mxu0 0.0
        %2058 = vmatpush2.msra.mxu0 0.0
        %2059 = vmatprep.subr.mxu0 0.0
        %2060 = vmatpush2.msra.mxu0 0.0
        %2061 = vmatprep.subr.mxu0 0.0
        %2062 = vmatpush2.msra.mxu0 0.0
        %2063 = vmatprep.subr.mxu0 0.0
        %2064 = vmatpush2.msra.mxu0 0.0
        %2065 = vmatprep.subr.mxu0 0.0
        %2066 = vmatpush2.msra.mxu0 0.0
        %2067 = vmatprep.subr.mxu0 0.0
        %2068 = vmatpush2.msra.mxu0 0.0
        %2069 = vmatprep.subr.mxu0 0.0
        %2070 = vmatpush2.msra.mxu0 0.0
        %2071 = vmatprep.subr.mxu0 0.0
        %2072 = vmatpush2.msra.mxu0 0.0
        %2073 = vmatprep.subr.mxu0 0.0
        %2074 = vmatpush2.msra.mxu0 0.0
        %2075 = vmatprep.subr.mxu0 0.0
        %2076 = vmatpush2.msra.mxu0 0.0
        %2077 = vmatprep.subr.mxu0 0.0
        %2078 = vmatpush2.msra.mxu0 0.0
        %2079 = vmatprep.subr.mxu0 0.0
        %2080 = vmatpush2.msra.mxu0 0.0
        %2081 = vmatprep.mubr.f32.mxu0 0.0
        %2082 = vmatmul.mubr.f32.gmra.mxu0 %v289
        %v2083 = vpop.f32.mrf.mxu0
        %v2084 = vadd.f32 %v1930, %v2083
        %v2085 = vpop.f32.mrf.mxu0
        %v2086 = vadd.f32 %v1932, %v2085
        %2087 = vmatprep.mubr.f32.mxu0 0.0
        %2088 = vmatmul.mubr.f32.gmra.mxu0 %v292
        %v2089 = vpop.f32.mrf.mxu0
        %v2090 = vadd.f32 %v1936, %v2089
        %v2091 = vpop.f32.mrf.mxu0
        %v2092 = vadd.f32 %v1938, %v2091
        %2093 = vdwg.mxu0
        %2094 = vmatprep.subr.mxu0 0.0
        %2095 = vmatpush1.msra.mxu0 0.0
        %2096 = vmatprep.subr.mxu0 0.0
        %2097 = vmatpush1.msra.mxu0 0.0
        %2098 = vmatprep.subr.mxu0 0.0
        %2099 = vmatpush1.msra.mxu0 0.0
        %2100 = vmatprep.subr.mxu0 0.0
        %2101 = vmatpush1.msra.mxu0 0.0
        %2102 = vmatprep.subr.mxu0 0.0
        %2103 = vmatpush1.msra.mxu0 0.0
        %2104 = vmatprep.subr.mxu0 0.0
        %2105 = vmatpush1.msra.mxu0 0.0
        %2106 = vmatprep.subr.mxu0 0.0
        %2107 = vmatpush1.msra.mxu0 0.0
        %2108 = vmatprep.subr.mxu0 0.0
        %2109 = vmatpush1.msra.mxu0 0.0
        %2110 = vmatprep.subr.mxu0 0.0
        %2111 = vmatpush1.msra.mxu0 0.0
        %2112 = vmatprep.subr.mxu0 0.0
        %2113 = vmatpush1.msra.mxu0 0.0
        %2114 = vmatprep.subr.mxu0 0.0
        %2115 = vmatpush1.msra.mxu0 0.0
        %2116 = vmatprep.subr.mxu0 0.0
        %2117 = vmatpush1.msra.mxu0 0.0
        %2118 = vmatprep.subr.mxu0 %v1040
        %2119 = vmatpush1.msra.mxu0 %v1037
        %2120 = vmatprep.subr.mxu0 %v842
        %2121 = vmatpush1.msra.mxu0 %v841
        %2122 = vmatprep.subr.mxu0 %v838
        %2123 = vmatpush1.msra.mxu0 %v837
        %2124 = vmatprep.subr.mxu0 %v834
        %2125 = vmatpush1.msra.mxu0 %v833
        %2126 = vmatprep.subr.mxu0 0.0
        %2127 = vmatpush2.msra.mxu0 0.0
        %2128 = vmatprep.subr.mxu0 0.0
        %2129 = vmatpush2.msra.mxu0 0.0
        %2130 = vmatprep.subr.mxu0 0.0
        %2131 = vmatpush2.msra.mxu0 0.0
        %2132 = vmatprep.subr.mxu0 0.0
        %2133 = vmatpush2.msra.mxu0 0.0
        %2134 = vmatprep.subr.mxu0 0.0
        %2135 = vmatpush2.msra.mxu0 0.0
        %2136 = vmatprep.subr.mxu0 0.0
        %2137 = vmatpush2.msra.mxu0 0.0
        %2138 = vmatprep.subr.mxu0 0.0
        %2139 = vmatpush2.msra.mxu0 0.0
        %2140 = vmatprep.subr.mxu0 0.0
        %2141 = vmatpush2.msra.mxu0 0.0
        %2142 = vmatprep.subr.mxu0 0.0
        %2143 = vmatpush2.msra.mxu0 0.0
        %2144 = vmatprep.subr.mxu0 0.0
        %2145 = vmatpush2.msra.mxu0 0.0
        %2146 = vmatprep.subr.mxu0 0.0
        %2147 = vmatpush2.msra.mxu0 0.0
        %2148 = vmatprep.subr.mxu0 0.0
        %2149 = vmatpush2.msra.mxu0 0.0
        %2150 = vmatprep.subr.mxu0 0.0
        %2151 = vmatpush2.msra.mxu0 0.0
        %2152 = vmatprep.subr.mxu0 0.0
        %2153 = vmatpush2.msra.mxu0 0.0
        %2154 = vmatprep.subr.mxu0 0.0
        %2155 = vmatpush2.msra.mxu0 0.0
        %2156 = vmatprep.subr.mxu0 0.0
        %2157 = vmatpush2.msra.mxu0 0.0
        %2158 = vmatprep.mubr.f32.mxu0 0.0
        %2159 = vmatmul.mubr.f32.gmra.mxu0 %v289
        %v2160 = vpop.f32.mrf.mxu0
        %v2161 = vadd.f32 %v2007, %v2160
        %v2162 = vpop.f32.mrf.mxu0
        %v2163 = vadd.f32 %v2009, %v2162
        %2164 = vmatprep.mubr.f32.mxu0 0.0
        %2165 = vmatmul.mubr.f32.gmra.mxu0 %v292
        %v2166 = vpop.f32.mrf.mxu0
        %v2167 = vadd.f32 %v2013, %v2166
        %v2168 = vpop.f32.mrf.mxu0
        %v2169 = vadd.f32 %v2015, %v2168
        %2170 = vdwg.mxu0
        %2171 = vmatprep.subr.mxu0 0.0
        %2172 = vmatpush1.msra.mxu0 0.0
        %2173 = vmatprep.subr.mxu0 0.0
        %2174 = vmatpush1.msra.mxu0 0.0
        %2175 = vmatprep.subr.mxu0 0.0
        %2176 = vmatpush1.msra.mxu0 0.0
        %2177 = vmatprep.subr.mxu0 0.0
        %2178 = vmatpush1.msra.mxu0 0.0
        %2179 = vmatprep.subr.mxu0 0.0
        %2180 = vmatpush1.msra.mxu0 0.0
        %2181 = vmatprep.subr.mxu0 0.0
        %2182 = vmatpush1.msra.mxu0 0.0
        %2183 = vmatprep.subr.mxu0 0.0
        %2184 = vmatpush1.msra.mxu0 0.0
        %2185 = vmatprep.subr.mxu0 0.0
        %2186 = vmatpush1.msra.mxu0 0.0
        %2187 = vmatprep.subr.mxu0 0.0
        %2188 = vmatpush1.msra.mxu0 0.0
        %2189 = vmatprep.subr.mxu0 0.0
        %2190 = vmatpush1.msra.mxu0 0.0
        %2191 = vmatprep.subr.mxu0 0.0
        %2192 = vmatpush1.msra.mxu0 0.0
        %2193 = vmatprep.subr.mxu0 0.0
        %2194 = vmatpush1.msra.mxu0 0.0
        %2195 = vmatprep.subr.mxu0 %v1217
        %2196 = vmatpush1.msra.mxu0 %v1214
        %2197 = vmatprep.subr.mxu0 %v1206
        %2198 = vmatpush1.msra.mxu0 %v1205
        %2199 = vmatprep.subr.mxu0 %v1202
        %2200 = vmatpush1.msra.mxu0 %v1201
        %2201 = vmatprep.subr.mxu0 %v1198
        %2202 = vmatpush1.msra.mxu0 %v1197
        %2203 = vmatprep.subr.mxu0 0.0
        %2204 = vmatpush2.msra.mxu0 0.0
        %2205 = vmatprep.subr.mxu0 0.0
        %2206 = vmatpush2.msra.mxu0 0.0
        %2207 = vmatprep.subr.mxu0 0.0
        %2208 = vmatpush2.msra.mxu0 0.0
        %2209 = vmatprep.subr.mxu0 0.0
        %2210 = vmatpush2.msra.mxu0 0.0
        %2211 = vmatprep.subr.mxu0 0.0
        %2212 = vmatpush2.msra.mxu0 0.0
        %2213 = vmatprep.subr.mxu0 0.0
        %2214 = vmatpush2.msra.mxu0 0.0
        %2215 = vmatprep.subr.mxu0 0.0
        %2216 = vmatpush2.msra.mxu0 0.0
        %2217 = vmatprep.subr.mxu0 0.0
        %2218 = vmatpush2.msra.mxu0 0.0
        %2219 = vmatprep.subr.mxu0 0.0
        %2220 = vmatpush2.msra.mxu0 0.0
        %2221 = vmatprep.subr.mxu0 0.0
        %2222 = vmatpush2.msra.mxu0 0.0
        %2223 = vmatprep.subr.mxu0 0.0
        %2224 = vmatpush2.msra.mxu0 0.0
        %2225 = vmatprep.subr.mxu0 0.0
        %2226 = vmatpush2.msra.mxu0 0.0
        %2227 = vmatprep.subr.mxu0 0.0
        %2228 = vmatpush2.msra.mxu0 0.0
        %2229 = vmatprep.subr.mxu0 0.0
        %2230 = vmatpush2.msra.mxu0 0.0
        %2231 = vmatprep.subr.mxu0 0.0
        %2232 = vmatpush2.msra.mxu0 0.0
        %2233 = vmatprep.subr.mxu0 0.0
        %2234 = vmatpush2.msra.mxu0 0.0
        %2235 = vmatprep.mubr.f32.mxu0 0.0
        %2236 = vmatmul.mubr.f32.gmra.mxu0 %v1696
        %v2237 = vpop.f32.mrf.mxu0
        %v2238 = vadd.f32 0.0, %v2237
        %v2239 = vpop.f32.mrf.mxu0
        %v2240 = vadd.f32 0.0, %v2239
        %2241 = vmatprep.mubr.f32.mxu0 0.0
        %2242 = vmatmul.mubr.f32.gmra.mxu0 %v1699
        %v2243 = vpop.f32.mrf.mxu0
        %v2244 = vadd.f32 0.0, %v2243
        %v2245 = vpop.f32.mrf.mxu0
        %v2246 = vadd.f32 0.0, %v2245
        %2247 = vdwg.mxu0
        %2248 = vmatprep.subr.mxu0 0.0
        %2249 = vmatpush1.msra.mxu0 0.0
        %2250 = vmatprep.subr.mxu0 0.0
        %2251 = vmatpush1.msra.mxu0 0.0
        %2252 = vmatprep.subr.mxu0 0.0
        %2253 = vmatpush1.msra.mxu0 0.0
        %2254 = vmatprep.subr.mxu0 0.0
        %2255 = vmatpush1.msra.mxu0 0.0
        %2256 = vmatprep.subr.mxu0 0.0
        %2257 = vmatpush1.msra.mxu0 0.0
        %2258 = vmatprep.subr.mxu0 0.0
        %2259 = vmatpush1.msra.mxu0 0.0
        %2260 = vmatprep.subr.mxu0 0.0
        %2261 = vmatpush1.msra.mxu0 0.0
        %2262 = vmatprep.subr.mxu0 0.0
        %2263 = vmatpush1.msra.mxu0 0.0
        %2264 = vmatprep.subr.mxu0 0.0
        %2265 = vmatpush1.msra.mxu0 0.0
        %2266 = vmatprep.subr.mxu0 0.0
        %2267 = vmatpush1.msra.mxu0 0.0
        %2268 = vmatprep.subr.mxu0 0.0
        %2269 = vmatpush1.msra.mxu0 0.0
        %2270 = vmatprep.subr.mxu0 0.0
        %2271 = vmatpush1.msra.mxu0 0.0
        %2272 = vmatprep.subr.mxu0 %v1223
        %2273 = vmatpush1.msra.mxu0 %v1220
        %2274 = vmatprep.subr.mxu0 %v1208
        %2275 = vmatpush1.msra.mxu0 %v1207
        %2276 = vmatprep.subr.mxu0 %v1204
        %2277 = vmatpush1.msra.mxu0 %v1203
        %2278 = vmatprep.subr.mxu0 %v1200
        %2279 = vmatpush1.msra.mxu0 %v1199
        %2280 = vmatprep.subr.mxu0 0.0
        %2281 = vmatpush2.msra.mxu0 0.0
        %2282 = vmatprep.subr.mxu0 0.0
        %2283 = vmatpush2.msra.mxu0 0.0
        %2284 = vmatprep.subr.mxu0 0.0
        %2285 = vmatpush2.msra.mxu0 0.0
        %2286 = vmatprep.subr.mxu0 0.0
        %2287 = vmatpush2.msra.mxu0 0.0
        %2288 = vmatprep.subr.mxu0 0.0
        %2289 = vmatpush2.msra.mxu0 0.0
        %2290 = vmatprep.subr.mxu0 0.0
        %2291 = vmatpush2.msra.mxu0 0.0
        %2292 = vmatprep.subr.mxu0 0.0
        %2293 = vmatpush2.msra.mxu0 0.0
        %2294 = vmatprep.subr.mxu0 0.0
        %2295 = vmatpush2.msra.mxu0 0.0
        %2296 = vmatprep.subr.mxu0 0.0
        %2297 = vmatpush2.msra.mxu0 0.0
        %2298 = vmatprep.subr.mxu0 0.0
        %2299 = vmatpush2.msra.mxu0 0.0
        %2300 = vmatprep.subr.mxu0 0.0
        %2301 = vmatpush2.msra.mxu0 0.0
        %2302 = vmatprep.subr.mxu0 0.0
        %2303 = vmatpush2.msra.mxu0 0.0
        %2304 = vmatprep.subr.mxu0 0.0
        %2305 = vmatpush2.msra.mxu0 0.0
        %2306 = vmatprep.subr.mxu0 0.0
        %2307 = vmatpush2.msra.mxu0 0.0
        %2308 = vmatprep.subr.mxu0 0.0
        %2309 = vmatpush2.msra.mxu0 0.0
        %2310 = vmatprep.subr.mxu0 0.0
        %2311 = vmatpush2.msra.mxu0 0.0
        %2312 = vmatprep.mubr.f32.mxu0 0.0
        %2313 = vmatmul.mubr.f32.gmra.mxu0 %v1696
        %v2314 = vpop.f32.mrf.mxu0
        %v2315 = vadd.f32 0.0, %v2314
        %v2316 = vpop.f32.mrf.mxu0
        %v2317 = vadd.f32 0.0, %v2316
        %2318 = vmatprep.mubr.f32.mxu0 0.0
        %2319 = vmatmul.mubr.f32.gmra.mxu0 %v1699
        %v2320 = vpop.f32.mrf.mxu0
        %v2321 = vadd.f32 0.0, %v2320
        %v2322 = vpop.f32.mrf.mxu0
        %v2323 = vadd.f32 0.0, %v2322
        %2324 = vdwg.mxu0
        %v2325 = vadd.f32 %v2084, %v2238
        %v2326 = vadd.f32 %v2086, %v2240
        %v2327 = vadd.f32 %v2161, %v2315
        %v2328 = vadd.f32 %v2163, %v2317
        %v2329 = vadd.f32 %v2090, %v2244
        %v2330 = vadd.f32 %v2092, %v2246
        %v2331 = vadd.f32 %v2167, %v2321
        %v2332 = vadd.f32 %v2169, %v2323
        %v2333 = vmax.f32 %v822, %v1379
        %v2334 = vmax.f32 %v823, %v1380
        %v2335 = vmax.f32 %v824, %v1381
        %v2336 = vmax.f32 %v825, %v1382
        %v2337 = vmax.f32 %v826, %v1383
        %v2338 = vmax.f32 %v827, %v1384
        %v2339 = vmax.f32 %v828, %v1385
        %v2340 = vmax.f32 %v829, %v1386
        %v2341 = vmax.f32 %v1855, %v2325
        %v2342 = vmax.f32 %v1856, %v2326
        %v2343 = vmax.f32 %v1857, %v2327
        %v2344 = vmax.f32 %v1858, %v2328
        %v2345 = vmax.f32 %v1859, %v2329
        %v2346 = vmax.f32 %v1860, %v2330
        %v2347 = vmax.f32 %v1861, %v2331
        %v2348 = vmax.f32 %v1862, %v2332
        %v2349 = vmax.f32 %v2333, %v2341
        %v2350 = vmax.f32 %v2334, %v2342
        %v2351 = vmax.f32 %v2335, %v2343
        %v2352 = vmax.f32 %v2336, %v2344
        %v2353 = vmax.f32 %v2337, %v2345
        %v2354 = vmax.f32 %v2338, %v2346
        %v2355 = vmax.f32 %v2339, %v2347
        %v2356 = vmax.f32 %v2340, %v2348
        %v2357 = vld [vmem:[#allocation4] sm:$0xf]
        %v2359 = vlaneseq
        %v2360 = vshrl.u32 %v2359, 7
        %v2361 = vsub.s32 0, %v2360
        %v2362 = vrot.slane %v2357, %v2361
        %v2363 = vlaneseq
        %v2364 = vshrl.u32 %v2363, 7
        %v2365 = vsub.s32 1, %v2364
        %v2366 = vrot.slane %v2357, %v2365
        %v2367 = vlaneseq
        %v2368 = vshrl.u32 %v2367, 7
        %v2369 = vsub.s32 2, %v2368
        %v2370 = vrot.slane %v2357, %v2369
        %v2371 = vlaneseq
        %v2372 = vshrl.u32 %v2371, 7
        %v2373 = vsub.s32 3, %v2372
        %v2374 = vrot.slane %v2357, %v2373
        %v2379 = vadd.f32 %v2349, %v2362
        %v2380 = vadd.f32 %v2350, %v2366
        %v2381 = vadd.f32 %v2351, %v2370
        %v2382 = vadd.f32 %v2352, %v2374
        %v2383 = vadd.f32 %v2353, %v2362
        %v2384 = vadd.f32 %v2354, %v2366
        %v2385 = vadd.f32 %v2355, %v2370
        %v2386 = vadd.f32 %v2356, %v2374
        %v2387 = vmax.f32 %v2379, 0.0
        %v2388 = vmax.f32 %v2380, 0.0
        %v2389 = vmax.f32 %v2381, 0.0
        %v2390 = vmax.f32 %v2382, 0.0
        %v2391 = vmax.f32 %v2383, 0.0
        %v2392 = vmax.f32 %v2384, 0.0
        %v2393 = vmax.f32 %v2385, 0.0
        %v2394 = vmax.f32 %v2386, 0.0
        %2395 = vst [vmem:[%s245] sm:$0xff] %v2387
        %2396 = vst [vmem:[%s245 + $0x8] sm:$0xff] %v2388
        %2397 = vst [vmem:[%s245 + $0x10] sm:$0xff] %v2389
        %vm2398 = vcmask 523264
        %2399 = vst.msk [vmem:[%s245 + $0x18] sm:$0xff] %vm2398, %v2390
        %2400 = vst [vmem:[%s245 + $0x20] sm:$0x3f] %v2391
        %2401 = vst [vmem:[%s245 + $0x28] sm:$0x3f] %v2392
        %2402 = vst [vmem:[%s245 + $0x30] sm:$0x3f] %v2393
        %vm2403 = vcmask 521216
        %2404 = vst.msk [vmem:[%s245 + $0x38] sm:$0x3f] %vm2403, %v2394
        %p2405 = scmp.lt.s32.totalorder %s17, 1
        %s2406 = scalar_select %p2405, %s17, 1
        %s2407 = smul.addr %s2406, 8
        %s2408 = smul.addr %s2407, 8
        %s2409 = scalar_lea.vmem %s4, %s2408
        // Predicated region
        $region45: #{cnn_b_forward.3} parent=35 // pred_check
          %p2410 = pneg %p129
        $region46: #{cnn_b_forward.3} parent=35 // pred_check_branch
          %2412 = sbr.rel (%p2410) target = $region48
        $region47: #{cnn_b_forward.3} parent=35 // pred_region
          _
        $region48: #{cnn_b_forward.3} parent=35 // pred_fallthru
          _
      $region36: #{cnn_b_forward.3} parent=5 // pred_fallthru
        _
      %p2413 = scmp.le.s32.totalorder 2, %s12
      // Predicated region
      $region49: #{cnn_b_forward.3} parent=5 // pred_check
        %p2414 = pneg %p2413
      $region50: #{cnn_b_forward.3} parent=5 // pred_check_branch
        %2416 = sbr.rel (%p2414) target = $region52
      $region51: #{cnn_b_forward.3} parent=5 // pred_region
        %s2417 = ssub.s32 %s12, 2
        // Predicated region
        $region53: #{cnn_b_forward.3} parent=51 // pred_check
          %p2418 = pneg %p135
        $region54: #{cnn_b_forward.3} parent=51 // pred_check_branch
          %2420 = sbr.rel (%p2418) target = $region56
        $region55: #{cnn_b_forward.3} parent=51 // pred_region
          %p2421 = scmp.lt.s32.totalorder %s18, 1
          %s2422 = scalar_select %p2421, %s18, 1
          %s2423 = smul.addr %s2422, 8
          %s2424 = smul.addr %s2423, 8
          %s2425 = scalar_lea.vmem %s4, %s2424
        $region56: #{cnn_b_forward.3} parent=51 // pred_fallthru
          _
      $region52: #{cnn_b_forward.3} parent=5 // pred_fallthru
        _
    $region6: #{cnn_b_forward.3} parent=1 // loop_footer
      %s16 = sadd.s32 1, %s12
    $region7: #{cnn_b_forward.3} parent=1 // loop_footer_branch
      %11 = sbr.rel target = $region3
    $region8: #{cnn_b_forward.3} parent=1 // loop_exit
      _
    %2426 = vsyncpa [#allocation3], 1
    %s2427 = scalar_lea.sflag [#allocation3], 1
    %2428 = vsyncpa %s2427, 1
    %2429 = vsyncpa [#allocation5], 1

// kernel: cnn_b_forward.5
$region0: #{cnn_b_forward.5}
  #allocation0 [shape = 'u32[]', space=smem, size = 0x4, offset = 0x4, fixed_abs, tag = 'smem constant byte address 0x4 - core index']
  #allocation1 [shape = 'u32[144,128]{1,0:T(1,128)}', space=vmem, size = 0x12000, scoped, tag = 'internal scratch']
  %s0 = inlined_call_operand.vmem [shape: f32[2,3136], index: 0, kind: input, shape index: {}]
  %s1 = inlined_call_operand.vmem [shape: f32[3136,256], index: 1, kind: input, shape index: {}]
  %s2 = inlined_call_operand.vmem [shape: f32[1,256], index: 2, kind: input, shape index: {}]
  %s3 = inlined_call_operand.vmem [shape: f32[256,17], index: 3, kind: input, shape index: {}]
  %s4 = inlined_call_operand.vmem [shape: f32[1,17], index: 4, kind: input, shape index: {}]
  %s5 = inlined_call_operand.hbm [shape: f32[2,17], index: 5, kind: output, shape index: {}]
  %s6 = sld [smem:[#allocation0]]
  $region30: #{cnn_b_forward.5} parent=0
    _
  %s8 = ssub.s32 1, %s6
  %s9 = scalar_select 0, %s8, %s6
  $region1: #{cnn_b_forward.5} parent=0
    #allocation2 [shape = 'u8[1024]{0}', space=vmem, size = 0x400, scoped, tag = 'output window, operand 0, single buffered']
    #allocation3 [shape = 's32[1]{0}', space=sflag, size = 0x4, scoped, tag = 'scoped memory for cnn_b_forward.5']
    %10 = vsyncpa [#allocation3], 0
    // Predicated region
    $region2: #{cnn_b_forward.5} parent=1 // pred_check
      _
    $region3: #{cnn_b_forward.5} parent=1 // pred_check_branch
      %12 = sbr.rel (0) target = $region5
    $region4: #{cnn_b_forward.5} parent=1 // pred_region
      _
    $region5: #{cnn_b_forward.5} parent=1 // pred_fallthru
      _
    // Predicated region
    $region6: #{cnn_b_forward.5} parent=1 // pred_check
      _
    $region7: #{cnn_b_forward.5} parent=1 // pred_check_branch
      %14 = sbr.rel (0) target = $region9
    $region8: #{cnn_b_forward.5} parent=1 // pred_region
      _
    $region9: #{cnn_b_forward.5} parent=1 // pred_fallthru
      _
    // Predicated region
    $region10: #{cnn_b_forward.5} parent=1 // pred_check
      _
    $region11: #{cnn_b_forward.5} parent=1 // pred_check_branch
      %16 = sbr.rel (0) target = $region13
    $region12: #{cnn_b_forward.5} parent=1 // pred_region
      _
    $region13: #{cnn_b_forward.5} parent=1 // pred_fallthru
      _
    // Predicated region
    $region14: #{cnn_b_forward.5} parent=1 // pred_check
      _
    $region15: #{cnn_b_forward.5} parent=1 // pred_check_branch
      %18 = sbr.rel (0) target = $region17
    $region16: #{cnn_b_forward.5} parent=1 // pred_region
      _
    $region17: #{cnn_b_forward.5} parent=1 // pred_fallthru
      _
    // Predicated region
    $region18: #{cnn_b_forward.5} parent=1 // pred_check
      _
    $region19: #{cnn_b_forward.5} parent=1 // pred_check_branch
      %20 = sbr.rel (0) target = $region21
    $region20: #{cnn_b_forward.5} parent=1 // pred_region
      _
    $region21: #{cnn_b_forward.5} parent=1 // pred_fallthru
      _
    %v21 = vld [vmem:[%s0] sm:$0xff]
    %v22 = vld [vmem:[%s0 + $0x8] sm:$0xff]
    %v23 = vld [vmem:[%s0 + $0x10] sm:$0xff]
    %v24 = vld [vmem:[%s0 + $0x18] sm:$0xff]
    %v25 = vld [vmem:[%s0 + $0x20] sm:$0xff]
    %v26 = vld [vmem:[%s0 + $0x28] sm:$0xff]
    %v27 = vld [vmem:[%s0 + $0x30] sm:$0x3]
    %v28 = vld [vmem:[%s1] sm:$0xff]
    %v29 = vld [vmem:[%s1 + $0x8] sm:$0xff]
    %v30 = vld [vmem:[%s1 + $0x10] sm:$0xff]
    %v31 = vld [vmem:[%s1 + $0x18] sm:$0xff]
    %v32 = vld [vmem:[%s1 + $0x20] sm:$0xff]
    %v33 = vld [vmem:[%s1 + $0x28] sm:$0xff]
    %v34 = vld [vmem:[%s1 + $0x30] sm:$0xff]
    %v35 = vld [vmem:[%s1 + $0x38] sm:$0xff]
    %v36 = vld [vmem:[%s1 + $0x40] sm:$0xff]
    %v37 = vld [vmem:[%s1 + $0x48] sm:$0xff]
    %v38 = vld [vmem:[%s1 + $0x50] sm:$0xff]
    %v39 = vld [vmem:[%s1 + $0x58] sm:$0xff]
    %v40 = vld [vmem:[%s1 + $0x60] sm:$0xff]
    %v41 = vld [vmem:[%s1 + $0x68] sm:$0xff]
    %v42 = vld [vmem:[%s1 + $0x70] sm:$0xff]
    %v43 = vld [vmem:[%s1 + $0x78] sm:$0xff]
    %v44 = vld [vmem:[%s1 + $0x80] sm:$0xff]
    %v45 = vld [vmem:[%s1 + $0x88] sm:$0xff]
    %v46 = vld [vmem:[%s1 + $0x90] sm:$0xff]
    %v47 = vld [vmem:[%s1 + $0x98] sm:$0xff]
    %v48 = vld [vmem:[%s1 + $0xa0] sm:$0xff]
    %v49 = vld [vmem:[%s1 + $0xa8] sm:$0xff]
    %v50 = vld [vmem:[%s1 + $0xb0] sm:$0xff]
    %v51 = vld [vmem:[%s1 + $0xb8] sm:$0xff]
    %v52 = vld [vmem:[%s1 + $0xc0] sm:$0xff]
    %v53 = vld [vmem:[%s1 + $0xc8] sm:$0xff]
    %v54 = vld [vmem:[%s1 + $0xd0] sm:$0xff]
    %v55 = vld [vmem:[%s1 + $0xd8] sm:$0xff]
    %v56 = vld [vmem:[%s1 + $0xe0] sm:$0xff]
    %v57 = vld [vmem:[%s1 + $0xe8] sm:$0xff]
    %v58 = vld [vmem:[%s1 + $0xf0] sm:$0xff]
    %v59 = vld [vmem:[%s1 + $0xf8] sm:$0xff]
    %v60 = vld [vmem:[%s1 + $0x100] sm:$0xff]
    %v61 = vld [vmem:[%s1 + $0x108] sm:$0xff]
    %v62 = vld [vmem:[%s1 + $0x110] sm:$0xff]
    %v63 = vld [vmem:[%s1 + $0x118] sm:$0xff]
    %v64 = vld [vmem:[%s1 + $0x120] sm:$0xff]
    %v65 = vld [vmem:[%s1 + $0x128] sm:$0xff]
    %v66 = vld [vmem:[%s1 + $0x130] sm:$0xff]
    %v67 = vld [vmem:[%s1 + $0x138] sm:$0xff]
    %v68 = vld [vmem:[%s1 + $0x140] sm:$0xff]
    %v69 = vld [vmem:[%s1 + $0x148] sm:$0xff]
    %v70 = vld [vmem:[%s1 + $0x150] sm:$0xff]
    %v71 = vld [vmem:[%s1 + $0x158] sm:$0xff]
    %v72 = vld [vmem:[%s1 + $0x160] sm:$0xff]
    %v73 = vld [vmem:[%s1 + $0x168] sm:$0xff]
    %v74 = vld [vmem:[%s1 + $0x170] sm:$0xff]
    %v75 = vld [vmem:[%s1 + $0x178] sm:$0xff]
    %v76 = vld [vmem:[%s1 + $0x180] sm:$0xff]
    %v77 = vld [vmem:[%s1 + $0x188] sm:$0xff]
    %v78 = vld [vmem:[%s1 + $0x190] sm:$0xff]
    %v79 = vld [vmem:[%s1 + $0x198] sm:$0xff]
    %v80 = vld [vmem:[%s1 + $0x1a0] sm:$0xff]
    %v81 = vld [vmem:[%s1 + $0x1a8] sm:$0xff]
    %v82 = vld [vmem:[%s1 + $0x1b0] sm:$0xff]
    %v83 = vld [vmem:[%s1 + $0x1b8] sm:$0xff]
    %v84 = vld [vmem:[%s1 + $0x1c0] sm:$0xff]
    %v85 = vld [vmem:[%s1 + $0x1c8] sm:$0xff]
    %v86 = vld [vmem:[%s1 + $0x1d0] sm:$0xff]
    %v87 = vld [vmem:[%s1 + $0x1d8] sm:$0xff]
    %v88 = vld [vmem:[%s1 + $0x1e0] sm:$0xff]
    %v89 = vld [vmem:[%s1 + $0x1e8] sm:$0xff]
    %v90 = vld [vmem:[%s1 + $0x1f0] sm:$0xff]
    %v91 = vld [vmem:[%s1 + $0x1f8] sm:$0xff]
    %v92 = vld [vmem:[%s1 + $0x200] sm:$0xff]
    %v93 = vld [vmem:[%s1 + $0x208] sm:$0xff]
    %v94 = vld [vmem:[%s1 + $0x210] sm:$0xff]
    %v95 = vld [vmem:[%s1 + $0x218] sm:$0xff]
    %v96 = vld [vmem:[%s1 + $0x220] sm:$0xff]
    %v97 = vld [vmem:[%s1 + $0x228] sm:$0xff]
    %v98 = vld [vmem:[%s1 + $0x230] sm:$0xff]
    %v99 = vld [vmem:[%s1 + $0x238] sm:$0xff]
    %v100 = vld [vmem:[%s1 + $0x240] sm:$0xff]
    %v101 = vld [vmem:[%s1 + $0x248] sm:$0xff]
    %v102 = vld [vmem:[%s1 + $0x250] sm:$0xff]
    %v103 = vld [vmem:[%s1 + $0x258] sm:$0xff]
    %v104 = vld [vmem:[%s1 + $0x260] sm:$0xff]
    %v105 = vld [vmem:[%s1 + $0x268] sm:$0xff]
    %v106 = vld [vmem:[%s1 + $0x270] sm:$0xff]
    %v107 = vld [vmem:[%s1 + $0x278] sm:$0xff]
    %v108 = vld [vmem:[%s1 + $0x280] sm:$0xff]
    %v109 = vld [vmem:[%s1 + $0x288] sm:$0xff]
    %v110 = vld [vmem:[%s1 + $0x290] sm:$0xff]
    %v111 = vld [vmem:[%s1 + $0x298] sm:$0xff]
    %v112 = vld [vmem:[%s1 + $0x2a0] sm:$0xff]
    %v113 = vld [vmem:[%s1 + $0x2a8] sm:$0xff]
    %v114 = vld [vmem:[%s1 + $0x2b0] sm:$0xff]
    %v115 = vld [vmem:[%s1 + $0x2b8] sm:$0xff]
    %v116 = vld [vmem:[%s1 + $0x2c0] sm:$0xff]
    %v117 = vld [vmem:[%s1 + $0x2c8] sm:$0xff]
    %v118 = vld [vmem:[%s1 + $0x2d0] sm:$0xff]
    %v119 = vld [vmem:[%s1 + $0x2d8] sm:$0xff]
    %v120 = vld [vmem:[%s1 + $0x2e0] sm:$0xff]
    %v121 = vld [vmem:[%s1 + $0x2e8] sm:$0xff]
    %v122 = vld [vmem:[%s1 + $0x2f0] sm:$0xff]
    %v123 = vld [vmem:[%s1 + $0x2f8] sm:$0xff]
    %v124 = vld [vmem:[%s1 + $0x300] sm:$0xff]
    %v125 = vld [vmem:[%s1 + $0x308] sm:$0xff]
    %v126 = vld [vmem:[%s1 + $0x310] sm:$0xff]
    %v127 = vld [vmem:[%s1 + $0x318] sm:$0xff]
    %v128 = vld [vmem:[%s1 + $0x320] sm:$0xff]
    %v129 = vld [vmem:[%s1 + $0x328] sm:$0xff]
    %v130 = vld [vmem:[%s1 + $0x330] sm:$0xff]
    %v131 = vld [vmem:[%s1 + $0x338] sm:$0xff]
    %v132 = vld [vmem:[%s1 + $0x340] sm:$0xff]
    %v133 = vld [vmem:[%s1 + $0x348] sm:$0xff]
    %v134 = vld [vmem:[%s1 + $0x350] sm:$0xff]
    %v135 = vld [vmem:[%s1 + $0x358] sm:$0xff]
    %v136 = vld [vmem:[%s1 + $0x360] sm:$0xff]
    %v137 = vld [vmem:[%s1 + $0x368] sm:$0xff]
    %v138 = vld [vmem:[%s1 + $0x370] sm:$0xff]
    %v139 = vld [vmem:[%s1 + $0x378] sm:$0xff]
    %v140 = vld [vmem:[%s1 + $0x380] sm:$0xff]
    %v141 = vld [vmem:[%s1 + $0x388] sm:$0xff]
    %v142 = vld [vmem:[%s1 + $0x390] sm:$0xff]
    %v143 = vld [vmem:[%s1 + $0x398] sm:$0xff]
    %v144 = vld [vmem:[%s1 + $0x3a0] sm:$0xff]
    %v145 = vld [vmem:[%s1 + $0x3a8] sm:$0xff]
    %v146 = vld [vmem:[%s1 + $0x3b0] sm:$0xff]
    %v147 = vld [vmem:[%s1 + $0x3b8] sm:$0xff]
    %v148 = vld [vmem:[%s1 + $0x3c0] sm:$0xff]
    %v149 = vld [vmem:[%s1 + $0x3c8] sm:$0xff]
    %v150 = vld [vmem:[%s1 + $0x3d0] sm:$0xff]
    %v151 = vld [vmem:[%s1 + $0x3d8] sm:$0xff]
    %v152 = vld [vmem:[%s1 + $0x3e0] sm:$0xff]
    %v153 = vld [vmem:[%s1 + $0x3e8] sm:$0xff]
    %v154 = vld [vmem:[%s1 + $0x3f0] sm:$0xff]
    %v155 = vld [vmem:[%s1 + $0x3f8] sm:$0xff]
    %v156 = vld [vmem:[%s1 + $0x400] sm:$0xff]
    %v157 = vld [vmem:[%s1 + $0x408] sm:$0xff]
    %v158 = vld [vmem:[%s1 + $0x410] sm:$0xff]
    %v159 = vld [vmem:[%s1 + $0x418] sm:$0xff]
    %v160 = vld [vmem:[%s1 + $0x420] sm:$0xff]
    %v161 = vld [vmem:[%s1 + $0x428] sm:$0xff]
    %v162 = vld [vmem:[%s1 + $0x430] sm:$0xff]
    %v163 = vld [vmem:[%s1 + $0x438] sm:$0xff]
    %v164 = vld [vmem:[%s1 + $0x440] sm:$0xff]
    %v165 = vld [vmem:[%s1 + $0x448] sm:$0xff]
    %v166 = vld [vmem:[%s1 + $0x450] sm:$0xff]
    %v167 = vld [vmem:[%s1 + $0x458] sm:$0xff]
    %v168 = vld [vmem:[%s1 + $0x460] sm:$0xff]
    %v169 = vld [vmem:[%s1 + $0x468] sm:$0xff]
    %v170 = vld [vmem:[%s1 + $0x470] sm:$0xff]
    %v171 = vld [vmem:[%s1 + $0x478] sm:$0xff]
    %v172 = vld [vmem:[%s1 + $0x480] sm:$0xff]
    %v173 = vld [vmem:[%s1 + $0x488] sm:$0xff]
    %v174 = vld [vmem:[%s1 + $0x490] sm:$0xff]
    %v175 = vld [vmem:[%s1 + $0x498] sm:$0xff]
    %v176 = vld [vmem:[%s1 + $0x4a0] sm:$0xff]
    %v177 = vld [vmem:[%s1 + $0x4a8] sm:$0xff]
    %v178 = vld [vmem:[%s1 + $0x4b0] sm:$0xff]
    %v179 = vld [vmem:[%s1 + $0x4b8] sm:$0xff]
    %v180 = vld [vmem:[%s1 + $0x4c0] sm:$0xff]
    %v181 = vld [vmem:[%s1 + $0x4c8] sm:$0xff]
    %v182 = vld [vmem:[%s1 + $0x4d0] sm:$0xff]
    %v183 = vld [vmem:[%s1 + $0x4d8] sm:$0xff]
    %v184 = vld [vmem:[%s1 + $0x4e0] sm:$0xff]
    %v185 = vld [vmem:[%s1 + $0x4e8] sm:$0xff]
    %v186 = vld [vmem:[%s1 + $0x4f0] sm:$0xff]
    %v187 = vld [vmem:[%s1 + $0x4f8] sm:$0xff]
    %v188 = vld [vmem:[%s1 + $0x500] sm:$0xff]
    %v189 = vld [vmem:[%s1 + $0x508] sm:$0xff]
    %v190 = vld [vmem:[%s1 + $0x510] sm:$0xff]
    %v191 = vld [vmem:[%s1 + $0x518] sm:$0xff]
    %v192 = vld [vmem:[%s1 + $0x520] sm:$0xff]
    %v193 = vld [vmem:[%s1 + $0x528] sm:$0xff]
    %v194 = vld [vmem:[%s1 + $0x530] sm:$0xff]
    %v195 = vld [vmem:[%s1 + $0x538] sm:$0xff]
    %v196 = vld [vmem:[%s1 + $0x540] sm:$0xff]
    %v197 = vld [vmem:[%s1 + $0x548] sm:$0xff]
    %v198 = vld [vmem:[%s1 + $0x550] sm:$0xff]
    %v199 = vld [vmem:[%s1 + $0x558] sm:$0xff]
    %v200 = vld [vmem:[%s1 + $0x560] sm:$0xff]
    %v201 = vld [vmem:[%s1 + $0x568] sm:$0xff]
    %v202 = vld [vmem:[%s1 + $0x570] sm:$0xff]
    %v203 = vld [vmem:[%s1 + $0x578] sm:$0xff]
    %v204 = vld [vmem:[%s1 + $0x580] sm:$0xff]
    %v205 = vld [vmem:[%s1 + $0x588] sm:$0xff]
    %v206 = vld [vmem:[%s1 + $0x590] sm:$0xff]
    %v207 = vld [vmem:[%s1 + $0x598] sm:$0xff]
    %v208 = vld [vmem:[%s1 + $0x5a0] sm:$0xff]
    %v209 = vld [vmem:[%s1 + $0x5a8] sm:$0xff]
    %v210 = vld [vmem:[%s1 + $0x5b0] sm:$0xff]
    %v211 = vld [vmem:[%s1 + $0x5b8] sm:$0xff]
    %v212 = vld [vmem:[%s1 + $0x5c0] sm:$0xff]
    %v213 = vld [vmem:[%s1 + $0x5c8] sm:$0xff]
    %v214 = vld [vmem:[%s1 + $0x5d0] sm:$0xff]
    %v215 = vld [vmem:[%s1 + $0x5d8] sm:$0xff]
    %v216 = vld [vmem:[%s1 + $0x5e0] sm:$0xff]
    %v217 = vld [vmem:[%s1 + $0x5e8] sm:$0xff]
    %v218 = vld [vmem:[%s1 + $0x5f0] sm:$0xff]
    %v219 = vld [vmem:[%s1 + $0x5f8] sm:$0xff]
    %v220 = vld [vmem:[%s1 + $0x600] sm:$0xff]
    %v221 = vld [vmem:[%s1 + $0x608] sm:$0xff]
    %v222 = vld [vmem:[%s1 + $0x610] sm:$0xff]
    %v223 = vld [vmem:[%s1 + $0x618] sm:$0xff]
    %v224 = vld [vmem:[%s1 + $0x620] sm:$0xff]
    %v225 = vld [vmem:[%s1 + $0x628] sm:$0xff]
    %v226 = vld [vmem:[%s1 + $0x630] sm:$0xff]
    %v227 = vld [vmem:[%s1 + $0x638] sm:$0xff]
    %v228 = vld [vmem:[%s1 + $0x640] sm:$0xff]
    %v229 = vld [vmem:[%s1 + $0x648] sm:$0xff]
    %v230 = vld [vmem:[%s1 + $0x650] sm:$0xff]
    %v231 = vld [vmem:[%s1 + $0x658] sm:$0xff]
    %v232 = vld [vmem:[%s1 + $0x660] sm:$0xff]
    %v233 = vld [vmem:[%s1 + $0x668] sm:$0xff]
    %v234 = vld [vmem:[%s1 + $0x670] sm:$0xff]
    %v235 = vld [vmem:[%s1 + $0x678] sm:$0xff]
    %v236 = vld [vmem:[%s1 + $0x680] sm:$0xff]
    %v237 = vld [vmem:[%s1 + $0x688] sm:$0xff]
    %v238 = vld [vmem:[%s1 + $0x690] sm:$0xff]
    %v239 = vld [vmem:[%s1 + $0x698] sm:$0xff]
    %v240 = vld [vmem:[%s1 + $0x6a0] sm:$0xff]
    %v241 = vld [vmem:[%s1 + $0x6a8] sm:$0xff]
    %v242 = vld [vmem:[%s1 + $0x6b0] sm:$0xff]
    %v243 = vld [vmem:[%s1 + $0x6b8] sm:$0xff]
    %v244 = vld [vmem:[%s1 + $0x6c0] sm:$0xff]
    %v245 = vld [vmem:[%s1 + $0x6c8] sm:$0xff]
    %v246 = vld [vmem:[%s1 + $0x6d0] sm:$0xff]
    %v247 = vld [vmem:[%s1 + $0x6d8] sm:$0xff]
    %v248 = vld [vmem:[%s1 + $0x6e0] sm:$0xff]
    %v249 = vld [vmem:[%s1 + $0x6e8] sm:$0xff]
    %v250 = vld [vmem:[%s1 + $0x6f0] sm:$0xff]
    %v251 = vld [vmem:[%s1 + $0x6f8] sm:$0xff]
    %v252 = vld [vmem:[%s1 + $0x700] sm:$0xff]
    %v253 = vld [vmem:[%s1 + $0x708] sm:$0xff]
    %v254 = vld [vmem:[%s1 + $0x710] sm:$0xff]
    %v255 = vld [vmem:[%s1 + $0x718] sm:$0xff]
    %v256 = vld [vmem:[%s1 + $0x720] sm:$0xff]
    %v257 = vld [vmem:[%s1 + $0x728] sm:$0xff]
    %v258 = vld [vmem:[%s1 + $0x730] sm:$0xff]
    %v259 = vld [vmem:[%s1 + $0x738] sm:$0xff]
    %v260 = vld [vmem:[%s1 + $0x740] sm:$0xff]
    %v261 = vld [vmem:[%s1 + $0x748] sm:$0xff]
    %v262 = vld [vmem:[%s1 + $0x750] sm:$0xff]
    %v263 = vld [vmem:[%s1 + $0x758] sm:$0xff]
    %v264 = vld [vmem:[%s1 + $0x760] sm:$0xff]
    %v265 = vld [vmem:[%s1 + $0x768] sm:$0xff]
    %v266 = vld [vmem:[%s1 + $0x770] sm:$0xff]
    %v267 = vld [vmem:[%s1 + $0x778] sm:$0xff]
    %v268 = vld [vmem:[%s1 + $0x780] sm:$0xff]
    %v269 = vld [vmem:[%s1 + $0x788] sm:$0xff]
    %v270 = vld [vmem:[%s1 + $0x790] sm:$0xff]
    %v271 = vld [vmem:[%s1 + $0x798] sm:$0xff]
    %v272 = vld [vmem:[%s1 + $0x7a0] sm:$0xff]
    %v273 = vld [vmem:[%s1 + $0x7a8] sm:$0xff]
    %v274 = vld [vmem:[%s1 + $0x7b0] sm:$0xff]
    %v275 = vld [vmem:[%s1 + $0x7b8] sm:$0xff]
    %v276 = vld [vmem:[%s1 + $0x7c0] sm:$0xff]
    %v277 = vld [vmem:[%s1 + $0x7c8] sm:$0xff]
    %v278 = vld [vmem:[%s1 + $0x7d0] sm:$0xff]
    %v279 = vld [vmem:[%s1 + $0x7d8] sm:$0xff]
    %v280 = vld [vmem:[%s1 + $0x7e0] sm:$0xff]
    %v281 = vld [vmem:[%s1 + $0x7e8] sm:$0xff]
    %v282 = vld [vmem:[%s1 + $0x7f0] sm:$0xff]
    %v283 = vld [vmem:[%s1 + $0x7f8] sm:$0xff]
    %v284 = vld [vmem:[%s1 + $0x800] sm:$0xff]
    %v285 = vld [vmem:[%s1 + $0x808] sm:$0xff]
    %v286 = vld [vmem:[%s1 + $0x810] sm:$0xff]
    %v287 = vld [vmem:[%s1 + $0x818] sm:$0xff]
    %v288 = vld [vmem:[%s1 + $0x820] sm:$0xff]
    %v289 = vld [vmem:[%s1 + $0x828] sm:$0xff]
    %v290 = vld [vmem:[%s1 + $0x830] sm:$0xff]
    %v291 = vld [vmem:[%s1 + $0x838] sm:$0xff]
    %v292 = vld [vmem:[%s1 + $0x840] sm:$0xff]
    %v293 = vld [vmem:[%s1 + $0x848] sm:$0xff]
    %v294 = vld [vmem:[%s1 + $0x850] sm:$0xff]
    %v295 = vld [vmem:[%s1 + $0x858] sm:$0xff]
    %v296 = vld [vmem:[%s1 + $0x860] sm:$0xff]
    %v297 = vld [vmem:[%s1 + $0x868] sm:$0xff]
    %v298 = vld [vmem:[%s1 + $0x870] sm:$0xff]
    %v299 = vld [vmem:[%s1 + $0x878] sm:$0xff]
    %v300 = vld [vmem:[%s1 + $0x880] sm:$0xff]
    %v301 = vld [vmem:[%s1 + $0x888] sm:$0xff]
    %v302 = vld [vmem:[%s1 + $0x890] sm:$0xff]
    %v303 = vld [vmem:[%s1 + $0x898] sm:$0xff]
    %v304 = vld [vmem:[%s1 + $0x8a0] sm:$0xff]
    %v305 = vld [vmem:[%s1 + $0x8a8] sm:$0xff]
    %v306 = vld [vmem:[%s1 + $0x8b0] sm:$0xff]
    %v307 = vld [vmem:[%s1 + $0x8b8] sm:$0xff]
    %v308 = vld [vmem:[%s1 + $0x8c0] sm:$0xff]
    %v309 = vld [vmem:[%s1 + $0x8c8] sm:$0xff]
    %v310 = vld [vmem:[%s1 + $0x8d0] sm:$0xff]
    %v311 = vld [vmem:[%s1 + $0x8d8] sm:$0xff]
    %v312 = vld [vmem:[%s1 + $0x8e0] sm:$0xff]
    %v313 = vld [vmem:[%s1 + $0x8e8] sm:$0xff]
    %v314 = vld [vmem:[%s1 + $0x8f0] sm:$0xff]
    %v315 = vld [vmem:[%s1 + $0x8f8] sm:$0xff]
    %v316 = vld [vmem:[%s1 + $0x900] sm:$0xff]
    %v317 = vld [vmem:[%s1 + $0x908] sm:$0xff]
    %v318 = vld [vmem:[%s1 + $0x910] sm:$0xff]
    %v319 = vld [vmem:[%s1 + $0x918] sm:$0xff]
    %v320 = vld [vmem:[%s1 + $0x920] sm:$0xff]
    %v321 = vld [vmem:[%s1 + $0x928] sm:$0xff]
    %v322 = vld [vmem:[%s1 + $0x930] sm:$0xff]
    %v323 = vld [vmem:[%s1 + $0x938] sm:$0xff]
    %v324 = vld [vmem:[%s1 + $0x940] sm:$0xff]
    %v325 = vld [vmem:[%s1 + $0x948] sm:$0xff]
    %v326 = vld [vmem:[%s1 + $0x950] sm:$0xff]
    %v327 = vld [vmem:[%s1 + $0x958] sm:$0xff]
    %v328 = vld [vmem:[%s1 + $0x960] sm:$0xff]
    %v329 = vld [vmem:[%s1 + $0x968] sm:$0xff]
    %v330 = vld [vmem:[%s1 + $0x970] sm:$0xff]
    %v331 = vld [vmem:[%s1 + $0x978] sm:$0xff]
    %v332 = vld [vmem:[%s1 + $0x980] sm:$0xff]
    %v333 = vld [vmem:[%s1 + $0x988] sm:$0xff]
    %v334 = vld [vmem:[%s1 + $0x990] sm:$0xff]
    %v335 = vld [vmem:[%s1 + $0x998] sm:$0xff]
    %v336 = vld [vmem:[%s1 + $0x9a0] sm:$0xff]
    %v337 = vld [vmem:[%s1 + $0x9a8] sm:$0xff]
    %v338 = vld [vmem:[%s1 + $0x9b0] sm:$0xff]
    %v339 = vld [vmem:[%s1 + $0x9b8] sm:$0xff]
    %v340 = vld [vmem:[%s1 + $0x9c0] sm:$0xff]
    %v341 = vld [vmem:[%s1 + $0x9c8] sm:$0xff]
    %v342 = vld [vmem:[%s1 + $0x9d0] sm:$0xff]
    %v343 = vld [vmem:[%s1 + $0x9d8] sm:$0xff]
    %v344 = vld [vmem:[%s1 + $0x9e0] sm:$0xff]
    %v345 = vld [vmem:[%s1 + $0x9e8] sm:$0xff]
    %v346 = vld [vmem:[%s1 + $0x9f0] sm:$0xff]
    %v347 = vld [vmem:[%s1 + $0x9f8] sm:$0xff]
    %v348 = vld [vmem:[%s1 + $0xa00] sm:$0xff]
    %v349 = vld [vmem:[%s1 + $0xa08] sm:$0xff]
    %v350 = vld [vmem:[%s1 + $0xa10] sm:$0xff]
    %v351 = vld [vmem:[%s1 + $0xa18] sm:$0xff]
    %v352 = vld [vmem:[%s1 + $0xa20] sm:$0xff]
    %v353 = vld [vmem:[%s1 + $0xa28] sm:$0xff]
    %v354 = vld [vmem:[%s1 + $0xa30] sm:$0xff]
    %v355 = vld [vmem:[%s1 + $0xa38] sm:$0xff]
    %v356 = vld [vmem:[%s1 + $0xa40] sm:$0xff]
    %v357 = vld [vmem:[%s1 + $0xa48] sm:$0xff]
    %v358 = vld [vmem:[%s1 + $0xa50] sm:$0xff]
    %v359 = vld [vmem:[%s1 + $0xa58] sm:$0xff]
    %v360 = vld [vmem:[%s1 + $0xa60] sm:$0xff]
    %v361 = vld [vmem:[%s1 + $0xa68] sm:$0xff]
    %v362 = vld [vmem:[%s1 + $0xa70] sm:$0xff]
    %v363 = vld [vmem:[%s1 + $0xa78] sm:$0xff]
    %v364 = vld [vmem:[%s1 + $0xa80] sm:$0xff]
    %v365 = vld [vmem:[%s1 + $0xa88] sm:$0xff]
    %v366 = vld [vmem:[%s1 + $0xa90] sm:$0xff]
    %v367 = vld [vmem:[%s1 + $0xa98] sm:$0xff]
    %v368 = vld [vmem:[%s1 + $0xaa0] sm:$0xff]
    %v369 = vld [vmem:[%s1 + $0xaa8] sm:$0xff]
    %v370 = vld [vmem:[%s1 + $0xab0] sm:$0xff]
    %v371 = vld [vmem:[%s1 + $0xab8] sm:$0xff]
    %v372 = vld [vmem:[%s1 + $0xac0] sm:$0xff]
    %v373 = vld [vmem:[%s1 + $0xac8] sm:$0xff]
    %v374 = vld [vmem:[%s1 + $0xad0] sm:$0xff]
    %v375 = vld [vmem:[%s1 + $0xad8] sm:$0xff]
    %v376 = vld [vmem:[%s1 + $0xae0] sm:$0xff]
    %v377 = vld [vmem:[%s1 + $0xae8] sm:$0xff]
    %v378 = vld [vmem:[%s1 + $0xaf0] sm:$0xff]
    %v379 = vld [vmem:[%s1 + $0xaf8] sm:$0xff]
    %v380 = vld [vmem:[%s1 + $0xb00] sm:$0xff]
    %v381 = vld [vmem:[%s1 + $0xb08] sm:$0xff]
    %v382 = vld [vmem:[%s1 + $0xb10] sm:$0xff]
    %v383 = vld [vmem:[%s1 + $0xb18] sm:$0xff]
    %v384 = vld [vmem:[%s1 + $0xb20] sm:$0xff]
    %v385 = vld [vmem:[%s1 + $0xb28] sm:$0xff]
    %v386 = vld [vmem:[%s1 + $0xb30] sm:$0xff]
    %v387 = vld [vmem:[%s1 + $0xb38] sm:$0xff]
    %v388 = vld [vmem:[%s1 + $0xb40] sm:$0xff]
    %v389 = vld [vmem:[%s1 + $0xb48] sm:$0xff]
    %v390 = vld [vmem:[%s1 + $0xb50] sm:$0xff]
    %v391 = vld [vmem:[%s1 + $0xb58] sm:$0xff]
    %v392 = vld [vmem:[%s1 + $0xb60] sm:$0xff]
    %v393 = vld [vmem:[%s1 + $0xb68] sm:$0xff]
    %v394 = vld [vmem:[%s1 + $0xb70] sm:$0xff]
    %v395 = vld [vmem:[%s1 + $0xb78] sm:$0xff]
    %v396 = vld [vmem:[%s1 + $0xb80] sm:$0xff]
    %v397 = vld [vmem:[%s1 + $0xb88] sm:$0xff]
    %v398 = vld [vmem:[%s1 + $0xb90] sm:$0xff]
    %v399 = vld [vmem:[%s1 + $0xb98] sm:$0xff]
    %v400 = vld [vmem:[%s1 + $0xba0] sm:$0xff]
    %v401 = vld [vmem:[%s1 + $0xba8] sm:$0xff]
    %v402 = vld [vmem:[%s1 + $0xbb0] sm:$0xff]
    %v403 = vld [vmem:[%s1 + $0xbb8] sm:$0xff]
    %v404 = vld [vmem:[%s1 + $0xbc0] sm:$0xff]
    %v405 = vld [vmem:[%s1 + $0xbc8] sm:$0xff]
    %v406 = vld [vmem:[%s1 + $0xbd0] sm:$0xff]
    %v407 = vld [vmem:[%s1 + $0xbd8] sm:$0xff]
    %v408 = vld [vmem:[%s1 + $0xbe0] sm:$0xff]
    %v409 = vld [vmem:[%s1 + $0xbe8] sm:$0xff]
    %v410 = vld [vmem:[%s1 + $0xbf0] sm:$0xff]
    %v411 = vld [vmem:[%s1 + $0xbf8] sm:$0xff]
    %v412 = vld [vmem:[%s1 + $0xc00] sm:$0xff]
    %v413 = vld [vmem:[%s1 + $0xc08] sm:$0xff]
    %v414 = vld [vmem:[%s1 + $0xc10] sm:$0xff]
    %v415 = vld [vmem:[%s1 + $0xc18] sm:$0xff]
    %v416 = vld [vmem:[%s1 + $0xc20] sm:$0xff]
    %v417 = vld [vmem:[%s1 + $0xc28] sm:$0xff]
    %v418 = vld [vmem:[%s1 + $0xc30] sm:$0xff]
    %v419 = vld [vmem:[%s1 + $0xc38] sm:$0xff]
    %v420 = vld [vmem:[%s1 + $0xc40] sm:$0xff]
    %v421 = vld [vmem:[%s1 + $0xc48] sm:$0xff]
    %v422 = vld [vmem:[%s1 + $0xc50] sm:$0xff]
    %v423 = vld [vmem:[%s1 + $0xc58] sm:$0xff]
    %v424 = vld [vmem:[%s1 + $0xc60] sm:$0xff]
    %v425 = vld [vmem:[%s1 + $0xc68] sm:$0xff]
    %v426 = vld [vmem:[%s1 + $0xc70] sm:$0xff]
    %v427 = vld [vmem:[%s1 + $0xc78] sm:$0xff]
    %v428 = vld [vmem:[%s1 + $0xc80] sm:$0xff]
    %v429 = vld [vmem:[%s1 + $0xc88] sm:$0xff]
    %v430 = vld [vmem:[%s1 + $0xc90] sm:$0xff]
    %v431 = vld [vmem:[%s1 + $0xc98] sm:$0xff]
    %v432 = vld [vmem:[%s1 + $0xca0] sm:$0xff]
    %v433 = vld [vmem:[%s1 + $0xca8] sm:$0xff]
    %v434 = vld [vmem:[%s1 + $0xcb0] sm:$0xff]
    %v435 = vld [vmem:[%s1 + $0xcb8] sm:$0xff]
    %v436 = vld [vmem:[%s1 + $0xcc0] sm:$0xff]
    %v437 = vld [vmem:[%s1 + $0xcc8] sm:$0xff]
    %v438 = vld [vmem:[%s1 + $0xcd0] sm:$0xff]
    %v439 = vld [vmem:[%s1 + $0xcd8] sm:$0xff]
    %v440 = vld [vmem:[%s1 + $0xce0] sm:$0xff]
    %v441 = vld [vmem:[%s1 + $0xce8] sm:$0xff]
    %v442 = vld [vmem:[%s1 + $0xcf0] sm:$0xff]
    %v443 = vld [vmem:[%s1 + $0xcf8] sm:$0xff]
    %v444 = vld [vmem:[%s1 + $0xd00] sm:$0xff]
    %v445 = vld [vmem:[%s1 + $0xd08] sm:$0xff]
    %v446 = vld [vmem:[%s1 + $0xd10] sm:$0xff]
    %v447 = vld [vmem:[%s1 + $0xd18] sm:$0xff]
    %v448 = vld [vmem:[%s1 + $0xd20] sm:$0xff]
    %v449 = vld [vmem:[%s1 + $0xd28] sm:$0xff]
    %v450 = vld [vmem:[%s1 + $0xd30] sm:$0xff]
    %v451 = vld [vmem:[%s1 + $0xd38] sm:$0xff]
    %v452 = vld [vmem:[%s1 + $0xd40] sm:$0xff]
    %v453 = vld [vmem:[%s1 + $0xd48] sm:$0xff]
    %v454 = vld [vmem:[%s1 + $0xd50] sm:$0xff]
    %v455 = vld [vmem:[%s1 + $0xd58] sm:$0xff]
    %v456 = vld [vmem:[%s1 + $0xd60] sm:$0xff]
    %v457 = vld [vmem:[%s1 + $0xd68] sm:$0xff]
    %v458 = vld [vmem:[%s1 + $0xd70] sm:$0xff]
    %v459 = vld [vmem:[%s1 + $0xd78] sm:$0xff]
    %v460 = vld [vmem:[%s1 + $0xd80] sm:$0xff]
    %v461 = vld [vmem:[%s1 + $0xd88] sm:$0xff]
    %v462 = vld [vmem:[%s1 + $0xd90] sm:$0xff]
    %v463 = vld [vmem:[%s1 + $0xd98] sm:$0xff]
    %v464 = vld [vmem:[%s1 + $0xda0] sm:$0xff]
    %v465 = vld [vmem:[%s1 + $0xda8] sm:$0xff]
    %v466 = vld [vmem:[%s1 + $0xdb0] sm:$0xff]
    %v467 = vld [vmem:[%s1 + $0xdb8] sm:$0xff]
    %v468 = vld [vmem:[%s1 + $0xdc0] sm:$0xff]
    %v469 = vld [vmem:[%s1 + $0xdc8] sm:$0xff]
    %v470 = vld [vmem:[%s1 + $0xdd0] sm:$0xff]
    %v471 = vld [vmem:[%s1 + $0xdd8] sm:$0xff]
    %v472 = vld [vmem:[%s1 + $0xde0] sm:$0xff]
    %v473 = vld [vmem:[%s1 + $0xde8] sm:$0xff]
    %v474 = vld [vmem:[%s1 + $0xdf0] sm:$0xff]
    %v475 = vld [vmem:[%s1 + $0xdf8] sm:$0xff]
    %v476 = vld [vmem:[%s1 + $0xe00] sm:$0xff]
    %v477 = vld [vmem:[%s1 + $0xe08] sm:$0xff]
    %v478 = vld [vmem:[%s1 + $0xe10] sm:$0xff]
    %v479 = vld [vmem:[%s1 + $0xe18] sm:$0xff]
    %v480 = vld [vmem:[%s1 + $0xe20] sm:$0xff]
    %v481 = vld [vmem:[%s1 + $0xe28] sm:$0xff]
    %v482 = vld [vmem:[%s1 + $0xe30] sm:$0xff]
    %v483 = vld [vmem:[%s1 + $0xe38] sm:$0xff]
    %v484 = vld [vmem:[%s1 + $0xe40] sm:$0xff]
    %v485 = vld [vmem:[%s1 + $0xe48] sm:$0xff]
    %v486 = vld [vmem:[%s1 + $0xe50] sm:$0xff]
    %v487 = vld [vmem:[%s1 + $0xe58] sm:$0xff]
    %v488 = vld [vmem:[%s1 + $0xe60] sm:$0xff]
    %v489 = vld [vmem:[%s1 + $0xe68] sm:$0xff]
    %v490 = vld [vmem:[%s1 + $0xe70] sm:$0xff]
    %v491 = vld [vmem:[%s1 + $0xe78] sm:$0xff]
    %v492 = vld [vmem:[%s1 + $0xe80] sm:$0xff]
    %v493 = vld [vmem:[%s1 + $0xe88] sm:$0xff]
    %v494 = vld [vmem:[%s1 + $0xe90] sm:$0xff]
    %v495 = vld [vmem:[%s1 + $0xe98] sm:$0xff]
    %v496 = vld [vmem:[%s1 + $0xea0] sm:$0xff]
    %v497 = vld [vmem:[%s1 + $0xea8] sm:$0xff]
    %v498 = vld [vmem:[%s1 + $0xeb0] sm:$0xff]
    %v499 = vld [vmem:[%s1 + $0xeb8] sm:$0xff]
    %v500 = vld [vmem:[%s1 + $0xec0] sm:$0xff]
    %v501 = vld [vmem:[%s1 + $0xec8] sm:$0xff]
    %v502 = vld [vmem:[%s1 + $0xed0] sm:$0xff]
    %v503 = vld [vmem:[%s1 + $0xed8] sm:$0xff]
    %v504 = vld [vmem:[%s1 + $0xee0] sm:$0xff]
    %v505 = vld [vmem:[%s1 + $0xee8] sm:$0xff]
    %v506 = vld [vmem:[%s1 + $0xef0] sm:$0xff]
    %v507 = vld [vmem:[%s1 + $0xef8] sm:$0xff]
    %v508 = vld [vmem:[%s1 + $0xf00] sm:$0xff]
    %v509 = vld [vmem:[%s1 + $0xf08] sm:$0xff]
    %v510 = vld [vmem:[%s1 + $0xf10] sm:$0xff]
    %v511 = vld [vmem:[%s1 + $0xf18] sm:$0xff]
    %v512 = vld [vmem:[%s1 + $0xf20] sm:$0xff]
    %v513 = vld [vmem:[%s1 + $0xf28] sm:$0xff]
    %v514 = vld [vmem:[%s1 + $0xf30] sm:$0xff]
    %v515 = vld [vmem:[%s1 + $0xf38] sm:$0xff]
    %v516 = vld [vmem:[%s1 + $0xf40] sm:$0xff]
    %v517 = vld [vmem:[%s1 + $0xf48] sm:$0xff]
    %v518 = vld [vmem:[%s1 + $0xf50] sm:$0xff]
    %v519 = vld [vmem:[%s1 + $0xf58] sm:$0xff]
    %v520 = vld [vmem:[%s1 + $0xf60] sm:$0xff]
    %v521 = vld [vmem:[%s1 + $0xf68] sm:$0xff]
    %v522 = vld [vmem:[%s1 + $0xf70] sm:$0xff]
    %v523 = vld [vmem:[%s1 + $0xf78] sm:$0xff]
    %v524 = vld [vmem:[%s1 + $0xf80] sm:$0xff]
    %v525 = vld [vmem:[%s1 + $0xf88] sm:$0xff]
    %v526 = vld [vmem:[%s1 + $0xf90] sm:$0xff]
    %v527 = vld [vmem:[%s1 + $0xf98] sm:$0xff]
    %v528 = vld [vmem:[%s1 + $0xfa0] sm:$0xff]
    %v529 = vld [vmem:[%s1 + $0xfa8] sm:$0xff]
    %v530 = vld [vmem:[%s1 + $0xfb0] sm:$0xff]
    %v531 = vld [vmem:[%s1 + $0xfb8] sm:$0xff]
    %v532 = vld [vmem:[%s1 + $0xfc0] sm:$0xff]
    %v533 = vld [vmem:[%s1 + $0xfc8] sm:$0xff]
    %v534 = vld [vmem:[%s1 + $0xfd0] sm:$0xff]
    %v535 = vld [vmem:[%s1 + $0xfd8] sm:$0xff]
    %v536 = vld [vmem:[%s1 + $0xfe0] sm:$0xff]
    %v537 = vld [vmem:[%s1 + $0xfe8] sm:$0xff]
    %v538 = vld [vmem:[%s1 + $0xff0] sm:$0xff]
    %v539 = vld [vmem:[%s1 + $0xff8] sm:$0xff]
    %v540 = vld [vmem:[%s1 + $0x1000] sm:$0xff]
    %v541 = vld [vmem:[%s1 + $0x1008] sm:$0xff]
    %v542 = vld [vmem:[%s1 + $0x1010] sm:$0xff]
    %v543 = vld [vmem:[%s1 + $0x1018] sm:$0xff]
    %v544 = vld [vmem:[%s1 + $0x1020] sm:$0xff]
    %v545 = vld [vmem:[%s1 + $0x1028] sm:$0xff]
    %v546 = vld [vmem:[%s1 + $0x1030] sm:$0xff]
    %v547 = vld [vmem:[%s1 + $0x1038] sm:$0xff]
    %v548 = vld [vmem:[%s1 + $0x1040] sm:$0xff]
    %v549 = vld [vmem:[%s1 + $0x1048] sm:$0xff]
    %v550 = vld [vmem:[%s1 + $0x1050] sm:$0xff]
    %v551 = vld [vmem:[%s1 + $0x1058] sm:$0xff]
    %v552 = vld [vmem:[%s1 + $0x1060] sm:$0xff]
    %v553 = vld [vmem:[%s1 + $0x1068] sm:$0xff]
    %v554 = vld [vmem:[%s1 + $0x1070] sm:$0xff]
    %v555 = vld [vmem:[%s1 + $0x1078] sm:$0xff]
    %v556 = vld [vmem:[%s1 + $0x1080] sm:$0xff]
    %v557 = vld [vmem:[%s1 + $0x1088] sm:$0xff]
    %v558 = vld [vmem:[%s1 + $0x1090] sm:$0xff]
    %v559 = vld [vmem:[%s1 + $0x1098] sm:$0xff]
    %v560 = vld [vmem:[%s1 + $0x10a0] sm:$0xff]
    %v561 = vld [vmem:[%s1 + $0x10a8] sm:$0xff]
    %v562 = vld [vmem:[%s1 + $0x10b0] sm:$0xff]
    %v563 = vld [vmem:[%s1 + $0x10b8] sm:$0xff]
    %v564 = vld [vmem:[%s1 + $0x10c0] sm:$0xff]
    %v565 = vld [vmem:[%s1 + $0x10c8] sm:$0xff]
    %v566 = vld [vmem:[%s1 + $0x10d0] sm:$0xff]
    %v567 = vld [vmem:[%s1 + $0x10d8] sm:$0xff]
    %v568 = vld [vmem:[%s1 + $0x10e0] sm:$0xff]
    %v569 = vld [vmem:[%s1 + $0x10e8] sm:$0xff]
    %v570 = vld [vmem:[%s1 + $0x10f0] sm:$0xff]
    %v571 = vld [vmem:[%s1 + $0x10f8] sm:$0xff]
    %v572 = vld [vmem:[%s1 + $0x1100] sm:$0xff]
    %v573 = vld [vmem:[%s1 + $0x1108] sm:$0xff]
    %v574 = vld [vmem:[%s1 + $0x1110] sm:$0xff]
    %v575 = vld [vmem:[%s1 + $0x1118] sm:$0xff]
    %v576 = vld [vmem:[%s1 + $0x1120] sm:$0xff]
    %v577 = vld [vmem:[%s1 + $0x1128] sm:$0xff]
    %v578 = vld [vmem:[%s1 + $0x1130] sm:$0xff]
    %v579 = vld [vmem:[%s1 + $0x1138] sm:$0xff]
    %v580 = vld [vmem:[%s1 + $0x1140] sm:$0xff]
    %v581 = vld [vmem:[%s1 + $0x1148] sm:$0xff]
    %v582 = vld [vmem:[%s1 + $0x1150] sm:$0xff]
    %v583 = vld [vmem:[%s1 + $0x1158] sm:$0xff]
    %v584 = vld [vmem:[%s1 + $0x1160] sm:$0xff]
    %v585 = vld [vmem:[%s1 + $0x1168] sm:$0xff]
    %v586 = vld [vmem:[%s1 + $0x1170] sm:$0xff]
    %v587 = vld [vmem:[%s1 + $0x1178] sm:$0xff]
    %v588 = vld [vmem:[%s1 + $0x1180] sm:$0xff]
    %v589 = vld [vmem:[%s1 + $0x1188] sm:$0xff]
    %v590 = vld [vmem:[%s1 + $0x1190] sm:$0xff]
    %v591 = vld [vmem:[%s1 + $0x1198] sm:$0xff]
    %v592 = vld [vmem:[%s1 + $0x11a0] sm:$0xff]
    %v593 = vld [vmem:[%s1 + $0x11a8] sm:$0xff]
    %v594 = vld [vmem:[%s1 + $0x11b0] sm:$0xff]
    %v595 = vld [vmem:[%s1 + $0x11b8] sm:$0xff]
    %v596 = vld [vmem:[%s1 + $0x11c0] sm:$0xff]
    %v597 = vld [vmem:[%s1 + $0x11c8] sm:$0xff]
    %v598 = vld [vmem:[%s1 + $0x11d0] sm:$0xff]
    %v599 = vld [vmem:[%s1 + $0x11d8] sm:$0xff]
    %v600 = vld [vmem:[%s1 + $0x11e0] sm:$0xff]
    %v601 = vld [vmem:[%s1 + $0x11e8] sm:$0xff]
    %v602 = vld [vmem:[%s1 + $0x11f0] sm:$0xff]
    %v603 = vld [vmem:[%s1 + $0x11f8] sm:$0xff]
    %v604 = vld [vmem:[%s1 + $0x1200] sm:$0xff]
    %v605 = vld [vmem:[%s1 + $0x1208] sm:$0xff]
    %v606 = vld [vmem:[%s1 + $0x1210] sm:$0xff]
    %v607 = vld [vmem:[%s1 + $0x1218] sm:$0xff]
    %v608 = vld [vmem:[%s1 + $0x1220] sm:$0xff]
    %v609 = vld [vmem:[%s1 + $0x1228] sm:$0xff]
    %v610 = vld [vmem:[%s1 + $0x1230] sm:$0xff]
    %v611 = vld [vmem:[%s1 + $0x1238] sm:$0xff]
    %v612 = vld [vmem:[%s1 + $0x1240] sm:$0xff]
    %v613 = vld [vmem:[%s1 + $0x1248] sm:$0xff]
    %v614 = vld [vmem:[%s1 + $0x1250] sm:$0xff]
    %v615 = vld [vmem:[%s1 + $0x1258] sm:$0xff]
    %v616 = vld [vmem:[%s1 + $0x1260] sm:$0xff]
    %v617 = vld [vmem:[%s1 + $0x1268] sm:$0xff]
    %v618 = vld [vmem:[%s1 + $0x1270] sm:$0xff]
    %v619 = vld [vmem:[%s1 + $0x1278] sm:$0xff]
    %v620 = vld [vmem:[%s1 + $0x1280] sm:$0xff]
    %v621 = vld [vmem:[%s1 + $0x1288] sm:$0xff]
    %v622 = vld [vmem:[%s1 + $0x1290] sm:$0xff]
    %v623 = vld [vmem:[%s1 + $0x1298] sm:$0xff]
    %v624 = vld [vmem:[%s1 + $0x12a0] sm:$0xff]
    %v625 = vld [vmem:[%s1 + $0x12a8] sm:$0xff]
    %v626 = vld [vmem:[%s1 + $0x12b0] sm:$0xff]
    %v627 = vld [vmem:[%s1 + $0x12b8] sm:$0xff]
    %v628 = vld [vmem:[%s1 + $0x12c0] sm:$0xff]
    %v629 = vld [vmem:[%s1 + $0x12c8] sm:$0xff]
    %v630 = vld [vmem:[%s1 + $0x12d0] sm:$0xff]
    %v631 = vld [vmem:[%s1 + $0x12d8] sm:$0xff]
    %v632 = vld [vmem:[%s1 + $0x12e0] sm:$0xff]
    %v633 = vld [vmem:[%s1 + $0x12e8] sm:$0xff]
    %v634 = vld [vmem:[%s1 + $0x12f0] sm:$0xff]
    %v635 = vld [vmem:[%s1 + $0x12f8] sm:$0xff]
    %v636 = vld [vmem:[%s1 + $0x1300] sm:$0xff]
    %v637 = vld [vmem:[%s1 + $0x1308] sm:$0xff]
    %v638 = vld [vmem:[%s1 + $0x1310] sm:$0xff]
    %v639 = vld [vmem:[%s1 + $0x1318] sm:$0xff]
    %v640 = vld [vmem:[%s1 + $0x1320] sm:$0xff]
    %v641 = vld [vmem:[%s1 + $0x1328] sm:$0xff]
    %v642 = vld [vmem:[%s1 + $0x1330] sm:$0xff]
    %v643 = vld [vmem:[%s1 + $0x1338] sm:$0xff]
    %v644 = vld [vmem:[%s1 + $0x1340] sm:$0xff]
    %v645 = vld [vmem:[%s1 + $0x1348] sm:$0xff]
    %v646 = vld [vmem:[%s1 + $0x1350] sm:$0xff]
    %v647 = vld [vmem:[%s1 + $0x1358] sm:$0xff]
    %v648 = vld [vmem:[%s1 + $0x1360] sm:$0xff]
    %v649 = vld [vmem:[%s1 + $0x1368] sm:$0xff]
    %v650 = vld [vmem:[%s1 + $0x1370] sm:$0xff]
    %v651 = vld [vmem:[%s1 + $0x1378] sm:$0xff]
    %v652 = vld [vmem:[%s1 + $0x1380] sm:$0xff]
    %v653 = vld [vmem:[%s1 + $0x1388] sm:$0xff]
    %v654 = vld [vmem:[%s1 + $0x1390] sm:$0xff]
    %v655 = vld [vmem:[%s1 + $0x1398] sm:$0xff]
    %v656 = vld [vmem:[%s1 + $0x13a0] sm:$0xff]
    %v657 = vld [vmem:[%s1 + $0x13a8] sm:$0xff]
    %v658 = vld [vmem:[%s1 + $0x13b0] sm:$0xff]
    %v659 = vld [vmem:[%s1 + $0x13b8] sm:$0xff]
    %v660 = vld [vmem:[%s1 + $0x13c0] sm:$0xff]
    %v661 = vld [vmem:[%s1 + $0x13c8] sm:$0xff]
    %v662 = vld [vmem:[%s1 + $0x13d0] sm:$0xff]
    %v663 = vld [vmem:[%s1 + $0x13d8] sm:$0xff]
    %v664 = vld [vmem:[%s1 + $0x13e0] sm:$0xff]
    %v665 = vld [vmem:[%s1 + $0x13e8] sm:$0xff]
    %v666 = vld [vmem:[%s1 + $0x13f0] sm:$0xff]
    %v667 = vld [vmem:[%s1 + $0x13f8] sm:$0xff]
    %v668 = vld [vmem:[%s1 + $0x1400] sm:$0xff]
    %v669 = vld [vmem:[%s1 + $0x1408] sm:$0xff]
    %v670 = vld [vmem:[%s1 + $0x1410] sm:$0xff]
    %v671 = vld [vmem:[%s1 + $0x1418] sm:$0xff]
    %v672 = vld [vmem:[%s1 + $0x1420] sm:$0xff]
    %v673 = vld [vmem:[%s1 + $0x1428] sm:$0xff]
    %v674 = vld [vmem:[%s1 + $0x1430] sm:$0xff]
    %v675 = vld [vmem:[%s1 + $0x1438] sm:$0xff]
    %v676 = vld [vmem:[%s1 + $0x1440] sm:$0xff]
    %v677 = vld [vmem:[%s1 + $0x1448] sm:$0xff]
    %v678 = vld [vmem:[%s1 + $0x1450] sm:$0xff]
    %v679 = vld [vmem:[%s1 + $0x1458] sm:$0xff]
    %v680 = vld [vmem:[%s1 + $0x1460] sm:$0xff]
    %v681 = vld [vmem:[%s1 + $0x1468] sm:$0xff]
    %v682 = vld [vmem:[%s1 + $0x1470] sm:$0xff]
    %v683 = vld [vmem:[%s1 + $0x1478] sm:$0xff]
    %v684 = vld [vmem:[%s1 + $0x1480] sm:$0xff]
    %v685 = vld [vmem:[%s1 + $0x1488] sm:$0xff]
    %v686 = vld [vmem:[%s1 + $0x1490] sm:$0xff]
    %v687 = vld [vmem:[%s1 + $0x1498] sm:$0xff]
    %v688 = vld [vmem:[%s1 + $0x14a0] sm:$0xff]
    %v689 = vld [vmem:[%s1 + $0x14a8] sm:$0xff]
    %v690 = vld [vmem:[%s1 + $0x14b0] sm:$0xff]
    %v691 = vld [vmem:[%s1 + $0x14b8] sm:$0xff]
    %v692 = vld [vmem:[%s1 + $0x14c0] sm:$0xff]
    %v693 = vld [vmem:[%s1 + $0x14c8] sm:$0xff]
    %v694 = vld [vmem:[%s1 + $0x14d0] sm:$0xff]
    %v695 = vld [vmem:[%s1 + $0x14d8] sm:$0xff]
    %v696 = vld [vmem:[%s1 + $0x14e0] sm:$0xff]
    %v697 = vld [vmem:[%s1 + $0x14e8] sm:$0xff]
    %v698 = vld [vmem:[%s1 + $0x14f0] sm:$0xff]
    %v699 = vld [vmem:[%s1 + $0x14f8] sm:$0xff]
    %v700 = vld [vmem:[%s1 + $0x1500] sm:$0xff]
    %v701 = vld [vmem:[%s1 + $0x1508] sm:$0xff]
    %v702 = vld [vmem:[%s1 + $0x1510] sm:$0xff]
    %v703 = vld [vmem:[%s1 + $0x1518] sm:$0xff]
    %v704 = vld [vmem:[%s1 + $0x1520] sm:$0xff]
    %v705 = vld [vmem:[%s1 + $0x1528] sm:$0xff]
    %v706 = vld [vmem:[%s1 + $0x1530] sm:$0xff]
    %v707 = vld [vmem:[%s1 + $0x1538] sm:$0xff]
    %v708 = vld [vmem:[%s1 + $0x1540] sm:$0xff]
    %v709 = vld [vmem:[%s1 + $0x1548] sm:$0xff]
    %v710 = vld [vmem:[%s1 + $0x1550] sm:$0xff]
    %v711 = vld [vmem:[%s1 + $0x1558] sm:$0xff]
    %v712 = vld [vmem:[%s1 + $0x1560] sm:$0xff]
    %v713 = vld [vmem:[%s1 + $0x1568] sm:$0xff]
    %v714 = vld [vmem:[%s1 + $0x1570] sm:$0xff]
    %v715 = vld [vmem:[%s1 + $0x1578] sm:$0xff]
    %v716 = vld [vmem:[%s1 + $0x1580] sm:$0xff]
    %v717 = vld [vmem:[%s1 + $0x1588] sm:$0xff]
    %v718 = vld [vmem:[%s1 + $0x1590] sm:$0xff]
    %v719 = vld [vmem:[%s1 + $0x1598] sm:$0xff]
    %v720 = vld [vmem:[%s1 + $0x15a0] sm:$0xff]
    %v721 = vld [vmem:[%s1 + $0x15a8] sm:$0xff]
    %v722 = vld [vmem:[%s1 + $0x15b0] sm:$0xff]
    %v723 = vld [vmem:[%s1 + $0x15b8] sm:$0xff]
    %v724 = vld [vmem:[%s1 + $0x15c0] sm:$0xff]
    %v725 = vld [vmem:[%s1 + $0x15c8] sm:$0xff]
    %v726 = vld [vmem:[%s1 + $0x15d0] sm:$0xff]
    %v727 = vld [vmem:[%s1 + $0x15d8] sm:$0xff]
    %v728 = vld [vmem:[%s1 + $0x15e0] sm:$0xff]
    %v729 = vld [vmem:[%s1 + $0x15e8] sm:$0xff]
    %v730 = vld [vmem:[%s1 + $0x15f0] sm:$0xff]
    %v731 = vld [vmem:[%s1 + $0x15f8] sm:$0xff]
    %v732 = vld [vmem:[%s1 + $0x1600] sm:$0xff]
    %v733 = vld [vmem:[%s1 + $0x1608] sm:$0xff]
    %v734 = vld [vmem:[%s1 + $0x1610] sm:$0xff]
    %v735 = vld [vmem:[%s1 + $0x1618] sm:$0xff]
    %v736 = vld [vmem:[%s1 + $0x1620] sm:$0xff]
    %v737 = vld [vmem:[%s1 + $0x1628] sm:$0xff]
    %v738 = vld [vmem:[%s1 + $0x1630] sm:$0xff]
    %v739 = vld [vmem:[%s1 + $0x1638] sm:$0xff]
    %v740 = vld [vmem:[%s1 + $0x1640] sm:$0xff]
    %v741 = vld [vmem:[%s1 + $0x1648] sm:$0xff]
    %v742 = vld [vmem:[%s1 + $0x1650] sm:$0xff]
    %v743 = vld [vmem:[%s1 + $0x1658] sm:$0xff]
    %v744 = vld [vmem:[%s1 + $0x1660] sm:$0xff]
    %v745 = vld [vmem:[%s1 + $0x1668] sm:$0xff]
    %v746 = vld [vmem:[%s1 + $0x1670] sm:$0xff]
    %v747 = vld [vmem:[%s1 + $0x1678] sm:$0xff]
    %v748 = vld [vmem:[%s1 + $0x1680] sm:$0xff]
    %v749 = vld [vmem:[%s1 + $0x1688] sm:$0xff]
    %v750 = vld [vmem:[%s1 + $0x1690] sm:$0xff]
    %v751 = vld [vmem:[%s1 + $0x1698] sm:$0xff]
    %v752 = vld [vmem:[%s1 + $0x16a0] sm:$0xff]
    %v753 = vld [vmem:[%s1 + $0x16a8] sm:$0xff]
    %v754 = vld [vmem:[%s1 + $0x16b0] sm:$0xff]
    %v755 = vld [vmem:[%s1 + $0x16b8] sm:$0xff]
    %v756 = vld [vmem:[%s1 + $0x16c0] sm:$0xff]
    %v757 = vld [vmem:[%s1 + $0x16c8] sm:$0xff]
    %v758 = vld [vmem:[%s1 + $0x16d0] sm:$0xff]
    %v759 = vld [vmem:[%s1 + $0x16d8] sm:$0xff]
    %v760 = vld [vmem:[%s1 + $0x16e0] sm:$0xff]
    %v761 = vld [vmem:[%s1 + $0x16e8] sm:$0xff]
    %v762 = vld [vmem:[%s1 + $0x16f0] sm:$0xff]
    %v763 = vld [vmem:[%s1 + $0x16f8] sm:$0xff]
    %v764 = vld [vmem:[%s1 + $0x1700] sm:$0xff]
    %v765 = vld [vmem:[%s1 + $0x1708] sm:$0xff]
    %v766 = vld [vmem:[%s1 + $0x1710] sm:$0xff]
    %v767 = vld [vmem:[%s1 + $0x1718] sm:$0xff]
    %v768 = vld [vmem:[%s1 + $0x1720] sm:$0xff]
    %v769 = vld [vmem:[%s1 + $0x1728] sm:$0xff]
    %v770 = vld [vmem:[%s1 + $0x1730] sm:$0xff]
    %v771 = vld [vmem:[%s1 + $0x1738] sm:$0xff]
    %v772 = vld [vmem:[%s1 + $0x1740] sm:$0xff]
    %v773 = vld [vmem:[%s1 + $0x1748] sm:$0xff]
    %v774 = vld [vmem:[%s1 + $0x1750] sm:$0xff]
    %v775 = vld [vmem:[%s1 + $0x1758] sm:$0xff]
    %v776 = vld [vmem:[%s1 + $0x1760] sm:$0xff]
    %v777 = vld [vmem:[%s1 + $0x1768] sm:$0xff]
    %v778 = vld [vmem:[%s1 + $0x1770] sm:$0xff]
    %v779 = vld [vmem:[%s1 + $0x1778] sm:$0xff]
    %v780 = vld [vmem:[%s1 + $0x1780] sm:$0xff]
    %v781 = vld [vmem:[%s1 + $0x1788] sm:$0xff]
    %v782 = vld [vmem:[%s1 + $0x1790] sm:$0xff]
    %v783 = vld [vmem:[%s1 + $0x1798] sm:$0xff]
    %v784 = vld [vmem:[%s1 + $0x17a0] sm:$0xff]
    %v785 = vld [vmem:[%s1 + $0x17a8] sm:$0xff]
    %v786 = vld [vmem:[%s1 + $0x17b0] sm:$0xff]
    %v787 = vld [vmem:[%s1 + $0x17b8] sm:$0xff]
    %v788 = vld [vmem:[%s1 + $0x17c0] sm:$0xff]
    %v789 = vld [vmem:[%s1 + $0x17c8] sm:$0xff]
    %v790 = vld [vmem:[%s1 + $0x17d0] sm:$0xff]
    %v791 = vld [vmem:[%s1 + $0x17d8] sm:$0xff]
    %v792 = vld [vmem:[%s1 + $0x17e0] sm:$0xff]
    %v793 = vld [vmem:[%s1 + $0x17e8] sm:$0xff]
    %v794 = vld [vmem:[%s1 + $0x17f0] sm:$0xff]
    %v795 = vld [vmem:[%s1 + $0x17f8] sm:$0xff]
    %v796 = vld [vmem:[%s1 + $0x1800] sm:$0xff]
    %v797 = vld [vmem:[%s1 + $0x1808] sm:$0xff]
    %v798 = vld [vmem:[%s1 + $0x1810] sm:$0xff]
    %v799 = vld [vmem:[%s1 + $0x1818] sm:$0xff]
    %v800 = vld [vmem:[%s1 + $0x1820] sm:$0xff]
    %v801 = vld [vmem:[%s1 + $0x1828] sm:$0xff]
    %v802 = vld [vmem:[%s1 + $0x1830] sm:$0xff]
    %v803 = vld [vmem:[%s1 + $0x1838] sm:$0xff]
    %v804 = vld [vmem:[%s1 + $0x1840] sm:$0xff]
    %v805 = vld [vmem:[%s1 + $0x1848] sm:$0xff]
    %v806 = vld [vmem:[%s1 + $0x1850] sm:$0xff]
    %v807 = vld [vmem:[%s1 + $0x1858] sm:$0xff]
    %v808 = vld [vmem:[%s1 + $0x1860] sm:$0xff]
    %v809 = vld [vmem:[%s1 + $0x1868] sm:$0xff]
    %v810 = vld [vmem:[%s1 + $0x1870] sm:$0xff]
    %v811 = vld [vmem:[%s1 + $0x1878] sm:$0xff]
    %v812 = vld [vmem:[%s2] sm:$0x3]
    %v814 = vlaneseq
    %v815 = vshrl.u32 %v814, 7
    %v816 = vsub.s32 0, %v815
    %v817 = vrot.slane %v812, %v816
    %v818 = vlaneseq
    %v819 = vshrl.u32 %v818, 7
    %v820 = vsub.s32 1, %v819
    %v821 = vrot.slane %v812, %v820
    %v831 = vcombine.high %v21, %v21
    %v833 = vunpack.c.l.s4 1983009808
    %v834 = vunpack.c.0.s8 %v833
    %v835 = vlaneseq
    %v836 = vshrl.u32 %v835, 7
    %v837 = vsub.s32 %v834, %v836
    %v838 = vrot.slane %v21, %v837
    %v840 = vunpack.c.l.s4 1983009808
    %v841 = vunpack.c.0.s8 %v840
    %v842 = vlaneseq
    %v843 = vshrl.u32 %v842, 7
    %v844 = vsub.s32 %v841, %v843
    %v845 = vrot.slane %v831, %v844
    %v846 = vcombine.high %v838, %v838
    %v847 = vcombine.high %v845, %v845
    %v848 = vcombine.high %v22, %v22
    %v850 = vunpack.c.l.s4 1983009808
    %v851 = vunpack.c.0.s8 %v850
    %v852 = vlaneseq
    %v853 = vshrl.u32 %v852, 7
    %v854 = vsub.s32 %v851, %v853
    %v855 = vrot.slane %v22, %v854
    %v857 = vunpack.c.l.s4 1983009808
    %v858 = vunpack.c.0.s8 %v857
    %v859 = vlaneseq
    %v860 = vshrl.u32 %v859, 7
    %v861 = vsub.s32 %v858, %v860
    %v862 = vrot.slane %v848, %v861
    %v863 = vcombine.high %v855, %v855
    %v864 = vcombine.high %v862, %v862
    %v865 = vcombine.high %v23, %v23
    %v867 = vunpack.c.l.s4 1983009808
    %v868 = vunpack.c.0.s8 %v867
    %v869 = vlaneseq
    %v870 = vshrl.u32 %v869, 7
    %v871 = vsub.s32 %v868, %v870
    %v872 = vrot.slane %v23, %v871
    %v874 = vunpack.c.l.s4 1983009808
    %v875 = vunpack.c.0.s8 %v874
    %v876 = vlaneseq
    %v877 = vshrl.u32 %v876, 7
    %v878 = vsub.s32 %v875, %v877
    %v879 = vrot.slane %v865, %v878
    %v880 = vcombine.high %v872, %v872
    %v881 = vcombine.high %v879, %v879
    %v882 = vcombine.high %v24, %v24
    %v884 = vunpack.c.l.s4 1983009808
    %v885 = vunpack.c.0.s8 %v884
    %v886 = vlaneseq
    %v887 = vshrl.u32 %v886, 7
    %v888 = vsub.s32 %v885, %v887
    %v889 = vrot.slane %v24, %v888
    %v891 = vunpack.c.l.s4 1983009808
    %v892 = vunpack.c.0.s8 %v891
    %v893 = vlaneseq
    %v894 = vshrl.u32 %v893, 7
    %v895 = vsub.s32 %v892, %v894
    %v896 = vrot.slane %v882, %v895
    %v897 = vcombine.high %v889, %v889
    %v898 = vcombine.high %v896, %v896
    %v899 = vcombine.high %v25, %v25
    %v901 = vunpack.c.l.s4 1983009808
    %v902 = vunpack.c.0.s8 %v901
    %v903 = vlaneseq
    %v904 = vshrl.u32 %v903, 7
    %v905 = vsub.s32 %v902, %v904
    %v906 = vrot.slane %v25, %v905
    %v908 = vunpack.c.l.s4 1983009808
    %v909 = vunpack.c.0.s8 %v908
    %v910 = vlaneseq
    %v911 = vshrl.u32 %v910, 7
    %v912 = vsub.s32 %v909, %v911
    %v913 = vrot.slane %v899, %v912
    %v914 = vcombine.high %v906, %v906
    %v915 = vcombine.high %v913, %v913
    %v916 = vcombine.high %v26, %v26
    %v918 = vunpack.c.l.s4 1983009808
    %v919 = vunpack.c.0.s8 %v918
    %v920 = vlaneseq
    %v921 = vshrl.u32 %v920, 7
    %v922 = vsub.s32 %v919, %v921
    %v923 = vrot.slane %v26, %v922
    %v925 = vunpack.c.l.s4 1983009808
    %v926 = vunpack.c.0.s8 %v925
    %v927 = vlaneseq
    %v928 = vshrl.u32 %v927, 7
    %v929 = vsub.s32 %v926, %v928
    %v930 = vrot.slane %v916, %v929
    %v931 = vcombine.high %v923, %v923
    %v932 = vcombine.high %v930, %v930
    %v934 = vunpack.c.l.s4 1983009808
    %v935 = vunpack.c.0.s8 %v934
    %v936 = vlaneseq
    %v937 = vshrl.u32 %v936, 7
    %v938 = vsub.s32 %v935, %v937
    %v939 = vrot.slane %v27, %v938
    %vm964 = vcmask 523264
    %v965 = vsel %vm964, %v939, 0
    %967 = vmatprep.subr.mxu0 %v59
    %968 = vmatpush1.msra.mxu0 %v58
    %969 = vmatprep.subr.mxu0 %v57
    %970 = vmatpush1.msra.mxu0 %v56
    %971 = vmatprep.subr.mxu0 %v55
    %972 = vmatpush1.msra.mxu0 %v54
    %973 = vmatprep.subr.mxu0 %v53
    %974 = vmatpush1.msra.mxu0 %v52
    %975 = vmatprep.subr.mxu0 %v51
    %976 = vmatpush1.msra.mxu0 %v50
    %977 = vmatprep.subr.mxu0 %v49
    %978 = vmatpush1.msra.mxu0 %v48
    %979 = vmatprep.subr.mxu0 %v47
    %980 = vmatpush1.msra.mxu0 %v46
    %981 = vmatprep.subr.mxu0 %v45
    %982 = vmatpush1.msra.mxu0 %v44
    %983 = vmatprep.subr.mxu0 %v43
    %984 = vmatpush1.msra.mxu0 %v42
    %985 = vmatprep.subr.mxu0 %v41
    %986 = vmatpush1.msra.mxu0 %v40
    %987 = vmatprep.subr.mxu0 %v39
    %988 = vmatpush1.msra.mxu0 %v38
    %989 = vmatprep.subr.mxu0 %v37
    %990 = vmatpush1.msra.mxu0 %v36
    %991 = vmatprep.subr.mxu0 %v35
    %992 = vmatpush1.msra.mxu0 %v34
    %993 = vmatprep.subr.mxu0 %v33
    %994 = vmatpush1.msra.mxu0 %v32
    %995 = vmatprep.subr.mxu0 %v31
    %996 = vmatpush1.msra.mxu0 %v30
    %997 = vmatprep.subr.mxu0 %v29
    %998 = vmatpush1.msra.mxu0 %v28
    %999 = vmatprep.subr.mxu0 %v91
    %1000 = vmatpush2.msra.mxu0 %v90
    %1001 = vmatprep.subr.mxu0 %v89
    %1002 = vmatpush2.msra.mxu0 %v88
    %1003 = vmatprep.subr.mxu0 %v87
    %1004 = vmatpush2.msra.mxu0 %v86
    %1005 = vmatprep.subr.mxu0 %v85
    %1006 = vmatpush2.msra.mxu0 %v84
    %1007 = vmatprep.subr.mxu0 %v83
    %1008 = vmatpush2.msra.mxu0 %v82
    %1009 = vmatprep.subr.mxu0 %v81
    %1010 = vmatpush2.msra.mxu0 %v80
    %1011 = vmatprep.subr.mxu0 %v79
    %1012 = vmatpush2.msra.mxu0 %v78
    %1013 = vmatprep.subr.mxu0 %v77
    %1014 = vmatpush2.msra.mxu0 %v76
    %1015 = vmatprep.subr.mxu0 %v75
    %1016 = vmatpush2.msra.mxu0 %v74
    %1017 = vmatprep.subr.mxu0 %v73
    %1018 = vmatpush2.msra.mxu0 %v72
    %1019 = vmatprep.subr.mxu0 %v71
    %1020 = vmatpush2.msra.mxu0 %v70
    %1021 = vmatprep.subr.mxu0 %v69
    %1022 = vmatpush2.msra.mxu0 %v68
    %1023 = vmatprep.subr.mxu0 %v67
    %1024 = vmatpush2.msra.mxu0 %v66
    %1025 = vmatprep.subr.mxu0 %v65
    %1026 = vmatpush2.msra.mxu0 %v64
    %1027 = vmatprep.subr.mxu0 %v63
    %1028 = vmatpush2.msra.mxu0 %v62
    %1029 = vmatprep.subr.mxu0 %v61
    %1030 = vmatpush2.msra.mxu0 %v60
    %1031 = vmatprep.mubr.f32.mxu0 %v846
    %1032 = vmatmul.mubr.f32.gmra.mxu0 %v838
    %v1033 = vpop.f32.mrf.mxu0
    %v1034 = vadd.f32 %v817, %v1033
    %v1035 = vpop.f32.mrf.mxu0
    %v1036 = vadd.f32 %v821, %v1035
    %1037 = vdwg.mxu0
    %1038 = vmatprep.subr.mxu0 %v123
    %1039 = vmatpush1.msra.mxu0 %v122
    %1040 = vmatprep.subr.mxu0 %v121
    %1041 = vmatpush1.msra.mxu0 %v120
    %1042 = vmatprep.subr.mxu0 %v119
    %1043 = vmatpush1.msra.mxu0 %v118
    %1044 = vmatprep.subr.mxu0 %v117
    %1045 = vmatpush1.msra.mxu0 %v116
    %1046 = vmatprep.subr.mxu0 %v115
    %1047 = vmatpush1.msra.mxu0 %v114
    %1048 = vmatprep.subr.mxu0 %v113
    %1049 = vmatpush1.msra.mxu0 %v112
    %1050 = vmatprep.subr.mxu0 %v111
    %1051 = vmatpush1.msra.mxu0 %v110
    %1052 = vmatprep.subr.mxu0 %v109
    %1053 = vmatpush1.msra.mxu0 %v108
    %1054 = vmatprep.subr.mxu0 %v107
    %1055 = vmatpush1.msra.mxu0 %v106
    %1056 = vmatprep.subr.mxu0 %v105
    %1057 = vmatpush1.msra.mxu0 %v104
    %1058 = vmatprep.subr.mxu0 %v103
    %1059 = vmatpush1.msra.mxu0 %v102
    %1060 = vmatprep.subr.mxu0 %v101
    %1061 = vmatpush1.msra.mxu0 %v100
    %1062 = vmatprep.subr.mxu0 %v99
    %1063 = vmatpush1.msra.mxu0 %v98
    %1064 = vmatprep.subr.mxu0 %v97
    %1065 = vmatpush1.msra.mxu0 %v96
    %1066 = vmatprep.subr.mxu0 %v95
    %1067 = vmatpush1.msra.mxu0 %v94
    %1068 = vmatprep.subr.mxu0 %v93
    %1069 = vmatpush1.msra.mxu0 %v92
    %1070 = vmatprep.subr.mxu0 %v155
    %1071 = vmatpush2.msra.mxu0 %v154
    %1072 = vmatprep.subr.mxu0 %v153
    %1073 = vmatpush2.msra.mxu0 %v152
    %1074 = vmatprep.subr.mxu0 %v151
    %1075 = vmatpush2.msra.mxu0 %v150
    %1076 = vmatprep.subr.mxu0 %v149
    %1077 = vmatpush2.msra.mxu0 %v148
    %1078 = vmatprep.subr.mxu0 %v147
    %1079 = vmatpush2.msra.mxu0 %v146
    %1080 = vmatprep.subr.mxu0 %v145
    %1081 = vmatpush2.msra.mxu0 %v144
    %1082 = vmatprep.subr.mxu0 %v143
    %1083 = vmatpush2.msra.mxu0 %v142
    %1084 = vmatprep.subr.mxu0 %v141
    %1085 = vmatpush2.msra.mxu0 %v140
    %1086 = vmatprep.subr.mxu0 %v139
    %1087 = vmatpush2.msra.mxu0 %v138
    %1088 = vmatprep.subr.mxu0 %v137
    %1089 = vmatpush2.msra.mxu0 %v136
    %1090 = vmatprep.subr.mxu0 %v135
    %1091 = vmatpush2.msra.mxu0 %v134
    %1092 = vmatprep.subr.mxu0 %v133
    %1093 = vmatpush2.msra.mxu0 %v132
    %1094 = vmatprep.subr.mxu0 %v131
    %1095 = vmatpush2.msra.mxu0 %v130
    %1096 = vmatprep.subr.mxu0 %v129
    %1097 = vmatpush2.msra.mxu0 %v128
    %1098 = vmatprep.subr.mxu0 %v127
    %1099 = vmatpush2.msra.mxu0 %v126
    %1100 = vmatprep.subr.mxu0 %v125
    %1101 = vmatpush2.msra.mxu0 %v124
    %1102 = vmatprep.mubr.f32.mxu0 %v847
    %1103 = vmatmul.mubr.f32.gmra.mxu0 %v845
    %v1104 = vpop.f32.mrf.mxu0
    %v1105 = vadd.f32 %v1034, %v1104
    %v1106 = vpop.f32.mrf.mxu0
    %v1107 = vadd.f32 %v1036, %v1106
    %1108 = vdwg.mxu0
    %1109 = vmatprep.subr.mxu0 %v187
    %1110 = vmatpush1.msra.mxu0 %v186
    %1111 = vmatprep.subr.mxu0 %v185
    %1112 = vmatpush1.msra.mxu0 %v184
    %1113 = vmatprep.subr.mxu0 %v183
    %1114 = vmatpush1.msra.mxu0 %v182
    %1115 = vmatprep.subr.mxu0 %v181
    %1116 = vmatpush1.msra.mxu0 %v180
    %1117 = vmatprep.subr.mxu0 %v179
    %1118 = vmatpush1.msra.mxu0 %v178
    %1119 = vmatprep.subr.mxu0 %v177
    %1120 = vmatpush1.msra.mxu0 %v176
    %1121 = vmatprep.subr.mxu0 %v175
    %1122 = vmatpush1.msra.mxu0 %v174
    %1123 = vmatprep.subr.mxu0 %v173
    %1124 = vmatpush1.msra.mxu0 %v172
    %1125 = vmatprep.subr.mxu0 %v171
    %1126 = vmatpush1.msra.mxu0 %v170
    %1127 = vmatprep.subr.mxu0 %v169
    %1128 = vmatpush1.msra.mxu0 %v168
    %1129 = vmatprep.subr.mxu0 %v167
    %1130 = vmatpush1.msra.mxu0 %v166
    %1131 = vmatprep.subr.mxu0 %v165
    %1132 = vmatpush1.msra.mxu0 %v164
    %1133 = vmatprep.subr.mxu0 %v163
    %1134 = vmatpush1.msra.mxu0 %v162
    %1135 = vmatprep.subr.mxu0 %v161
    %1136 = vmatpush1.msra.mxu0 %v160
    %1137 = vmatprep.subr.mxu0 %v159
    %1138 = vmatpush1.msra.mxu0 %v158
    %1139 = vmatprep.subr.mxu0 %v157
    %1140 = vmatpush1.msra.mxu0 %v156
    %1141 = vmatprep.subr.mxu0 %v219
    %1142 = vmatpush2.msra.mxu0 %v218
    %1143 = vmatprep.subr.mxu0 %v217
    %1144 = vmatpush2.msra.mxu0 %v216
    %1145 = vmatprep.subr.mxu0 %v215
    %1146 = vmatpush2.msra.mxu0 %v214
    %1147 = vmatprep.subr.mxu0 %v213
    %1148 = vmatpush2.msra.mxu0 %v212
    %1149 = vmatprep.subr.mxu0 %v211
    %1150 = vmatpush2.msra.mxu0 %v210
    %1151 = vmatprep.subr.mxu0 %v209
    %1152 = vmatpush2.msra.mxu0 %v208
    %1153 = vmatprep.subr.mxu0 %v207
    %1154 = vmatpush2.msra.mxu0 %v206
    %1155 = vmatprep.subr.mxu0 %v205
    %1156 = vmatpush2.msra.mxu0 %v204
    %1157 = vmatprep.subr.mxu0 %v203
    %1158 = vmatpush2.msra.mxu0 %v202
    %1159 = vmatprep.subr.mxu0 %v201
    %1160 = vmatpush2.msra.mxu0 %v200
    %1161 = vmatprep.subr.mxu0 %v199
    %1162 = vmatpush2.msra.mxu0 %v198
    %1163 = vmatprep.subr.mxu0 %v197
    %1164 = vmatpush2.msra.mxu0 %v196
    %1165 = vmatprep.subr.mxu0 %v195
    %1166 = vmatpush2.msra.mxu0 %v194
    %1167 = vmatprep.subr.mxu0 %v193
    %1168 = vmatpush2.msra.mxu0 %v192
    %1169 = vmatprep.subr.mxu0 %v191
    %1170 = vmatpush2.msra.mxu0 %v190
    %1171 = vmatprep.subr.mxu0 %v189
    %1172 = vmatpush2.msra.mxu0 %v188
    %1173 = vmatprep.mubr.f32.mxu0 %v863
    %1174 = vmatmul.mubr.f32.gmra.mxu0 %v855
    %v1175 = vpop.f32.mrf.mxu0
    %v1176 = vadd.f32 %v1105, %v1175
    %v1177 = vpop.f32.mrf.mxu0
    %v1178 = vadd.f32 %v1107, %v1177
    %1179 = vdwg.mxu0
    %1180 = vmatprep.subr.mxu0 %v251
    %1181 = vmatpush1.msra.mxu0 %v250
    %1182 = vmatprep.subr.mxu0 %v249
    %1183 = vmatpush1.msra.mxu0 %v248
    %1184 = vmatprep.subr.mxu0 %v247
    %1185 = vmatpush1.msra.mxu0 %v246
    %1186 = vmatprep.subr.mxu0 %v245
    %1187 = vmatpush1.msra.mxu0 %v244
    %1188 = vmatprep.subr.mxu0 %v243
    %1189 = vmatpush1.msra.mxu0 %v242
    %1190 = vmatprep.subr.mxu0 %v241
    %1191 = vmatpush1.msra.mxu0 %v240
    %1192 = vmatprep.subr.mxu0 %v239
    %1193 = vmatpush1.msra.mxu0 %v238
    %1194 = vmatprep.subr.mxu0 %v237
    %1195 = vmatpush1.msra.mxu0 %v236
    %1196 = vmatprep.subr.mxu0 %v235
    %1197 = vmatpush1.msra.mxu0 %v234
    %1198 = vmatprep.subr.mxu0 %v233
    %1199 = vmatpush1.msra.mxu0 %v232
    %1200 = vmatprep.subr.mxu0 %v231
    %1201 = vmatpush1.msra.mxu0 %v230
    %1202 = vmatprep.subr.mxu0 %v229
    %1203 = vmatpush1.msra.mxu0 %v228
    %1204 = vmatprep.subr.mxu0 %v227
    %1205 = vmatpush1.msra.mxu0 %v226
    %1206 = vmatprep.subr.mxu0 %v225
    %1207 = vmatpush1.msra.mxu0 %v224
    %1208 = vmatprep.subr.mxu0 %v223
    %1209 = vmatpush1.msra.mxu0 %v222
    %1210 = vmatprep.subr.mxu0 %v221
    %1211 = vmatpush1.msra.mxu0 %v220
    %1212 = vmatprep.subr.mxu0 %v283
    %1213 = vmatpush2.msra.mxu0 %v282
    %1214 = vmatprep.subr.mxu0 %v281
    %1215 = vmatpush2.msra.mxu0 %v280
    %1216 = vmatprep.subr.mxu0 %v279
    %1217 = vmatpush2.msra.mxu0 %v278
    %1218 = vmatprep.subr.mxu0 %v277
    %1219 = vmatpush2.msra.mxu0 %v276
    %1220 = vmatprep.subr.mxu0 %v275
    %1221 = vmatpush2.msra.mxu0 %v274
    %1222 = vmatprep.subr.mxu0 %v273
    %1223 = vmatpush2.msra.mxu0 %v272
    %1224 = vmatprep.subr.mxu0 %v271
    %1225 = vmatpush2.msra.mxu0 %v270
    %1226 = vmatprep.subr.mxu0 %v269
    %1227 = vmatpush2.msra.mxu0 %v268
    %1228 = vmatprep.subr.mxu0 %v267
    %1229 = vmatpush2.msra.mxu0 %v266
    %1230 = vmatprep.subr.mxu0 %v265
    %1231 = vmatpush2.msra.mxu0 %v264
    %1232 = vmatprep.subr.mxu0 %v263
    %1233 = vmatpush2.msra.mxu0 %v262
    %1234 = vmatprep.subr.mxu0 %v261
    %1235 = vmatpush2.msra.mxu0 %v260
    %1236 = vmatprep.subr.mxu0 %v259
    %1237 = vmatpush2.msra.mxu0 %v258
    %1238 = vmatprep.subr.mxu0 %v257
    %1239 = vmatpush2.msra.mxu0 %v256
    %1240 = vmatprep.subr.mxu0 %v255
    %1241 = vmatpush2.msra.mxu0 %v254
    %1242 = vmatprep.subr.mxu0 %v253
    %1243 = vmatpush2.msra.mxu0 %v252
    %1244 = vmatprep.mubr.f32.mxu0 %v864
    %1245 = vmatmul.mubr.f32.gmra.mxu0 %v862
    %v1246 = vpop.f32.mrf.mxu0
    %v1247 = vadd.f32 %v1176, %v1246
    %v1248 = vpop.f32.mrf.mxu0
    %v1249 = vadd.f32 %v1178, %v1248
    %1250 = vdwg.mxu0
    %1251 = vmatprep.subr.mxu0 %v315
    %1252 = vmatpush1.msra.mxu0 %v314
    %1253 = vmatprep.subr.mxu0 %v313
    %1254 = vmatpush1.msra.mxu0 %v312
    %1255 = vmatprep.subr.mxu0 %v311
    %1256 = vmatpush1.msra.mxu0 %v310
    %1257 = vmatprep.subr.mxu0 %v309
    %1258 = vmatpush1.msra.mxu0 %v308
    %1259 = vmatprep.subr.mxu0 %v307
    %1260 = vmatpush1.msra.mxu0 %v306
    %1261 = vmatprep.subr.mxu0 %v305
    %1262 = vmatpush1.msra.mxu0 %v304
    %1263 = vmatprep.subr.mxu0 %v303
    %1264 = vmatpush1.msra.mxu0 %v302
    %1265 = vmatprep.subr.mxu0 %v301
    %1266 = vmatpush1.msra.mxu0 %v300
    %1267 = vmatprep.subr.mxu0 %v299
    %1268 = vmatpush1.msra.mxu0 %v298
    %1269 = vmatprep.subr.mxu0 %v297
    %1270 = vmatpush1.msra.mxu0 %v296
    %1271 = vmatprep.subr.mxu0 %v295
    %1272 = vmatpush1.msra.mxu0 %v294
    %1273 = vmatprep.subr.mxu0 %v293
    %1274 = vmatpush1.msra.mxu0 %v292
    %1275 = vmatprep.subr.mxu0 %v291
    %1276 = vmatpush1.msra.mxu0 %v290
    %1277 = vmatprep.subr.mxu0 %v289
    %1278 = vmatpush1.msra.mxu0 %v288
    %1279 = vmatprep.subr.mxu0 %v287
    %1280 = vmatpush1.msra.mxu0 %v286
    %1281 = vmatprep.subr.mxu0 %v285
    %1282 = vmatpush1.msra.mxu0 %v284
    %1283 = vmatprep.subr.mxu0 %v347
    %1284 = vmatpush2.msra.mxu0 %v346
    %1285 = vmatprep.subr.mxu0 %v345
    %1286 = vmatpush2.msra.mxu0 %v344
    %1287 = vmatprep.subr.mxu0 %v343
    %1288 = vmatpush2.msra.mxu0 %v342
    %1289 = vmatprep.subr.mxu0 %v341
    %1290 = vmatpush2.msra.mxu0 %v340
    %1291 = vmatprep.subr.mxu0 %v339
    %1292 = vmatpush2.msra.mxu0 %v338
    %1293 = vmatprep.subr.mxu0 %v337
    %1294 = vmatpush2.msra.mxu0 %v336
    %1295 = vmatprep.subr.mxu0 %v335
    %1296 = vmatpush2.msra.mxu0 %v334
    %1297 = vmatprep.subr.mxu0 %v333
    %1298 = vmatpush2.msra.mxu0 %v332
    %1299 = vmatprep.subr.mxu0 %v331
    %1300 = vmatpush2.msra.mxu0 %v330
    %1301 = vmatprep.subr.mxu0 %v329
    %1302 = vmatpush2.msra.mxu0 %v328
    %1303 = vmatprep.subr.mxu0 %v327
    %1304 = vmatpush2.msra.mxu0 %v326
    %1305 = vmatprep.subr.mxu0 %v325
    %1306 = vmatpush2.msra.mxu0 %v324
    %1307 = vmatprep.subr.mxu0 %v323
    %1308 = vmatpush2.msra.mxu0 %v322
    %1309 = vmatprep.subr.mxu0 %v321
    %1310 = vmatpush2.msra.mxu0 %v320
    %1311 = vmatprep.subr.mxu0 %v319
    %1312 = vmatpush2.msra.mxu0 %v318
    %1313 = vmatprep.subr.mxu0 %v317
    %1314 = vmatpush2.msra.mxu0 %v316
    %1315 = vmatprep.mubr.f32.mxu0 %v880
    %1316 = vmatmul.mubr.f32.gmra.mxu0 %v872
    %v1317 = vpop.f32.mrf.mxu0
    %v1318 = vadd.f32 %v1247, %v1317
    %v1319 = vpop.f32.mrf.mxu0
    %v1320 = vadd.f32 %v1249, %v1319
    %1321 = vdwg.mxu0
    %1322 = vmatprep.subr.mxu0 %v379
    %1323 = vmatpush1.msra.mxu0 %v378
    %1324 = vmatprep.subr.mxu0 %v377
    %1325 = vmatpush1.msra.mxu0 %v376
    %1326 = vmatprep.subr.mxu0 %v375
    %1327 = vmatpush1.msra.mxu0 %v374
    %1328 = vmatprep.subr.mxu0 %v373
    %1329 = vmatpush1.msra.mxu0 %v372
    %1330 = vmatprep.subr.mxu0 %v371
    %1331 = vmatpush1.msra.mxu0 %v370
    %1332 = vmatprep.subr.mxu0 %v369
    %1333 = vmatpush1.msra.mxu0 %v368
    %1334 = vmatprep.subr.mxu0 %v367
    %1335 = vmatpush1.msra.mxu0 %v366
    %1336 = vmatprep.subr.mxu0 %v365
    %1337 = vmatpush1.msra.mxu0 %v364
    %1338 = vmatprep.subr.mxu0 %v363
    %1339 = vmatpush1.msra.mxu0 %v362
    %1340 = vmatprep.subr.mxu0 %v361
    %1341 = vmatpush1.msra.mxu0 %v360
    %1342 = vmatprep.subr.mxu0 %v359
    %1343 = vmatpush1.msra.mxu0 %v358
    %1344 = vmatprep.subr.mxu0 %v357
    %1345 = vmatpush1.msra.mxu0 %v356
    %1346 = vmatprep.subr.mxu0 %v355
    %1347 = vmatpush1.msra.mxu0 %v354
    %1348 = vmatprep.subr.mxu0 %v353
    %1349 = vmatpush1.msra.mxu0 %v352
    %1350 = vmatprep.subr.mxu0 %v351
    %1351 = vmatpush1.msra.mxu0 %v350
    %1352 = vmatprep.subr.mxu0 %v349
    %1353 = vmatpush1.msra.mxu0 %v348
    %1354 = vmatprep.subr.mxu0 %v411
    %1355 = vmatpush2.msra.mxu0 %v410
    %1356 = vmatprep.subr.mxu0 %v409
    %1357 = vmatpush2.msra.mxu0 %v408
    %1358 = vmatprep.subr.mxu0 %v407
    %1359 = vmatpush2.msra.mxu0 %v406
    %1360 = vmatprep.subr.mxu0 %v405
    %1361 = vmatpush2.msra.mxu0 %v404
    %1362 = vmatprep.subr.mxu0 %v403
    %1363 = vmatpush2.msra.mxu0 %v402
    %1364 = vmatprep.subr.mxu0 %v401
    %1365 = vmatpush2.msra.mxu0 %v400
    %1366 = vmatprep.subr.mxu0 %v399
    %1367 = vmatpush2.msra.mxu0 %v398
    %1368 = vmatprep.subr.mxu0 %v397
    %1369 = vmatpush2.msra.mxu0 %v396
    %1370 = vmatprep.subr.mxu0 %v395
    %1371 = vmatpush2.msra.mxu0 %v394
    %1372 = vmatprep.subr.mxu0 %v393
    %1373 = vmatpush2.msra.mxu0 %v392
    %1374 = vmatprep.subr.mxu0 %v391
    %1375 = vmatpush2.msra.mxu0 %v390
    %1376 = vmatprep.subr.mxu0 %v389
    %1377 = vmatpush2.msra.mxu0 %v388
    %1378 = vmatprep.subr.mxu0 %v387
    %1379 = vmatpush2.msra.mxu0 %v386
    %1380 = vmatprep.subr.mxu0 %v385
    %1381 = vmatpush2.msra.mxu0 %v384
    %1382 = vmatprep.subr.mxu0 %v383
    %1383 = vmatpush2.msra.mxu0 %v382
    %1384 = vmatprep.subr.mxu0 %v381
    %1385 = vmatpush2.msra.mxu0 %v380
    %1386 = vmatprep.mubr.f32.mxu0 %v881
    %1387 = vmatmul.mubr.f32.gmra.mxu0 %v879
    %v1388 = vpop.f32.mrf.mxu0
    %v1389 = vadd.f32 %v1318, %v1388
    %v1390 = vpop.f32.mrf.mxu0
    %v1391 = vadd.f32 %v1320, %v1390
    %1392 = vdwg.mxu0
    %1393 = vmatprep.subr.mxu0 %v443
    %1394 = vmatpush1.msra.mxu0 %v442
    %1395 = vmatprep.subr.mxu0 %v441
    %1396 = vmatpush1.msra.mxu0 %v440
    %1397 = vmatprep.subr.mxu0 %v439
    %1398 = vmatpush1.msra.mxu0 %v438
    %1399 = vmatprep.subr.mxu0 %v437
    %1400 = vmatpush1.msra.mxu0 %v436
    %1401 = vmatprep.subr.mxu0 %v435
    %1402 = vmatpush1.msra.mxu0 %v434
    %1403 = vmatprep.subr.mxu0 %v433
    %1404 = vmatpush1.msra.mxu0 %v432
    %1405 = vmatprep.subr.mxu0 %v431
    %1406 = vmatpush1.msra.mxu0 %v430
    %1407 = vmatprep.subr.mxu0 %v429
    %1408 = vmatpush1.msra.mxu0 %v428
    %1409 = vmatprep.subr.mxu0 %v427
    %1410 = vmatpush1.msra.mxu0 %v426
    %1411 = vmatprep.subr.mxu0 %v425
    %1412 = vmatpush1.msra.mxu0 %v424
    %1413 = vmatprep.subr.mxu0 %v423
    %1414 = vmatpush1.msra.mxu0 %v422
    %1415 = vmatprep.subr.mxu0 %v421
    %1416 = vmatpush1.msra.mxu0 %v420
    %1417 = vmatprep.subr.mxu0 %v419
    %1418 = vmatpush1.msra.mxu0 %v418
    %1419 = vmatprep.subr.mxu0 %v417
    %1420 = vmatpush1.msra.mxu0 %v416
    %1421 = vmatprep.subr.mxu0 %v415
    %1422 = vmatpush1.msra.mxu0 %v414
    %1423 = vmatprep.subr.mxu0 %v413
    %1424 = vmatpush1.msra.mxu0 %v412
    %1425 = vmatprep.subr.mxu0 %v475
    %1426 = vmatpush2.msra.mxu0 %v474
    %1427 = vmatprep.subr.mxu0 %v473
    %1428 = vmatpush2.msra.mxu0 %v472
    %1429 = vmatprep.subr.mxu0 %v471
    %1430 = vmatpush2.msra.mxu0 %v470
    %1431 = vmatprep.subr.mxu0 %v469
    %1432 = vmatpush2.msra.mxu0 %v468
    %1433 = vmatprep.subr.mxu0 %v467
    %1434 = vmatpush2.msra.mxu0 %v466
    %1435 = vmatprep.subr.mxu0 %v465
    %1436 = vmatpush2.msra.mxu0 %v464
    %1437 = vmatprep.subr.mxu0 %v463
    %1438 = vmatpush2.msra.mxu0 %v462
    %1439 = vmatprep.subr.mxu0 %v461
    %1440 = vmatpush2.msra.mxu0 %v460
    %1441 = vmatprep.subr.mxu0 %v459
    %1442 = vmatpush2.msra.mxu0 %v458
    %1443 = vmatprep.subr.mxu0 %v457
    %1444 = vmatpush2.msra.mxu0 %v456
    %1445 = vmatprep.subr.mxu0 %v455
    %1446 = vmatpush2.msra.mxu0 %v454
    %1447 = vmatprep.subr.mxu0 %v453
    %1448 = vmatpush2.msra.mxu0 %v452
    %1449 = vmatprep.subr.mxu0 %v451
    %1450 = vmatpush2.msra.mxu0 %v450
    %1451 = vmatprep.subr.mxu0 %v449
    %1452 = vmatpush2.msra.mxu0 %v448
    %1453 = vmatprep.subr.mxu0 %v447
    %1454 = vmatpush2.msra.mxu0 %v446
    %1455 = vmatprep.subr.mxu0 %v445
    %1456 = vmatpush2.msra.mxu0 %v444
    %1457 = vmatprep.mubr.f32.mxu0 %v897
    %1458 = vmatmul.mubr.f32.gmra.mxu0 %v889
    %v1459 = vpop.f32.mrf.mxu0
    %v1460 = vadd.f32 %v1389, %v1459
    %v1461 = vpop.f32.mrf.mxu0
    %v1462 = vadd.f32 %v1391, %v1461
    %1463 = vdwg.mxu0
    %1464 = vmatprep.subr.mxu0 %v507
    %1465 = vmatpush1.msra.mxu0 %v506
    %1466 = vmatprep.subr.mxu0 %v505
    %1467 = vmatpush1.msra.mxu0 %v504
    %1468 = vmatprep.subr.mxu0 %v503
    %1469 = vmatpush1.msra.mxu0 %v502
    %1470 = vmatprep.subr.mxu0 %v501
    %1471 = vmatpush1.msra.mxu0 %v500
    %1472 = vmatprep.subr.mxu0 %v499
    %1473 = vmatpush1.msra.mxu0 %v498
    %1474 = vmatprep.subr.mxu0 %v497
    %1475 = vmatpush1.msra.mxu0 %v496
    %1476 = vmatprep.subr.mxu0 %v495
    %1477 = vmatpush1.msra.mxu0 %v494
    %1478 = vmatprep.subr.mxu0 %v493
    %1479 = vmatpush1.msra.mxu0 %v492
    %1480 = vmatprep.subr.mxu0 %v491
    %1481 = vmatpush1.msra.mxu0 %v490
    %1482 = vmatprep.subr.mxu0 %v489
    %1483 = vmatpush1.msra.mxu0 %v488
    %1484 = vmatprep.subr.mxu0 %v487
    %1485 = vmatpush1.msra.mxu0 %v486
    %1486 = vmatprep.subr.mxu0 %v485
    %1487 = vmatpush1.msra.mxu0 %v484
    %1488 = vmatprep.subr.mxu0 %v483
    %1489 = vmatpush1.msra.mxu0 %v482
    %1490 = vmatprep.subr.mxu0 %v481
    %1491 = vmatpush1.msra.mxu0 %v480
    %1492 = vmatprep.subr.mxu0 %v479
    %1493 = vmatpush1.msra.mxu0 %v478
    %1494 = vmatprep.subr.mxu0 %v477
    %1495 = vmatpush1.msra.mxu0 %v476
    %1496 = vmatprep.subr.mxu0 %v539
    %1497 = vmatpush2.msra.mxu0 %v538
    %1498 = vmatprep.subr.mxu0 %v537
    %1499 = vmatpush2.msra.mxu0 %v536
    %1500 = vmatprep.subr.mxu0 %v535
    %1501 = vmatpush2.msra.mxu0 %v534
    %1502 = vmatprep.subr.mxu0 %v533
    %1503 = vmatpush2.msra.mxu0 %v532
    %1504 = vmatprep.subr.mxu0 %v531
    %1505 = vmatpush2.msra.mxu0 %v530
    %1506 = vmatprep.subr.mxu0 %v529
    %1507 = vmatpush2.msra.mxu0 %v528
    %1508 = vmatprep.subr.mxu0 %v527
    %1509 = vmatpush2.msra.mxu0 %v526
    %1510 = vmatprep.subr.mxu0 %v525
    %1511 = vmatpush2.msra.mxu0 %v524
    %1512 = vmatprep.subr.mxu0 %v523
    %1513 = vmatpush2.msra.mxu0 %v522
    %1514 = vmatprep.subr.mxu0 %v521
    %1515 = vmatpush2.msra.mxu0 %v520
    %1516 = vmatprep.subr.mxu0 %v519
    %1517 = vmatpush2.msra.mxu0 %v518
    %1518 = vmatprep.subr.mxu0 %v517
    %1519 = vmatpush2.msra.mxu0 %v516
    %1520 = vmatprep.subr.mxu0 %v515
    %1521 = vmatpush2.msra.mxu0 %v514
    %1522 = vmatprep.subr.mxu0 %v513
    %1523 = vmatpush2.msra.mxu0 %v512
    %1524 = vmatprep.subr.mxu0 %v511
    %1525 = vmatpush2.msra.mxu0 %v510
    %1526 = vmatprep.subr.mxu0 %v509
    %1527 = vmatpush2.msra.mxu0 %v508
    %1528 = vmatprep.mubr.f32.mxu0 %v898
    %1529 = vmatmul.mubr.f32.gmra.mxu0 %v896
    %v1530 = vpop.f32.mrf.mxu0
    %v1531 = vadd.f32 %v1460, %v1530
    %v1532 = vpop.f32.mrf.mxu0
    %v1533 = vadd.f32 %v1462, %v1532
    %1534 = vdwg.mxu0
    %1535 = vmatprep.subr.mxu0 %v571
    %1536 = vmatpush1.msra.mxu0 %v570
    %1537 = vmatprep.subr.mxu0 %v569
    %1538 = vmatpush1.msra.mxu0 %v568
    %1539 = vmatprep.subr.mxu0 %v567
    %1540 = vmatpush1.msra.mxu0 %v566
    %1541 = vmatprep.subr.mxu0 %v565
    %1542 = vmatpush1.msra.mxu0 %v564
    %1543 = vmatprep.subr.mxu0 %v563
    %1544 = vmatpush1.msra.mxu0 %v562
    %1545 = vmatprep.subr.mxu0 %v561
    %1546 = vmatpush1.msra.mxu0 %v560
    %1547 = vmatprep.subr.mxu0 %v559
    %1548 = vmatpush1.msra.mxu0 %v558
    %1549 = vmatprep.subr.mxu0 %v557
    %1550 = vmatpush1.msra.mxu0 %v556
    %1551 = vmatprep.subr.mxu0 %v555
    %1552 = vmatpush1.msra.mxu0 %v554
    %1553 = vmatprep.subr.mxu0 %v553
    %1554 = vmatpush1.msra.mxu0 %v552
    %1555 = vmatprep.subr.mxu0 %v551
    %1556 = vmatpush1.msra.mxu0 %v550
    %1557 = vmatprep.subr.mxu0 %v549
    %1558 = vmatpush1.msra.mxu0 %v548
    %1559 = vmatprep.subr.mxu0 %v547
    %1560 = vmatpush1.msra.mxu0 %v546
    %1561 = vmatprep.subr.mxu0 %v545
    %1562 = vmatpush1.msra.mxu0 %v544
    %1563 = vmatprep.subr.mxu0 %v543
    %1564 = vmatpush1.msra.mxu0 %v542
    %1565 = vmatprep.subr.mxu0 %v541
    %1566 = vmatpush1.msra.mxu0 %v540
    %1567 = vmatprep.subr.mxu0 %v603
    %1568 = vmatpush2.msra.mxu0 %v602
    %1569 = vmatprep.subr.mxu0 %v601
    %1570 = vmatpush2.msra.mxu0 %v600
    %1571 = vmatprep.subr.mxu0 %v599
    %1572 = vmatpush2.msra.mxu0 %v598
    %1573 = vmatprep.subr.mxu0 %v597
    %1574 = vmatpush2.msra.mxu0 %v596
    %1575 = vmatprep.subr.mxu0 %v595
    %1576 = vmatpush2.msra.mxu0 %v594
    %1577 = vmatprep.subr.mxu0 %v593
    %1578 = vmatpush2.msra.mxu0 %v592
    %1579 = vmatprep.subr.mxu0 %v591
    %1580 = vmatpush2.msra.mxu0 %v590
    %1581 = vmatprep.subr.mxu0 %v589
    %1582 = vmatpush2.msra.mxu0 %v588
    %1583 = vmatprep.subr.mxu0 %v587
    %1584 = vmatpush2.msra.mxu0 %v586
    %1585 = vmatprep.subr.mxu0 %v585
    %1586 = vmatpush2.msra.mxu0 %v584
    %1587 = vmatprep.subr.mxu0 %v583
    %1588 = vmatpush2.msra.mxu0 %v582
    %1589 = vmatprep.subr.mxu0 %v581
    %1590 = vmatpush2.msra.mxu0 %v580
    %1591 = vmatprep.subr.mxu0 %v579
    %1592 = vmatpush2.msra.mxu0 %v578
    %1593 = vmatprep.subr.mxu0 %v577
    %1594 = vmatpush2.msra.mxu0 %v576
    %1595 = vmatprep.subr.mxu0 %v575
    %1596 = vmatpush2.msra.mxu0 %v574
    %1597 = vmatprep.subr.mxu0 %v573
    %1598 = vmatpush2.msra.mxu0 %v572
    %1599 = vmatprep.mubr.f32.mxu0 %v914
    %1600 = vmatmul.mubr.f32.gmra.mxu0 %v906
    %v1601 = vpop.f32.mrf.mxu0
    %v1602 = vadd.f32 %v1531, %v1601
    %v1603 = vpop.f32.mrf.mxu0
    %v1604 = vadd.f32 %v1533, %v1603
    %1605 = vdwg.mxu0
    %1606 = vmatprep.subr.mxu0 %v635
    %1607 = vmatpush1.msra.mxu0 %v634
    %1608 = vmatprep.subr.mxu0 %v633
    %1609 = vmatpush1.msra.mxu0 %v632
    %1610 = vmatprep.subr.mxu0 %v631
    %1611 = vmatpush1.msra.mxu0 %v630
    %1612 = vmatprep.subr.mxu0 %v629
    %1613 = vmatpush1.msra.mxu0 %v628
    %1614 = vmatprep.subr.mxu0 %v627
    %1615 = vmatpush1.msra.mxu0 %v626
    %1616 = vmatprep.subr.mxu0 %v625
    %1617 = vmatpush1.msra.mxu0 %v624
    %1618 = vmatprep.subr.mxu0 %v623
    %1619 = vmatpush1.msra.mxu0 %v622
    %1620 = vmatprep.subr.mxu0 %v621
    %1621 = vmatpush1.msra.mxu0 %v620
    %1622 = vmatprep.subr.mxu0 %v619
    %1623 = vmatpush1.msra.mxu0 %v618
    %1624 = vmatprep.subr.mxu0 %v617
    %1625 = vmatpush1.msra.mxu0 %v616
    %1626 = vmatprep.subr.mxu0 %v615
    %1627 = vmatpush1.msra.mxu0 %v614
    %1628 = vmatprep.subr.mxu0 %v613
    %1629 = vmatpush1.msra.mxu0 %v612
    %1630 = vmatprep.subr.mxu0 %v611
    %1631 = vmatpush1.msra.mxu0 %v610
    %1632 = vmatprep.subr.mxu0 %v609
    %1633 = vmatpush1.msra.mxu0 %v608
    %1634 = vmatprep.subr.mxu0 %v607
    %1635 = vmatpush1.msra.mxu0 %v606
    %1636 = vmatprep.subr.mxu0 %v605
    %1637 = vmatpush1.msra.mxu0 %v604
    %1638 = vmatprep.subr.mxu0 %v667
    %1639 = vmatpush2.msra.mxu0 %v666
    %1640 = vmatprep.subr.mxu0 %v665
    %1641 = vmatpush2.msra.mxu0 %v664
    %1642 = vmatprep.subr.mxu0 %v663
    %1643 = vmatpush2.msra.mxu0 %v662
    %1644 = vmatprep.subr.mxu0 %v661
    %1645 = vmatpush2.msra.mxu0 %v660
    %1646 = vmatprep.subr.mxu0 %v659
    %1647 = vmatpush2.msra.mxu0 %v658
    %1648 = vmatprep.subr.mxu0 %v657
    %1649 = vmatpush2.msra.mxu0 %v656
    %1650 = vmatprep.subr.mxu0 %v655
    %1651 = vmatpush2.msra.mxu0 %v654
    %1652 = vmatprep.subr.mxu0 %v653
    %1653 = vmatpush2.msra.mxu0 %v652
    %1654 = vmatprep.subr.mxu0 %v651
    %1655 = vmatpush2.msra.mxu0 %v650
    %1656 = vmatprep.subr.mxu0 %v649
    %1657 = vmatpush2.msra.mxu0 %v648
    %1658 = vmatprep.subr.mxu0 %v647
    %1659 = vmatpush2.msra.mxu0 %v646
    %1660 = vmatprep.subr.mxu0 %v645
    %1661 = vmatpush2.msra.mxu0 %v644
    %1662 = vmatprep.subr.mxu0 %v643
    %1663 = vmatpush2.msra.mxu0 %v642
    %1664 = vmatprep.subr.mxu0 %v641
    %1665 = vmatpush2.msra.mxu0 %v640
    %1666 = vmatprep.subr.mxu0 %v639
    %1667 = vmatpush2.msra.mxu0 %v638
    %1668 = vmatprep.subr.mxu0 %v637
    %1669 = vmatpush2.msra.mxu0 %v636
    %1670 = vmatprep.mubr.f32.mxu0 %v915
    %1671 = vmatmul.mubr.f32.gmra.mxu0 %v913
    %v1672 = vpop.f32.mrf.mxu0
    %v1673 = vadd.f32 %v1602, %v1672
    %v1674 = vpop.f32.mrf.mxu0
    %v1675 = vadd.f32 %v1604, %v1674
    %1676 = vdwg.mxu0
    %1677 = vmatprep.subr.mxu0 %v699
    %1678 = vmatpush1.msra.mxu0 %v698
    %1679 = vmatprep.subr.mxu0 %v697
    %1680 = vmatpush1.msra.mxu0 %v696
    %1681 = vmatprep.subr.mxu0 %v695
    %1682 = vmatpush1.msra.mxu0 %v694
    %1683 = vmatprep.subr.mxu0 %v693
    %1684 = vmatpush1.msra.mxu0 %v692
    %1685 = vmatprep.subr.mxu0 %v691
    %1686 = vmatpush1.msra.mxu0 %v690
    %1687 = vmatprep.subr.mxu0 %v689
    %1688 = vmatpush1.msra.mxu0 %v688
    %1689 = vmatprep.subr.mxu0 %v687
    %1690 = vmatpush1.msra.mxu0 %v686
    %1691 = vmatprep.subr.mxu0 %v685
    %1692 = vmatpush1.msra.mxu0 %v684
    %1693 = vmatprep.subr.mxu0 %v683
    %1694 = vmatpush1.msra.mxu0 %v682
    %1695 = vmatprep.subr.mxu0 %v681
    %1696 = vmatpush1.msra.mxu0 %v680
    %1697 = vmatprep.subr.mxu0 %v679
    %1698 = vmatpush1.msra.mxu0 %v678
    %1699 = vmatprep.subr.mxu0 %v677
    %1700 = vmatpush1.msra.mxu0 %v676
    %1701 = vmatprep.subr.mxu0 %v675
    %1702 = vmatpush1.msra.mxu0 %v674
    %1703 = vmatprep.subr.mxu0 %v673
    %1704 = vmatpush1.msra.mxu0 %v672
    %1705 = vmatprep.subr.mxu0 %v671
    %1706 = vmatpush1.msra.mxu0 %v670
    %1707 = vmatprep.subr.mxu0 %v669
    %1708 = vmatpush1.msra.mxu0 %v668
    %1709 = vmatprep.subr.mxu0 %v731
    %1710 = vmatpush2.msra.mxu0 %v730
    %1711 = vmatprep.subr.mxu0 %v729
    %1712 = vmatpush2.msra.mxu0 %v728
    %1713 = vmatprep.subr.mxu0 %v727
    %1714 = vmatpush2.msra.mxu0 %v726
    %1715 = vmatprep.subr.mxu0 %v725
    %1716 = vmatpush2.msra.mxu0 %v724
    %1717 = vmatprep.subr.mxu0 %v723
    %1718 = vmatpush2.msra.mxu0 %v722
    %1719 = vmatprep.subr.mxu0 %v721
    %1720 = vmatpush2.msra.mxu0 %v720
    %1721 = vmatprep.subr.mxu0 %v719
    %1722 = vmatpush2.msra.mxu0 %v718
    %1723 = vmatprep.subr.mxu0 %v717
    %1724 = vmatpush2.msra.mxu0 %v716
    %1725 = vmatprep.subr.mxu0 %v715
    %1726 = vmatpush2.msra.mxu0 %v714
    %1727 = vmatprep.subr.mxu0 %v713
    %1728 = vmatpush2.msra.mxu0 %v712
    %1729 = vmatprep.subr.mxu0 %v711
    %1730 = vmatpush2.msra.mxu0 %v710
    %1731 = vmatprep.subr.mxu0 %v709
    %1732 = vmatpush2.msra.mxu0 %v708
    %1733 = vmatprep.subr.mxu0 %v707
    %1734 = vmatpush2.msra.mxu0 %v706
    %1735 = vmatprep.subr.mxu0 %v705
    %1736 = vmatpush2.msra.mxu0 %v704
    %1737 = vmatprep.subr.mxu0 %v703
    %1738 = vmatpush2.msra.mxu0 %v702
    %1739 = vmatprep.subr.mxu0 %v701
    %1740 = vmatpush2.msra.mxu0 %v700
    %1741 = vmatprep.mubr.f32.mxu0 %v931
    %1742 = vmatmul.mubr.f32.gmra.mxu0 %v923
    %v1743 = vpop.f32.mrf.mxu0
    %v1744 = vadd.f32 %v1673, %v1743
    %v1745 = vpop.f32.mrf.mxu0
    %v1746 = vadd.f32 %v1675, %v1745
    %1747 = vdwg.mxu0
    %1748 = vmatprep.subr.mxu0 %v763
    %1749 = vmatpush1.msra.mxu0 %v762
    %1750 = vmatprep.subr.mxu0 %v761
    %1751 = vmatpush1.msra.mxu0 %v760
    %1752 = vmatprep.subr.mxu0 %v759
    %1753 = vmatpush1.msra.mxu0 %v758
    %1754 = vmatprep.subr.mxu0 %v757
    %1755 = vmatpush1.msra.mxu0 %v756
    %1756 = vmatprep.subr.mxu0 %v755
    %1757 = vmatpush1.msra.mxu0 %v754
    %1758 = vmatprep.subr.mxu0 %v753
    %1759 = vmatpush1.msra.mxu0 %v752
    %1760 = vmatprep.subr.mxu0 %v751
    %1761 = vmatpush1.msra.mxu0 %v750
    %1762 = vmatprep.subr.mxu0 %v749
    %1763 = vmatpush1.msra.mxu0 %v748
    %1764 = vmatprep.subr.mxu0 %v747
    %1765 = vmatpush1.msra.mxu0 %v746
    %1766 = vmatprep.subr.mxu0 %v745
    %1767 = vmatpush1.msra.mxu0 %v744
    %1768 = vmatprep.subr.mxu0 %v743
    %1769 = vmatpush1.msra.mxu0 %v742
    %1770 = vmatprep.subr.mxu0 %v741
    %1771 = vmatpush1.msra.mxu0 %v740
    %1772 = vmatprep.subr.mxu0 %v739
    %1773 = vmatpush1.msra.mxu0 %v738
    %1774 = vmatprep.subr.mxu0 %v737
    %1775 = vmatpush1.msra.mxu0 %v736
    %1776 = vmatprep.subr.mxu0 %v735
    %1777 = vmatpush1.msra.mxu0 %v734
    %1778 = vmatprep.subr.mxu0 %v733
    %1779 = vmatpush1.msra.mxu0 %v732
    %1780 = vmatprep.subr.mxu0 %v795
    %1781 = vmatpush2.msra.mxu0 %v794
    %1782 = vmatprep.subr.mxu0 %v793
    %1783 = vmatpush2.msra.mxu0 %v792
    %1784 = vmatprep.subr.mxu0 %v791
    %1785 = vmatpush2.msra.mxu0 %v790
    %1786 = vmatprep.subr.mxu0 %v789
    %1787 = vmatpush2.msra.mxu0 %v788
    %1788 = vmatprep.subr.mxu0 %v787
    %1789 = vmatpush2.msra.mxu0 %v786
    %1790 = vmatprep.subr.mxu0 %v785
    %1791 = vmatpush2.msra.mxu0 %v784
    %1792 = vmatprep.subr.mxu0 %v783
    %1793 = vmatpush2.msra.mxu0 %v782
    %1794 = vmatprep.subr.mxu0 %v781
    %1795 = vmatpush2.msra.mxu0 %v780
    %1796 = vmatprep.subr.mxu0 %v779
    %1797 = vmatpush2.msra.mxu0 %v778
    %1798 = vmatprep.subr.mxu0 %v777
    %1799 = vmatpush2.msra.mxu0 %v776
    %1800 = vmatprep.subr.mxu0 %v775
    %1801 = vmatpush2.msra.mxu0 %v774
    %1802 = vmatprep.subr.mxu0 %v773
    %1803 = vmatpush2.msra.mxu0 %v772
    %1804 = vmatprep.subr.mxu0 %v771
    %1805 = vmatpush2.msra.mxu0 %v770
    %1806 = vmatprep.subr.mxu0 %v769
    %1807 = vmatpush2.msra.mxu0 %v768
    %1808 = vmatprep.subr.mxu0 %v767
    %1809 = vmatpush2.msra.mxu0 %v766
    %1810 = vmatprep.subr.mxu0 %v765
    %1811 = vmatpush2.msra.mxu0 %v764
    %1812 = vmatprep.mubr.f32.mxu0 %v932
    %1813 = vmatmul.mubr.f32.gmra.mxu0 %v930
    %v1814 = vpop.f32.mrf.mxu0
    %v1815 = vadd.f32 %v1744, %v1814
    %v1816 = vpop.f32.mrf.mxu0
    %v1817 = vadd.f32 %v1746, %v1816
    %1818 = vdwg.mxu0
    %1819 = vmatprep.subr.mxu0 0.0
    %1820 = vmatpush1.msra.mxu0 0.0
    %1821 = vmatprep.subr.mxu0 0.0
    %1822 = vmatpush1.msra.mxu0 0.0
    %1823 = vmatprep.subr.mxu0 0.0
    %1824 = vmatpush1.msra.mxu0 0.0
    %1825 = vmatprep.subr.mxu0 0.0
    %1826 = vmatpush1.msra.mxu0 0.0
    %1827 = vmatprep.subr.mxu0 0.0
    %1828 = vmatpush1.msra.mxu0 0.0
    %1829 = vmatprep.subr.mxu0 0.0
    %1830 = vmatpush1.msra.mxu0 0.0
    %1831 = vmatprep.subr.mxu0 0.0
    %1832 = vmatpush1.msra.mxu0 0.0
    %1833 = vmatprep.subr.mxu0 0.0
    %1834 = vmatpush1.msra.mxu0 0.0
    %1835 = vmatprep.subr.mxu0 %v811
    %1836 = vmatpush1.msra.mxu0 %v810
    %1837 = vmatprep.subr.mxu0 %v809
    %1838 = vmatpush1.msra.mxu0 %v808
    %1839 = vmatprep.subr.mxu0 %v807
    %1840 = vmatpush1.msra.mxu0 %v806
    %1841 = vmatprep.subr.mxu0 %v805
    %1842 = vmatpush1.msra.mxu0 %v804
    %1843 = vmatprep.subr.mxu0 %v803
    %1844 = vmatpush1.msra.mxu0 %v802
    %1845 = vmatprep.subr.mxu0 %v801
    %1846 = vmatpush1.msra.mxu0 %v800
    %1847 = vmatprep.subr.mxu0 %v799
    %1848 = vmatpush1.msra.mxu0 %v798
    %1849 = vmatprep.subr.mxu0 %v797
    %1850 = vmatpush1.msra.mxu0 %v796
    %1851 = vmatprep.subr.mxu0 0.0
    %1852 = vmatpush2.msra.mxu0 0.0
    %1853 = vmatprep.subr.mxu0 0.0
    %1854 = vmatpush2.msra.mxu0 0.0
    %1855 = vmatprep.subr.mxu0 0.0
    %1856 = vmatpush2.msra.mxu0 0.0
    %1857 = vmatprep.subr.mxu0 0.0
    %1858 = vmatpush2.msra.mxu0 0.0
    %1859 = vmatprep.subr.mxu0 0.0
    %1860 = vmatpush2.msra.mxu0 0.0
    %1861 = vmatprep.subr.mxu0 0.0
    %1862 = vmatpush2.msra.mxu0 0.0
    %1863 = vmatprep.subr.mxu0 0.0
    %1864 = vmatpush2.msra.mxu0 0.0
    %1865 = vmatprep.subr.mxu0 0.0
    %1866 = vmatpush2.msra.mxu0 0.0
    %1867 = vmatprep.subr.mxu0 0.0
    %1868 = vmatpush2.msra.mxu0 0.0
    %1869 = vmatprep.subr.mxu0 0.0
    %1870 = vmatpush2.msra.mxu0 0.0
    %1871 = vmatprep.subr.mxu0 0.0
    %1872 = vmatpush2.msra.mxu0 0.0
    %1873 = vmatprep.subr.mxu0 0.0
    %1874 = vmatpush2.msra.mxu0 0.0
    %1875 = vmatprep.subr.mxu0 0.0
    %1876 = vmatpush2.msra.mxu0 0.0
    %1877 = vmatprep.subr.mxu0 0.0
    %1878 = vmatpush2.msra.mxu0 0.0
    %1879 = vmatprep.subr.mxu0 0.0
    %1880 = vmatpush2.msra.mxu0 0.0
    %1881 = vmatprep.subr.mxu0 0.0
    %1882 = vmatpush2.msra.mxu0 0.0
    %1883 = vmatprep.mubr.f32.mxu0 0.0
    %1884 = vmatmul.mubr.f32.gmra.mxu0 %v965
    %v1885 = vpop.f32.mrf.mxu0
    %v1886 = vadd.f32 %v1815, %v1885
    %v1887 = vpop.f32.mrf.mxu0
    %v1888 = vadd.f32 %v1817, %v1887
    %1889 = vdwg.mxu0
    %v1890 = vmax.f32 %v1886, 0.0
    %v1891 = vmax.f32 %v1888, 0.0
    %v1892 = vld [vmem:[%s3] sm:$0xff]
    %v1893 = vld [vmem:[%s3 + $0x8] sm:$0xff]
    %v1894 = vld [vmem:[%s3 + $0x10] sm:$0xff]
    %v1895 = vld [vmem:[%s3 + $0x18] sm:$0xff]
    %v1896 = vld [vmem:[%s3 + $0x20] sm:$0xff]
    %v1897 = vld [vmem:[%s3 + $0x28] sm:$0xff]
    %v1898 = vld [vmem:[%s3 + $0x30] sm:$0xff]
    %v1899 = vld [vmem:[%s3 + $0x38] sm:$0xff]
    %v1900 = vld [vmem:[%s3 + $0x40] sm:$0xff]
    %v1901 = vld [vmem:[%s3 + $0x48] sm:$0xff]
    %v1902 = vld [vmem:[%s3 + $0x50] sm:$0xff]
    %v1903 = vld [vmem:[%s3 + $0x58] sm:$0xff]
    %v1904 = vld [vmem:[%s3 + $0x60] sm:$0xff]
    %v1905 = vld [vmem:[%s3 + $0x68] sm:$0xff]
    %v1906 = vld [vmem:[%s3 + $0x70] sm:$0xff]
    %v1907 = vld [vmem:[%s3 + $0x78] sm:$0xff]
    %v1908 = vld [vmem:[%s3 + $0x80] sm:$0xff]
    %v1909 = vld [vmem:[%s3 + $0x88] sm:$0xff]
    %v1910 = vld [vmem:[%s3 + $0x90] sm:$0xff]
    %v1911 = vld [vmem:[%s3 + $0x98] sm:$0xff]
    %v1912 = vld [vmem:[%s3 + $0xa0] sm:$0xff]
    %v1913 = vld [vmem:[%s3 + $0xa8] sm:$0xff]
    %v1914 = vld [vmem:[%s3 + $0xb0] sm:$0xff]
    %v1915 = vld [vmem:[%s3 + $0xb8] sm:$0xff]
    %v1916 = vld [vmem:[%s3 + $0xc0] sm:$0xff]
    %v1917 = vld [vmem:[%s3 + $0xc8] sm:$0xff]
    %v1918 = vld [vmem:[%s3 + $0xd0] sm:$0xff]
    %v1919 = vld [vmem:[%s3 + $0xd8] sm:$0xff]
    %v1920 = vld [vmem:[%s3 + $0xe0] sm:$0xff]
    %v1921 = vld [vmem:[%s3 + $0xe8] sm:$0xff]
    %v1922 = vld [vmem:[%s3 + $0xf0] sm:$0xff]
    %v1923 = vld [vmem:[%s3 + $0xf8] sm:$0xff]
    %v1924 = vld [vmem:[%s4] sm:$0x1]
    %v1926 = vlaneseq
    %v1927 = vshrl.u32 %v1926, 7
    %v1928 = vsub.s32 0, %v1927
    %v1929 = vrot.slane %v1924, %v1928
    %1931 = vmatprep.subr.mxu0 0.0
    %1932 = vmatpush1.msra.mxu0 %v1907
    %1933 = vmatprep.subr.mxu0 0.0
    %1934 = vmatpush1.msra.mxu0 %v1906
    %1935 = vmatprep.subr.mxu0 0.0
    %1936 = vmatpush1.msra.mxu0 %v1905
    %1937 = vmatprep.subr.mxu0 0.0
    %1938 = vmatpush1.msra.mxu0 %v1904
    %1939 = vmatprep.subr.mxu0 0.0
    %1940 = vmatpush1.msra.mxu0 %v1903
    %1941 = vmatprep.subr.mxu0 0.0
    %1942 = vmatpush1.msra.mxu0 %v1902
    %1943 = vmatprep.subr.mxu0 0.0
    %1944 = vmatpush1.msra.mxu0 %v1901
    %1945 = vmatprep.subr.mxu0 0.0
    %1946 = vmatpush1.msra.mxu0 %v1900
    %1947 = vmatprep.subr.mxu0 0.0
    %1948 = vmatpush1.msra.mxu0 %v1899
    %1949 = vmatprep.subr.mxu0 0.0
    %1950 = vmatpush1.msra.mxu0 %v1898
    %1951 = vmatprep.subr.mxu0 0.0
    %1952 = vmatpush1.msra.mxu0 %v1897
    %1953 = vmatprep.subr.mxu0 0.0
    %1954 = vmatpush1.msra.mxu0 %v1896
    %1955 = vmatprep.subr.mxu0 0.0
    %1956 = vmatpush1.msra.mxu0 %v1895
    %1957 = vmatprep.subr.mxu0 0.0
    %1958 = vmatpush1.msra.mxu0 %v1894
    %1959 = vmatprep.subr.mxu0 0.0
    %1960 = vmatpush1.msra.mxu0 %v1893
    %1961 = vmatprep.subr.mxu0 0.0
    %1962 = vmatpush1.msra.mxu0 %v1892
    %1963 = vmatprep.subr.mxu0 0.0
    %1964 = vmatpush2.msra.mxu0 %v1923
    %1965 = vmatprep.subr.mxu0 0.0
    %1966 = vmatpush2.msra.mxu0 %v1922
    %1967 = vmatprep.subr.mxu0 0.0
    %1968 = vmatpush2.msra.mxu0 %v1921
    %1969 = vmatprep.subr.mxu0 0.0
    %1970 = vmatpush2.msra.mxu0 %v1920
    %1971 = vmatprep.subr.mxu0 0.0
    %1972 = vmatpush2.msra.mxu0 %v1919
    %1973 = vmatprep.subr.mxu0 0.0
    %1974 = vmatpush2.msra.mxu0 %v1918
    %1975 = vmatprep.subr.mxu0 0.0
    %1976 = vmatpush2.msra.mxu0 %v1917
    %1977 = vmatprep.subr.mxu0 0.0
    %1978 = vmatpush2.msra.mxu0 %v1916
    %1979 = vmatprep.subr.mxu0 0.0
    %1980 = vmatpush2.msra.mxu0 %v1915
    %1981 = vmatprep.subr.mxu0 0.0
    %1982 = vmatpush2.msra.mxu0 %v1914
    %1983 = vmatprep.subr.mxu0 0.0
    %1984 = vmatpush2.msra.mxu0 %v1913
    %1985 = vmatprep.subr.mxu0 0.0
    %1986 = vmatpush2.msra.mxu0 %v1912
    %1987 = vmatprep.subr.mxu0 0.0
    %1988 = vmatpush2.msra.mxu0 %v1911
    %1989 = vmatprep.subr.mxu0 0.0
    %1990 = vmatpush2.msra.mxu0 %v1910
    %1991 = vmatprep.subr.mxu0 0.0
    %1992 = vmatpush2.msra.mxu0 %v1909
    %1993 = vmatprep.subr.mxu0 0.0
    %1994 = vmatpush2.msra.mxu0 %v1908
    %1995 = vmatprep.mubr.f32.mxu0 %v1891
    %1996 = vmatmul.mubr.f32.gmra.mxu0 %v1890
    %v1997 = vpop.f32.mrf.mxu0
    %v1998 = vadd.f32 %v1929, %v1997
    %v1999 = vpop.f32.mrf.mxu0
    %2000 = vdwg.mxu0
    %vm2001 = vcmask 132096
    %2002 = vst.msk [vmem:[#allocation2] sm:$0x3] %vm2001, %v1998
    // Predicated region
    $region22: #{cnn_b_forward.5} parent=1 // pred_check
      _
    $region23: #{cnn_b_forward.5} parent=1 // pred_check_branch
      %2004 = sbr.rel (0) target = $region25
    $region24: #{cnn_b_forward.5} parent=1 // pred_region
      %s2006 = ssub.s32 32, 32
      %2007 = vsyncadd [#allocation3], %s2006
      %s2009 = sshll.u32 [#allocation2], 4
      %s2010 = int_to_ptr.vmem [resolvable:$true] %s2009
      %2012 = dma.vmem_to_hbm [thread:$0]  %s2010, 32, %s5, [#allocation3]
    $region25: #{cnn_b_forward.5} parent=1 // pred_fallthru
      _
    // Predicated region
    $region26: #{cnn_b_forward.5} parent=1 // pred_check
      _
    $region27: #{cnn_b_forward.5} parent=1 // pred_check_branch
      %2014 = sbr.rel (0) target = $region29
    $region28: #{cnn_b_forward.5} parent=1 // pred_region
      %2015 = dma.done [#allocation3], 32
    $region29: #{cnn_b_forward.5} parent=1 // pred_fallthru
      _
    %2016 = vsyncpa [#allocation3], 1

// kernel: cnn_b_forward.4
$region0: #{cnn_b_forward.4}
  #allocation0 [shape = 'u32[]', space=smem, size = 0x4, offset = 0x4, fixed_abs, tag = 'smem constant byte address 0x4 - core index']
  #allocation1 [shape = 'u32[144,128]{1,0:T(1,128)}', space=vmem, size = 0x12000, scoped, tag = 'internal scratch']
  %s0 = inlined_call_operand.vmem [shape: f32[2,8,512], index: 0, kind: input, shape index: {}]
  %s1 = inlined_call_operand.vmem [shape: f32[2,8,512], index: 1, kind: input, shape index: {}]
  %s2 = inlined_call_operand.vmem [shape: f32[6,512,448], index: 2, kind: input, shape index: {}]
  %s3 = inlined_call_operand.vmem [shape: f32[1,448], index: 3, kind: input, shape index: {}]
  %s4 = inlined_call_operand.vmem [shape: f32[2,7,448], index: 4, kind: output, shape index: {}]
  %s5 = sld [smem:[#allocation0]]
  $region49: #{cnn_b_forward.4} parent=0
    _
  %s7 = ssub.s32 1, %s5
  %s8 = scalar_select 0, %s7, %s5
  loop: start=0, step=1, limit=4
  $region2: #{cnn_b_forward.4} parent=0 // loop_pre_header
    _
  $region3: #{cnn_b_forward.4} parent=0 // loop_header
    %s10 = sphi 0, %s14
    %p11 = scmp.ge.s32.totalorder %s10, 4
    %s20 = sphi 0, %s22
    %s23 = sphi 0, %s20
    %s24 = sphi 0, %s23
    %s40 = sphi 0, %s24
    %s46 = sphi 0, %s48
    %s49 = sphi 0, %s46
    %s50 = sphi 0, %s49
    %s66 = sphi 0, %s50
    %s70 = sphi 0, %s70
    %s72 = sphi 0, %s70
    %s73 = sphi 0, %s72
    %s87 = sphi 0, %s73
    %s91 = sphi 0, %s91
    %s93 = sphi 0, %s91
    %s94 = sphi 0, %s93
    %s108 = sphi 0, %s94
    %s114 = sphi 0, %s116
    %s117 = sphi 0, %s114
    %s118 = sphi 0, %s117
    %s134 = sphi 0, %s118
  $region4: #{cnn_b_forward.4} parent=0 // loop_header_branch
    %13 = sbr.rel (%p11) target = $region8
  $region5: #{cnn_b_forward.4} parent=0 // loop_body
    %s15 = ssub.s32 %s10, 1
    %s16 = ssub.s32 %s10, 2
    %s17 = sadd.s32 %s10, 1
    %s18 = ssub.s32 %s10, %s17
    %p19 = scmp.eq.s32.totalorder %s18, 0
    %s21 = sadd.s32 %s20, 1
    %s22 = scalar_select %p19, %s20, %s21
    %p25 = pneg %p19
    %p26 = scmp.eq.s32.totalorder %s10, 1
    %p27 = por %p25, %p26
    %p28 = scmp.ne.s32.totalorder %s20, %s23
    %p29 = scmp.eq.s32.totalorder %s10, 0
    %p30 = por %p28, %p29
    %p31 = scmp.ne.s32.totalorder %s20, %s23
    %p32 = scmp.eq.s32.totalorder %s15, 1
    %p33 = por %p31, %p32
    %p34 = scmp.ne.s32.totalorder %s23, %s24
    %p35 = scmp.eq.s32.totalorder %s15, 0
    %p36 = por %p34, %p35
    %p37 = scmp.ne.s32.totalorder %s23, %s24
    %p38 = scmp.eq.s32.totalorder %s16, 1
    %p39 = por %p37, %p38
    %p41 = scmp.ne.s32.totalorder %s24, %s40
    %p42 = scmp.eq.s32.totalorder %s16, 0
    %p43 = por %p41, %p42
    %s44 = ssub.s32 %s10, %s17
    %p45 = scmp.eq.s32.totalorder %s44, 0
    %s47 = sadd.s32 %s46, 1
    %s48 = scalar_select %p45, %s46, %s47
    %p51 = pneg %p45
    %p52 = scmp.eq.s32.totalorder %s10, 1
    %p53 = por %p51, %p52
    %p54 = scmp.ne.s32.totalorder %s46, %s49
    %p55 = scmp.eq.s32.totalorder %s10, 0
    %p56 = por %p54, %p55
    %p57 = scmp.ne.s32.totalorder %s46, %s49
    %p58 = scmp.eq.s32.totalorder %s15, 1
    %p59 = por %p57, %p58
    %p60 = scmp.ne.s32.totalorder %s49, %s50
    %p61 = scmp.eq.s32.totalorder %s15, 0
    %p62 = por %p60, %p61
    %p63 = scmp.ne.s32.totalorder %s49, %s50
    %p64 = scmp.eq.s32.totalorder %s16, 1
    %p65 = por %p63, %p64
    %p67 = scmp.ne.s32.totalorder %s50, %s66
    %p68 = scmp.eq.s32.totalorder %s16, 0
    %p69 = por %p67, %p68
    %s71 = sadd.s32 %s70, 1
    %p74 = scmp.eq.s32.totalorder %s10, 1
    %p75 = scmp.ne.s32.totalorder %s70, %s72
    %p76 = scmp.eq.s32.totalorder %s10, 0
    %p77 = por %p75, %p76
    %p78 = scmp.ne.s32.totalorder %s70, %s72
    %p79 = scmp.eq.s32.totalorder %s15, 1
    %p80 = por %p78, %p79
    %p81 = scmp.ne.s32.totalorder %s72, %s73
    %p82 = scmp.eq.s32.totalorder %s15, 0
    %p83 = por %p81, %p82
    %p84 = scmp.ne.s32.totalorder %s72, %s73
    %p85 = scmp.eq.s32.totalorder %s16, 1
    %p86 = por %p84, %p85
    %p88 = scmp.ne.s32.totalorder %s73, %s87
    %p89 = scmp.eq.s32.totalorder %s16, 0
    %p90 = por %p88, %p89
    %s92 = sadd.s32 %s91, 1
    %p95 = scmp.eq.s32.totalorder %s10, 1
    %p96 = scmp.ne.s32.totalorder %s91, %s93
    %p97 = scmp.eq.s32.totalorder %s10, 0
    %p98 = por %p96, %p97
    %p99 = scmp.ne.s32.totalorder %s91, %s93
    %p100 = scmp.eq.s32.totalorder %s15, 1
    %p101 = por %p99, %p100
    %p102 = scmp.ne.s32.totalorder %s93, %s94
    %p103 = scmp.eq.s32.totalorder %s15, 0
    %p104 = por %p102, %p103
    %p105 = scmp.ne.s32.totalorder %s93, %s94
    %p106 = scmp.eq.s32.totalorder %s16, 1
    %p107 = por %p105, %p106
    %p109 = scmp.ne.s32.totalorder %s94, %s108
    %p110 = scmp.eq.s32.totalorder %s16, 0
    %p111 = por %p109, %p110
    %s112 = ssub.s32 %s10, %s17
    %p113 = scmp.eq.s32.totalorder %s112, 0
    %s115 = sadd.s32 %s114, 1
    %s116 = scalar_select %p113, %s114, %s115
    %p119 = pneg %p113
    %p120 = scmp.eq.s32.totalorder %s10, 1
    %p121 = por %p119, %p120
    %p122 = scmp.ne.s32.totalorder %s114, %s117
    %p123 = scmp.eq.s32.totalorder %s10, 0
    %p124 = por %p122, %p123
    %p125 = scmp.ne.s32.totalorder %s114, %s117
    %p126 = scmp.eq.s32.totalorder %s15, 1
    %p127 = por %p125, %p126
    %p128 = scmp.ne.s32.totalorder %s117, %s118
    %p129 = scmp.eq.s32.totalorder %s15, 0
    %p130 = por %p128, %p129
    %p131 = scmp.ne.s32.totalorder %s117, %s118
    %p132 = scmp.eq.s32.totalorder %s16, 1
    %p133 = por %p131, %p132
    %p135 = scmp.ne.s32.totalorder %s118, %s134
    %p136 = scmp.eq.s32.totalorder %s16, 0
    %p137 = por %p135, %p136
    %p138 = scmp.le.s32.totalorder 1, %s10
    %p139 = scmp.lt.s32.totalorder %s10, 3
    %p140 = pnand %p138, %p139
    %p141 = pneg %p140
    // Predicated region
    $region9: #{cnn_b_forward.4} parent=5 // pred_check
      _
    $region10: #{cnn_b_forward.4} parent=5 // pred_check_branch
      %143 = sbr.rel (%p140) target = $region12
    $region11: #{cnn_b_forward.4} parent=5 // pred_region
      %s144 = ssub.s32 %s10, 1
      // Predicated region
      $region13: #{cnn_b_forward.4} parent=11 // pred_check
        %p145 = pneg %p83
      $region14: #{cnn_b_forward.4} parent=11 // pred_check_branch
        %147 = sbr.rel (%p145) target = $region16
      $region15: #{cnn_b_forward.4} parent=11 // pred_region
        _
      $region16: #{cnn_b_forward.4} parent=11 // pred_fallthru
        _
      // Predicated region
      $region17: #{cnn_b_forward.4} parent=11 // pred_check
        %p148 = pneg %p104
      $region18: #{cnn_b_forward.4} parent=11 // pred_check_branch
        %150 = sbr.rel (%p148) target = $region20
      $region19: #{cnn_b_forward.4} parent=11 // pred_region
        _
      $region20: #{cnn_b_forward.4} parent=11 // pred_fallthru
        _
    $region12: #{cnn_b_forward.4} parent=5 // pred_fallthru
      _
    %p151 = scmp.lt.s32.totalorder %s10, 2
    // Predicated region
    $region21: #{cnn_b_forward.4} parent=5 // pred_check
      %p152 = pneg %p151
    $region22: #{cnn_b_forward.4} parent=5 // pred_check_branch
      %154 = sbr.rel (%p152) target = $region24
    $region23: #{cnn_b_forward.4} parent=5 // pred_region
      // Predicated region
      $region25: #{cnn_b_forward.4} parent=23 // pred_check
        %p155 = pneg %p30
      $region26: #{cnn_b_forward.4} parent=23 // pred_check_branch
        %157 = sbr.rel (%p155) target = $region28
      $region27: #{cnn_b_forward.4} parent=23 // pred_region
        %p158 = scmp.lt.s32.totalorder %s10, 1
        %s159 = scalar_select %p158, %s10, 1
        %s160 = smul.addr %s159, 4
        %s161 = smul.addr %s160, 8
        %s162 = scalar_lea.vmem %s0, %s161
      $region28: #{cnn_b_forward.4} parent=23 // pred_fallthru
        _
      // Predicated region
      $region29: #{cnn_b_forward.4} parent=23 // pred_check
        %p163 = pneg %p56
      $region30: #{cnn_b_forward.4} parent=23 // pred_check_branch
        %165 = sbr.rel (%p163) target = $region32
      $region31: #{cnn_b_forward.4} parent=23 // pred_region
        %p166 = scmp.lt.s32.totalorder %s10, 1
        %s167 = scalar_select %p166, %s10, 1
        %s168 = smul.addr %s167, 4
        %s169 = smul.addr %s168, 8
        %s170 = scalar_lea.vmem %s1, %s169
      $region32: #{cnn_b_forward.4} parent=23 // pred_fallthru
        _
    $region24: #{cnn_b_forward.4} parent=5 // pred_fallthru
      _
    %p171 = scmp.le.s32.totalorder 1, %s10
    %p172 = scmp.lt.s32.totalorder %s10, 3
    %p173 = pnand %p171, %p172
    %p174 = pneg %p173
    // Predicated region
    $region33: #{cnn_b_forward.4} parent=5 // pred_check
      _
    $region34: #{cnn_b_forward.4} parent=5 // pred_check_branch
      %176 = sbr.rel (%p173) target = $region36
    $region35: #{cnn_b_forward.4} parent=5 // pred_region
      %s177 = ssub.s32 %s10, 1
      %p178 = scmp.lt.s32.totalorder %s15, 1
      %s179 = scalar_select %p178, %s15, 1
      %s180 = smul.addr %s179, 4
      %s181 = smul.addr %s180, 8
      %s182 = scalar_lea.vmem %s0, %s181
      %p183 = pneg %p36
      %p184 = pneg %p33
      %p185 = scmp.lt.s32.totalorder %s15, 1
      %s186 = scalar_select %p185, %s15, 1
      %s187 = smul.addr %s186, 4
      %s188 = smul.addr %s187, 8
      %s189 = scalar_lea.vmem %s1, %s188
      %p190 = pneg %p62
      %p191 = pneg %p59
      %p192 = pneg %p83
      %p193 = pneg %p80
      %p194 = pneg %p104
      %p195 = pneg %p101
      %p196 = pneg %p130
      %p197 = pneg %p127
      %p198 = scmp.lt.s32.totalorder %s15, 1
      %s199 = scalar_select %p198, %s15, 1
      %s200 = smul.addr %s199, 4
      %s201 = smul.addr %s200, 8
      %s202 = scalar_lea.vmem %s4, %s201
      %p203 = scmp.lt.s32.totalorder %s15, 1
      %s204 = scalar_select %p203, %s15, 1
      %s205 = smul.addr %s204, 4
      %s206 = smul.addr %s205, 8
      %s207 = scalar_lea.vmem %s0, %s206
      %p208 = scmp.lt.s32.totalorder %s15, 1
      %s209 = scalar_select %p208, %s15, 1
      %s210 = smul.addr %s209, 4
      %s211 = smul.addr %s210, 8
      %s212 = scalar_lea.vmem %s1, %s211
      %p213 = scmp.lt.s32.totalorder %s15, 1
      %s214 = scalar_select %p213, %s15, 1
      %s215 = smul.addr %s214, 4
      %s216 = smul.addr %s215, 8
      %s217 = scalar_lea.vmem %s4, %s216
      %v218 = vld [vmem:[%s207] sm:$0x7f]
      %v219 = vld [vmem:[%s207 + $0x8] sm:$0x7f]
      %v220 = vld [vmem:[%s207 + $0x10] sm:$0x7f]
      %v221 = vld [vmem:[%s207 + $0x18] sm:$0x7f]
      %v222 = vld [vmem:[%s207] sm:$0xfe]
      %v223 = vld [vmem:[%s207 + $0x8] sm:$0xfe]
      %v224 = vld [vmem:[%s207 + $0x10] sm:$0xfe]
      %v225 = vld [vmem:[%s207 + $0x18] sm:$0xfe]
      %v226 = vld [vmem:[%s212] sm:$0x7f]
      %v227 = vld [vmem:[%s212 + $0x8] sm:$0x7f]
      %v228 = vld [vmem:[%s212 + $0x10] sm:$0x7f]
      %v229 = vld [vmem:[%s212 + $0x18] sm:$0x7f]
      %v230 = vld [vmem:[%s212] sm:$0xfe]
      %v231 = vld [vmem:[%s212 + $0x8] sm:$0xfe]
      %v232 = vld [vmem:[%s212 + $0x10] sm:$0xfe]
      %v233 = vld [vmem:[%s212 + $0x18] sm:$0xfe]
      %v234 = vld [vmem:[%s2] sm:$0xff]
      %v235 = vld [vmem:[%s2 + $0x8] sm:$0xff]
      %v236 = vld [vmem:[%s2 + $0x10] sm:$0xff]
      %v237 = vld [vmem:[%s2 + $0x18] sm:$0xff]
      %v238 = vld [vmem:[%s2 + $0x20] sm:$0xff]
      %v239 = vld [vmem:[%s2 + $0x28] sm:$0xff]
      %v240 = vld [vmem:[%s2 + $0x30] sm:$0xff]
      %v241 = vld [vmem:[%s2 + $0x38] sm:$0xff]
      %v242 = vld [vmem:[%s2 + $0x40] sm:$0xff]
      %v243 = vld [vmem:[%s2 + $0x48] sm:$0xff]
      %v244 = vld [vmem:[%s2 + $0x50] sm:$0xff]
      %v245 = vld [vmem:[%s2 + $0x58] sm:$0xff]
      %v246 = vld [vmem:[%s2 + $0x60] sm:$0xff]
      %v247 = vld [vmem:[%s2 + $0x68] sm:$0xff]
      %v248 = vld [vmem:[%s2 + $0x70] sm:$0xff]
      %v249 = vld [vmem:[%s2 + $0x78] sm:$0xff]
      %v250 = vld [vmem:[%s2 + $0x80] sm:$0xff]
      %v251 = vld [vmem:[%s2 + $0x88] sm:$0xff]
      %v252 = vld [vmem:[%s2 + $0x90] sm:$0xff]
      %v253 = vld [vmem:[%s2 + $0x98] sm:$0xff]
      %v254 = vld [vmem:[%s2 + $0xa0] sm:$0xff]
      %v255 = vld [vmem:[%s2 + $0xa8] sm:$0xff]
      %v256 = vld [vmem:[%s2 + $0xb0] sm:$0xff]
      %v257 = vld [vmem:[%s2 + $0xb8] sm:$0xff]
      %v258 = vld [vmem:[%s2 + $0xc0] sm:$0xff]
      %v259 = vld [vmem:[%s2 + $0xc8] sm:$0xff]
      %v260 = vld [vmem:[%s2 + $0xd0] sm:$0xff]
      %v261 = vld [vmem:[%s2 + $0xd8] sm:$0xff]
      %v262 = vld [vmem:[%s2 + $0xe0] sm:$0xff]
      %v263 = vld [vmem:[%s2 + $0xe8] sm:$0xff]
      %v264 = vld [vmem:[%s2 + $0xf0] sm:$0xff]
      %v265 = vld [vmem:[%s2 + $0xf8] sm:$0xff]
      %v266 = vld [vmem:[%s2 + $0x100] sm:$0xff]
      %v267 = vld [vmem:[%s2 + $0x108] sm:$0xff]
      %v268 = vld [vmem:[%s2 + $0x110] sm:$0xff]
      %v269 = vld [vmem:[%s2 + $0x118] sm:$0xff]
      %v270 = vld [vmem:[%s2 + $0x120] sm:$0xff]
      %v271 = vld [vmem:[%s2 + $0x128] sm:$0xff]
      %v272 = vld [vmem:[%s2 + $0x130] sm:$0xff]
      %v273 = vld [vmem:[%s2 + $0x138] sm:$0xff]
      %v274 = vld [vmem:[%s2 + $0x140] sm:$0xff]
      %v275 = vld [vmem:[%s2 + $0x148] sm:$0xff]
      %v276 = vld [vmem:[%s2 + $0x150] sm:$0xff]
      %v277 = vld [vmem:[%s2 + $0x158] sm:$0xff]
      %v278 = vld [vmem:[%s2 + $0x160] sm:$0xff]
      %v279 = vld [vmem:[%s2 + $0x168] sm:$0xff]
      %v280 = vld [vmem:[%s2 + $0x170] sm:$0xff]
      %v281 = vld [vmem:[%s2 + $0x178] sm:$0xff]
      %v282 = vld [vmem:[%s2 + $0x180] sm:$0xff]
      %v283 = vld [vmem:[%s2 + $0x188] sm:$0xff]
      %v284 = vld [vmem:[%s2 + $0x190] sm:$0xff]
      %v285 = vld [vmem:[%s2 + $0x198] sm:$0xff]
      %v286 = vld [vmem:[%s2 + $0x1a0] sm:$0xff]
      %v287 = vld [vmem:[%s2 + $0x1a8] sm:$0xff]
      %v288 = vld [vmem:[%s2 + $0x1b0] sm:$0xff]
      %v289 = vld [vmem:[%s2 + $0x1b8] sm:$0xff]
      %v290 = vld [vmem:[%s2 + $0x1c0] sm:$0xff]
      %v291 = vld [vmem:[%s2 + $0x1c8] sm:$0xff]
      %v292 = vld [vmem:[%s2 + $0x1d0] sm:$0xff]
      %v293 = vld [vmem:[%s2 + $0x1d8] sm:$0xff]
      %v294 = vld [vmem:[%s2 + $0x1e0] sm:$0xff]
      %v295 = vld [vmem:[%s2 + $0x1e8] sm:$0xff]
      %v296 = vld [vmem:[%s2 + $0x1f0] sm:$0xff]
      %v297 = vld [vmem:[%s2 + $0x1f8] sm:$0xff]
      %v298 = vld [vmem:[%s2 + $0x200] sm:$0xff]
      %v299 = vld [vmem:[%s2 + $0x208] sm:$0xff]
      %v300 = vld [vmem:[%s2 + $0x210] sm:$0xff]
      %v301 = vld [vmem:[%s2 + $0x218] sm:$0xff]
      %v302 = vld [vmem:[%s2 + $0x220] sm:$0xff]
      %v303 = vld [vmem:[%s2 + $0x228] sm:$0xff]
      %v304 = vld [vmem:[%s2 + $0x230] sm:$0xff]
      %v305 = vld [vmem:[%s2 + $0x238] sm:$0xff]
      %v306 = vld [vmem:[%s2 + $0x240] sm:$0xff]
      %v307 = vld [vmem:[%s2 + $0x248] sm:$0xff]
      %v308 = vld [vmem:[%s2 + $0x250] sm:$0xff]
      %v309 = vld [vmem:[%s2 + $0x258] sm:$0xff]
      %v310 = vld [vmem:[%s2 + $0x260] sm:$0xff]
      %v311 = vld [vmem:[%s2 + $0x268] sm:$0xff]
      %v312 = vld [vmem:[%s2 + $0x270] sm:$0xff]
      %v313 = vld [vmem:[%s2 + $0x278] sm:$0xff]
      %v314 = vld [vmem:[%s2 + $0x280] sm:$0xff]
      %v315 = vld [vmem:[%s2 + $0x288] sm:$0xff]
      %v316 = vld [vmem:[%s2 + $0x290] sm:$0xff]
      %v317 = vld [vmem:[%s2 + $0x298] sm:$0xff]
      %v318 = vld [vmem:[%s2 + $0x2a0] sm:$0xff]
      %v319 = vld [vmem:[%s2 + $0x2a8] sm:$0xff]
      %v320 = vld [vmem:[%s2 + $0x2b0] sm:$0xff]
      %v321 = vld [vmem:[%s2 + $0x2b8] sm:$0xff]
      %v322 = vld [vmem:[%s2 + $0x2c0] sm:$0xff]
      %v323 = vld [vmem:[%s2 + $0x2c8] sm:$0xff]
      %v324 = vld [vmem:[%s2 + $0x2d0] sm:$0xff]
      %v325 = vld [vmem:[%s2 + $0x2d8] sm:$0xff]
      %v326 = vld [vmem:[%s2 + $0x2e0] sm:$0xff]
      %v327 = vld [vmem:[%s2 + $0x2e8] sm:$0xff]
      %v328 = vld [vmem:[%s2 + $0x2f0] sm:$0xff]
      %v329 = vld [vmem:[%s2 + $0x2f8] sm:$0xff]
      %v330 = vld [vmem:[%s2 + $0x300] sm:$0xff]
      %v331 = vld [vmem:[%s2 + $0x308] sm:$0xff]
      %v332 = vld [vmem:[%s2 + $0x310] sm:$0xff]
      %v333 = vld [vmem:[%s2 + $0x318] sm:$0xff]
      %v334 = vld [vmem:[%s2 + $0x320] sm:$0xff]
      %v335 = vld [vmem:[%s2 + $0x328] sm:$0xff]
      %v336 = vld [vmem:[%s2 + $0x330] sm:$0xff]
      %v337 = vld [vmem:[%s2 + $0x338] sm:$0xff]
      %v338 = vld [vmem:[%s2 + $0x340] sm:$0xff]
      %v339 = vld [vmem:[%s2 + $0x348] sm:$0xff]
      %v340 = vld [vmem:[%s2 + $0x350] sm:$0xff]
      %v341 = vld [vmem:[%s2 + $0x358] sm:$0xff]
      %v342 = vld [vmem:[%s2 + $0x360] sm:$0xff]
      %v343 = vld [vmem:[%s2 + $0x368] sm:$0xff]
      %v344 = vld [vmem:[%s2 + $0x370] sm:$0xff]
      %v345 = vld [vmem:[%s2 + $0x378] sm:$0xff]
      %v346 = vld [vmem:[%s2 + $0x380] sm:$0xff]
      %v347 = vld [vmem:[%s2 + $0x388] sm:$0xff]
      %v348 = vld [vmem:[%s2 + $0x390] sm:$0xff]
      %v349 = vld [vmem:[%s2 + $0x398] sm:$0xff]
      %v350 = vld [vmem:[%s2 + $0x3a0] sm:$0xff]
      %v351 = vld [vmem:[%s2 + $0x3a8] sm:$0xff]
      %v352 = vld [vmem:[%s2 + $0x3b0] sm:$0xff]
      %v353 = vld [vmem:[%s2 + $0x3b8] sm:$0xff]
      %v354 = vld [vmem:[%s2 + $0x3c0] sm:$0xff]
      %v355 = vld [vmem:[%s2 + $0x3c8] sm:$0xff]
      %v356 = vld [vmem:[%s2 + $0x3d0] sm:$0xff]
      %v357 = vld [vmem:[%s2 + $0x3d8] sm:$0xff]
      %v358 = vld [vmem:[%s2 + $0x3e0] sm:$0xff]
      %v359 = vld [vmem:[%s2 + $0x3e8] sm:$0xff]
      %v360 = vld [vmem:[%s2 + $0x3f0] sm:$0xff]
      %v361 = vld [vmem:[%s2 + $0x3f8] sm:$0xff]
      %v362 = vld [vmem:[%s2 + $0x400] sm:$0xff]
      %v363 = vld [vmem:[%s2 + $0x408] sm:$0xff]
      %v364 = vld [vmem:[%s2 + $0x410] sm:$0xff]
      %v365 = vld [vmem:[%s2 + $0x418] sm:$0xff]
      %v366 = vld [vmem:[%s2 + $0x420] sm:$0xff]
      %v367 = vld [vmem:[%s2 + $0x428] sm:$0xff]
      %v368 = vld [vmem:[%s2 + $0x430] sm:$0xff]
      %v369 = vld [vmem:[%s2 + $0x438] sm:$0xff]
      %v370 = vld [vmem:[%s2 + $0x440] sm:$0xff]
      %v371 = vld [vmem:[%s2 + $0x448] sm:$0xff]
      %v372 = vld [vmem:[%s2 + $0x450] sm:$0xff]
      %v373 = vld [vmem:[%s2 + $0x458] sm:$0xff]
      %v374 = vld [vmem:[%s2 + $0x460] sm:$0xff]
      %v375 = vld [vmem:[%s2 + $0x468] sm:$0xff]
      %v376 = vld [vmem:[%s2 + $0x470] sm:$0xff]
      %v377 = vld [vmem:[%s2 + $0x478] sm:$0xff]
      %v378 = vld [vmem:[%s2 + $0x480] sm:$0xff]
      %v379 = vld [vmem:[%s2 + $0x488] sm:$0xff]
      %v380 = vld [vmem:[%s2 + $0x490] sm:$0xff]
      %v381 = vld [vmem:[%s2 + $0x498] sm:$0xff]
      %v382 = vld [vmem:[%s2 + $0x4a0] sm:$0xff]
      %v383 = vld [vmem:[%s2 + $0x4a8] sm:$0xff]
      %v384 = vld [vmem:[%s2 + $0x4b0] sm:$0xff]
      %v385 = vld [vmem:[%s2 + $0x4b8] sm:$0xff]
      %v386 = vld [vmem:[%s2 + $0x4c0] sm:$0xff]
      %v387 = vld [vmem:[%s2 + $0x4c8] sm:$0xff]
      %v388 = vld [vmem:[%s2 + $0x4d0] sm:$0xff]
      %v389 = vld [vmem:[%s2 + $0x4d8] sm:$0xff]
      %v390 = vld [vmem:[%s2 + $0x4e0] sm:$0xff]
      %v391 = vld [vmem:[%s2 + $0x4e8] sm:$0xff]
      %v392 = vld [vmem:[%s2 + $0x4f0] sm:$0xff]
      %v393 = vld [vmem:[%s2 + $0x4f8] sm:$0xff]
      %v394 = vld [vmem:[%s2 + $0x500] sm:$0xff]
      %v395 = vld [vmem:[%s2 + $0x508] sm:$0xff]
      %v396 = vld [vmem:[%s2 + $0x510] sm:$0xff]
      %v397 = vld [vmem:[%s2 + $0x518] sm:$0xff]
      %v398 = vld [vmem:[%s2 + $0x520] sm:$0xff]
      %v399 = vld [vmem:[%s2 + $0x528] sm:$0xff]
      %v400 = vld [vmem:[%s2 + $0x530] sm:$0xff]
      %v401 = vld [vmem:[%s2 + $0x538] sm:$0xff]
      %v402 = vld [vmem:[%s2 + $0x540] sm:$0xff]
      %v403 = vld [vmem:[%s2 + $0x548] sm:$0xff]
      %v404 = vld [vmem:[%s2 + $0x550] sm:$0xff]
      %v405 = vld [vmem:[%s2 + $0x558] sm:$0xff]
      %v406 = vld [vmem:[%s2 + $0x560] sm:$0xff]
      %v407 = vld [vmem:[%s2 + $0x568] sm:$0xff]
      %v408 = vld [vmem:[%s2 + $0x570] sm:$0xff]
      %v409 = vld [vmem:[%s2 + $0x578] sm:$0xff]
      %v410 = vld [vmem:[%s2 + $0x580] sm:$0xff]
      %v411 = vld [vmem:[%s2 + $0x588] sm:$0xff]
      %v412 = vld [vmem:[%s2 + $0x590] sm:$0xff]
      %v413 = vld [vmem:[%s2 + $0x598] sm:$0xff]
      %v414 = vld [vmem:[%s2 + $0x5a0] sm:$0xff]
      %v415 = vld [vmem:[%s2 + $0x5a8] sm:$0xff]
      %v416 = vld [vmem:[%s2 + $0x5b0] sm:$0xff]
      %v417 = vld [vmem:[%s2 + $0x5b8] sm:$0xff]
      %v418 = vld [vmem:[%s2 + $0x5c0] sm:$0xff]
      %v419 = vld [vmem:[%s2 + $0x5c8] sm:$0xff]
      %v420 = vld [vmem:[%s2 + $0x5d0] sm:$0xff]
      %v421 = vld [vmem:[%s2 + $0x5d8] sm:$0xff]
      %v422 = vld [vmem:[%s2 + $0x5e0] sm:$0xff]
      %v423 = vld [vmem:[%s2 + $0x5e8] sm:$0xff]
      %v424 = vld [vmem:[%s2 + $0x5f0] sm:$0xff]
      %v425 = vld [vmem:[%s2 + $0x5f8] sm:$0xff]
      %v426 = vld [vmem:[%s2 + $0x600] sm:$0xff]
      %v427 = vld [vmem:[%s2 + $0x608] sm:$0xff]
      %v428 = vld [vmem:[%s2 + $0x610] sm:$0xff]
      %v429 = vld [vmem:[%s2 + $0x618] sm:$0xff]
      %v430 = vld [vmem:[%s2 + $0x620] sm:$0xff]
      %v431 = vld [vmem:[%s2 + $0x628] sm:$0xff]
      %v432 = vld [vmem:[%s2 + $0x630] sm:$0xff]
      %v433 = vld [vmem:[%s2 + $0x638] sm:$0xff]
      %v434 = vld [vmem:[%s2 + $0x640] sm:$0xff]
      %v435 = vld [vmem:[%s2 + $0x648] sm:$0xff]
      %v436 = vld [vmem:[%s2 + $0x650] sm:$0xff]
      %v437 = vld [vmem:[%s2 + $0x658] sm:$0xff]
      %v438 = vld [vmem:[%s2 + $0x660] sm:$0xff]
      %v439 = vld [vmem:[%s2 + $0x668] sm:$0xff]
      %v440 = vld [vmem:[%s2 + $0x670] sm:$0xff]
      %v441 = vld [vmem:[%s2 + $0x678] sm:$0xff]
      %v442 = vld [vmem:[%s2 + $0x680] sm:$0xff]
      %v443 = vld [vmem:[%s2 + $0x688] sm:$0xff]
      %v444 = vld [vmem:[%s2 + $0x690] sm:$0xff]
      %v445 = vld [vmem:[%s2 + $0x698] sm:$0xff]
      %v446 = vld [vmem:[%s2 + $0x6a0] sm:$0xff]
      %v447 = vld [vmem:[%s2 + $0x6a8] sm:$0xff]
      %v448 = vld [vmem:[%s2 + $0x6b0] sm:$0xff]
      %v449 = vld [vmem:[%s2 + $0x6b8] sm:$0xff]
      %v450 = vld [vmem:[%s2 + $0x6c0] sm:$0xff]
      %v451 = vld [vmem:[%s2 + $0x6c8] sm:$0xff]
      %v452 = vld [vmem:[%s2 + $0x6d0] sm:$0xff]
      %v453 = vld [vmem:[%s2 + $0x6d8] sm:$0xff]
      %v454 = vld [vmem:[%s2 + $0x6e0] sm:$0xff]
      %v455 = vld [vmem:[%s2 + $0x6e8] sm:$0xff]
      %v456 = vld [vmem:[%s2 + $0x6f0] sm:$0xff]
      %v457 = vld [vmem:[%s2 + $0x6f8] sm:$0xff]
      %v458 = vld [vmem:[%s2 + $0x700] sm:$0xff]
      %v459 = vld [vmem:[%s2 + $0x708] sm:$0xff]
      %v460 = vld [vmem:[%s2 + $0x710] sm:$0xff]
      %v461 = vld [vmem:[%s2 + $0x718] sm:$0xff]
      %v462 = vld [vmem:[%s2 + $0x720] sm:$0xff]
      %v463 = vld [vmem:[%s2 + $0x728] sm:$0xff]
      %v464 = vld [vmem:[%s2 + $0x730] sm:$0xff]
      %v465 = vld [vmem:[%s2 + $0x738] sm:$0xff]
      %v466 = vld [vmem:[%s2 + $0x740] sm:$0xff]
      %v467 = vld [vmem:[%s2 + $0x748] sm:$0xff]
      %v468 = vld [vmem:[%s2 + $0x750] sm:$0xff]
      %v469 = vld [vmem:[%s2 + $0x758] sm:$0xff]
      %v470 = vld [vmem:[%s2 + $0x760] sm:$0xff]
      %v471 = vld [vmem:[%s2 + $0x768] sm:$0xff]
      %v472 = vld [vmem:[%s2 + $0x770] sm:$0xff]
      %v473 = vld [vmem:[%s2 + $0x778] sm:$0xff]
      %v474 = vld [vmem:[%s2 + $0x780] sm:$0xff]
      %v475 = vld [vmem:[%s2 + $0x788] sm:$0xff]
      %v476 = vld [vmem:[%s2 + $0x790] sm:$0xff]
      %v477 = vld [vmem:[%s2 + $0x798] sm:$0xff]
      %v478 = vld [vmem:[%s2 + $0x7a0] sm:$0xff]
      %v479 = vld [vmem:[%s2 + $0x7a8] sm:$0xff]
      %v480 = vld [vmem:[%s2 + $0x7b0] sm:$0xff]
      %v481 = vld [vmem:[%s2 + $0x7b8] sm:$0xff]
      %v482 = vld [vmem:[%s2 + $0x7c0] sm:$0xff]
      %v483 = vld [vmem:[%s2 + $0x7c8] sm:$0xff]
      %v484 = vld [vmem:[%s2 + $0x7d0] sm:$0xff]
      %v485 = vld [vmem:[%s2 + $0x7d8] sm:$0xff]
      %v486 = vld [vmem:[%s2 + $0x7e0] sm:$0xff]
      %v487 = vld [vmem:[%s2 + $0x7e8] sm:$0xff]
      %v488 = vld [vmem:[%s2 + $0x7f0] sm:$0xff]
      %v489 = vld [vmem:[%s2 + $0x7f8] sm:$0xff]
      %s490 = scalar_lea.vmem %s2, 2048
      %v491 = vld [vmem:[%s490] sm:$0xff]
      %v492 = vld [vmem:[%s490 + $0x8] sm:$0xff]
      %v493 = vld [vmem:[%s490 + $0x10] sm:$0xff]
      %v494 = vld [vmem:[%s490 + $0x18] sm:$0xff]
      %v495 = vld [vmem:[%s490 + $0x20] sm:$0xff]
      %v496 = vld [vmem:[%s490 + $0x28] sm:$0xff]
      %v497 = vld [vmem:[%s490 + $0x30] sm:$0xff]
      %v498 = vld [vmem:[%s490 + $0x38] sm:$0xff]
      %v499 = vld [vmem:[%s490 + $0x40] sm:$0xff]
      %v500 = vld [vmem:[%s490 + $0x48] sm:$0xff]
      %v501 = vld [vmem:[%s490 + $0x50] sm:$0xff]
      %v502 = vld [vmem:[%s490 + $0x58] sm:$0xff]
      %v503 = vld [vmem:[%s490 + $0x60] sm:$0xff]
      %v504 = vld [vmem:[%s490 + $0x68] sm:$0xff]
      %v505 = vld [vmem:[%s490 + $0x70] sm:$0xff]
      %v506 = vld [vmem:[%s490 + $0x78] sm:$0xff]
      %v507 = vld [vmem:[%s490 + $0x80] sm:$0xff]
      %v508 = vld [vmem:[%s490 + $0x88] sm:$0xff]
      %v509 = vld [vmem:[%s490 + $0x90] sm:$0xff]
      %v510 = vld [vmem:[%s490 + $0x98] sm:$0xff]
      %v511 = vld [vmem:[%s490 + $0xa0] sm:$0xff]
      %v512 = vld [vmem:[%s490 + $0xa8] sm:$0xff]
      %v513 = vld [vmem:[%s490 + $0xb0] sm:$0xff]
      %v514 = vld [vmem:[%s490 + $0xb8] sm:$0xff]
      %v515 = vld [vmem:[%s490 + $0xc0] sm:$0xff]
      %v516 = vld [vmem:[%s490 + $0xc8] sm:$0xff]
      %v517 = vld [vmem:[%s490 + $0xd0] sm:$0xff]
      %v518 = vld [vmem:[%s490 + $0xd8] sm:$0xff]
      %v519 = vld [vmem:[%s490 + $0xe0] sm:$0xff]
      %v520 = vld [vmem:[%s490 + $0xe8] sm:$0xff]
      %v521 = vld [vmem:[%s490 + $0xf0] sm:$0xff]
      %v522 = vld [vmem:[%s490 + $0xf8] sm:$0xff]
      %v523 = vld [vmem:[%s490 + $0x100] sm:$0xff]
      %v524 = vld [vmem:[%s490 + $0x108] sm:$0xff]
      %v525 = vld [vmem:[%s490 + $0x110] sm:$0xff]
      %v526 = vld [vmem:[%s490 + $0x118] sm:$0xff]
      %v527 = vld [vmem:[%s490 + $0x120] sm:$0xff]
      %v528 = vld [vmem:[%s490 + $0x128] sm:$0xff]
      %v529 = vld [vmem:[%s490 + $0x130] sm:$0xff]
      %v530 = vld [vmem:[%s490 + $0x138] sm:$0xff]
      %v531 = vld [vmem:[%s490 + $0x140] sm:$0xff]
      %v532 = vld [vmem:[%s490 + $0x148] sm:$0xff]
      %v533 = vld [vmem:[%s490 + $0x150] sm:$0xff]
      %v534 = vld [vmem:[%s490 + $0x158] sm:$0xff]
      %v535 = vld [vmem:[%s490 + $0x160] sm:$0xff]
      %v536 = vld [vmem:[%s490 + $0x168] sm:$0xff]
      %v537 = vld [vmem:[%s490 + $0x170] sm:$0xff]
      %v538 = vld [vmem:[%s490 + $0x178] sm:$0xff]
      %v539 = vld [vmem:[%s490 + $0x180] sm:$0xff]
      %v540 = vld [vmem:[%s490 + $0x188] sm:$0xff]
      %v541 = vld [vmem:[%s490 + $0x190] sm:$0xff]
      %v542 = vld [vmem:[%s490 + $0x198] sm:$0xff]
      %v543 = vld [vmem:[%s490 + $0x1a0] sm:$0xff]
      %v544 = vld [vmem:[%s490 + $0x1a8] sm:$0xff]
      %v545 = vld [vmem:[%s490 + $0x1b0] sm:$0xff]
      %v546 = vld [vmem:[%s490 + $0x1b8] sm:$0xff]
      %v547 = vld [vmem:[%s490 + $0x1c0] sm:$0xff]
      %v548 = vld [vmem:[%s490 + $0x1c8] sm:$0xff]
      %v549 = vld [vmem:[%s490 + $0x1d0] sm:$0xff]
      %v550 = vld [vmem:[%s490 + $0x1d8] sm:$0xff]
      %v551 = vld [vmem:[%s490 + $0x1e0] sm:$0xff]
      %v552 = vld [vmem:[%s490 + $0x1e8] sm:$0xff]
      %v553 = vld [vmem:[%s490 + $0x1f0] sm:$0xff]
      %v554 = vld [vmem:[%s490 + $0x1f8] sm:$0xff]
      %v555 = vld [vmem:[%s490 + $0x200] sm:$0xff]
      %v556 = vld [vmem:[%s490 + $0x208] sm:$0xff]
      %v557 = vld [vmem:[%s490 + $0x210] sm:$0xff]
      %v558 = vld [vmem:[%s490 + $0x218] sm:$0xff]
      %v559 = vld [vmem:[%s490 + $0x220] sm:$0xff]
      %v560 = vld [vmem:[%s490 + $0x228] sm:$0xff]
      %v561 = vld [vmem:[%s490 + $0x230] sm:$0xff]
      %v562 = vld [vmem:[%s490 + $0x238] sm:$0xff]
      %v563 = vld [vmem:[%s490 + $0x240] sm:$0xff]
      %v564 = vld [vmem:[%s490 + $0x248] sm:$0xff]
      %v565 = vld [vmem:[%s490 + $0x250] sm:$0xff]
      %v566 = vld [vmem:[%s490 + $0x258] sm:$0xff]
      %v567 = vld [vmem:[%s490 + $0x260] sm:$0xff]
      %v568 = vld [vmem:[%s490 + $0x268] sm:$0xff]
      %v569 = vld [vmem:[%s490 + $0x270] sm:$0xff]
      %v570 = vld [vmem:[%s490 + $0x278] sm:$0xff]
      %v571 = vld [vmem:[%s490 + $0x280] sm:$0xff]
      %v572 = vld [vmem:[%s490 + $0x288] sm:$0xff]
      %v573 = vld [vmem:[%s490 + $0x290] sm:$0xff]
      %v574 = vld [vmem:[%s490 + $0x298] sm:$0xff]
      %v575 = vld [vmem:[%s490 + $0x2a0] sm:$0xff]
      %v576 = vld [vmem:[%s490 + $0x2a8] sm:$0xff]
      %v577 = vld [vmem:[%s490 + $0x2b0] sm:$0xff]
      %v578 = vld [vmem:[%s490 + $0x2b8] sm:$0xff]
      %v579 = vld [vmem:[%s490 + $0x2c0] sm:$0xff]
      %v580 = vld [vmem:[%s490 + $0x2c8] sm:$0xff]
      %v581 = vld [vmem:[%s490 + $0x2d0] sm:$0xff]
      %v582 = vld [vmem:[%s490 + $0x2d8] sm:$0xff]
      %v583 = vld [vmem:[%s490 + $0x2e0] sm:$0xff]
      %v584 = vld [vmem:[%s490 + $0x2e8] sm:$0xff]
      %v585 = vld [vmem:[%s490 + $0x2f0] sm:$0xff]
      %v586 = vld [vmem:[%s490 + $0x2f8] sm:$0xff]
      %v587 = vld [vmem:[%s490 + $0x300] sm:$0xff]
      %v588 = vld [vmem:[%s490 + $0x308] sm:$0xff]
      %v589 = vld [vmem:[%s490 + $0x310] sm:$0xff]
      %v590 = vld [vmem:[%s490 + $0x318] sm:$0xff]
      %v591 = vld [vmem:[%s490 + $0x320] sm:$0xff]
      %v592 = vld [vmem:[%s490 + $0x328] sm:$0xff]
      %v593 = vld [vmem:[%s490 + $0x330] sm:$0xff]
      %v594 = vld [vmem:[%s490 + $0x338] sm:$0xff]
      %v595 = vld [vmem:[%s490 + $0x340] sm:$0xff]
      %v596 = vld [vmem:[%s490 + $0x348] sm:$0xff]
      %v597 = vld [vmem:[%s490 + $0x350] sm:$0xff]
      %v598 = vld [vmem:[%s490 + $0x358] sm:$0xff]
      %v599 = vld [vmem:[%s490 + $0x360] sm:$0xff]
      %v600 = vld [vmem:[%s490 + $0x368] sm:$0xff]
      %v601 = vld [vmem:[%s490 + $0x370] sm:$0xff]
      %v602 = vld [vmem:[%s490 + $0x378] sm:$0xff]
      %v603 = vld [vmem:[%s490 + $0x380] sm:$0xff]
      %v604 = vld [vmem:[%s490 + $0x388] sm:$0xff]
      %v605 = vld [vmem:[%s490 + $0x390] sm:$0xff]
      %v606 = vld [vmem:[%s490 + $0x398] sm:$0xff]
      %v607 = vld [vmem:[%s490 + $0x3a0] sm:$0xff]
      %v608 = vld [vmem:[%s490 + $0x3a8] sm:$0xff]
      %v609 = vld [vmem:[%s490 + $0x3b0] sm:$0xff]
      %v610 = vld [vmem:[%s490 + $0x3b8] sm:$0xff]
      %v611 = vld [vmem:[%s490 + $0x3c0] sm:$0xff]
      %v612 = vld [vmem:[%s490 + $0x3c8] sm:$0xff]
      %v613 = vld [vmem:[%s490 + $0x3d0] sm:$0xff]
      %v614 = vld [vmem:[%s490 + $0x3d8] sm:$0xff]
      %v615 = vld [vmem:[%s490 + $0x3e0] sm:$0xff]
      %v616 = vld [vmem:[%s490 + $0x3e8] sm:$0xff]
      %v617 = vld [vmem:[%s490 + $0x3f0] sm:$0xff]
      %v618 = vld [vmem:[%s490 + $0x3f8] sm:$0xff]
      %v619 = vld [vmem:[%s490 + $0x400] sm:$0xff]
      %v620 = vld [vmem:[%s490 + $0x408] sm:$0xff]
      %v621 = vld [vmem:[%s490 + $0x410] sm:$0xff]
      %v622 = vld [vmem:[%s490 + $0x418] sm:$0xff]
      %v623 = vld [vmem:[%s490 + $0x420] sm:$0xff]
      %v624 = vld [vmem:[%s490 + $0x428] sm:$0xff]
      %v625 = vld [vmem:[%s490 + $0x430] sm:$0xff]
      %v626 = vld [vmem:[%s490 + $0x438] sm:$0xff]
      %v627 = vld [vmem:[%s490 + $0x440] sm:$0xff]
      %v628 = vld [vmem:[%s490 + $0x448] sm:$0xff]
      %v629 = vld [vmem:[%s490 + $0x450] sm:$0xff]
      %v630 = vld [vmem:[%s490 + $0x458] sm:$0xff]
      %v631 = vld [vmem:[%s490 + $0x460] sm:$0xff]
      %v632 = vld [vmem:[%s490 + $0x468] sm:$0xff]
      %v633 = vld [vmem:[%s490 + $0x470] sm:$0xff]
      %v634 = vld [vmem:[%s490 + $0x478] sm:$0xff]
      %v635 = vld [vmem:[%s490 + $0x480] sm:$0xff]
      %v636 = vld [vmem:[%s490 + $0x488] sm:$0xff]
      %v637 = vld [vmem:[%s490 + $0x490] sm:$0xff]
      %v638 = vld [vmem:[%s490 + $0x498] sm:$0xff]
      %v639 = vld [vmem:[%s490 + $0x4a0] sm:$0xff]
      %v640 = vld [vmem:[%s490 + $0x4a8] sm:$0xff]
      %v641 = vld [vmem:[%s490 + $0x4b0] sm:$0xff]
      %v642 = vld [vmem:[%s490 + $0x4b8] sm:$0xff]
      %v643 = vld [vmem:[%s490 + $0x4c0] sm:$0xff]
      %v644 = vld [vmem:[%s490 + $0x4c8] sm:$0xff]
      %v645 = vld [vmem:[%s490 + $0x4d0] sm:$0xff]
      %v646 = vld [vmem:[%s490 + $0x4d8] sm:$0xff]
      %v647 = vld [vmem:[%s490 + $0x4e0] sm:$0xff]
      %v648 = vld [vmem:[%s490 + $0x4e8] sm:$0xff]
      %v649 = vld [vmem:[%s490 + $0x4f0] sm:$0xff]
      %v650 = vld [vmem:[%s490 + $0x4f8] sm:$0xff]
      %v651 = vld [vmem:[%s490 + $0x500] sm:$0xff]
      %v652 = vld [vmem:[%s490 + $0x508] sm:$0xff]
      %v653 = vld [vmem:[%s490 + $0x510] sm:$0xff]
      %v654 = vld [vmem:[%s490 + $0x518] sm:$0xff]
      %v655 = vld [vmem:[%s490 + $0x520] sm:$0xff]
      %v656 = vld [vmem:[%s490 + $0x528] sm:$0xff]
      %v657 = vld [vmem:[%s490 + $0x530] sm:$0xff]
      %v658 = vld [vmem:[%s490 + $0x538] sm:$0xff]
      %v659 = vld [vmem:[%s490 + $0x540] sm:$0xff]
      %v660 = vld [vmem:[%s490 + $0x548] sm:$0xff]
      %v661 = vld [vmem:[%s490 + $0x550] sm:$0xff]
      %v662 = vld [vmem:[%s490 + $0x558] sm:$0xff]
      %v663 = vld [vmem:[%s490 + $0x560] sm:$0xff]
      %v664 = vld [vmem:[%s490 + $0x568] sm:$0xff]
      %v665 = vld [vmem:[%s490 + $0x570] sm:$0xff]
      %v666 = vld [vmem:[%s490 + $0x578] sm:$0xff]
      %v667 = vld [vmem:[%s490 + $0x580] sm:$0xff]
      %v668 = vld [vmem:[%s490 + $0x588] sm:$0xff]
      %v669 = vld [vmem:[%s490 + $0x590] sm:$0xff]
      %v670 = vld [vmem:[%s490 + $0x598] sm:$0xff]
      %v671 = vld [vmem:[%s490 + $0x5a0] sm:$0xff]
      %v672 = vld [vmem:[%s490 + $0x5a8] sm:$0xff]
      %v673 = vld [vmem:[%s490 + $0x5b0] sm:$0xff]
      %v674 = vld [vmem:[%s490 + $0x5b8] sm:$0xff]
      %v675 = vld [vmem:[%s490 + $0x5c0] sm:$0xff]
      %v676 = vld [vmem:[%s490 + $0x5c8] sm:$0xff]
      %v677 = vld [vmem:[%s490 + $0x5d0] sm:$0xff]
      %v678 = vld [vmem:[%s490 + $0x5d8] sm:$0xff]
      %v679 = vld [vmem:[%s490 + $0x5e0] sm:$0xff]
      %v680 = vld [vmem:[%s490 + $0x5e8] sm:$0xff]
      %v681 = vld [vmem:[%s490 + $0x5f0] sm:$0xff]
      %v682 = vld [vmem:[%s490 + $0x5f8] sm:$0xff]
      %v683 = vld [vmem:[%s490 + $0x600] sm:$0xff]
      %v684 = vld [vmem:[%s490 + $0x608] sm:$0xff]
      %v685 = vld [vmem:[%s490 + $0x610] sm:$0xff]
      %v686 = vld [vmem:[%s490 + $0x618] sm:$0xff]
      %v687 = vld [vmem:[%s490 + $0x620] sm:$0xff]
      %v688 = vld [vmem:[%s490 + $0x628] sm:$0xff]
      %v689 = vld [vmem:[%s490 + $0x630] sm:$0xff]
      %v690 = vld [vmem:[%s490 + $0x638] sm:$0xff]
      %v691 = vld [vmem:[%s490 + $0x640] sm:$0xff]
      %v692 = vld [vmem:[%s490 + $0x648] sm:$0xff]
      %v693 = vld [vmem:[%s490 + $0x650] sm:$0xff]
      %v694 = vld [vmem:[%s490 + $0x658] sm:$0xff]
      %v695 = vld [vmem:[%s490 + $0x660] sm:$0xff]
      %v696 = vld [vmem:[%s490 + $0x668] sm:$0xff]
      %v697 = vld [vmem:[%s490 + $0x670] sm:$0xff]
      %v698 = vld [vmem:[%s490 + $0x678] sm:$0xff]
      %v699 = vld [vmem:[%s490 + $0x680] sm:$0xff]
      %v700 = vld [vmem:[%s490 + $0x688] sm:$0xff]
      %v701 = vld [vmem:[%s490 + $0x690] sm:$0xff]
      %v702 = vld [vmem:[%s490 + $0x698] sm:$0xff]
      %v703 = vld [vmem:[%s490 + $0x6a0] sm:$0xff]
      %v704 = vld [vmem:[%s490 + $0x6a8] sm:$0xff]
      %v705 = vld [vmem:[%s490 + $0x6b0] sm:$0xff]
      %v706 = vld [vmem:[%s490 + $0x6b8] sm:$0xff]
      %v707 = vld [vmem:[%s490 + $0x6c0] sm:$0xff]
      %v708 = vld [vmem:[%s490 + $0x6c8] sm:$0xff]
      %v709 = vld [vmem:[%s490 + $0x6d0] sm:$0xff]
      %v710 = vld [vmem:[%s490 + $0x6d8] sm:$0xff]
      %v711 = vld [vmem:[%s490 + $0x6e0] sm:$0xff]
      %v712 = vld [vmem:[%s490 + $0x6e8] sm:$0xff]
      %v713 = vld [vmem:[%s490 + $0x6f0] sm:$0xff]
      %v714 = vld [vmem:[%s490 + $0x6f8] sm:$0xff]
      %v715 = vld [vmem:[%s490 + $0x700] sm:$0xff]
      %v716 = vld [vmem:[%s490 + $0x708] sm:$0xff]
      %v717 = vld [vmem:[%s490 + $0x710] sm:$0xff]
      %v718 = vld [vmem:[%s490 + $0x718] sm:$0xff]
      %v719 = vld [vmem:[%s490 + $0x720] sm:$0xff]
      %v720 = vld [vmem:[%s490 + $0x728] sm:$0xff]
      %v721 = vld [vmem:[%s490 + $0x730] sm:$0xff]
      %v722 = vld [vmem:[%s490 + $0x738] sm:$0xff]
      %v723 = vld [vmem:[%s490 + $0x740] sm:$0xff]
      %v724 = vld [vmem:[%s490 + $0x748] sm:$0xff]
      %v725 = vld [vmem:[%s490 + $0x750] sm:$0xff]
      %v726 = vld [vmem:[%s490 + $0x758] sm:$0xff]
      %v727 = vld [vmem:[%s490 + $0x760] sm:$0xff]
      %v728 = vld [vmem:[%s490 + $0x768] sm:$0xff]
      %v729 = vld [vmem:[%s490 + $0x770] sm:$0xff]
      %v730 = vld [vmem:[%s490 + $0x778] sm:$0xff]
      %v731 = vld [vmem:[%s490 + $0x780] sm:$0xff]
      %v732 = vld [vmem:[%s490 + $0x788] sm:$0xff]
      %v733 = vld [vmem:[%s490 + $0x790] sm:$0xff]
      %v734 = vld [vmem:[%s490 + $0x798] sm:$0xff]
      %v735 = vld [vmem:[%s490 + $0x7a0] sm:$0xff]
      %v736 = vld [vmem:[%s490 + $0x7a8] sm:$0xff]
      %v737 = vld [vmem:[%s490 + $0x7b0] sm:$0xff]
      %v738 = vld [vmem:[%s490 + $0x7b8] sm:$0xff]
      %v739 = vld [vmem:[%s490 + $0x7c0] sm:$0xff]
      %v740 = vld [vmem:[%s490 + $0x7c8] sm:$0xff]
      %v741 = vld [vmem:[%s490 + $0x7d0] sm:$0xff]
      %v742 = vld [vmem:[%s490 + $0x7d8] sm:$0xff]
      %v743 = vld [vmem:[%s490 + $0x7e0] sm:$0xff]
      %v744 = vld [vmem:[%s490 + $0x7e8] sm:$0xff]
      %v745 = vld [vmem:[%s490 + $0x7f0] sm:$0xff]
      %v746 = vld [vmem:[%s490 + $0x7f8] sm:$0xff]
      %747 = vmatprep.subr.mxu0 %v552
      %748 = vmatpush1.msra.mxu0 %v551
      %749 = vmatprep.subr.mxu0 %v548
      %750 = vmatpush1.msra.mxu0 %v547
      %751 = vmatprep.subr.mxu0 %v544
      %752 = vmatpush1.msra.mxu0 %v543
      %753 = vmatprep.subr.mxu0 %v540
      %754 = vmatpush1.msra.mxu0 %v539
      %755 = vmatprep.subr.mxu0 %v536
      %756 = vmatpush1.msra.mxu0 %v535
      %757 = vmatprep.subr.mxu0 %v532
      %758 = vmatpush1.msra.mxu0 %v531
      %759 = vmatprep.subr.mxu0 %v528
      %760 = vmatpush1.msra.mxu0 %v527
      %761 = vmatprep.subr.mxu0 %v524
      %762 = vmatpush1.msra.mxu0 %v523
      %763 = vmatprep.subr.mxu0 %v520
      %764 = vmatpush1.msra.mxu0 %v519
      %765 = vmatprep.subr.mxu0 %v516
      %766 = vmatpush1.msra.mxu0 %v515
      %767 = vmatprep.subr.mxu0 %v512
      %768 = vmatpush1.msra.mxu0 %v511
      %769 = vmatprep.subr.mxu0 %v508
      %770 = vmatpush1.msra.mxu0 %v507
      %771 = vmatprep.subr.mxu0 %v504
      %772 = vmatpush1.msra.mxu0 %v503
      %773 = vmatprep.subr.mxu0 %v500
      %774 = vmatpush1.msra.mxu0 %v499
      %775 = vmatprep.subr.mxu0 %v496
      %776 = vmatpush1.msra.mxu0 %v495
      %777 = vmatprep.subr.mxu0 %v492
      %778 = vmatpush1.msra.mxu0 %v491
      %779 = vmatprep.subr.mxu0 %v616
      %780 = vmatpush2.msra.mxu0 %v615
      %781 = vmatprep.subr.mxu0 %v612
      %782 = vmatpush2.msra.mxu0 %v611
      %783 = vmatprep.subr.mxu0 %v608
      %784 = vmatpush2.msra.mxu0 %v607
      %785 = vmatprep.subr.mxu0 %v604
      %786 = vmatpush2.msra.mxu0 %v603
      %787 = vmatprep.subr.mxu0 %v600
      %788 = vmatpush2.msra.mxu0 %v599
      %789 = vmatprep.subr.mxu0 %v596
      %790 = vmatpush2.msra.mxu0 %v595
      %791 = vmatprep.subr.mxu0 %v592
      %792 = vmatpush2.msra.mxu0 %v591
      %793 = vmatprep.subr.mxu0 %v588
      %794 = vmatpush2.msra.mxu0 %v587
      %795 = vmatprep.subr.mxu0 %v584
      %796 = vmatpush2.msra.mxu0 %v583
      %797 = vmatprep.subr.mxu0 %v580
      %798 = vmatpush2.msra.mxu0 %v579
      %799 = vmatprep.subr.mxu0 %v576
      %800 = vmatpush2.msra.mxu0 %v575
      %801 = vmatprep.subr.mxu0 %v572
      %802 = vmatpush2.msra.mxu0 %v571
      %803 = vmatprep.subr.mxu0 %v568
      %804 = vmatpush2.msra.mxu0 %v567
      %805 = vmatprep.subr.mxu0 %v564
      %806 = vmatpush2.msra.mxu0 %v563
      %807 = vmatprep.subr.mxu0 %v560
      %808 = vmatpush2.msra.mxu0 %v559
      %809 = vmatprep.subr.mxu0 %v556
      %810 = vmatpush2.msra.mxu0 %v555
      %811 = vmatprep.mubr.f32.mxu0 %v227
      %812 = vmatmul.mubr.f32.gmra.mxu0 %v226
      %v813 = vpop.f32.mrf.mxu0
      %v814 = vadd.f32 0.0, %v813
      %v815 = vpop.f32.mrf.mxu0
      %v816 = vadd.f32 0.0, %v815
      %817 = vdwg.mxu0
      %818 = vmatprep.subr.mxu0 %v680
      %819 = vmatpush1.msra.mxu0 %v679
      %820 = vmatprep.subr.mxu0 %v676
      %821 = vmatpush1.msra.mxu0 %v675
      %822 = vmatprep.subr.mxu0 %v672
      %823 = vmatpush1.msra.mxu0 %v671
      %824 = vmatprep.subr.mxu0 %v668
      %825 = vmatpush1.msra.mxu0 %v667
      %826 = vmatprep.subr.mxu0 %v664
      %827 = vmatpush1.msra.mxu0 %v663
      %828 = vmatprep.subr.mxu0 %v660
      %829 = vmatpush1.msra.mxu0 %v659
      %830 = vmatprep.subr.mxu0 %v656
      %831 = vmatpush1.msra.mxu0 %v655
      %832 = vmatprep.subr.mxu0 %v652
      %833 = vmatpush1.msra.mxu0 %v651
      %834 = vmatprep.subr.mxu0 %v648
      %835 = vmatpush1.msra.mxu0 %v647
      %836 = vmatprep.subr.mxu0 %v644
      %837 = vmatpush1.msra.mxu0 %v643
      %838 = vmatprep.subr.mxu0 %v640
      %839 = vmatpush1.msra.mxu0 %v639
      %840 = vmatprep.subr.mxu0 %v636
      %841 = vmatpush1.msra.mxu0 %v635
      %842 = vmatprep.subr.mxu0 %v632
      %843 = vmatpush1.msra.mxu0 %v631
      %844 = vmatprep.subr.mxu0 %v628
      %845 = vmatpush1.msra.mxu0 %v627
      %846 = vmatprep.subr.mxu0 %v624
      %847 = vmatpush1.msra.mxu0 %v623
      %848 = vmatprep.subr.mxu0 %v620
      %849 = vmatpush1.msra.mxu0 %v619
      %850 = vmatprep.subr.mxu0 %v744
      %851 = vmatpush2.msra.mxu0 %v743
      %852 = vmatprep.subr.mxu0 %v740
      %853 = vmatpush2.msra.mxu0 %v739
      %854 = vmatprep.subr.mxu0 %v736
      %855 = vmatpush2.msra.mxu0 %v735
      %856 = vmatprep.subr.mxu0 %v732
      %857 = vmatpush2.msra.mxu0 %v731
      %858 = vmatprep.subr.mxu0 %v728
      %859 = vmatpush2.msra.mxu0 %v727
      %860 = vmatprep.subr.mxu0 %v724
      %861 = vmatpush2.msra.mxu0 %v723
      %862 = vmatprep.subr.mxu0 %v720
      %863 = vmatpush2.msra.mxu0 %v719
      %864 = vmatprep.subr.mxu0 %v716
      %865 = vmatpush2.msra.mxu0 %v715
      %866 = vmatprep.subr.mxu0 %v712
      %867 = vmatpush2.msra.mxu0 %v711
      %868 = vmatprep.subr.mxu0 %v708
      %869 = vmatpush2.msra.mxu0 %v707
      %870 = vmatprep.subr.mxu0 %v704
      %871 = vmatpush2.msra.mxu0 %v703
      %872 = vmatprep.subr.mxu0 %v700
      %873 = vmatpush2.msra.mxu0 %v699
      %874 = vmatprep.subr.mxu0 %v696
      %875 = vmatpush2.msra.mxu0 %v695
      %876 = vmatprep.subr.mxu0 %v692
      %877 = vmatpush2.msra.mxu0 %v691
      %878 = vmatprep.subr.mxu0 %v688
      %879 = vmatpush2.msra.mxu0 %v687
      %880 = vmatprep.subr.mxu0 %v684
      %881 = vmatpush2.msra.mxu0 %v683
      %882 = vmatprep.mubr.f32.mxu0 %v229
      %883 = vmatmul.mubr.f32.gmra.mxu0 %v228
      %v884 = vpop.f32.mrf.mxu0
      %v885 = vadd.f32 %v814, %v884
      %v886 = vpop.f32.mrf.mxu0
      %v887 = vadd.f32 %v816, %v886
      %888 = vdwg.mxu0
      %889 = vmatprep.subr.mxu0 %v554
      %890 = vmatpush1.msra.mxu0 %v553
      %891 = vmatprep.subr.mxu0 %v550
      %892 = vmatpush1.msra.mxu0 %v549
      %893 = vmatprep.subr.mxu0 %v546
      %894 = vmatpush1.msra.mxu0 %v545
      %895 = vmatprep.subr.mxu0 %v542
      %896 = vmatpush1.msra.mxu0 %v541
      %897 = vmatprep.subr.mxu0 %v538
      %898 = vmatpush1.msra.mxu0 %v537
      %899 = vmatprep.subr.mxu0 %v534
      %900 = vmatpush1.msra.mxu0 %v533
      %901 = vmatprep.subr.mxu0 %v530
      %902 = vmatpush1.msra.mxu0 %v529
      %903 = vmatprep.subr.mxu0 %v526
      %904 = vmatpush1.msra.mxu0 %v525
      %905 = vmatprep.subr.mxu0 %v522
      %906 = vmatpush1.msra.mxu0 %v521
      %907 = vmatprep.subr.mxu0 %v518
      %908 = vmatpush1.msra.mxu0 %v517
      %909 = vmatprep.subr.mxu0 %v514
      %910 = vmatpush1.msra.mxu0 %v513
      %911 = vmatprep.subr.mxu0 %v510
      %912 = vmatpush1.msra.mxu0 %v509
      %913 = vmatprep.subr.mxu0 %v506
      %914 = vmatpush1.msra.mxu0 %v505
      %915 = vmatprep.subr.mxu0 %v502
      %916 = vmatpush1.msra.mxu0 %v501
      %917 = vmatprep.subr.mxu0 %v498
      %918 = vmatpush1.msra.mxu0 %v497
      %919 = vmatprep.subr.mxu0 %v494
      %920 = vmatpush1.msra.mxu0 %v493
      %921 = vmatprep.subr.mxu0 %v618
      %922 = vmatpush2.msra.mxu0 %v617
      %923 = vmatprep.subr.mxu0 %v614
      %924 = vmatpush2.msra.mxu0 %v613
      %925 = vmatprep.subr.mxu0 %v610
      %926 = vmatpush2.msra.mxu0 %v609
      %927 = vmatprep.subr.mxu0 %v606
      %928 = vmatpush2.msra.mxu0 %v605
      %929 = vmatprep.subr.mxu0 %v602
      %930 = vmatpush2.msra.mxu0 %v601
      %931 = vmatprep.subr.mxu0 %v598
      %932 = vmatpush2.msra.mxu0 %v597
      %933 = vmatprep.subr.mxu0 %v594
      %934 = vmatpush2.msra.mxu0 %v593
      %935 = vmatprep.subr.mxu0 %v590
      %936 = vmatpush2.msra.mxu0 %v589
      %937 = vmatprep.subr.mxu0 %v586
      %938 = vmatpush2.msra.mxu0 %v585
      %939 = vmatprep.subr.mxu0 %v582
      %940 = vmatpush2.msra.mxu0 %v581
      %941 = vmatprep.subr.mxu0 %v578
      %942 = vmatpush2.msra.mxu0 %v577
      %943 = vmatprep.subr.mxu0 %v574
      %944 = vmatpush2.msra.mxu0 %v573
      %945 = vmatprep.subr.mxu0 %v570
      %946 = vmatpush2.msra.mxu0 %v569
      %947 = vmatprep.subr.mxu0 %v566
      %948 = vmatpush2.msra.mxu0 %v565
      %949 = vmatprep.subr.mxu0 %v562
      %950 = vmatpush2.msra.mxu0 %v561
      %951 = vmatprep.subr.mxu0 %v558
      %952 = vmatpush2.msra.mxu0 %v557
      %953 = vmatprep.mubr.f32.mxu0 %v227
      %954 = vmatmul.mubr.f32.gmra.mxu0 %v226
      %v955 = vpop.f32.mrf.mxu0
      %v956 = vadd.f32 0.0, %v955
      %v957 = vpop.f32.mrf.mxu0
      %v958 = vadd.f32 0.0, %v957
      %959 = vdwg.mxu0
      %960 = vmatprep.subr.mxu0 %v682
      %961 = vmatpush1.msra.mxu0 %v681
      %962 = vmatprep.subr.mxu0 %v678
      %963 = vmatpush1.msra.mxu0 %v677
      %964 = vmatprep.subr.mxu0 %v674
      %965 = vmatpush1.msra.mxu0 %v673
      %966 = vmatprep.subr.mxu0 %v670
      %967 = vmatpush1.msra.mxu0 %v669
      %968 = vmatprep.subr.mxu0 %v666
      %969 = vmatpush1.msra.mxu0 %v665
      %970 = vmatprep.subr.mxu0 %v662
      %971 = vmatpush1.msra.mxu0 %v661
      %972 = vmatprep.subr.mxu0 %v658
      %973 = vmatpush1.msra.mxu0 %v657
      %974 = vmatprep.subr.mxu0 %v654
      %975 = vmatpush1.msra.mxu0 %v653
      %976 = vmatprep.subr.mxu0 %v650
      %977 = vmatpush1.msra.mxu0 %v649
      %978 = vmatprep.subr.mxu0 %v646
      %979 = vmatpush1.msra.mxu0 %v645
      %980 = vmatprep.subr.mxu0 %v642
      %981 = vmatpush1.msra.mxu0 %v641
      %982 = vmatprep.subr.mxu0 %v638
      %983 = vmatpush1.msra.mxu0 %v637
      %984 = vmatprep.subr.mxu0 %v634
      %985 = vmatpush1.msra.mxu0 %v633
      %986 = vmatprep.subr.mxu0 %v630
      %987 = vmatpush1.msra.mxu0 %v629
      %988 = vmatprep.subr.mxu0 %v626
      %989 = vmatpush1.msra.mxu0 %v625
      %990 = vmatprep.subr.mxu0 %v622
      %991 = vmatpush1.msra.mxu0 %v621
      %992 = vmatprep.subr.mxu0 %v746
      %993 = vmatpush2.msra.mxu0 %v745
      %994 = vmatprep.subr.mxu0 %v742
      %995 = vmatpush2.msra.mxu0 %v741
      %996 = vmatprep.subr.mxu0 %v738
      %997 = vmatpush2.msra.mxu0 %v737
      %998 = vmatprep.subr.mxu0 %v734
      %999 = vmatpush2.msra.mxu0 %v733
      %1000 = vmatprep.subr.mxu0 %v730
      %1001 = vmatpush2.msra.mxu0 %v729
      %1002 = vmatprep.subr.mxu0 %v726
      %1003 = vmatpush2.msra.mxu0 %v725
      %1004 = vmatprep.subr.mxu0 %v722
      %1005 = vmatpush2.msra.mxu0 %v721
      %1006 = vmatprep.subr.mxu0 %v718
      %1007 = vmatpush2.msra.mxu0 %v717
      %1008 = vmatprep.subr.mxu0 %v714
      %1009 = vmatpush2.msra.mxu0 %v713
      %1010 = vmatprep.subr.mxu0 %v710
      %1011 = vmatpush2.msra.mxu0 %v709
      %1012 = vmatprep.subr.mxu0 %v706
      %1013 = vmatpush2.msra.mxu0 %v705
      %1014 = vmatprep.subr.mxu0 %v702
      %1015 = vmatpush2.msra.mxu0 %v701
      %1016 = vmatprep.subr.mxu0 %v698
      %1017 = vmatpush2.msra.mxu0 %v697
      %1018 = vmatprep.subr.mxu0 %v694
      %1019 = vmatpush2.msra.mxu0 %v693
      %1020 = vmatprep.subr.mxu0 %v690
      %1021 = vmatpush2.msra.mxu0 %v689
      %1022 = vmatprep.subr.mxu0 %v686
      %1023 = vmatpush2.msra.mxu0 %v685
      %1024 = vmatprep.mubr.f32.mxu0 %v229
      %1025 = vmatmul.mubr.f32.gmra.mxu0 %v228
      %v1026 = vpop.f32.mrf.mxu0
      %v1027 = vadd.f32 %v956, %v1026
      %v1028 = vpop.f32.mrf.mxu0
      %v1029 = vadd.f32 %v958, %v1028
      %1030 = vdwg.mxu0
      %1031 = vmatprep.subr.mxu0 %v295
      %1032 = vmatpush1.msra.mxu0 %v294
      %1033 = vmatprep.subr.mxu0 %v291
      %1034 = vmatpush1.msra.mxu0 %v290
      %1035 = vmatprep.subr.mxu0 %v287
      %1036 = vmatpush1.msra.mxu0 %v286
      %1037 = vmatprep.subr.mxu0 %v283
      %1038 = vmatpush1.msra.mxu0 %v282
      %1039 = vmatprep.subr.mxu0 %v279
      %1040 = vmatpush1.msra.mxu0 %v278
      %1041 = vmatprep.subr.mxu0 %v275
      %1042 = vmatpush1.msra.mxu0 %v274
      %1043 = vmatprep.subr.mxu0 %v271
      %1044 = vmatpush1.msra.mxu0 %v270
      %1045 = vmatprep.subr.mxu0 %v267
      %1046 = vmatpush1.msra.mxu0 %v266
      %1047 = vmatprep.subr.mxu0 %v263
      %1048 = vmatpush1.msra.mxu0 %v262
      %1049 = vmatprep.subr.mxu0 %v259
      %1050 = vmatpush1.msra.mxu0 %v258
      %1051 = vmatprep.subr.mxu0 %v255
      %1052 = vmatpush1.msra.mxu0 %v254
      %1053 = vmatprep.subr.mxu0 %v251
      %1054 = vmatpush1.msra.mxu0 %v250
      %1055 = vmatprep.subr.mxu0 %v247
      %1056 = vmatpush1.msra.mxu0 %v246
      %1057 = vmatprep.subr.mxu0 %v243
      %1058 = vmatpush1.msra.mxu0 %v242
      %1059 = vmatprep.subr.mxu0 %v239
      %1060 = vmatpush1.msra.mxu0 %v238
      %1061 = vmatprep.subr.mxu0 %v235
      %1062 = vmatpush1.msra.mxu0 %v234
      %1063 = vmatprep.subr.mxu0 %v359
      %1064 = vmatpush2.msra.mxu0 %v358
      %1065 = vmatprep.subr.mxu0 %v355
      %1066 = vmatpush2.msra.mxu0 %v354
      %1067 = vmatprep.subr.mxu0 %v351
      %1068 = vmatpush2.msra.mxu0 %v350
      %1069 = vmatprep.subr.mxu0 %v347
      %1070 = vmatpush2.msra.mxu0 %v346
      %1071 = vmatprep.subr.mxu0 %v343
      %1072 = vmatpush2.msra.mxu0 %v342
      %1073 = vmatprep.subr.mxu0 %v339
      %1074 = vmatpush2.msra.mxu0 %v338
      %1075 = vmatprep.subr.mxu0 %v335
      %1076 = vmatpush2.msra.mxu0 %v334
      %1077 = vmatprep.subr.mxu0 %v331
      %1078 = vmatpush2.msra.mxu0 %v330
      %1079 = vmatprep.subr.mxu0 %v327
      %1080 = vmatpush2.msra.mxu0 %v326
      %1081 = vmatprep.subr.mxu0 %v323
      %1082 = vmatpush2.msra.mxu0 %v322
      %1083 = vmatprep.subr.mxu0 %v319
      %1084 = vmatpush2.msra.mxu0 %v318
      %1085 = vmatprep.subr.mxu0 %v315
      %1086 = vmatpush2.msra.mxu0 %v314
      %1087 = vmatprep.subr.mxu0 %v311
      %1088 = vmatpush2.msra.mxu0 %v310
      %1089 = vmatprep.subr.mxu0 %v307
      %1090 = vmatpush2.msra.mxu0 %v306
      %1091 = vmatprep.subr.mxu0 %v303
      %1092 = vmatpush2.msra.mxu0 %v302
      %1093 = vmatprep.subr.mxu0 %v299
      %1094 = vmatpush2.msra.mxu0 %v298
      %1095 = vmatprep.mubr.f32.mxu0 %v219
      %1096 = vmatmul.mubr.f32.gmra.mxu0 %v218
      %v1097 = vpop.f32.mrf.mxu0
      %v1098 = vadd.f32 %v885, %v1097
      %v1099 = vpop.f32.mrf.mxu0
      %v1100 = vadd.f32 %v887, %v1099
      %1101 = vdwg.mxu0
      %1102 = vmatprep.subr.mxu0 %v423
      %1103 = vmatpush1.msra.mxu0 %v422
      %1104 = vmatprep.subr.mxu0 %v419
      %1105 = vmatpush1.msra.mxu0 %v418
      %1106 = vmatprep.subr.mxu0 %v415
      %1107 = vmatpush1.msra.mxu0 %v414
      %1108 = vmatprep.subr.mxu0 %v411
      %1109 = vmatpush1.msra.mxu0 %v410
      %1110 = vmatprep.subr.mxu0 %v407
      %1111 = vmatpush1.msra.mxu0 %v406
      %1112 = vmatprep.subr.mxu0 %v403
      %1113 = vmatpush1.msra.mxu0 %v402
      %1114 = vmatprep.subr.mxu0 %v399
      %1115 = vmatpush1.msra.mxu0 %v398
      %1116 = vmatprep.subr.mxu0 %v395
      %1117 = vmatpush1.msra.mxu0 %v394
      %1118 = vmatprep.subr.mxu0 %v391
      %1119 = vmatpush1.msra.mxu0 %v390
      %1120 = vmatprep.subr.mxu0 %v387
      %1121 = vmatpush1.msra.mxu0 %v386
      %1122 = vmatprep.subr.mxu0 %v383
      %1123 = vmatpush1.msra.mxu0 %v382
      %1124 = vmatprep.subr.mxu0 %v379
      %1125 = vmatpush1.msra.mxu0 %v378
      %1126 = vmatprep.subr.mxu0 %v375
      %1127 = vmatpush1.msra.mxu0 %v374
      %1128 = vmatprep.subr.mxu0 %v371
      %1129 = vmatpush1.msra.mxu0 %v370
      %1130 = vmatprep.subr.mxu0 %v367
      %1131 = vmatpush1.msra.mxu0 %v366
      %1132 = vmatprep.subr.mxu0 %v363
      %1133 = vmatpush1.msra.mxu0 %v362
      %1134 = vmatprep.subr.mxu0 %v487
      %1135 = vmatpush2.msra.mxu0 %v486
      %1136 = vmatprep.subr.mxu0 %v483
      %1137 = vmatpush2.msra.mxu0 %v482
      %1138 = vmatprep.subr.mxu0 %v479
      %1139 = vmatpush2.msra.mxu0 %v478
      %1140 = vmatprep.subr.mxu0 %v475
      %1141 = vmatpush2.msra.mxu0 %v474
      %1142 = vmatprep.subr.mxu0 %v471
      %1143 = vmatpush2.msra.mxu0 %v470
      %1144 = vmatprep.subr.mxu0 %v467
      %1145 = vmatpush2.msra.mxu0 %v466
      %1146 = vmatprep.subr.mxu0 %v463
      %1147 = vmatpush2.msra.mxu0 %v462
      %1148 = vmatprep.subr.mxu0 %v459
      %1149 = vmatpush2.msra.mxu0 %v458
      %1150 = vmatprep.subr.mxu0 %v455
      %1151 = vmatpush2.msra.mxu0 %v454
      %1152 = vmatprep.subr.mxu0 %v451
      %1153 = vmatpush2.msra.mxu0 %v450
      %1154 = vmatprep.subr.mxu0 %v447
      %1155 = vmatpush2.msra.mxu0 %v446
      %1156 = vmatprep.subr.mxu0 %v443
      %1157 = vmatpush2.msra.mxu0 %v442
      %1158 = vmatprep.subr.mxu0 %v439
      %1159 = vmatpush2.msra.mxu0 %v438
      %1160 = vmatprep.subr.mxu0 %v435
      %1161 = vmatpush2.msra.mxu0 %v434
      %1162 = vmatprep.subr.mxu0 %v431
      %1163 = vmatpush2.msra.mxu0 %v430
      %1164 = vmatprep.subr.mxu0 %v427
      %1165 = vmatpush2.msra.mxu0 %v426
      %1166 = vmatprep.mubr.f32.mxu0 %v221
      %1167 = vmatmul.mubr.f32.gmra.mxu0 %v220
      %v1168 = vpop.f32.mrf.mxu0
      %v1169 = vadd.f32 %v1098, %v1168
      %v1170 = vpop.f32.mrf.mxu0
      %v1171 = vadd.f32 %v1100, %v1170
      %1172 = vdwg.mxu0
      %1173 = vmatprep.subr.mxu0 %v297
      %1174 = vmatpush1.msra.mxu0 %v296
      %1175 = vmatprep.subr.mxu0 %v293
      %1176 = vmatpush1.msra.mxu0 %v292
      %1177 = vmatprep.subr.mxu0 %v289
      %1178 = vmatpush1.msra.mxu0 %v288
      %1179 = vmatprep.subr.mxu0 %v285
      %1180 = vmatpush1.msra.mxu0 %v284
      %1181 = vmatprep.subr.mxu0 %v281
      %1182 = vmatpush1.msra.mxu0 %v280
      %1183 = vmatprep.subr.mxu0 %v277
      %1184 = vmatpush1.msra.mxu0 %v276
      %1185 = vmatprep.subr.mxu0 %v273
      %1186 = vmatpush1.msra.mxu0 %v272
      %1187 = vmatprep.subr.mxu0 %v269
      %1188 = vmatpush1.msra.mxu0 %v268
      %1189 = vmatprep.subr.mxu0 %v265
      %1190 = vmatpush1.msra.mxu0 %v264
      %1191 = vmatprep.subr.mxu0 %v261
      %1192 = vmatpush1.msra.mxu0 %v260
      %1193 = vmatprep.subr.mxu0 %v257
      %1194 = vmatpush1.msra.mxu0 %v256
      %1195 = vmatprep.subr.mxu0 %v253
      %1196 = vmatpush1.msra.mxu0 %v252
      %1197 = vmatprep.subr.mxu0 %v249
      %1198 = vmatpush1.msra.mxu0 %v248
      %1199 = vmatprep.subr.mxu0 %v245
      %1200 = vmatpush1.msra.mxu0 %v244
      %1201 = vmatprep.subr.mxu0 %v241
      %1202 = vmatpush1.msra.mxu0 %v240
      %1203 = vmatprep.subr.mxu0 %v237
      %1204 = vmatpush1.msra.mxu0 %v236
      %1205 = vmatprep.subr.mxu0 %v361
      %1206 = vmatpush2.msra.mxu0 %v360
      %1207 = vmatprep.subr.mxu0 %v357
      %1208 = vmatpush2.msra.mxu0 %v356
      %1209 = vmatprep.subr.mxu0 %v353
      %1210 = vmatpush2.msra.mxu0 %v352
      %1211 = vmatprep.subr.mxu0 %v349
      %1212 = vmatpush2.msra.mxu0 %v348
      %1213 = vmatprep.subr.mxu0 %v345
      %1214 = vmatpush2.msra.mxu0 %v344
      %1215 = vmatprep.subr.mxu0 %v341
      %1216 = vmatpush2.msra.mxu0 %v340
      %1217 = vmatprep.subr.mxu0 %v337
      %1218 = vmatpush2.msra.mxu0 %v336
      %1219 = vmatprep.subr.mxu0 %v333
      %1220 = vmatpush2.msra.mxu0 %v332
      %1221 = vmatprep.subr.mxu0 %v329
      %1222 = vmatpush2.msra.mxu0 %v328
      %1223 = vmatprep.subr.mxu0 %v325
      %1224 = vmatpush2.msra.mxu0 %v324
      %1225 = vmatprep.subr.mxu0 %v321
      %1226 = vmatpush2.msra.mxu0 %v320
      %1227 = vmatprep.subr.mxu0 %v317
      %1228 = vmatpush2.msra.mxu0 %v316
      %1229 = vmatprep.subr.mxu0 %v313
      %1230 = vmatpush2.msra.mxu0 %v312
      %1231 = vmatprep.subr.mxu0 %v309
      %1232 = vmatpush2.msra.mxu0 %v308
      %1233 = vmatprep.subr.mxu0 %v305
      %1234 = vmatpush2.msra.mxu0 %v304
      %1235 = vmatprep.subr.mxu0 %v301
      %1236 = vmatpush2.msra.mxu0 %v300
      %1237 = vmatprep.mubr.f32.mxu0 %v219
      %1238 = vmatmul.mubr.f32.gmra.mxu0 %v218
      %v1239 = vpop.f32.mrf.mxu0
      %v1240 = vadd.f32 %v1027, %v1239
      %v1241 = vpop.f32.mrf.mxu0
      %v1242 = vadd.f32 %v1029, %v1241
      %1243 = vdwg.mxu0
      %1244 = vmatprep.subr.mxu0 %v425
      %1245 = vmatpush1.msra.mxu0 %v424
      %1246 = vmatprep.subr.mxu0 %v421
      %1247 = vmatpush1.msra.mxu0 %v420
      %1248 = vmatprep.subr.mxu0 %v417
      %1249 = vmatpush1.msra.mxu0 %v416
      %1250 = vmatprep.subr.mxu0 %v413
      %1251 = vmatpush1.msra.mxu0 %v412
      %1252 = vmatprep.subr.mxu0 %v409
      %1253 = vmatpush1.msra.mxu0 %v408
      %1254 = vmatprep.subr.mxu0 %v405
      %1255 = vmatpush1.msra.mxu0 %v404
      %1256 = vmatprep.subr.mxu0 %v401
      %1257 = vmatpush1.msra.mxu0 %v400
      %1258 = vmatprep.subr.mxu0 %v397
      %1259 = vmatpush1.msra.mxu0 %v396
      %1260 = vmatprep.subr.mxu0 %v393
      %1261 = vmatpush1.msra.mxu0 %v392
      %1262 = vmatprep.subr.mxu0 %v389
      %1263 = vmatpush1.msra.mxu0 %v388
      %1264 = vmatprep.subr.mxu0 %v385
      %1265 = vmatpush1.msra.mxu0 %v384
      %1266 = vmatprep.subr.mxu0 %v381
      %1267 = vmatpush1.msra.mxu0 %v380
      %1268 = vmatprep.subr.mxu0 %v377
      %1269 = vmatpush1.msra.mxu0 %v376
      %1270 = vmatprep.subr.mxu0 %v373
      %1271 = vmatpush1.msra.mxu0 %v372
      %1272 = vmatprep.subr.mxu0 %v369
      %1273 = vmatpush1.msra.mxu0 %v368
      %1274 = vmatprep.subr.mxu0 %v365
      %1275 = vmatpush1.msra.mxu0 %v364
      %1276 = vmatprep.subr.mxu0 %v489
      %1277 = vmatpush2.msra.mxu0 %v488
      %1278 = vmatprep.subr.mxu0 %v485
      %1279 = vmatpush2.msra.mxu0 %v484
      %1280 = vmatprep.subr.mxu0 %v481
      %1281 = vmatpush2.msra.mxu0 %v480
      %1282 = vmatprep.subr.mxu0 %v477
      %1283 = vmatpush2.msra.mxu0 %v476
      %1284 = vmatprep.subr.mxu0 %v473
      %1285 = vmatpush2.msra.mxu0 %v472
      %1286 = vmatprep.subr.mxu0 %v469
      %1287 = vmatpush2.msra.mxu0 %v468
      %1288 = vmatprep.subr.mxu0 %v465
      %1289 = vmatpush2.msra.mxu0 %v464
      %1290 = vmatprep.subr.mxu0 %v461
      %1291 = vmatpush2.msra.mxu0 %v460
      %1292 = vmatprep.subr.mxu0 %v457
      %1293 = vmatpush2.msra.mxu0 %v456
      %1294 = vmatprep.subr.mxu0 %v453
      %1295 = vmatpush2.msra.mxu0 %v452
      %1296 = vmatprep.subr.mxu0 %v449
      %1297 = vmatpush2.msra.mxu0 %v448
      %1298 = vmatprep.subr.mxu0 %v445
      %1299 = vmatpush2.msra.mxu0 %v444
      %1300 = vmatprep.subr.mxu0 %v441
      %1301 = vmatpush2.msra.mxu0 %v440
      %1302 = vmatprep.subr.mxu0 %v437
      %1303 = vmatpush2.msra.mxu0 %v436
      %1304 = vmatprep.subr.mxu0 %v433
      %1305 = vmatpush2.msra.mxu0 %v432
      %1306 = vmatprep.subr.mxu0 %v429
      %1307 = vmatpush2.msra.mxu0 %v428
      %1308 = vmatprep.mubr.f32.mxu0 %v221
      %1309 = vmatmul.mubr.f32.gmra.mxu0 %v220
      %v1310 = vpop.f32.mrf.mxu0
      %v1311 = vadd.f32 %v1240, %v1310
      %v1312 = vpop.f32.mrf.mxu0
      %v1313 = vadd.f32 %v1242, %v1312
      %1314 = vdwg.mxu0
      %s1315 = scalar_lea.vmem %s2, 4096
      %v1316 = vld [vmem:[%s1315] sm:$0xff]
      %v1317 = vld [vmem:[%s1315 + $0x8] sm:$0xff]
      %v1318 = vld [vmem:[%s1315 + $0x10] sm:$0xff]
      %v1319 = vld [vmem:[%s1315 + $0x18] sm:$0xff]
      %v1320 = vld [vmem:[%s1315 + $0x20] sm:$0xff]
      %v1321 = vld [vmem:[%s1315 + $0x28] sm:$0xff]
      %v1322 = vld [vmem:[%s1315 + $0x30] sm:$0xff]
      %v1323 = vld [vmem:[%s1315 + $0x38] sm:$0xff]
      %v1324 = vld [vmem:[%s1315 + $0x40] sm:$0xff]
      %v1325 = vld [vmem:[%s1315 + $0x48] sm:$0xff]
      %v1326 = vld [vmem:[%s1315 + $0x50] sm:$0xff]
      %v1327 = vld [vmem:[%s1315 + $0x58] sm:$0xff]
      %v1328 = vld [vmem:[%s1315 + $0x60] sm:$0xff]
      %v1329 = vld [vmem:[%s1315 + $0x68] sm:$0xff]
      %v1330 = vld [vmem:[%s1315 + $0x70] sm:$0xff]
      %v1331 = vld [vmem:[%s1315 + $0x78] sm:$0xff]
      %v1332 = vld [vmem:[%s1315 + $0x80] sm:$0xff]
      %v1333 = vld [vmem:[%s1315 + $0x88] sm:$0xff]
      %v1334 = vld [vmem:[%s1315 + $0x90] sm:$0xff]
      %v1335 = vld [vmem:[%s1315 + $0x98] sm:$0xff]
      %v1336 = vld [vmem:[%s1315 + $0xa0] sm:$0xff]
      %v1337 = vld [vmem:[%s1315 + $0xa8] sm:$0xff]
      %v1338 = vld [vmem:[%s1315 + $0xb0] sm:$0xff]
      %v1339 = vld [vmem:[%s1315 + $0xb8] sm:$0xff]
      %v1340 = vld [vmem:[%s1315 + $0xc0] sm:$0xff]
      %v1341 = vld [vmem:[%s1315 + $0xc8] sm:$0xff]
      %v1342 = vld [vmem:[%s1315 + $0xd0] sm:$0xff]
      %v1343 = vld [vmem:[%s1315 + $0xd8] sm:$0xff]
      %v1344 = vld [vmem:[%s1315 + $0xe0] sm:$0xff]
      %v1345 = vld [vmem:[%s1315 + $0xe8] sm:$0xff]
      %v1346 = vld [vmem:[%s1315 + $0xf0] sm:$0xff]
      %v1347 = vld [vmem:[%s1315 + $0xf8] sm:$0xff]
      %v1348 = vld [vmem:[%s1315 + $0x100] sm:$0xff]
      %v1349 = vld [vmem:[%s1315 + $0x108] sm:$0xff]
      %v1350 = vld [vmem:[%s1315 + $0x110] sm:$0xff]
      %v1351 = vld [vmem:[%s1315 + $0x118] sm:$0xff]
      %v1352 = vld [vmem:[%s1315 + $0x120] sm:$0xff]
      %v1353 = vld [vmem:[%s1315 + $0x128] sm:$0xff]
      %v1354 = vld [vmem:[%s1315 + $0x130] sm:$0xff]
      %v1355 = vld [vmem:[%s1315 + $0x138] sm:$0xff]
      %v1356 = vld [vmem:[%s1315 + $0x140] sm:$0xff]
      %v1357 = vld [vmem:[%s1315 + $0x148] sm:$0xff]
      %v1358 = vld [vmem:[%s1315 + $0x150] sm:$0xff]
      %v1359 = vld [vmem:[%s1315 + $0x158] sm:$0xff]
      %v1360 = vld [vmem:[%s1315 + $0x160] sm:$0xff]
      %v1361 = vld [vmem:[%s1315 + $0x168] sm:$0xff]
      %v1362 = vld [vmem:[%s1315 + $0x170] sm:$0xff]
      %v1363 = vld [vmem:[%s1315 + $0x178] sm:$0xff]
      %v1364 = vld [vmem:[%s1315 + $0x180] sm:$0xff]
      %v1365 = vld [vmem:[%s1315 + $0x188] sm:$0xff]
      %v1366 = vld [vmem:[%s1315 + $0x190] sm:$0xff]
      %v1367 = vld [vmem:[%s1315 + $0x198] sm:$0xff]
      %v1368 = vld [vmem:[%s1315 + $0x1a0] sm:$0xff]
      %v1369 = vld [vmem:[%s1315 + $0x1a8] sm:$0xff]
      %v1370 = vld [vmem:[%s1315 + $0x1b0] sm:$0xff]
      %v1371 = vld [vmem:[%s1315 + $0x1b8] sm:$0xff]
      %v1372 = vld [vmem:[%s1315 + $0x1c0] sm:$0xff]
      %v1373 = vld [vmem:[%s1315 + $0x1c8] sm:$0xff]
      %v1374 = vld [vmem:[%s1315 + $0x1d0] sm:$0xff]
      %v1375 = vld [vmem:[%s1315 + $0x1d8] sm:$0xff]
      %v1376 = vld [vmem:[%s1315 + $0x1e0] sm:$0xff]
      %v1377 = vld [vmem:[%s1315 + $0x1e8] sm:$0xff]
      %v1378 = vld [vmem:[%s1315 + $0x1f0] sm:$0xff]
      %v1379 = vld [vmem:[%s1315 + $0x1f8] sm:$0xff]
      %v1380 = vld [vmem:[%s1315 + $0x200] sm:$0xff]
      %v1381 = vld [vmem:[%s1315 + $0x208] sm:$0xff]
      %v1382 = vld [vmem:[%s1315 + $0x210] sm:$0xff]
      %v1383 = vld [vmem:[%s1315 + $0x218] sm:$0xff]
      %v1384 = vld [vmem:[%s1315 + $0x220] sm:$0xff]
      %v1385 = vld [vmem:[%s1315 + $0x228] sm:$0xff]
      %v1386 = vld [vmem:[%s1315 + $0x230] sm:$0xff]
      %v1387 = vld [vmem:[%s1315 + $0x238] sm:$0xff]
      %v1388 = vld [vmem:[%s1315 + $0x240] sm:$0xff]
      %v1389 = vld [vmem:[%s1315 + $0x248] sm:$0xff]
      %v1390 = vld [vmem:[%s1315 + $0x250] sm:$0xff]
      %v1391 = vld [vmem:[%s1315 + $0x258] sm:$0xff]
      %v1392 = vld [vmem:[%s1315 + $0x260] sm:$0xff]
      %v1393 = vld [vmem:[%s1315 + $0x268] sm:$0xff]
      %v1394 = vld [vmem:[%s1315 + $0x270] sm:$0xff]
      %v1395 = vld [vmem:[%s1315 + $0x278] sm:$0xff]
      %v1396 = vld [vmem:[%s1315 + $0x280] sm:$0xff]
      %v1397 = vld [vmem:[%s1315 + $0x288] sm:$0xff]
      %v1398 = vld [vmem:[%s1315 + $0x290] sm:$0xff]
      %v1399 = vld [vmem:[%s1315 + $0x298] sm:$0xff]
      %v1400 = vld [vmem:[%s1315 + $0x2a0] sm:$0xff]
      %v1401 = vld [vmem:[%s1315 + $0x2a8] sm:$0xff]
      %v1402 = vld [vmem:[%s1315 + $0x2b0] sm:$0xff]
      %v1403 = vld [vmem:[%s1315 + $0x2b8] sm:$0xff]
      %v1404 = vld [vmem:[%s1315 + $0x2c0] sm:$0xff]
      %v1405 = vld [vmem:[%s1315 + $0x2c8] sm:$0xff]
      %v1406 = vld [vmem:[%s1315 + $0x2d0] sm:$0xff]
      %v1407 = vld [vmem:[%s1315 + $0x2d8] sm:$0xff]
      %v1408 = vld [vmem:[%s1315 + $0x2e0] sm:$0xff]
      %v1409 = vld [vmem:[%s1315 + $0x2e8] sm:$0xff]
      %v1410 = vld [vmem:[%s1315 + $0x2f0] sm:$0xff]
      %v1411 = vld [vmem:[%s1315 + $0x2f8] sm:$0xff]
      %v1412 = vld [vmem:[%s1315 + $0x300] sm:$0xff]
      %v1413 = vld [vmem:[%s1315 + $0x308] sm:$0xff]
      %v1414 = vld [vmem:[%s1315 + $0x310] sm:$0xff]
      %v1415 = vld [vmem:[%s1315 + $0x318] sm:$0xff]
      %v1416 = vld [vmem:[%s1315 + $0x320] sm:$0xff]
      %v1417 = vld [vmem:[%s1315 + $0x328] sm:$0xff]
      %v1418 = vld [vmem:[%s1315 + $0x330] sm:$0xff]
      %v1419 = vld [vmem:[%s1315 + $0x338] sm:$0xff]
      %v1420 = vld [vmem:[%s1315 + $0x340] sm:$0xff]
      %v1421 = vld [vmem:[%s1315 + $0x348] sm:$0xff]
      %v1422 = vld [vmem:[%s1315 + $0x350] sm:$0xff]
      %v1423 = vld [vmem:[%s1315 + $0x358] sm:$0xff]
      %v1424 = vld [vmem:[%s1315 + $0x360] sm:$0xff]
      %v1425 = vld [vmem:[%s1315 + $0x368] sm:$0xff]
      %v1426 = vld [vmem:[%s1315 + $0x370] sm:$0xff]
      %v1427 = vld [vmem:[%s1315 + $0x378] sm:$0xff]
      %v1428 = vld [vmem:[%s1315 + $0x380] sm:$0xff]
      %v1429 = vld [vmem:[%s1315 + $0x388] sm:$0xff]
      %v1430 = vld [vmem:[%s1315 + $0x390] sm:$0xff]
      %v1431 = vld [vmem:[%s1315 + $0x398] sm:$0xff]
      %v1432 = vld [vmem:[%s1315 + $0x3a0] sm:$0xff]
      %v1433 = vld [vmem:[%s1315 + $0x3a8] sm:$0xff]
      %v1434 = vld [vmem:[%s1315 + $0x3b0] sm:$0xff]
      %v1435 = vld [vmem:[%s1315 + $0x3b8] sm:$0xff]
      %v1436 = vld [vmem:[%s1315 + $0x3c0] sm:$0xff]
      %v1437 = vld [vmem:[%s1315 + $0x3c8] sm:$0xff]
      %v1438 = vld [vmem:[%s1315 + $0x3d0] sm:$0xff]
      %v1439 = vld [vmem:[%s1315 + $0x3d8] sm:$0xff]
      %v1440 = vld [vmem:[%s1315 + $0x3e0] sm:$0xff]
      %v1441 = vld [vmem:[%s1315 + $0x3e8] sm:$0xff]
      %v1442 = vld [vmem:[%s1315 + $0x3f0] sm:$0xff]
      %v1443 = vld [vmem:[%s1315 + $0x3f8] sm:$0xff]
      %v1444 = vld [vmem:[%s1315 + $0x400] sm:$0xff]
      %v1445 = vld [vmem:[%s1315 + $0x408] sm:$0xff]
      %v1446 = vld [vmem:[%s1315 + $0x410] sm:$0xff]
      %v1447 = vld [vmem:[%s1315 + $0x418] sm:$0xff]
      %v1448 = vld [vmem:[%s1315 + $0x420] sm:$0xff]
      %v1449 = vld [vmem:[%s1315 + $0x428] sm:$0xff]
      %v1450 = vld [vmem:[%s1315 + $0x430] sm:$0xff]
      %v1451 = vld [vmem:[%s1315 + $0x438] sm:$0xff]
      %v1452 = vld [vmem:[%s1315 + $0x440] sm:$0xff]
      %v1453 = vld [vmem:[%s1315 + $0x448] sm:$0xff]
      %v1454 = vld [vmem:[%s1315 + $0x450] sm:$0xff]
      %v1455 = vld [vmem:[%s1315 + $0x458] sm:$0xff]
      %v1456 = vld [vmem:[%s1315 + $0x460] sm:$0xff]
      %v1457 = vld [vmem:[%s1315 + $0x468] sm:$0xff]
      %v1458 = vld [vmem:[%s1315 + $0x470] sm:$0xff]
      %v1459 = vld [vmem:[%s1315 + $0x478] sm:$0xff]
      %v1460 = vld [vmem:[%s1315 + $0x480] sm:$0xff]
      %v1461 = vld [vmem:[%s1315 + $0x488] sm:$0xff]
      %v1462 = vld [vmem:[%s1315 + $0x490] sm:$0xff]
      %v1463 = vld [vmem:[%s1315 + $0x498] sm:$0xff]
      %v1464 = vld [vmem:[%s1315 + $0x4a0] sm:$0xff]
      %v1465 = vld [vmem:[%s1315 + $0x4a8] sm:$0xff]
      %v1466 = vld [vmem:[%s1315 + $0x4b0] sm:$0xff]
      %v1467 = vld [vmem:[%s1315 + $0x4b8] sm:$0xff]
      %v1468 = vld [vmem:[%s1315 + $0x4c0] sm:$0xff]
      %v1469 = vld [vmem:[%s1315 + $0x4c8] sm:$0xff]
      %v1470 = vld [vmem:[%s1315 + $0x4d0] sm:$0xff]
      %v1471 = vld [vmem:[%s1315 + $0x4d8] sm:$0xff]
      %v1472 = vld [vmem:[%s1315 + $0x4e0] sm:$0xff]
      %v1473 = vld [vmem:[%s1315 + $0x4e8] sm:$0xff]
      %v1474 = vld [vmem:[%s1315 + $0x4f0] sm:$0xff]
      %v1475 = vld [vmem:[%s1315 + $0x4f8] sm:$0xff]
      %v1476 = vld [vmem:[%s1315 + $0x500] sm:$0xff]
      %v1477 = vld [vmem:[%s1315 + $0x508] sm:$0xff]
      %v1478 = vld [vmem:[%s1315 + $0x510] sm:$0xff]
      %v1479 = vld [vmem:[%s1315 + $0x518] sm:$0xff]
      %v1480 = vld [vmem:[%s1315 + $0x520] sm:$0xff]
      %v1481 = vld [vmem:[%s1315 + $0x528] sm:$0xff]
      %v1482 = vld [vmem:[%s1315 + $0x530] sm:$0xff]
      %v1483 = vld [vmem:[%s1315 + $0x538] sm:$0xff]
      %v1484 = vld [vmem:[%s1315 + $0x540] sm:$0xff]
      %v1485 = vld [vmem:[%s1315 + $0x548] sm:$0xff]
      %v1486 = vld [vmem:[%s1315 + $0x550] sm:$0xff]
      %v1487 = vld [vmem:[%s1315 + $0x558] sm:$0xff]
      %v1488 = vld [vmem:[%s1315 + $0x560] sm:$0xff]
      %v1489 = vld [vmem:[%s1315 + $0x568] sm:$0xff]
      %v1490 = vld [vmem:[%s1315 + $0x570] sm:$0xff]
      %v1491 = vld [vmem:[%s1315 + $0x578] sm:$0xff]
      %v1492 = vld [vmem:[%s1315 + $0x580] sm:$0xff]
      %v1493 = vld [vmem:[%s1315 + $0x588] sm:$0xff]
      %v1494 = vld [vmem:[%s1315 + $0x590] sm:$0xff]
      %v1495 = vld [vmem:[%s1315 + $0x598] sm:$0xff]
      %v1496 = vld [vmem:[%s1315 + $0x5a0] sm:$0xff]
      %v1497 = vld [vmem:[%s1315 + $0x5a8] sm:$0xff]
      %v1498 = vld [vmem:[%s1315 + $0x5b0] sm:$0xff]
      %v1499 = vld [vmem:[%s1315 + $0x5b8] sm:$0xff]
      %v1500 = vld [vmem:[%s1315 + $0x5c0] sm:$0xff]
      %v1501 = vld [vmem:[%s1315 + $0x5c8] sm:$0xff]
      %v1502 = vld [vmem:[%s1315 + $0x5d0] sm:$0xff]
      %v1503 = vld [vmem:[%s1315 + $0x5d8] sm:$0xff]
      %v1504 = vld [vmem:[%s1315 + $0x5e0] sm:$0xff]
      %v1505 = vld [vmem:[%s1315 + $0x5e8] sm:$0xff]
      %v1506 = vld [vmem:[%s1315 + $0x5f0] sm:$0xff]
      %v1507 = vld [vmem:[%s1315 + $0x5f8] sm:$0xff]
      %v1508 = vld [vmem:[%s1315 + $0x600] sm:$0xff]
      %v1509 = vld [vmem:[%s1315 + $0x608] sm:$0xff]
      %v1510 = vld [vmem:[%s1315 + $0x610] sm:$0xff]
      %v1511 = vld [vmem:[%s1315 + $0x618] sm:$0xff]
      %v1512 = vld [vmem:[%s1315 + $0x620] sm:$0xff]
      %v1513 = vld [vmem:[%s1315 + $0x628] sm:$0xff]
      %v1514 = vld [vmem:[%s1315 + $0x630] sm:$0xff]
      %v1515 = vld [vmem:[%s1315 + $0x638] sm:$0xff]
      %v1516 = vld [vmem:[%s1315 + $0x640] sm:$0xff]
      %v1517 = vld [vmem:[%s1315 + $0x648] sm:$0xff]
      %v1518 = vld [vmem:[%s1315 + $0x650] sm:$0xff]
      %v1519 = vld [vmem:[%s1315 + $0x658] sm:$0xff]
      %v1520 = vld [vmem:[%s1315 + $0x660] sm:$0xff]
      %v1521 = vld [vmem:[%s1315 + $0x668] sm:$0xff]
      %v1522 = vld [vmem:[%s1315 + $0x670] sm:$0xff]
      %v1523 = vld [vmem:[%s1315 + $0x678] sm:$0xff]
      %v1524 = vld [vmem:[%s1315 + $0x680] sm:$0xff]
      %v1525 = vld [vmem:[%s1315 + $0x688] sm:$0xff]
      %v1526 = vld [vmem:[%s1315 + $0x690] sm:$0xff]
      %v1527 = vld [vmem:[%s1315 + $0x698] sm:$0xff]
      %v1528 = vld [vmem:[%s1315 + $0x6a0] sm:$0xff]
      %v1529 = vld [vmem:[%s1315 + $0x6a8] sm:$0xff]
      %v1530 = vld [vmem:[%s1315 + $0x6b0] sm:$0xff]
      %v1531 = vld [vmem:[%s1315 + $0x6b8] sm:$0xff]
      %v1532 = vld [vmem:[%s1315 + $0x6c0] sm:$0xff]
      %v1533 = vld [vmem:[%s1315 + $0x6c8] sm:$0xff]
      %v1534 = vld [vmem:[%s1315 + $0x6d0] sm:$0xff]
      %v1535 = vld [vmem:[%s1315 + $0x6d8] sm:$0xff]
      %v1536 = vld [vmem:[%s1315 + $0x6e0] sm:$0xff]
      %v1537 = vld [vmem:[%s1315 + $0x6e8] sm:$0xff]
      %v1538 = vld [vmem:[%s1315 + $0x6f0] sm:$0xff]
      %v1539 = vld [vmem:[%s1315 + $0x6f8] sm:$0xff]
      %v1540 = vld [vmem:[%s1315 + $0x700] sm:$0xff]
      %v1541 = vld [vmem:[%s1315 + $0x708] sm:$0xff]
      %v1542 = vld [vmem:[%s1315 + $0x710] sm:$0xff]
      %v1543 = vld [vmem:[%s1315 + $0x718] sm:$0xff]
      %v1544 = vld [vmem:[%s1315 + $0x720] sm:$0xff]
      %v1545 = vld [vmem:[%s1315 + $0x728] sm:$0xff]
      %v1546 = vld [vmem:[%s1315 + $0x730] sm:$0xff]
      %v1547 = vld [vmem:[%s1315 + $0x738] sm:$0xff]
      %v1548 = vld [vmem:[%s1315 + $0x740] sm:$0xff]
      %v1549 = vld [vmem:[%s1315 + $0x748] sm:$0xff]
      %v1550 = vld [vmem:[%s1315 + $0x750] sm:$0xff]
      %v1551 = vld [vmem:[%s1315 + $0x758] sm:$0xff]
      %v1552 = vld [vmem:[%s1315 + $0x760] sm:$0xff]
      %v1553 = vld [vmem:[%s1315 + $0x768] sm:$0xff]
      %v1554 = vld [vmem:[%s1315 + $0x770] sm:$0xff]
      %v1555 = vld [vmem:[%s1315 + $0x778] sm:$0xff]
      %v1556 = vld [vmem:[%s1315 + $0x780] sm:$0xff]
      %v1557 = vld [vmem:[%s1315 + $0x788] sm:$0xff]
      %v1558 = vld [vmem:[%s1315 + $0x790] sm:$0xff]
      %v1559 = vld [vmem:[%s1315 + $0x798] sm:$0xff]
      %v1560 = vld [vmem:[%s1315 + $0x7a0] sm:$0xff]
      %v1561 = vld [vmem:[%s1315 + $0x7a8] sm:$0xff]
      %v1562 = vld [vmem:[%s1315 + $0x7b0] sm:$0xff]
      %v1563 = vld [vmem:[%s1315 + $0x7b8] sm:$0xff]
      %v1564 = vld [vmem:[%s1315 + $0x7c0] sm:$0xff]
      %v1565 = vld [vmem:[%s1315 + $0x7c8] sm:$0xff]
      %v1566 = vld [vmem:[%s1315 + $0x7d0] sm:$0xff]
      %v1567 = vld [vmem:[%s1315 + $0x7d8] sm:$0xff]
      %v1568 = vld [vmem:[%s1315 + $0x7e0] sm:$0xff]
      %v1569 = vld [vmem:[%s1315 + $0x7e8] sm:$0xff]
      %v1570 = vld [vmem:[%s1315 + $0x7f0] sm:$0xff]
      %v1571 = vld [vmem:[%s1315 + $0x7f8] sm:$0xff]
      %v1576 = vrot.slane %v222, 1
      %v1577 = vrot.slane %v223, 1
      %v1578 = vrot.slane %v224, 1
      %v1579 = vrot.slane %v225, 1
      %1584 = vmatprep.subr.mxu0 %v1377
      %1585 = vmatpush1.msra.mxu0 %v1376
      %1586 = vmatprep.subr.mxu0 %v1373
      %1587 = vmatpush1.msra.mxu0 %v1372
      %1588 = vmatprep.subr.mxu0 %v1369
      %1589 = vmatpush1.msra.mxu0 %v1368
      %1590 = vmatprep.subr.mxu0 %v1365
      %1591 = vmatpush1.msra.mxu0 %v1364
      %1592 = vmatprep.subr.mxu0 %v1361
      %1593 = vmatpush1.msra.mxu0 %v1360
      %1594 = vmatprep.subr.mxu0 %v1357
      %1595 = vmatpush1.msra.mxu0 %v1356
      %1596 = vmatprep.subr.mxu0 %v1353
      %1597 = vmatpush1.msra.mxu0 %v1352
      %1598 = vmatprep.subr.mxu0 %v1349
      %1599 = vmatpush1.msra.mxu0 %v1348
      %1600 = vmatprep.subr.mxu0 %v1345
      %1601 = vmatpush1.msra.mxu0 %v1344
      %1602 = vmatprep.subr.mxu0 %v1341
      %1603 = vmatpush1.msra.mxu0 %v1340
      %1604 = vmatprep.subr.mxu0 %v1337
      %1605 = vmatpush1.msra.mxu0 %v1336
      %1606 = vmatprep.subr.mxu0 %v1333
      %1607 = vmatpush1.msra.mxu0 %v1332
      %1608 = vmatprep.subr.mxu0 %v1329
      %1609 = vmatpush1.msra.mxu0 %v1328
      %1610 = vmatprep.subr.mxu0 %v1325
      %1611 = vmatpush1.msra.mxu0 %v1324
      %1612 = vmatprep.subr.mxu0 %v1321
      %1613 = vmatpush1.msra.mxu0 %v1320
      %1614 = vmatprep.subr.mxu0 %v1317
      %1615 = vmatpush1.msra.mxu0 %v1316
      %1616 = vmatprep.subr.mxu0 %v1441
      %1617 = vmatpush2.msra.mxu0 %v1440
      %1618 = vmatprep.subr.mxu0 %v1437
      %1619 = vmatpush2.msra.mxu0 %v1436
      %1620 = vmatprep.subr.mxu0 %v1433
      %1621 = vmatpush2.msra.mxu0 %v1432
      %1622 = vmatprep.subr.mxu0 %v1429
      %1623 = vmatpush2.msra.mxu0 %v1428
      %1624 = vmatprep.subr.mxu0 %v1425
      %1625 = vmatpush2.msra.mxu0 %v1424
      %1626 = vmatprep.subr.mxu0 %v1421
      %1627 = vmatpush2.msra.mxu0 %v1420
      %1628 = vmatprep.subr.mxu0 %v1417
      %1629 = vmatpush2.msra.mxu0 %v1416
      %1630 = vmatprep.subr.mxu0 %v1413
      %1631 = vmatpush2.msra.mxu0 %v1412
      %1632 = vmatprep.subr.mxu0 %v1409
      %1633 = vmatpush2.msra.mxu0 %v1408
      %1634 = vmatprep.subr.mxu0 %v1405
      %1635 = vmatpush2.msra.mxu0 %v1404
      %1636 = vmatprep.subr.mxu0 %v1401
      %1637 = vmatpush2.msra.mxu0 %v1400
      %1638 = vmatprep.subr.mxu0 %v1397
      %1639 = vmatpush2.msra.mxu0 %v1396
      %1640 = vmatprep.subr.mxu0 %v1393
      %1641 = vmatpush2.msra.mxu0 %v1392
      %1642 = vmatprep.subr.mxu0 %v1389
      %1643 = vmatpush2.msra.mxu0 %v1388
      %1644 = vmatprep.subr.mxu0 %v1385
      %1645 = vmatpush2.msra.mxu0 %v1384
      %1646 = vmatprep.subr.mxu0 %v1381
      %1647 = vmatpush2.msra.mxu0 %v1380
      %1648 = vmatprep.mubr.f32.mxu0 %v1577
      %1649 = vmatmul.mubr.f32.gmra.mxu0 %v1576
      %v1650 = vpop.f32.mrf.mxu0
      %v1651 = vadd.f32 0.0, %v1650
      %v1652 = vpop.f32.mrf.mxu0
      %v1653 = vadd.f32 0.0, %v1652
      %1654 = vdwg.mxu0
      %1655 = vmatprep.subr.mxu0 %v1505
      %1656 = vmatpush1.msra.mxu0 %v1504
      %1657 = vmatprep.subr.mxu0 %v1501
      %1658 = vmatpush1.msra.mxu0 %v1500
      %1659 = vmatprep.subr.mxu0 %v1497
      %1660 = vmatpush1.msra.mxu0 %v1496
      %1661 = vmatprep.subr.mxu0 %v1493
      %1662 = vmatpush1.msra.mxu0 %v1492
      %1663 = vmatprep.subr.mxu0 %v1489
      %1664 = vmatpush1.msra.mxu0 %v1488
      %1665 = vmatprep.subr.mxu0 %v1485
      %1666 = vmatpush1.msra.mxu0 %v1484
      %1667 = vmatprep.subr.mxu0 %v1481
      %1668 = vmatpush1.msra.mxu0 %v1480
      %1669 = vmatprep.subr.mxu0 %v1477
      %1670 = vmatpush1.msra.mxu0 %v1476
      %1671 = vmatprep.subr.mxu0 %v1473
      %1672 = vmatpush1.msra.mxu0 %v1472
      %1673 = vmatprep.subr.mxu0 %v1469
      %1674 = vmatpush1.msra.mxu0 %v1468
      %1675 = vmatprep.subr.mxu0 %v1465
      %1676 = vmatpush1.msra.mxu0 %v1464
      %1677 = vmatprep.subr.mxu0 %v1461
      %1678 = vmatpush1.msra.mxu0 %v1460
      %1679 = vmatprep.subr.mxu0 %v1457
      %1680 = vmatpush1.msra.mxu0 %v1456
      %1681 = vmatprep.subr.mxu0 %v1453
      %1682 = vmatpush1.msra.mxu0 %v1452
      %1683 = vmatprep.subr.mxu0 %v1449
      %1684 = vmatpush1.msra.mxu0 %v1448
      %1685 = vmatprep.subr.mxu0 %v1445
      %1686 = vmatpush1.msra.mxu0 %v1444
      %1687 = vmatprep.subr.mxu0 %v1569
      %1688 = vmatpush2.msra.mxu0 %v1568
      %1689 = vmatprep.subr.mxu0 %v1565
      %1690 = vmatpush2.msra.mxu0 %v1564
      %1691 = vmatprep.subr.mxu0 %v1561
      %1692 = vmatpush2.msra.mxu0 %v1560
      %1693 = vmatprep.subr.mxu0 %v1557
      %1694 = vmatpush2.msra.mxu0 %v1556
      %1695 = vmatprep.subr.mxu0 %v1553
      %1696 = vmatpush2.msra.mxu0 %v1552
      %1697 = vmatprep.subr.mxu0 %v1549
      %1698 = vmatpush2.msra.mxu0 %v1548
      %1699 = vmatprep.subr.mxu0 %v1545
      %1700 = vmatpush2.msra.mxu0 %v1544
      %1701 = vmatprep.subr.mxu0 %v1541
      %1702 = vmatpush2.msra.mxu0 %v1540
      %1703 = vmatprep.subr.mxu0 %v1537
      %1704 = vmatpush2.msra.mxu0 %v1536
      %1705 = vmatprep.subr.mxu0 %v1533
      %1706 = vmatpush2.msra.mxu0 %v1532
      %1707 = vmatprep.subr.mxu0 %v1529
      %1708 = vmatpush2.msra.mxu0 %v1528
      %1709 = vmatprep.subr.mxu0 %v1525
      %1710 = vmatpush2.msra.mxu0 %v1524
      %1711 = vmatprep.subr.mxu0 %v1521
      %1712 = vmatpush2.msra.mxu0 %v1520
      %1713 = vmatprep.subr.mxu0 %v1517
      %1714 = vmatpush2.msra.mxu0 %v1516
      %1715 = vmatprep.subr.mxu0 %v1513
      %1716 = vmatpush2.msra.mxu0 %v1512
      %1717 = vmatprep.subr.mxu0 %v1509
      %1718 = vmatpush2.msra.mxu0 %v1508
      %1719 = vmatprep.mubr.f32.mxu0 %v1579
      %1720 = vmatmul.mubr.f32.gmra.mxu0 %v1578
      %v1721 = vpop.f32.mrf.mxu0
      %v1722 = vadd.f32 %v1651, %v1721
      %v1723 = vpop.f32.mrf.mxu0
      %v1724 = vadd.f32 %v1653, %v1723
      %1725 = vdwg.mxu0
      %1726 = vmatprep.subr.mxu0 %v1379
      %1727 = vmatpush1.msra.mxu0 %v1378
      %1728 = vmatprep.subr.mxu0 %v1375
      %1729 = vmatpush1.msra.mxu0 %v1374
      %1730 = vmatprep.subr.mxu0 %v1371
      %1731 = vmatpush1.msra.mxu0 %v1370
      %1732 = vmatprep.subr.mxu0 %v1367
      %1733 = vmatpush1.msra.mxu0 %v1366
      %1734 = vmatprep.subr.mxu0 %v1363
      %1735 = vmatpush1.msra.mxu0 %v1362
      %1736 = vmatprep.subr.mxu0 %v1359
      %1737 = vmatpush1.msra.mxu0 %v1358
      %1738 = vmatprep.subr.mxu0 %v1355
      %1739 = vmatpush1.msra.mxu0 %v1354
      %1740 = vmatprep.subr.mxu0 %v1351
      %1741 = vmatpush1.msra.mxu0 %v1350
      %1742 = vmatprep.subr.mxu0 %v1347
      %1743 = vmatpush1.msra.mxu0 %v1346
      %1744 = vmatprep.subr.mxu0 %v1343
      %1745 = vmatpush1.msra.mxu0 %v1342
      %1746 = vmatprep.subr.mxu0 %v1339
      %1747 = vmatpush1.msra.mxu0 %v1338
      %1748 = vmatprep.subr.mxu0 %v1335
      %1749 = vmatpush1.msra.mxu0 %v1334
      %1750 = vmatprep.subr.mxu0 %v1331
      %1751 = vmatpush1.msra.mxu0 %v1330
      %1752 = vmatprep.subr.mxu0 %v1327
      %1753 = vmatpush1.msra.mxu0 %v1326
      %1754 = vmatprep.subr.mxu0 %v1323
      %1755 = vmatpush1.msra.mxu0 %v1322
      %1756 = vmatprep.subr.mxu0 %v1319
      %1757 = vmatpush1.msra.mxu0 %v1318
      %1758 = vmatprep.subr.mxu0 %v1443
      %1759 = vmatpush2.msra.mxu0 %v1442
      %1760 = vmatprep.subr.mxu0 %v1439
      %1761 = vmatpush2.msra.mxu0 %v1438
      %1762 = vmatprep.subr.mxu0 %v1435
      %1763 = vmatpush2.msra.mxu0 %v1434
      %1764 = vmatprep.subr.mxu0 %v1431
      %1765 = vmatpush2.msra.mxu0 %v1430
      %1766 = vmatprep.subr.mxu0 %v1427
      %1767 = vmatpush2.msra.mxu0 %v1426
      %1768 = vmatprep.subr.mxu0 %v1423
      %1769 = vmatpush2.msra.mxu0 %v1422
      %1770 = vmatprep.subr.mxu0 %v1419
      %1771 = vmatpush2.msra.mxu0 %v1418
      %1772 = vmatprep.subr.mxu0 %v1415
      %1773 = vmatpush2.msra.mxu0 %v1414
      %1774 = vmatprep.subr.mxu0 %v1411
      %1775 = vmatpush2.msra.mxu0 %v1410
      %1776 = vmatprep.subr.mxu0 %v1407
      %1777 = vmatpush2.msra.mxu0 %v1406
      %1778 = vmatprep.subr.mxu0 %v1403
      %1779 = vmatpush2.msra.mxu0 %v1402
      %1780 = vmatprep.subr.mxu0 %v1399
      %1781 = vmatpush2.msra.mxu0 %v1398
      %1782 = vmatprep.subr.mxu0 %v1395
      %1783 = vmatpush2.msra.mxu0 %v1394
      %1784 = vmatprep.subr.mxu0 %v1391
      %1785 = vmatpush2.msra.mxu0 %v1390
      %1786 = vmatprep.subr.mxu0 %v1387
      %1787 = vmatpush2.msra.mxu0 %v1386
      %1788 = vmatprep.subr.mxu0 %v1383
      %1789 = vmatpush2.msra.mxu0 %v1382
      %1790 = vmatprep.mubr.f32.mxu0 %v1577
      %1791 = vmatmul.mubr.f32.gmra.mxu0 %v1576
      %v1792 = vpop.f32.mrf.mxu0
      %v1793 = vadd.f32 0.0, %v1792
      %v1794 = vpop.f32.mrf.mxu0
      %v1795 = vadd.f32 0.0, %v1794
      %1796 = vdwg.mxu0
      %1797 = vmatprep.subr.mxu0 %v1507
      %1798 = vmatpush1.msra.mxu0 %v1506
      %1799 = vmatprep.subr.mxu0 %v1503
      %1800 = vmatpush1.msra.mxu0 %v1502
      %1801 = vmatprep.subr.mxu0 %v1499
      %1802 = vmatpush1.msra.mxu0 %v1498
      %1803 = vmatprep.subr.mxu0 %v1495
      %1804 = vmatpush1.msra.mxu0 %v1494
      %1805 = vmatprep.subr.mxu0 %v1491
      %1806 = vmatpush1.msra.mxu0 %v1490
      %1807 = vmatprep.subr.mxu0 %v1487
      %1808 = vmatpush1.msra.mxu0 %v1486
      %1809 = vmatprep.subr.mxu0 %v1483
      %1810 = vmatpush1.msra.mxu0 %v1482
      %1811 = vmatprep.subr.mxu0 %v1479
      %1812 = vmatpush1.msra.mxu0 %v1478
      %1813 = vmatprep.subr.mxu0 %v1475
      %1814 = vmatpush1.msra.mxu0 %v1474
      %1815 = vmatprep.subr.mxu0 %v1471
      %1816 = vmatpush1.msra.mxu0 %v1470
      %1817 = vmatprep.subr.mxu0 %v1467
      %1818 = vmatpush1.msra.mxu0 %v1466
      %1819 = vmatprep.subr.mxu0 %v1463
      %1820 = vmatpush1.msra.mxu0 %v1462
      %1821 = vmatprep.subr.mxu0 %v1459
      %1822 = vmatpush1.msra.mxu0 %v1458
      %1823 = vmatprep.subr.mxu0 %v1455
      %1824 = vmatpush1.msra.mxu0 %v1454
      %1825 = vmatprep.subr.mxu0 %v1451
      %1826 = vmatpush1.msra.mxu0 %v1450
      %1827 = vmatprep.subr.mxu0 %v1447
      %1828 = vmatpush1.msra.mxu0 %v1446
      %1829 = vmatprep.subr.mxu0 %v1571
      %1830 = vmatpush2.msra.mxu0 %v1570
      %1831 = vmatprep.subr.mxu0 %v1567
      %1832 = vmatpush2.msra.mxu0 %v1566
      %1833 = vmatprep.subr.mxu0 %v1563
      %1834 = vmatpush2.msra.mxu0 %v1562
      %1835 = vmatprep.subr.mxu0 %v1559
      %1836 = vmatpush2.msra.mxu0 %v1558
      %1837 = vmatprep.subr.mxu0 %v1555
      %1838 = vmatpush2.msra.mxu0 %v1554
      %1839 = vmatprep.subr.mxu0 %v1551
      %1840 = vmatpush2.msra.mxu0 %v1550
      %1841 = vmatprep.subr.mxu0 %v1547
      %1842 = vmatpush2.msra.mxu0 %v1546
      %1843 = vmatprep.subr.mxu0 %v1543
      %1844 = vmatpush2.msra.mxu0 %v1542
      %1845 = vmatprep.subr.mxu0 %v1539
      %1846 = vmatpush2.msra.mxu0 %v1538
      %1847 = vmatprep.subr.mxu0 %v1535
      %1848 = vmatpush2.msra.mxu0 %v1534
      %1849 = vmatprep.subr.mxu0 %v1531
      %1850 = vmatpush2.msra.mxu0 %v1530
      %1851 = vmatprep.subr.mxu0 %v1527
      %1852 = vmatpush2.msra.mxu0 %v1526
      %1853 = vmatprep.subr.mxu0 %v1523
      %1854 = vmatpush2.msra.mxu0 %v1522
      %1855 = vmatprep.subr.mxu0 %v1519
      %1856 = vmatpush2.msra.mxu0 %v1518
      %1857 = vmatprep.subr.mxu0 %v1515
      %1858 = vmatpush2.msra.mxu0 %v1514
      %1859 = vmatprep.subr.mxu0 %v1511
      %1860 = vmatpush2.msra.mxu0 %v1510
      %1861 = vmatprep.mubr.f32.mxu0 %v1579
      %1862 = vmatmul.mubr.f32.gmra.mxu0 %v1578
      %v1863 = vpop.f32.mrf.mxu0
      %v1864 = vadd.f32 %v1793, %v1863
      %v1865 = vpop.f32.mrf.mxu0
      %v1866 = vadd.f32 %v1795, %v1865
      %1867 = vdwg.mxu0
      %v1868 = vadd.f32 %v1169, %v1722
      %v1869 = vadd.f32 %v1171, %v1724
      %v1870 = vadd.f32 %v1311, %v1864
      %v1871 = vadd.f32 %v1313, %v1866
      %s1872 = scalar_lea.vmem %s2, 6144
      %v1873 = vld [vmem:[%s1872] sm:$0xff]
      %v1874 = vld [vmem:[%s1872 + $0x8] sm:$0xff]
      %v1875 = vld [vmem:[%s1872 + $0x10] sm:$0xff]
      %v1876 = vld [vmem:[%s1872 + $0x18] sm:$0xff]
      %v1877 = vld [vmem:[%s1872 + $0x20] sm:$0xff]
      %v1878 = vld [vmem:[%s1872 + $0x28] sm:$0xff]
      %v1879 = vld [vmem:[%s1872 + $0x30] sm:$0xff]
      %v1880 = vld [vmem:[%s1872 + $0x38] sm:$0xff]
      %v1881 = vld [vmem:[%s1872 + $0x40] sm:$0xff]
      %v1882 = vld [vmem:[%s1872 + $0x48] sm:$0xff]
      %v1883 = vld [vmem:[%s1872 + $0x50] sm:$0xff]
      %v1884 = vld [vmem:[%s1872 + $0x58] sm:$0xff]
      %v1885 = vld [vmem:[%s1872 + $0x60] sm:$0xff]
      %v1886 = vld [vmem:[%s1872 + $0x68] sm:$0xff]
      %v1887 = vld [vmem:[%s1872 + $0x70] sm:$0xff]
      %v1888 = vld [vmem:[%s1872 + $0x78] sm:$0xff]
      %v1889 = vld [vmem:[%s1872 + $0x80] sm:$0xff]
      %v1890 = vld [vmem:[%s1872 + $0x88] sm:$0xff]
      %v1891 = vld [vmem:[%s1872 + $0x90] sm:$0xff]
      %v1892 = vld [vmem:[%s1872 + $0x98] sm:$0xff]
      %v1893 = vld [vmem:[%s1872 + $0xa0] sm:$0xff]
      %v1894 = vld [vmem:[%s1872 + $0xa8] sm:$0xff]
      %v1895 = vld [vmem:[%s1872 + $0xb0] sm:$0xff]
      %v1896 = vld [vmem:[%s1872 + $0xb8] sm:$0xff]
      %v1897 = vld [vmem:[%s1872 + $0xc0] sm:$0xff]
      %v1898 = vld [vmem:[%s1872 + $0xc8] sm:$0xff]
      %v1899 = vld [vmem:[%s1872 + $0xd0] sm:$0xff]
      %v1900 = vld [vmem:[%s1872 + $0xd8] sm:$0xff]
      %v1901 = vld [vmem:[%s1872 + $0xe0] sm:$0xff]
      %v1902 = vld [vmem:[%s1872 + $0xe8] sm:$0xff]
      %v1903 = vld [vmem:[%s1872 + $0xf0] sm:$0xff]
      %v1904 = vld [vmem:[%s1872 + $0xf8] sm:$0xff]
      %v1905 = vld [vmem:[%s1872 + $0x100] sm:$0xff]
      %v1906 = vld [vmem:[%s1872 + $0x108] sm:$0xff]
      %v1907 = vld [vmem:[%s1872 + $0x110] sm:$0xff]
      %v1908 = vld [vmem:[%s1872 + $0x118] sm:$0xff]
      %v1909 = vld [vmem:[%s1872 + $0x120] sm:$0xff]
      %v1910 = vld [vmem:[%s1872 + $0x128] sm:$0xff]
      %v1911 = vld [vmem:[%s1872 + $0x130] sm:$0xff]
      %v1912 = vld [vmem:[%s1872 + $0x138] sm:$0xff]
      %v1913 = vld [vmem:[%s1872 + $0x140] sm:$0xff]
      %v1914 = vld [vmem:[%s1872 + $0x148] sm:$0xff]
      %v1915 = vld [vmem:[%s1872 + $0x150] sm:$0xff]
      %v1916 = vld [vmem:[%s1872 + $0x158] sm:$0xff]
      %v1917 = vld [vmem:[%s1872 + $0x160] sm:$0xff]
      %v1918 = vld [vmem:[%s1872 + $0x168] sm:$0xff]
      %v1919 = vld [vmem:[%s1872 + $0x170] sm:$0xff]
      %v1920 = vld [vmem:[%s1872 + $0x178] sm:$0xff]
      %v1921 = vld [vmem:[%s1872 + $0x180] sm:$0xff]
      %v1922 = vld [vmem:[%s1872 + $0x188] sm:$0xff]
      %v1923 = vld [vmem:[%s1872 + $0x190] sm:$0xff]
      %v1924 = vld [vmem:[%s1872 + $0x198] sm:$0xff]
      %v1925 = vld [vmem:[%s1872 + $0x1a0] sm:$0xff]
      %v1926 = vld [vmem:[%s1872 + $0x1a8] sm:$0xff]
      %v1927 = vld [vmem:[%s1872 + $0x1b0] sm:$0xff]
      %v1928 = vld [vmem:[%s1872 + $0x1b8] sm:$0xff]
      %v1929 = vld [vmem:[%s1872 + $0x1c0] sm:$0xff]
      %v1930 = vld [vmem:[%s1872 + $0x1c8] sm:$0xff]
      %v1931 = vld [vmem:[%s1872 + $0x1d0] sm:$0xff]
      %v1932 = vld [vmem:[%s1872 + $0x1d8] sm:$0xff]
      %v1933 = vld [vmem:[%s1872 + $0x1e0] sm:$0xff]
      %v1934 = vld [vmem:[%s1872 + $0x1e8] sm:$0xff]
      %v1935 = vld [vmem:[%s1872 + $0x1f0] sm:$0xff]
      %v1936 = vld [vmem:[%s1872 + $0x1f8] sm:$0xff]
      %v1937 = vld [vmem:[%s1872 + $0x200] sm:$0xff]
      %v1938 = vld [vmem:[%s1872 + $0x208] sm:$0xff]
      %v1939 = vld [vmem:[%s1872 + $0x210] sm:$0xff]
      %v1940 = vld [vmem:[%s1872 + $0x218] sm:$0xff]
      %v1941 = vld [vmem:[%s1872 + $0x220] sm:$0xff]
      %v1942 = vld [vmem:[%s1872 + $0x228] sm:$0xff]
      %v1943 = vld [vmem:[%s1872 + $0x230] sm:$0xff]
      %v1944 = vld [vmem:[%s1872 + $0x238] sm:$0xff]
      %v1945 = vld [vmem:[%s1872 + $0x240] sm:$0xff]
      %v1946 = vld [vmem:[%s1872 + $0x248] sm:$0xff]
      %v1947 = vld [vmem:[%s1872 + $0x250] sm:$0xff]
      %v1948 = vld [vmem:[%s1872 + $0x258] sm:$0xff]
      %v1949 = vld [vmem:[%s1872 + $0x260] sm:$0xff]
      %v1950 = vld [vmem:[%s1872 + $0x268] sm:$0xff]
      %v1951 = vld [vmem:[%s1872 + $0x270] sm:$0xff]
      %v1952 = vld [vmem:[%s1872 + $0x278] sm:$0xff]
      %v1953 = vld [vmem:[%s1872 + $0x280] sm:$0xff]
      %v1954 = vld [vmem:[%s1872 + $0x288] sm:$0xff]
      %v1955 = vld [vmem:[%s1872 + $0x290] sm:$0xff]
      %v1956 = vld [vmem:[%s1872 + $0x298] sm:$0xff]
      %v1957 = vld [vmem:[%s1872 + $0x2a0] sm:$0xff]
      %v1958 = vld [vmem:[%s1872 + $0x2a8] sm:$0xff]
      %v1959 = vld [vmem:[%s1872 + $0x2b0] sm:$0xff]
      %v1960 = vld [vmem:[%s1872 + $0x2b8] sm:$0xff]
      %v1961 = vld [vmem:[%s1872 + $0x2c0] sm:$0xff]
      %v1962 = vld [vmem:[%s1872 + $0x2c8] sm:$0xff]
      %v1963 = vld [vmem:[%s1872 + $0x2d0] sm:$0xff]
      %v1964 = vld [vmem:[%s1872 + $0x2d8] sm:$0xff]
      %v1965 = vld [vmem:[%s1872 + $0x2e0] sm:$0xff]
      %v1966 = vld [vmem:[%s1872 + $0x2e8] sm:$0xff]
      %v1967 = vld [vmem:[%s1872 + $0x2f0] sm:$0xff]
      %v1968 = vld [vmem:[%s1872 + $0x2f8] sm:$0xff]
      %v1969 = vld [vmem:[%s1872 + $0x300] sm:$0xff]
      %v1970 = vld [vmem:[%s1872 + $0x308] sm:$0xff]
      %v1971 = vld [vmem:[%s1872 + $0x310] sm:$0xff]
      %v1972 = vld [vmem:[%s1872 + $0x318] sm:$0xff]
      %v1973 = vld [vmem:[%s1872 + $0x320] sm:$0xff]
      %v1974 = vld [vmem:[%s1872 + $0x328] sm:$0xff]
      %v1975 = vld [vmem:[%s1872 + $0x330] sm:$0xff]
      %v1976 = vld [vmem:[%s1872 + $0x338] sm:$0xff]
      %v1977 = vld [vmem:[%s1872 + $0x340] sm:$0xff]
      %v1978 = vld [vmem:[%s1872 + $0x348] sm:$0xff]
      %v1979 = vld [vmem:[%s1872 + $0x350] sm:$0xff]
      %v1980 = vld [vmem:[%s1872 + $0x358] sm:$0xff]
      %v1981 = vld [vmem:[%s1872 + $0x360] sm:$0xff]
      %v1982 = vld [vmem:[%s1872 + $0x368] sm:$0xff]
      %v1983 = vld [vmem:[%s1872 + $0x370] sm:$0xff]
      %v1984 = vld [vmem:[%s1872 + $0x378] sm:$0xff]
      %v1985 = vld [vmem:[%s1872 + $0x380] sm:$0xff]
      %v1986 = vld [vmem:[%s1872 + $0x388] sm:$0xff]
      %v1987 = vld [vmem:[%s1872 + $0x390] sm:$0xff]
      %v1988 = vld [vmem:[%s1872 + $0x398] sm:$0xff]
      %v1989 = vld [vmem:[%s1872 + $0x3a0] sm:$0xff]
      %v1990 = vld [vmem:[%s1872 + $0x3a8] sm:$0xff]
      %v1991 = vld [vmem:[%s1872 + $0x3b0] sm:$0xff]
      %v1992 = vld [vmem:[%s1872 + $0x3b8] sm:$0xff]
      %v1993 = vld [vmem:[%s1872 + $0x3c0] sm:$0xff]
      %v1994 = vld [vmem:[%s1872 + $0x3c8] sm:$0xff]
      %v1995 = vld [vmem:[%s1872 + $0x3d0] sm:$0xff]
      %v1996 = vld [vmem:[%s1872 + $0x3d8] sm:$0xff]
      %v1997 = vld [vmem:[%s1872 + $0x3e0] sm:$0xff]
      %v1998 = vld [vmem:[%s1872 + $0x3e8] sm:$0xff]
      %v1999 = vld [vmem:[%s1872 + $0x3f0] sm:$0xff]
      %v2000 = vld [vmem:[%s1872 + $0x3f8] sm:$0xff]
      %v2001 = vld [vmem:[%s1872 + $0x400] sm:$0xff]
      %v2002 = vld [vmem:[%s1872 + $0x408] sm:$0xff]
      %v2003 = vld [vmem:[%s1872 + $0x410] sm:$0xff]
      %v2004 = vld [vmem:[%s1872 + $0x418] sm:$0xff]
      %v2005 = vld [vmem:[%s1872 + $0x420] sm:$0xff]
      %v2006 = vld [vmem:[%s1872 + $0x428] sm:$0xff]
      %v2007 = vld [vmem:[%s1872 + $0x430] sm:$0xff]
      %v2008 = vld [vmem:[%s1872 + $0x438] sm:$0xff]
      %v2009 = vld [vmem:[%s1872 + $0x440] sm:$0xff]
      %v2010 = vld [vmem:[%s1872 + $0x448] sm:$0xff]
      %v2011 = vld [vmem:[%s1872 + $0x450] sm:$0xff]
      %v2012 = vld [vmem:[%s1872 + $0x458] sm:$0xff]
      %v2013 = vld [vmem:[%s1872 + $0x460] sm:$0xff]
      %v2014 = vld [vmem:[%s1872 + $0x468] sm:$0xff]
      %v2015 = vld [vmem:[%s1872 + $0x470] sm:$0xff]
      %v2016 = vld [vmem:[%s1872 + $0x478] sm:$0xff]
      %v2017 = vld [vmem:[%s1872 + $0x480] sm:$0xff]
      %v2018 = vld [vmem:[%s1872 + $0x488] sm:$0xff]
      %v2019 = vld [vmem:[%s1872 + $0x490] sm:$0xff]
      %v2020 = vld [vmem:[%s1872 + $0x498] sm:$0xff]
      %v2021 = vld [vmem:[%s1872 + $0x4a0] sm:$0xff]
      %v2022 = vld [vmem:[%s1872 + $0x4a8] sm:$0xff]
      %v2023 = vld [vmem:[%s1872 + $0x4b0] sm:$0xff]
      %v2024 = vld [vmem:[%s1872 + $0x4b8] sm:$0xff]
      %v2025 = vld [vmem:[%s1872 + $0x4c0] sm:$0xff]
      %v2026 = vld [vmem:[%s1872 + $0x4c8] sm:$0xff]
      %v2027 = vld [vmem:[%s1872 + $0x4d0] sm:$0xff]
      %v2028 = vld [vmem:[%s1872 + $0x4d8] sm:$0xff]
      %v2029 = vld [vmem:[%s1872 + $0x4e0] sm:$0xff]
      %v2030 = vld [vmem:[%s1872 + $0x4e8] sm:$0xff]
      %v2031 = vld [vmem:[%s1872 + $0x4f0] sm:$0xff]
      %v2032 = vld [vmem:[%s1872 + $0x4f8] sm:$0xff]
      %v2033 = vld [vmem:[%s1872 + $0x500] sm:$0xff]
      %v2034 = vld [vmem:[%s1872 + $0x508] sm:$0xff]
      %v2035 = vld [vmem:[%s1872 + $0x510] sm:$0xff]
      %v2036 = vld [vmem:[%s1872 + $0x518] sm:$0xff]
      %v2037 = vld [vmem:[%s1872 + $0x520] sm:$0xff]
      %v2038 = vld [vmem:[%s1872 + $0x528] sm:$0xff]
      %v2039 = vld [vmem:[%s1872 + $0x530] sm:$0xff]
      %v2040 = vld [vmem:[%s1872 + $0x538] sm:$0xff]
      %v2041 = vld [vmem:[%s1872 + $0x540] sm:$0xff]
      %v2042 = vld [vmem:[%s1872 + $0x548] sm:$0xff]
      %v2043 = vld [vmem:[%s1872 + $0x550] sm:$0xff]
      %v2044 = vld [vmem:[%s1872 + $0x558] sm:$0xff]
      %v2045 = vld [vmem:[%s1872 + $0x560] sm:$0xff]
      %v2046 = vld [vmem:[%s1872 + $0x568] sm:$0xff]
      %v2047 = vld [vmem:[%s1872 + $0x570] sm:$0xff]
      %v2048 = vld [vmem:[%s1872 + $0x578] sm:$0xff]
      %v2049 = vld [vmem:[%s1872 + $0x580] sm:$0xff]
      %v2050 = vld [vmem:[%s1872 + $0x588] sm:$0xff]
      %v2051 = vld [vmem:[%s1872 + $0x590] sm:$0xff]
      %v2052 = vld [vmem:[%s1872 + $0x598] sm:$0xff]
      %v2053 = vld [vmem:[%s1872 + $0x5a0] sm:$0xff]
      %v2054 = vld [vmem:[%s1872 + $0x5a8] sm:$0xff]
      %v2055 = vld [vmem:[%s1872 + $0x5b0] sm:$0xff]
      %v2056 = vld [vmem:[%s1872 + $0x5b8] sm:$0xff]
      %v2057 = vld [vmem:[%s1872 + $0x5c0] sm:$0xff]
      %v2058 = vld [vmem:[%s1872 + $0x5c8] sm:$0xff]
      %v2059 = vld [vmem:[%s1872 + $0x5d0] sm:$0xff]
      %v2060 = vld [vmem:[%s1872 + $0x5d8] sm:$0xff]
      %v2061 = vld [vmem:[%s1872 + $0x5e0] sm:$0xff]
      %v2062 = vld [vmem:[%s1872 + $0x5e8] sm:$0xff]
      %v2063 = vld [vmem:[%s1872 + $0x5f0] sm:$0xff]
      %v2064 = vld [vmem:[%s1872 + $0x5f8] sm:$0xff]
      %v2065 = vld [vmem:[%s1872 + $0x600] sm:$0xff]
      %v2066 = vld [vmem:[%s1872 + $0x608] sm:$0xff]
      %v2067 = vld [vmem:[%s1872 + $0x610] sm:$0xff]
      %v2068 = vld [vmem:[%s1872 + $0x618] sm:$0xff]
      %v2069 = vld [vmem:[%s1872 + $0x620] sm:$0xff]
      %v2070 = vld [vmem:[%s1872 + $0x628] sm:$0xff]
      %v2071 = vld [vmem:[%s1872 + $0x630] sm:$0xff]
      %v2072 = vld [vmem:[%s1872 + $0x638] sm:$0xff]
      %v2073 = vld [vmem:[%s1872 + $0x640] sm:$0xff]
      %v2074 = vld [vmem:[%s1872 + $0x648] sm:$0xff]
      %v2075 = vld [vmem:[%s1872 + $0x650] sm:$0xff]
      %v2076 = vld [vmem:[%s1872 + $0x658] sm:$0xff]
      %v2077 = vld [vmem:[%s1872 + $0x660] sm:$0xff]
      %v2078 = vld [vmem:[%s1872 + $0x668] sm:$0xff]
      %v2079 = vld [vmem:[%s1872 + $0x670] sm:$0xff]
      %v2080 = vld [vmem:[%s1872 + $0x678] sm:$0xff]
      %v2081 = vld [vmem:[%s1872 + $0x680] sm:$0xff]
      %v2082 = vld [vmem:[%s1872 + $0x688] sm:$0xff]
      %v2083 = vld [vmem:[%s1872 + $0x690] sm:$0xff]
      %v2084 = vld [vmem:[%s1872 + $0x698] sm:$0xff]
      %v2085 = vld [vmem:[%s1872 + $0x6a0] sm:$0xff]
      %v2086 = vld [vmem:[%s1872 + $0x6a8] sm:$0xff]
      %v2087 = vld [vmem:[%s1872 + $0x6b0] sm:$0xff]
      %v2088 = vld [vmem:[%s1872 + $0x6b8] sm:$0xff]
      %v2089 = vld [vmem:[%s1872 + $0x6c0] sm:$0xff]
      %v2090 = vld [vmem:[%s1872 + $0x6c8] sm:$0xff]
      %v2091 = vld [vmem:[%s1872 + $0x6d0] sm:$0xff]
      %v2092 = vld [vmem:[%s1872 + $0x6d8] sm:$0xff]
      %v2093 = vld [vmem:[%s1872 + $0x6e0] sm:$0xff]
      %v2094 = vld [vmem:[%s1872 + $0x6e8] sm:$0xff]
      %v2095 = vld [vmem:[%s1872 + $0x6f0] sm:$0xff]
      %v2096 = vld [vmem:[%s1872 + $0x6f8] sm:$0xff]
      %v2097 = vld [vmem:[%s1872 + $0x700] sm:$0xff]
      %v2098 = vld [vmem:[%s1872 + $0x708] sm:$0xff]
      %v2099 = vld [vmem:[%s1872 + $0x710] sm:$0xff]
      %v2100 = vld [vmem:[%s1872 + $0x718] sm:$0xff]
      %v2101 = vld [vmem:[%s1872 + $0x720] sm:$0xff]
      %v2102 = vld [vmem:[%s1872 + $0x728] sm:$0xff]
      %v2103 = vld [vmem:[%s1872 + $0x730] sm:$0xff]
      %v2104 = vld [vmem:[%s1872 + $0x738] sm:$0xff]
      %v2105 = vld [vmem:[%s1872 + $0x740] sm:$0xff]
      %v2106 = vld [vmem:[%s1872 + $0x748] sm:$0xff]
      %v2107 = vld [vmem:[%s1872 + $0x750] sm:$0xff]
      %v2108 = vld [vmem:[%s1872 + $0x758] sm:$0xff]
      %v2109 = vld [vmem:[%s1872 + $0x760] sm:$0xff]
      %v2110 = vld [vmem:[%s1872 + $0x768] sm:$0xff]
      %v2111 = vld [vmem:[%s1872 + $0x770] sm:$0xff]
      %v2112 = vld [vmem:[%s1872 + $0x778] sm:$0xff]
      %v2113 = vld [vmem:[%s1872 + $0x780] sm:$0xff]
      %v2114 = vld [vmem:[%s1872 + $0x788] sm:$0xff]
      %v2115 = vld [vmem:[%s1872 + $0x790] sm:$0xff]
      %v2116 = vld [vmem:[%s1872 + $0x798] sm:$0xff]
      %v2117 = vld [vmem:[%s1872 + $0x7a0] sm:$0xff]
      %v2118 = vld [vmem:[%s1872 + $0x7a8] sm:$0xff]
      %v2119 = vld [vmem:[%s1872 + $0x7b0] sm:$0xff]
      %v2120 = vld [vmem:[%s1872 + $0x7b8] sm:$0xff]
      %v2121 = vld [vmem:[%s1872 + $0x7c0] sm:$0xff]
      %v2122 = vld [vmem:[%s1872 + $0x7c8] sm:$0xff]
      %v2123 = vld [vmem:[%s1872 + $0x7d0] sm:$0xff]
      %v2124 = vld [vmem:[%s1872 + $0x7d8] sm:$0xff]
      %v2125 = vld [vmem:[%s1872 + $0x7e0] sm:$0xff]
      %v2126 = vld [vmem:[%s1872 + $0x7e8] sm:$0xff]
      %v2127 = vld [vmem:[%s1872 + $0x7f0] sm:$0xff]
      %v2128 = vld [vmem:[%s1872 + $0x7f8] sm:$0xff]
      %s2129 = scalar_lea.vmem %s2, 8192
      %v2130 = vld [vmem:[%s2129] sm:$0xff]
      %v2131 = vld [vmem:[%s2129 + $0x8] sm:$0xff]
      %v2132 = vld [vmem:[%s2129 + $0x10] sm:$0xff]
      %v2133 = vld [vmem:[%s2129 + $0x18] sm:$0xff]
      %v2134 = vld [vmem:[%s2129 + $0x20] sm:$0xff]
      %v2135 = vld [vmem:[%s2129 + $0x28] sm:$0xff]
      %v2136 = vld [vmem:[%s2129 + $0x30] sm:$0xff]
      %v2137 = vld [vmem:[%s2129 + $0x38] sm:$0xff]
      %v2138 = vld [vmem:[%s2129 + $0x40] sm:$0xff]
      %v2139 = vld [vmem:[%s2129 + $0x48] sm:$0xff]
      %v2140 = vld [vmem:[%s2129 + $0x50] sm:$0xff]
      %v2141 = vld [vmem:[%s2129 + $0x58] sm:$0xff]
      %v2142 = vld [vmem:[%s2129 + $0x60] sm:$0xff]
      %v2143 = vld [vmem:[%s2129 + $0x68] sm:$0xff]
      %v2144 = vld [vmem:[%s2129 + $0x70] sm:$0xff]
      %v2145 = vld [vmem:[%s2129 + $0x78] sm:$0xff]
      %v2146 = vld [vmem:[%s2129 + $0x80] sm:$0xff]
      %v2147 = vld [vmem:[%s2129 + $0x88] sm:$0xff]
      %v2148 = vld [vmem:[%s2129 + $0x90] sm:$0xff]
      %v2149 = vld [vmem:[%s2129 + $0x98] sm:$0xff]
      %v2150 = vld [vmem:[%s2129 + $0xa0] sm:$0xff]
      %v2151 = vld [vmem:[%s2129 + $0xa8] sm:$0xff]
      %v2152 = vld [vmem:[%s2129 + $0xb0] sm:$0xff]
      %v2153 = vld [vmem:[%s2129 + $0xb8] sm:$0xff]
      %v2154 = vld [vmem:[%s2129 + $0xc0] sm:$0xff]
      %v2155 = vld [vmem:[%s2129 + $0xc8] sm:$0xff]
      %v2156 = vld [vmem:[%s2129 + $0xd0] sm:$0xff]
      %v2157 = vld [vmem:[%s2129 + $0xd8] sm:$0xff]
      %v2158 = vld [vmem:[%s2129 + $0xe0] sm:$0xff]
      %v2159 = vld [vmem:[%s2129 + $0xe8] sm:$0xff]
      %v2160 = vld [vmem:[%s2129 + $0xf0] sm:$0xff]
      %v2161 = vld [vmem:[%s2129 + $0xf8] sm:$0xff]
      %v2162 = vld [vmem:[%s2129 + $0x100] sm:$0xff]
      %v2163 = vld [vmem:[%s2129 + $0x108] sm:$0xff]
      %v2164 = vld [vmem:[%s2129 + $0x110] sm:$0xff]
      %v2165 = vld [vmem:[%s2129 + $0x118] sm:$0xff]
      %v2166 = vld [vmem:[%s2129 + $0x120] sm:$0xff]
      %v2167 = vld [vmem:[%s2129 + $0x128] sm:$0xff]
      %v2168 = vld [vmem:[%s2129 + $0x130] sm:$0xff]
      %v2169 = vld [vmem:[%s2129 + $0x138] sm:$0xff]
      %v2170 = vld [vmem:[%s2129 + $0x140] sm:$0xff]
      %v2171 = vld [vmem:[%s2129 + $0x148] sm:$0xff]
      %v2172 = vld [vmem:[%s2129 + $0x150] sm:$0xff]
      %v2173 = vld [vmem:[%s2129 + $0x158] sm:$0xff]
      %v2174 = vld [vmem:[%s2129 + $0x160] sm:$0xff]
      %v2175 = vld [vmem:[%s2129 + $0x168] sm:$0xff]
      %v2176 = vld [vmem:[%s2129 + $0x170] sm:$0xff]
      %v2177 = vld [vmem:[%s2129 + $0x178] sm:$0xff]
      %v2178 = vld [vmem:[%s2129 + $0x180] sm:$0xff]
      %v2179 = vld [vmem:[%s2129 + $0x188] sm:$0xff]
      %v2180 = vld [vmem:[%s2129 + $0x190] sm:$0xff]
      %v2181 = vld [vmem:[%s2129 + $0x198] sm:$0xff]
      %v2182 = vld [vmem:[%s2129 + $0x1a0] sm:$0xff]
      %v2183 = vld [vmem:[%s2129 + $0x1a8] sm:$0xff]
      %v2184 = vld [vmem:[%s2129 + $0x1b0] sm:$0xff]
      %v2185 = vld [vmem:[%s2129 + $0x1b8] sm:$0xff]
      %v2186 = vld [vmem:[%s2129 + $0x1c0] sm:$0xff]
      %v2187 = vld [vmem:[%s2129 + $0x1c8] sm:$0xff]
      %v2188 = vld [vmem:[%s2129 + $0x1d0] sm:$0xff]
      %v2189 = vld [vmem:[%s2129 + $0x1d8] sm:$0xff]
      %v2190 = vld [vmem:[%s2129 + $0x1e0] sm:$0xff]
      %v2191 = vld [vmem:[%s2129 + $0x1e8] sm:$0xff]
      %v2192 = vld [vmem:[%s2129 + $0x1f0] sm:$0xff]
      %v2193 = vld [vmem:[%s2129 + $0x1f8] sm:$0xff]
      %v2194 = vld [vmem:[%s2129 + $0x200] sm:$0xff]
      %v2195 = vld [vmem:[%s2129 + $0x208] sm:$0xff]
      %v2196 = vld [vmem:[%s2129 + $0x210] sm:$0xff]
      %v2197 = vld [vmem:[%s2129 + $0x218] sm:$0xff]
      %v2198 = vld [vmem:[%s2129 + $0x220] sm:$0xff]
      %v2199 = vld [vmem:[%s2129 + $0x228] sm:$0xff]
      %v2200 = vld [vmem:[%s2129 + $0x230] sm:$0xff]
      %v2201 = vld [vmem:[%s2129 + $0x238] sm:$0xff]
      %v2202 = vld [vmem:[%s2129 + $0x240] sm:$0xff]
      %v2203 = vld [vmem:[%s2129 + $0x248] sm:$0xff]
      %v2204 = vld [vmem:[%s2129 + $0x250] sm:$0xff]
      %v2205 = vld [vmem:[%s2129 + $0x258] sm:$0xff]
      %v2206 = vld [vmem:[%s2129 + $0x260] sm:$0xff]
      %v2207 = vld [vmem:[%s2129 + $0x268] sm:$0xff]
      %v2208 = vld [vmem:[%s2129 + $0x270] sm:$0xff]
      %v2209 = vld [vmem:[%s2129 + $0x278] sm:$0xff]
      %v2210 = vld [vmem:[%s2129 + $0x280] sm:$0xff]
      %v2211 = vld [vmem:[%s2129 + $0x288] sm:$0xff]
      %v2212 = vld [vmem:[%s2129 + $0x290] sm:$0xff]
      %v2213 = vld [vmem:[%s2129 + $0x298] sm:$0xff]
      %v2214 = vld [vmem:[%s2129 + $0x2a0] sm:$0xff]
      %v2215 = vld [vmem:[%s2129 + $0x2a8] sm:$0xff]
      %v2216 = vld [vmem:[%s2129 + $0x2b0] sm:$0xff]
      %v2217 = vld [vmem:[%s2129 + $0x2b8] sm:$0xff]
      %v2218 = vld [vmem:[%s2129 + $0x2c0] sm:$0xff]
      %v2219 = vld [vmem:[%s2129 + $0x2c8] sm:$0xff]
      %v2220 = vld [vmem:[%s2129 + $0x2d0] sm:$0xff]
      %v2221 = vld [vmem:[%s2129 + $0x2d8] sm:$0xff]
      %v2222 = vld [vmem:[%s2129 + $0x2e0] sm:$0xff]
      %v2223 = vld [vmem:[%s2129 + $0x2e8] sm:$0xff]
      %v2224 = vld [vmem:[%s2129 + $0x2f0] sm:$0xff]
      %v2225 = vld [vmem:[%s2129 + $0x2f8] sm:$0xff]
      %v2226 = vld [vmem:[%s2129 + $0x300] sm:$0xff]
      %v2227 = vld [vmem:[%s2129 + $0x308] sm:$0xff]
      %v2228 = vld [vmem:[%s2129 + $0x310] sm:$0xff]
      %v2229 = vld [vmem:[%s2129 + $0x318] sm:$0xff]
      %v2230 = vld [vmem:[%s2129 + $0x320] sm:$0xff]
      %v2231 = vld [vmem:[%s2129 + $0x328] sm:$0xff]
      %v2232 = vld [vmem:[%s2129 + $0x330] sm:$0xff]
      %v2233 = vld [vmem:[%s2129 + $0x338] sm:$0xff]
      %v2234 = vld [vmem:[%s2129 + $0x340] sm:$0xff]
      %v2235 = vld [vmem:[%s2129 + $0x348] sm:$0xff]
      %v2236 = vld [vmem:[%s2129 + $0x350] sm:$0xff]
      %v2237 = vld [vmem:[%s2129 + $0x358] sm:$0xff]
      %v2238 = vld [vmem:[%s2129 + $0x360] sm:$0xff]
      %v2239 = vld [vmem:[%s2129 + $0x368] sm:$0xff]
      %v2240 = vld [vmem:[%s2129 + $0x370] sm:$0xff]
      %v2241 = vld [vmem:[%s2129 + $0x378] sm:$0xff]
      %v2242 = vld [vmem:[%s2129 + $0x380] sm:$0xff]
      %v2243 = vld [vmem:[%s2129 + $0x388] sm:$0xff]
      %v2244 = vld [vmem:[%s2129 + $0x390] sm:$0xff]
      %v2245 = vld [vmem:[%s2129 + $0x398] sm:$0xff]
      %v2246 = vld [vmem:[%s2129 + $0x3a0] sm:$0xff]
      %v2247 = vld [vmem:[%s2129 + $0x3a8] sm:$0xff]
      %v2248 = vld [vmem:[%s2129 + $0x3b0] sm:$0xff]
      %v2249 = vld [vmem:[%s2129 + $0x3b8] sm:$0xff]
      %v2250 = vld [vmem:[%s2129 + $0x3c0] sm:$0xff]
      %v2251 = vld [vmem:[%s2129 + $0x3c8] sm:$0xff]
      %v2252 = vld [vmem:[%s2129 + $0x3d0] sm:$0xff]
      %v2253 = vld [vmem:[%s2129 + $0x3d8] sm:$0xff]
      %v2254 = vld [vmem:[%s2129 + $0x3e0] sm:$0xff]
      %v2255 = vld [vmem:[%s2129 + $0x3e8] sm:$0xff]
      %v2256 = vld [vmem:[%s2129 + $0x3f0] sm:$0xff]
      %v2257 = vld [vmem:[%s2129 + $0x3f8] sm:$0xff]
      %v2258 = vld [vmem:[%s2129 + $0x400] sm:$0xff]
      %v2259 = vld [vmem:[%s2129 + $0x408] sm:$0xff]
      %v2260 = vld [vmem:[%s2129 + $0x410] sm:$0xff]
      %v2261 = vld [vmem:[%s2129 + $0x418] sm:$0xff]
      %v2262 = vld [vmem:[%s2129 + $0x420] sm:$0xff]
      %v2263 = vld [vmem:[%s2129 + $0x428] sm:$0xff]
      %v2264 = vld [vmem:[%s2129 + $0x430] sm:$0xff]
      %v2265 = vld [vmem:[%s2129 + $0x438] sm:$0xff]
      %v2266 = vld [vmem:[%s2129 + $0x440] sm:$0xff]
      %v2267 = vld [vmem:[%s2129 + $0x448] sm:$0xff]
      %v2268 = vld [vmem:[%s2129 + $0x450] sm:$0xff]
      %v2269 = vld [vmem:[%s2129 + $0x458] sm:$0xff]
      %v2270 = vld [vmem:[%s2129 + $0x460] sm:$0xff]
      %v2271 = vld [vmem:[%s2129 + $0x468] sm:$0xff]
      %v2272 = vld [vmem:[%s2129 + $0x470] sm:$0xff]
      %v2273 = vld [vmem:[%s2129 + $0x478] sm:$0xff]
      %v2274 = vld [vmem:[%s2129 + $0x480] sm:$0xff]
      %v2275 = vld [vmem:[%s2129 + $0x488] sm:$0xff]
      %v2276 = vld [vmem:[%s2129 + $0x490] sm:$0xff]
      %v2277 = vld [vmem:[%s2129 + $0x498] sm:$0xff]
      %v2278 = vld [vmem:[%s2129 + $0x4a0] sm:$0xff]
      %v2279 = vld [vmem:[%s2129 + $0x4a8] sm:$0xff]
      %v2280 = vld [vmem:[%s2129 + $0x4b0] sm:$0xff]
      %v2281 = vld [vmem:[%s2129 + $0x4b8] sm:$0xff]
      %v2282 = vld [vmem:[%s2129 + $0x4c0] sm:$0xff]
      %v2283 = vld [vmem:[%s2129 + $0x4c8] sm:$0xff]
      %v2284 = vld [vmem:[%s2129 + $0x4d0] sm:$0xff]
      %v2285 = vld [vmem:[%s2129 + $0x4d8] sm:$0xff]
      %v2286 = vld [vmem:[%s2129 + $0x4e0] sm:$0xff]
      %v2287 = vld [vmem:[%s2129 + $0x4e8] sm:$0xff]
      %v2288 = vld [vmem:[%s2129 + $0x4f0] sm:$0xff]
      %v2289 = vld [vmem:[%s2129 + $0x4f8] sm:$0xff]
      %v2290 = vld [vmem:[%s2129 + $0x500] sm:$0xff]
      %v2291 = vld [vmem:[%s2129 + $0x508] sm:$0xff]
      %v2292 = vld [vmem:[%s2129 + $0x510] sm:$0xff]
      %v2293 = vld [vmem:[%s2129 + $0x518] sm:$0xff]
      %v2294 = vld [vmem:[%s2129 + $0x520] sm:$0xff]
      %v2295 = vld [vmem:[%s2129 + $0x528] sm:$0xff]
      %v2296 = vld [vmem:[%s2129 + $0x530] sm:$0xff]
      %v2297 = vld [vmem:[%s2129 + $0x538] sm:$0xff]
      %v2298 = vld [vmem:[%s2129 + $0x540] sm:$0xff]
      %v2299 = vld [vmem:[%s2129 + $0x548] sm:$0xff]
      %v2300 = vld [vmem:[%s2129 + $0x550] sm:$0xff]
      %v2301 = vld [vmem:[%s2129 + $0x558] sm:$0xff]
      %v2302 = vld [vmem:[%s2129 + $0x560] sm:$0xff]
      %v2303 = vld [vmem:[%s2129 + $0x568] sm:$0xff]
      %v2304 = vld [vmem:[%s2129 + $0x570] sm:$0xff]
      %v2305 = vld [vmem:[%s2129 + $0x578] sm:$0xff]
      %v2306 = vld [vmem:[%s2129 + $0x580] sm:$0xff]
      %v2307 = vld [vmem:[%s2129 + $0x588] sm:$0xff]
      %v2308 = vld [vmem:[%s2129 + $0x590] sm:$0xff]
      %v2309 = vld [vmem:[%s2129 + $0x598] sm:$0xff]
      %v2310 = vld [vmem:[%s2129 + $0x5a0] sm:$0xff]
      %v2311 = vld [vmem:[%s2129 + $0x5a8] sm:$0xff]
      %v2312 = vld [vmem:[%s2129 + $0x5b0] sm:$0xff]
      %v2313 = vld [vmem:[%s2129 + $0x5b8] sm:$0xff]
      %v2314 = vld [vmem:[%s2129 + $0x5c0] sm:$0xff]
      %v2315 = vld [vmem:[%s2129 + $0x5c8] sm:$0xff]
      %v2316 = vld [vmem:[%s2129 + $0x5d0] sm:$0xff]
      %v2317 = vld [vmem:[%s2129 + $0x5d8] sm:$0xff]
      %v2318 = vld [vmem:[%s2129 + $0x5e0] sm:$0xff]
      %v2319 = vld [vmem:[%s2129 + $0x5e8] sm:$0xff]
      %v2320 = vld [vmem:[%s2129 + $0x5f0] sm:$0xff]
      %v2321 = vld [vmem:[%s2129 + $0x5f8] sm:$0xff]
      %v2322 = vld [vmem:[%s2129 + $0x600] sm:$0xff]
      %v2323 = vld [vmem:[%s2129 + $0x608] sm:$0xff]
      %v2324 = vld [vmem:[%s2129 + $0x610] sm:$0xff]
      %v2325 = vld [vmem:[%s2129 + $0x618] sm:$0xff]
      %v2326 = vld [vmem:[%s2129 + $0x620] sm:$0xff]
      %v2327 = vld [vmem:[%s2129 + $0x628] sm:$0xff]
      %v2328 = vld [vmem:[%s2129 + $0x630] sm:$0xff]
      %v2329 = vld [vmem:[%s2129 + $0x638] sm:$0xff]
      %v2330 = vld [vmem:[%s2129 + $0x640] sm:$0xff]
      %v2331 = vld [vmem:[%s2129 + $0x648] sm:$0xff]
      %v2332 = vld [vmem:[%s2129 + $0x650] sm:$0xff]
      %v2333 = vld [vmem:[%s2129 + $0x658] sm:$0xff]
      %v2334 = vld [vmem:[%s2129 + $0x660] sm:$0xff]
      %v2335 = vld [vmem:[%s2129 + $0x668] sm:$0xff]
      %v2336 = vld [vmem:[%s2129 + $0x670] sm:$0xff]
      %v2337 = vld [vmem:[%s2129 + $0x678] sm:$0xff]
      %v2338 = vld [vmem:[%s2129 + $0x680] sm:$0xff]
      %v2339 = vld [vmem:[%s2129 + $0x688] sm:$0xff]
      %v2340 = vld [vmem:[%s2129 + $0x690] sm:$0xff]
      %v2341 = vld [vmem:[%s2129 + $0x698] sm:$0xff]
      %v2342 = vld [vmem:[%s2129 + $0x6a0] sm:$0xff]
      %v2343 = vld [vmem:[%s2129 + $0x6a8] sm:$0xff]
      %v2344 = vld [vmem:[%s2129 + $0x6b0] sm:$0xff]
      %v2345 = vld [vmem:[%s2129 + $0x6b8] sm:$0xff]
      %v2346 = vld [vmem:[%s2129 + $0x6c0] sm:$0xff]
      %v2347 = vld [vmem:[%s2129 + $0x6c8] sm:$0xff]
      %v2348 = vld [vmem:[%s2129 + $0x6d0] sm:$0xff]
      %v2349 = vld [vmem:[%s2129 + $0x6d8] sm:$0xff]
      %v2350 = vld [vmem:[%s2129 + $0x6e0] sm:$0xff]
      %v2351 = vld [vmem:[%s2129 + $0x6e8] sm:$0xff]
      %v2352 = vld [vmem:[%s2129 + $0x6f0] sm:$0xff]
      %v2353 = vld [vmem:[%s2129 + $0x6f8] sm:$0xff]
      %v2354 = vld [vmem:[%s2129 + $0x700] sm:$0xff]
      %v2355 = vld [vmem:[%s2129 + $0x708] sm:$0xff]
      %v2356 = vld [vmem:[%s2129 + $0x710] sm:$0xff]
      %v2357 = vld [vmem:[%s2129 + $0x718] sm:$0xff]
      %v2358 = vld [vmem:[%s2129 + $0x720] sm:$0xff]
      %v2359 = vld [vmem:[%s2129 + $0x728] sm:$0xff]
      %v2360 = vld [vmem:[%s2129 + $0x730] sm:$0xff]
      %v2361 = vld [vmem:[%s2129 + $0x738] sm:$0xff]
      %v2362 = vld [vmem:[%s2129 + $0x740] sm:$0xff]
      %v2363 = vld [vmem:[%s2129 + $0x748] sm:$0xff]
      %v2364 = vld [vmem:[%s2129 + $0x750] sm:$0xff]
      %v2365 = vld [vmem:[%s2129 + $0x758] sm:$0xff]
      %v2366 = vld [vmem:[%s2129 + $0x760] sm:$0xff]
      %v2367 = vld [vmem:[%s2129 + $0x768] sm:$0xff]
      %v2368 = vld [vmem:[%s2129 + $0x770] sm:$0xff]
      %v2369 = vld [vmem:[%s2129 + $0x778] sm:$0xff]
      %v2370 = vld [vmem:[%s2129 + $0x780] sm:$0xff]
      %v2371 = vld [vmem:[%s2129 + $0x788] sm:$0xff]
      %v2372 = vld [vmem:[%s2129 + $0x790] sm:$0xff]
      %v2373 = vld [vmem:[%s2129 + $0x798] sm:$0xff]
      %v2374 = vld [vmem:[%s2129 + $0x7a0] sm:$0xff]
      %v2375 = vld [vmem:[%s2129 + $0x7a8] sm:$0xff]
      %v2376 = vld [vmem:[%s2129 + $0x7b0] sm:$0xff]
      %v2377 = vld [vmem:[%s2129 + $0x7b8] sm:$0xff]
      %v2378 = vld [vmem:[%s2129 + $0x7c0] sm:$0xff]
      %v2379 = vld [vmem:[%s2129 + $0x7c8] sm:$0xff]
      %v2380 = vld [vmem:[%s2129 + $0x7d0] sm:$0xff]
      %v2381 = vld [vmem:[%s2129 + $0x7d8] sm:$0xff]
      %v2382 = vld [vmem:[%s2129 + $0x7e0] sm:$0xff]
      %v2383 = vld [vmem:[%s2129 + $0x7e8] sm:$0xff]
      %v2384 = vld [vmem:[%s2129 + $0x7f0] sm:$0xff]
      %v2385 = vld [vmem:[%s2129 + $0x7f8] sm:$0xff]
      %2386 = vmatprep.subr.mxu0 %v2191
      %2387 = vmatpush1.msra.mxu0 %v2190
      %2388 = vmatprep.subr.mxu0 %v2187
      %2389 = vmatpush1.msra.mxu0 %v2186
      %2390 = vmatprep.subr.mxu0 %v2183
      %2391 = vmatpush1.msra.mxu0 %v2182
      %2392 = vmatprep.subr.mxu0 %v2179
      %2393 = vmatpush1.msra.mxu0 %v2178
      %2394 = vmatprep.subr.mxu0 %v2175
      %2395 = vmatpush1.msra.mxu0 %v2174
      %2396 = vmatprep.subr.mxu0 %v2171
      %2397 = vmatpush1.msra.mxu0 %v2170
      %2398 = vmatprep.subr.mxu0 %v2167
      %2399 = vmatpush1.msra.mxu0 %v2166
      %2400 = vmatprep.subr.mxu0 %v2163
      %2401 = vmatpush1.msra.mxu0 %v2162
      %2402 = vmatprep.subr.mxu0 %v2159
      %2403 = vmatpush1.msra.mxu0 %v2158
      %2404 = vmatprep.subr.mxu0 %v2155
      %2405 = vmatpush1.msra.mxu0 %v2154
      %2406 = vmatprep.subr.mxu0 %v2151
      %2407 = vmatpush1.msra.mxu0 %v2150
      %2408 = vmatprep.subr.mxu0 %v2147
      %2409 = vmatpush1.msra.mxu0 %v2146
      %2410 = vmatprep.subr.mxu0 %v2143
      %2411 = vmatpush1.msra.mxu0 %v2142
      %2412 = vmatprep.subr.mxu0 %v2139
      %2413 = vmatpush1.msra.mxu0 %v2138
      %2414 = vmatprep.subr.mxu0 %v2135
      %2415 = vmatpush1.msra.mxu0 %v2134
      %2416 = vmatprep.subr.mxu0 %v2131
      %2417 = vmatpush1.msra.mxu0 %v2130
      %2418 = vmatprep.subr.mxu0 %v2255
      %2419 = vmatpush2.msra.mxu0 %v2254
      %2420 = vmatprep.subr.mxu0 %v2251
      %2421 = vmatpush2.msra.mxu0 %v2250
      %2422 = vmatprep.subr.mxu0 %v2247
      %2423 = vmatpush2.msra.mxu0 %v2246
      %2424 = vmatprep.subr.mxu0 %v2243
      %2425 = vmatpush2.msra.mxu0 %v2242
      %2426 = vmatprep.subr.mxu0 %v2239
      %2427 = vmatpush2.msra.mxu0 %v2238
      %2428 = vmatprep.subr.mxu0 %v2235
      %2429 = vmatpush2.msra.mxu0 %v2234
      %2430 = vmatprep.subr.mxu0 %v2231
      %2431 = vmatpush2.msra.mxu0 %v2230
      %2432 = vmatprep.subr.mxu0 %v2227
      %2433 = vmatpush2.msra.mxu0 %v2226
      %2434 = vmatprep.subr.mxu0 %v2223
      %2435 = vmatpush2.msra.mxu0 %v2222
      %2436 = vmatprep.subr.mxu0 %v2219
      %2437 = vmatpush2.msra.mxu0 %v2218
      %2438 = vmatprep.subr.mxu0 %v2215
      %2439 = vmatpush2.msra.mxu0 %v2214
      %2440 = vmatprep.subr.mxu0 %v2211
      %2441 = vmatpush2.msra.mxu0 %v2210
      %2442 = vmatprep.subr.mxu0 %v2207
      %2443 = vmatpush2.msra.mxu0 %v2206
      %2444 = vmatprep.subr.mxu0 %v2203
      %2445 = vmatpush2.msra.mxu0 %v2202
      %2446 = vmatprep.subr.mxu0 %v2199
      %2447 = vmatpush2.msra.mxu0 %v2198
      %2448 = vmatprep.subr.mxu0 %v2195
      %2449 = vmatpush2.msra.mxu0 %v2194
      %2450 = vmatprep.mubr.f32.mxu0 %v227
      %2451 = vmatmul.mubr.f32.gmra.mxu0 %v226
      %v2452 = vpop.f32.mrf.mxu0
      %v2453 = vadd.f32 0.0, %v2452
      %v2454 = vpop.f32.mrf.mxu0
      %v2455 = vadd.f32 0.0, %v2454
      %2456 = vdwg.mxu0
      %2457 = vmatprep.subr.mxu0 %v2319
      %2458 = vmatpush1.msra.mxu0 %v2318
      %2459 = vmatprep.subr.mxu0 %v2315
      %2460 = vmatpush1.msra.mxu0 %v2314
      %2461 = vmatprep.subr.mxu0 %v2311
      %2462 = vmatpush1.msra.mxu0 %v2310
      %2463 = vmatprep.subr.mxu0 %v2307
      %2464 = vmatpush1.msra.mxu0 %v2306
      %2465 = vmatprep.subr.mxu0 %v2303
      %2466 = vmatpush1.msra.mxu0 %v2302
      %2467 = vmatprep.subr.mxu0 %v2299
      %2468 = vmatpush1.msra.mxu0 %v2298
      %2469 = vmatprep.subr.mxu0 %v2295
      %2470 = vmatpush1.msra.mxu0 %v2294
      %2471 = vmatprep.subr.mxu0 %v2291
      %2472 = vmatpush1.msra.mxu0 %v2290
      %2473 = vmatprep.subr.mxu0 %v2287
      %2474 = vmatpush1.msra.mxu0 %v2286
      %2475 = vmatprep.subr.mxu0 %v2283
      %2476 = vmatpush1.msra.mxu0 %v2282
      %2477 = vmatprep.subr.mxu0 %v2279
      %2478 = vmatpush1.msra.mxu0 %v2278
      %2479 = vmatprep.subr.mxu0 %v2275
      %2480 = vmatpush1.msra.mxu0 %v2274
      %2481 = vmatprep.subr.mxu0 %v2271
      %2482 = vmatpush1.msra.mxu0 %v2270
      %2483 = vmatprep.subr.mxu0 %v2267
      %2484 = vmatpush1.msra.mxu0 %v2266
      %2485 = vmatprep.subr.mxu0 %v2263
      %2486 = vmatpush1.msra.mxu0 %v2262
      %2487 = vmatprep.subr.mxu0 %v2259
      %2488 = vmatpush1.msra.mxu0 %v2258
      %2489 = vmatprep.subr.mxu0 %v2383
      %2490 = vmatpush2.msra.mxu0 %v2382
      %2491 = vmatprep.subr.mxu0 %v2379
      %2492 = vmatpush2.msra.mxu0 %v2378
      %2493 = vmatprep.subr.mxu0 %v2375
      %2494 = vmatpush2.msra.mxu0 %v2374
      %2495 = vmatprep.subr.mxu0 %v2371
      %2496 = vmatpush2.msra.mxu0 %v2370
      %2497 = vmatprep.subr.mxu0 %v2367
      %2498 = vmatpush2.msra.mxu0 %v2366
      %2499 = vmatprep.subr.mxu0 %v2363
      %2500 = vmatpush2.msra.mxu0 %v2362
      %2501 = vmatprep.subr.mxu0 %v2359
      %2502 = vmatpush2.msra.mxu0 %v2358
      %2503 = vmatprep.subr.mxu0 %v2355
      %2504 = vmatpush2.msra.mxu0 %v2354
      %2505 = vmatprep.subr.mxu0 %v2351
      %2506 = vmatpush2.msra.mxu0 %v2350
      %2507 = vmatprep.subr.mxu0 %v2347
      %2508 = vmatpush2.msra.mxu0 %v2346
      %2509 = vmatprep.subr.mxu0 %v2343
      %2510 = vmatpush2.msra.mxu0 %v2342
      %2511 = vmatprep.subr.mxu0 %v2339
      %2512 = vmatpush2.msra.mxu0 %v2338
      %2513 = vmatprep.subr.mxu0 %v2335
      %2514 = vmatpush2.msra.mxu0 %v2334
      %2515 = vmatprep.subr.mxu0 %v2331
      %2516 = vmatpush2.msra.mxu0 %v2330
      %2517 = vmatprep.subr.mxu0 %v2327
      %2518 = vmatpush2.msra.mxu0 %v2326
      %2519 = vmatprep.subr.mxu0 %v2323
      %2520 = vmatpush2.msra.mxu0 %v2322
      %2521 = vmatprep.mubr.f32.mxu0 %v229
      %2522 = vmatmul.mubr.f32.gmra.mxu0 %v228
      %v2523 = vpop.f32.mrf.mxu0
      %v2524 = vadd.f32 %v2453, %v2523
      %v2525 = vpop.f32.mrf.mxu0
      %v2526 = vadd.f32 %v2455, %v2525
      %2527 = vdwg.mxu0
      %2528 = vmatprep.subr.mxu0 %v2193
      %2529 = vmatpush1.msra.mxu0 %v2192
      %2530 = vmatprep.subr.mxu0 %v2189
      %2531 = vmatpush1.msra.mxu0 %v2188
      %2532 = vmatprep.subr.mxu0 %v2185
      %2533 = vmatpush1.msra.mxu0 %v2184
      %2534 = vmatprep.subr.mxu0 %v2181
      %2535 = vmatpush1.msra.mxu0 %v2180
      %2536 = vmatprep.subr.mxu0 %v2177
      %2537 = vmatpush1.msra.mxu0 %v2176
      %2538 = vmatprep.subr.mxu0 %v2173
      %2539 = vmatpush1.msra.mxu0 %v2172
      %2540 = vmatprep.subr.mxu0 %v2169
      %2541 = vmatpush1.msra.mxu0 %v2168
      %2542 = vmatprep.subr.mxu0 %v2165
      %2543 = vmatpush1.msra.mxu0 %v2164
      %2544 = vmatprep.subr.mxu0 %v2161
      %2545 = vmatpush1.msra.mxu0 %v2160
      %2546 = vmatprep.subr.mxu0 %v2157
      %2547 = vmatpush1.msra.mxu0 %v2156
      %2548 = vmatprep.subr.mxu0 %v2153
      %2549 = vmatpush1.msra.mxu0 %v2152
      %2550 = vmatprep.subr.mxu0 %v2149
      %2551 = vmatpush1.msra.mxu0 %v2148
      %2552 = vmatprep.subr.mxu0 %v2145
      %2553 = vmatpush1.msra.mxu0 %v2144
      %2554 = vmatprep.subr.mxu0 %v2141
      %2555 = vmatpush1.msra.mxu0 %v2140
      %2556 = vmatprep.subr.mxu0 %v2137
      %2557 = vmatpush1.msra.mxu0 %v2136
      %2558 = vmatprep.subr.mxu0 %v2133
      %2559 = vmatpush1.msra.mxu0 %v2132
      %2560 = vmatprep.subr.mxu0 %v2257
      %2561 = vmatpush2.msra.mxu0 %v2256
      %2562 = vmatprep.subr.mxu0 %v2253
      %2563 = vmatpush2.msra.mxu0 %v2252
      %2564 = vmatprep.subr.mxu0 %v2249
      %2565 = vmatpush2.msra.mxu0 %v2248
      %2566 = vmatprep.subr.mxu0 %v2245
      %2567 = vmatpush2.msra.mxu0 %v2244
      %2568 = vmatprep.subr.mxu0 %v2241
      %2569 = vmatpush2.msra.mxu0 %v2240
      %2570 = vmatprep.subr.mxu0 %v2237
      %2571 = vmatpush2.msra.mxu0 %v2236
      %2572 = vmatprep.subr.mxu0 %v2233
      %2573 = vmatpush2.msra.mxu0 %v2232
      %2574 = vmatprep.subr.mxu0 %v2229
      %2575 = vmatpush2.msra.mxu0 %v2228
      %2576 = vmatprep.subr.mxu0 %v2225
      %2577 = vmatpush2.msra.mxu0 %v2224
      %2578 = vmatprep.subr.mxu0 %v2221
      %2579 = vmatpush2.msra.mxu0 %v2220
      %2580 = vmatprep.subr.mxu0 %v2217
      %2581 = vmatpush2.msra.mxu0 %v2216
      %2582 = vmatprep.subr.mxu0 %v2213
      %2583 = vmatpush2.msra.mxu0 %v2212
      %2584 = vmatprep.subr.mxu0 %v2209
      %2585 = vmatpush2.msra.mxu0 %v2208
      %2586 = vmatprep.subr.mxu0 %v2205
      %2587 = vmatpush2.msra.mxu0 %v2204
      %2588 = vmatprep.subr.mxu0 %v2201
      %2589 = vmatpush2.msra.mxu0 %v2200
      %2590 = vmatprep.subr.mxu0 %v2197
      %2591 = vmatpush2.msra.mxu0 %v2196
      %2592 = vmatprep.mubr.f32.mxu0 %v227
      %2593 = vmatmul.mubr.f32.gmra.mxu0 %v226
      %v2594 = vpop.f32.mrf.mxu0
      %v2595 = vadd.f32 0.0, %v2594
      %v2596 = vpop.f32.mrf.mxu0
      %v2597 = vadd.f32 0.0, %v2596
      %2598 = vdwg.mxu0
      %2599 = vmatprep.subr.mxu0 %v2321
      %2600 = vmatpush1.msra.mxu0 %v2320
      %2601 = vmatprep.subr.mxu0 %v2317
      %2602 = vmatpush1.msra.mxu0 %v2316
      %2603 = vmatprep.subr.mxu0 %v2313
      %2604 = vmatpush1.msra.mxu0 %v2312
      %2605 = vmatprep.subr.mxu0 %v2309
      %2606 = vmatpush1.msra.mxu0 %v2308
      %2607 = vmatprep.subr.mxu0 %v2305
      %2608 = vmatpush1.msra.mxu0 %v2304
      %2609 = vmatprep.subr.mxu0 %v2301
      %2610 = vmatpush1.msra.mxu0 %v2300
      %2611 = vmatprep.subr.mxu0 %v2297
      %2612 = vmatpush1.msra.mxu0 %v2296
      %2613 = vmatprep.subr.mxu0 %v2293
      %2614 = vmatpush1.msra.mxu0 %v2292
      %2615 = vmatprep.subr.mxu0 %v2289
      %2616 = vmatpush1.msra.mxu0 %v2288
      %2617 = vmatprep.subr.mxu0 %v2285
      %2618 = vmatpush1.msra.mxu0 %v2284
      %2619 = vmatprep.subr.mxu0 %v2281
      %2620 = vmatpush1.msra.mxu0 %v2280
      %2621 = vmatprep.subr.mxu0 %v2277
      %2622 = vmatpush1.msra.mxu0 %v2276
      %2623 = vmatprep.subr.mxu0 %v2273
      %2624 = vmatpush1.msra.mxu0 %v2272
      %2625 = vmatprep.subr.mxu0 %v2269
      %2626 = vmatpush1.msra.mxu0 %v2268
      %2627 = vmatprep.subr.mxu0 %v2265
      %2628 = vmatpush1.msra.mxu0 %v2264
      %2629 = vmatprep.subr.mxu0 %v2261
      %2630 = vmatpush1.msra.mxu0 %v2260
      %2631 = vmatprep.subr.mxu0 %v2385
      %2632 = vmatpush2.msra.mxu0 %v2384
      %2633 = vmatprep.subr.mxu0 %v2381
      %2634 = vmatpush2.msra.mxu0 %v2380
      %2635 = vmatprep.subr.mxu0 %v2377
      %2636 = vmatpush2.msra.mxu0 %v2376
      %2637 = vmatprep.subr.mxu0 %v2373
      %2638 = vmatpush2.msra.mxu0 %v2372
      %2639 = vmatprep.subr.mxu0 %v2369
      %2640 = vmatpush2.msra.mxu0 %v2368
      %2641 = vmatprep.subr.mxu0 %v2365
      %2642 = vmatpush2.msra.mxu0 %v2364
      %2643 = vmatprep.subr.mxu0 %v2361
      %2644 = vmatpush2.msra.mxu0 %v2360
      %2645 = vmatprep.subr.mxu0 %v2357
      %2646 = vmatpush2.msra.mxu0 %v2356
      %2647 = vmatprep.subr.mxu0 %v2353
      %2648 = vmatpush2.msra.mxu0 %v2352
      %2649 = vmatprep.subr.mxu0 %v2349
      %2650 = vmatpush2.msra.mxu0 %v2348
      %2651 = vmatprep.subr.mxu0 %v2345
      %2652 = vmatpush2.msra.mxu0 %v2344
      %2653 = vmatprep.subr.mxu0 %v2341
      %2654 = vmatpush2.msra.mxu0 %v2340
      %2655 = vmatprep.subr.mxu0 %v2337
      %2656 = vmatpush2.msra.mxu0 %v2336
      %2657 = vmatprep.subr.mxu0 %v2333
      %2658 = vmatpush2.msra.mxu0 %v2332
      %2659 = vmatprep.subr.mxu0 %v2329
      %2660 = vmatpush2.msra.mxu0 %v2328
      %2661 = vmatprep.subr.mxu0 %v2325
      %2662 = vmatpush2.msra.mxu0 %v2324
      %2663 = vmatprep.mubr.f32.mxu0 %v229
      %2664 = vmatmul.mubr.f32.gmra.mxu0 %v228
      %v2665 = vpop.f32.mrf.mxu0
      %v2666 = vadd.f32 %v2595, %v2665
      %v2667 = vpop.f32.mrf.mxu0
      %v2668 = vadd.f32 %v2597, %v2667
      %2669 = vdwg.mxu0
      %2670 = vmatprep.subr.mxu0 %v1934
      %2671 = vmatpush1.msra.mxu0 %v1933
      %2672 = vmatprep.subr.mxu0 %v1930
      %2673 = vmatpush1.msra.mxu0 %v1929
      %2674 = vmatprep.subr.mxu0 %v1926
      %2675 = vmatpush1.msra.mxu0 %v1925
      %2676 = vmatprep.subr.mxu0 %v1922
      %2677 = vmatpush1.msra.mxu0 %v1921
      %2678 = vmatprep.subr.mxu0 %v1918
      %2679 = vmatpush1.msra.mxu0 %v1917
      %2680 = vmatprep.subr.mxu0 %v1914
      %2681 = vmatpush1.msra.mxu0 %v1913
      %2682 = vmatprep.subr.mxu0 %v1910
      %2683 = vmatpush1.msra.mxu0 %v1909
      %2684 = vmatprep.subr.mxu0 %v1906
      %2685 = vmatpush1.msra.mxu0 %v1905
      %2686 = vmatprep.subr.mxu0 %v1902
      %2687 = vmatpush1.msra.mxu0 %v1901
      %2688 = vmatprep.subr.mxu0 %v1898
      %2689 = vmatpush1.msra.mxu0 %v1897
      %2690 = vmatprep.subr.mxu0 %v1894
      %2691 = vmatpush1.msra.mxu0 %v1893
      %2692 = vmatprep.subr.mxu0 %v1890
      %2693 = vmatpush1.msra.mxu0 %v1889
      %2694 = vmatprep.subr.mxu0 %v1886
      %2695 = vmatpush1.msra.mxu0 %v1885
      %2696 = vmatprep.subr.mxu0 %v1882
      %2697 = vmatpush1.msra.mxu0 %v1881
      %2698 = vmatprep.subr.mxu0 %v1878
      %2699 = vmatpush1.msra.mxu0 %v1877
      %2700 = vmatprep.subr.mxu0 %v1874
      %2701 = vmatpush1.msra.mxu0 %v1873
      %2702 = vmatprep.subr.mxu0 %v1998
      %2703 = vmatpush2.msra.mxu0 %v1997
      %2704 = vmatprep.subr.mxu0 %v1994
      %2705 = vmatpush2.msra.mxu0 %v1993
      %2706 = vmatprep.subr.mxu0 %v1990
      %2707 = vmatpush2.msra.mxu0 %v1989
      %2708 = vmatprep.subr.mxu0 %v1986
      %2709 = vmatpush2.msra.mxu0 %v1985
      %2710 = vmatprep.subr.mxu0 %v1982
      %2711 = vmatpush2.msra.mxu0 %v1981
      %2712 = vmatprep.subr.mxu0 %v1978
      %2713 = vmatpush2.msra.mxu0 %v1977
      %2714 = vmatprep.subr.mxu0 %v1974
      %2715 = vmatpush2.msra.mxu0 %v1973
      %2716 = vmatprep.subr.mxu0 %v1970
      %2717 = vmatpush2.msra.mxu0 %v1969
      %2718 = vmatprep.subr.mxu0 %v1966
      %2719 = vmatpush2.msra.mxu0 %v1965
      %2720 = vmatprep.subr.mxu0 %v1962
      %2721 = vmatpush2.msra.mxu0 %v1961
      %2722 = vmatprep.subr.mxu0 %v1958
      %2723 = vmatpush2.msra.mxu0 %v1957
      %2724 = vmatprep.subr.mxu0 %v1954
      %2725 = vmatpush2.msra.mxu0 %v1953
      %2726 = vmatprep.subr.mxu0 %v1950
      %2727 = vmatpush2.msra.mxu0 %v1949
      %2728 = vmatprep.subr.mxu0 %v1946
      %2729 = vmatpush2.msra.mxu0 %v1945
      %2730 = vmatprep.subr.mxu0 %v1942
      %2731 = vmatpush2.msra.mxu0 %v1941
      %2732 = vmatprep.subr.mxu0 %v1938
      %2733 = vmatpush2.msra.mxu0 %v1937
      %2734 = vmatprep.mubr.f32.mxu0 %v219
      %2735 = vmatmul.mubr.f32.gmra.mxu0 %v218
      %v2736 = vpop.f32.mrf.mxu0
      %v2737 = vadd.f32 %v2524, %v2736
      %v2738 = vpop.f32.mrf.mxu0
      %v2739 = vadd.f32 %v2526, %v2738
      %2740 = vdwg.mxu0
      %2741 = vmatprep.subr.mxu0 %v2062
      %2742 = vmatpush1.msra.mxu0 %v2061
      %2743 = vmatprep.subr.mxu0 %v2058
      %2744 = vmatpush1.msra.mxu0 %v2057
      %2745 = vmatprep.subr.mxu0 %v2054
      %2746 = vmatpush1.msra.mxu0 %v2053
      %2747 = vmatprep.subr.mxu0 %v2050
      %2748 = vmatpush1.msra.mxu0 %v2049
      %2749 = vmatprep.subr.mxu0 %v2046
      %2750 = vmatpush1.msra.mxu0 %v2045
      %2751 = vmatprep.subr.mxu0 %v2042
      %2752 = vmatpush1.msra.mxu0 %v2041
      %2753 = vmatprep.subr.mxu0 %v2038
      %2754 = vmatpush1.msra.mxu0 %v2037
      %2755 = vmatprep.subr.mxu0 %v2034
      %2756 = vmatpush1.msra.mxu0 %v2033
      %2757 = vmatprep.subr.mxu0 %v2030
      %2758 = vmatpush1.msra.mxu0 %v2029
      %2759 = vmatprep.subr.mxu0 %v2026
      %2760 = vmatpush1.msra.mxu0 %v2025
      %2761 = vmatprep.subr.mxu0 %v2022
      %2762 = vmatpush1.msra.mxu0 %v2021
      %2763 = vmatprep.subr.mxu0 %v2018
      %2764 = vmatpush1.msra.mxu0 %v2017
      %2765 = vmatprep.subr.mxu0 %v2014
      %2766 = vmatpush1.msra.mxu0 %v2013
      %2767 = vmatprep.subr.mxu0 %v2010
      %2768 = vmatpush1.msra.mxu0 %v2009
      %2769 = vmatprep.subr.mxu0 %v2006
      %2770 = vmatpush1.msra.mxu0 %v2005
      %2771 = vmatprep.subr.mxu0 %v2002
      %2772 = vmatpush1.msra.mxu0 %v2001
      %2773 = vmatprep.subr.mxu0 %v2126
      %2774 = vmatpush2.msra.mxu0 %v2125
      %2775 = vmatprep.subr.mxu0 %v2122
      %2776 = vmatpush2.msra.mxu0 %v2121
      %2777 = vmatprep.subr.mxu0 %v2118
      %2778 = vmatpush2.msra.mxu0 %v2117
      %2779 = vmatprep.subr.mxu0 %v2114
      %2780 = vmatpush2.msra.mxu0 %v2113
      %2781 = vmatprep.subr.mxu0 %v2110
      %2782 = vmatpush2.msra.mxu0 %v2109
      %2783 = vmatprep.subr.mxu0 %v2106
      %2784 = vmatpush2.msra.mxu0 %v2105
      %2785 = vmatprep.subr.mxu0 %v2102
      %2786 = vmatpush2.msra.mxu0 %v2101
      %2787 = vmatprep.subr.mxu0 %v2098
      %2788 = vmatpush2.msra.mxu0 %v2097
      %2789 = vmatprep.subr.mxu0 %v2094
      %2790 = vmatpush2.msra.mxu0 %v2093
      %2791 = vmatprep.subr.mxu0 %v2090
      %2792 = vmatpush2.msra.mxu0 %v2089
      %2793 = vmatprep.subr.mxu0 %v2086
      %2794 = vmatpush2.msra.mxu0 %v2085
      %2795 = vmatprep.subr.mxu0 %v2082
      %2796 = vmatpush2.msra.mxu0 %v2081
      %2797 = vmatprep.subr.mxu0 %v2078
      %2798 = vmatpush2.msra.mxu0 %v2077
      %2799 = vmatprep.subr.mxu0 %v2074
      %2800 = vmatpush2.msra.mxu0 %v2073
      %2801 = vmatprep.subr.mxu0 %v2070
      %2802 = vmatpush2.msra.mxu0 %v2069
      %2803 = vmatprep.subr.mxu0 %v2066
      %2804 = vmatpush2.msra.mxu0 %v2065
      %2805 = vmatprep.mubr.f32.mxu0 %v221
      %2806 = vmatmul.mubr.f32.gmra.mxu0 %v220
      %v2807 = vpop.f32.mrf.mxu0
      %v2808 = vadd.f32 %v2737, %v2807
      %v2809 = vpop.f32.mrf.mxu0
      %v2810 = vadd.f32 %v2739, %v2809
      %2811 = vdwg.mxu0
      %2812 = vmatprep.subr.mxu0 %v1936
      %2813 = vmatpush1.msra.mxu0 %v1935
      %2814 = vmatprep.subr.mxu0 %v1932
      %2815 = vmatpush1.msra.mxu0 %v1931
      %2816 = vmatprep.subr.mxu0 %v1928
      %2817 = vmatpush1.msra.mxu0 %v1927
      %2818 = vmatprep.subr.mxu0 %v1924
      %2819 = vmatpush1.msra.mxu0 %v1923
      %2820 = vmatprep.subr.mxu0 %v1920
      %2821 = vmatpush1.msra.mxu0 %v1919
      %2822 = vmatprep.subr.mxu0 %v1916
      %2823 = vmatpush1.msra.mxu0 %v1915
      %2824 = vmatprep.subr.mxu0 %v1912
      %2825 = vmatpush1.msra.mxu0 %v1911
      %2826 = vmatprep.subr.mxu0 %v1908
      %2827 = vmatpush1.msra.mxu0 %v1907
      %2828 = vmatprep.subr.mxu0 %v1904
      %2829 = vmatpush1.msra.mxu0 %v1903
      %2830 = vmatprep.subr.mxu0 %v1900
      %2831 = vmatpush1.msra.mxu0 %v1899
      %2832 = vmatprep.subr.mxu0 %v1896
      %2833 = vmatpush1.msra.mxu0 %v1895
      %2834 = vmatprep.subr.mxu0 %v1892
      %2835 = vmatpush1.msra.mxu0 %v1891
      %2836 = vmatprep.subr.mxu0 %v1888
      %2837 = vmatpush1.msra.mxu0 %v1887
      %2838 = vmatprep.subr.mxu0 %v1884
      %2839 = vmatpush1.msra.mxu0 %v1883
      %2840 = vmatprep.subr.mxu0 %v1880
      %2841 = vmatpush1.msra.mxu0 %v1879
      %2842 = vmatprep.subr.mxu0 %v1876
      %2843 = vmatpush1.msra.mxu0 %v1875
      %2844 = vmatprep.subr.mxu0 %v2000
      %2845 = vmatpush2.msra.mxu0 %v1999
      %2846 = vmatprep.subr.mxu0 %v1996
      %2847 = vmatpush2.msra.mxu0 %v1995
      %2848 = vmatprep.subr.mxu0 %v1992
      %2849 = vmatpush2.msra.mxu0 %v1991
      %2850 = vmatprep.subr.mxu0 %v1988
      %2851 = vmatpush2.msra.mxu0 %v1987
      %2852 = vmatprep.subr.mxu0 %v1984
      %2853 = vmatpush2.msra.mxu0 %v1983
      %2854 = vmatprep.subr.mxu0 %v1980
      %2855 = vmatpush2.msra.mxu0 %v1979
      %2856 = vmatprep.subr.mxu0 %v1976
      %2857 = vmatpush2.msra.mxu0 %v1975
      %2858 = vmatprep.subr.mxu0 %v1972
      %2859 = vmatpush2.msra.mxu0 %v1971
      %2860 = vmatprep.subr.mxu0 %v1968
      %2861 = vmatpush2.msra.mxu0 %v1967
      %2862 = vmatprep.subr.mxu0 %v1964
      %2863 = vmatpush2.msra.mxu0 %v1963
      %2864 = vmatprep.subr.mxu0 %v1960
      %2865 = vmatpush2.msra.mxu0 %v1959
      %2866 = vmatprep.subr.mxu0 %v1956
      %2867 = vmatpush2.msra.mxu0 %v1955
      %2868 = vmatprep.subr.mxu0 %v1952
      %2869 = vmatpush2.msra.mxu0 %v1951
      %2870 = vmatprep.subr.mxu0 %v1948
      %2871 = vmatpush2.msra.mxu0 %v1947
      %2872 = vmatprep.subr.mxu0 %v1944
      %2873 = vmatpush2.msra.mxu0 %v1943
      %2874 = vmatprep.subr.mxu0 %v1940
      %2875 = vmatpush2.msra.mxu0 %v1939
      %2876 = vmatprep.mubr.f32.mxu0 %v219
      %2877 = vmatmul.mubr.f32.gmra.mxu0 %v218
      %v2878 = vpop.f32.mrf.mxu0
      %v2879 = vadd.f32 %v2666, %v2878
      %v2880 = vpop.f32.mrf.mxu0
      %v2881 = vadd.f32 %v2668, %v2880
      %2882 = vdwg.mxu0
      %2883 = vmatprep.subr.mxu0 %v2064
      %2884 = vmatpush1.msra.mxu0 %v2063
      %2885 = vmatprep.subr.mxu0 %v2060
      %2886 = vmatpush1.msra.mxu0 %v2059
      %2887 = vmatprep.subr.mxu0 %v2056
      %2888 = vmatpush1.msra.mxu0 %v2055
      %2889 = vmatprep.subr.mxu0 %v2052
      %2890 = vmatpush1.msra.mxu0 %v2051
      %2891 = vmatprep.subr.mxu0 %v2048
      %2892 = vmatpush1.msra.mxu0 %v2047
      %2893 = vmatprep.subr.mxu0 %v2044
      %2894 = vmatpush1.msra.mxu0 %v2043
      %2895 = vmatprep.subr.mxu0 %v2040
      %2896 = vmatpush1.msra.mxu0 %v2039
      %2897 = vmatprep.subr.mxu0 %v2036
      %2898 = vmatpush1.msra.mxu0 %v2035
      %2899 = vmatprep.subr.mxu0 %v2032
      %2900 = vmatpush1.msra.mxu0 %v2031
      %2901 = vmatprep.subr.mxu0 %v2028
      %2902 = vmatpush1.msra.mxu0 %v2027
      %2903 = vmatprep.subr.mxu0 %v2024
      %2904 = vmatpush1.msra.mxu0 %v2023
      %2905 = vmatprep.subr.mxu0 %v2020
      %2906 = vmatpush1.msra.mxu0 %v2019
      %2907 = vmatprep.subr.mxu0 %v2016
      %2908 = vmatpush1.msra.mxu0 %v2015
      %2909 = vmatprep.subr.mxu0 %v2012
      %2910 = vmatpush1.msra.mxu0 %v2011
      %2911 = vmatprep.subr.mxu0 %v2008
      %2912 = vmatpush1.msra.mxu0 %v2007
      %2913 = vmatprep.subr.mxu0 %v2004
      %2914 = vmatpush1.msra.mxu0 %v2003
      %2915 = vmatprep.subr.mxu0 %v2128
      %2916 = vmatpush2.msra.mxu0 %v2127
      %2917 = vmatprep.subr.mxu0 %v2124
      %2918 = vmatpush2.msra.mxu0 %v2123
      %2919 = vmatprep.subr.mxu0 %v2120
      %2920 = vmatpush2.msra.mxu0 %v2119
      %2921 = vmatprep.subr.mxu0 %v2116
      %2922 = vmatpush2.msra.mxu0 %v2115
      %2923 = vmatprep.subr.mxu0 %v2112
      %2924 = vmatpush2.msra.mxu0 %v2111
      %2925 = vmatprep.subr.mxu0 %v2108
      %2926 = vmatpush2.msra.mxu0 %v2107
      %2927 = vmatprep.subr.mxu0 %v2104
      %2928 = vmatpush2.msra.mxu0 %v2103
      %2929 = vmatprep.subr.mxu0 %v2100
      %2930 = vmatpush2.msra.mxu0 %v2099
      %2931 = vmatprep.subr.mxu0 %v2096
      %2932 = vmatpush2.msra.mxu0 %v2095
      %2933 = vmatprep.subr.mxu0 %v2092
      %2934 = vmatpush2.msra.mxu0 %v2091
      %2935 = vmatprep.subr.mxu0 %v2088
      %2936 = vmatpush2.msra.mxu0 %v2087
      %2937 = vmatprep.subr.mxu0 %v2084
      %2938 = vmatpush2.msra.mxu0 %v2083
      %2939 = vmatprep.subr.mxu0 %v2080
      %2940 = vmatpush2.msra.mxu0 %v2079
      %2941 = vmatprep.subr.mxu0 %v2076
      %2942 = vmatpush2.msra.mxu0 %v2075
      %2943 = vmatprep.subr.mxu0 %v2072
      %2944 = vmatpush2.msra.mxu0 %v2071
      %2945 = vmatprep.subr.mxu0 %v2068
      %2946 = vmatpush2.msra.mxu0 %v2067
      %2947 = vmatprep.mubr.f32.mxu0 %v221
      %2948 = vmatmul.mubr.f32.gmra.mxu0 %v220
      %v2949 = vpop.f32.mrf.mxu0
      %v2950 = vadd.f32 %v2879, %v2949
      %v2951 = vpop.f32.mrf.mxu0
      %v2952 = vadd.f32 %v2881, %v2951
      %2953 = vdwg.mxu0
      %s2954 = scalar_lea.vmem %s2, 10240
      %v2955 = vld [vmem:[%s2954] sm:$0xff]
      %v2956 = vld [vmem:[%s2954 + $0x8] sm:$0xff]
      %v2957 = vld [vmem:[%s2954 + $0x10] sm:$0xff]
      %v2958 = vld [vmem:[%s2954 + $0x18] sm:$0xff]
      %v2959 = vld [vmem:[%s2954 + $0x20] sm:$0xff]
      %v2960 = vld [vmem:[%s2954 + $0x28] sm:$0xff]
      %v2961 = vld [vmem:[%s2954 + $0x30] sm:$0xff]
      %v2962 = vld [vmem:[%s2954 + $0x38] sm:$0xff]
      %v2963 = vld [vmem:[%s2954 + $0x40] sm:$0xff]
      %v2964 = vld [vmem:[%s2954 + $0x48] sm:$0xff]
      %v2965 = vld [vmem:[%s2954 + $0x50] sm:$0xff]
      %v2966 = vld [vmem:[%s2954 + $0x58] sm:$0xff]
      %v2967 = vld [vmem:[%s2954 + $0x60] sm:$0xff]
      %v2968 = vld [vmem:[%s2954 + $0x68] sm:$0xff]
      %v2969 = vld [vmem:[%s2954 + $0x70] sm:$0xff]
      %v2970 = vld [vmem:[%s2954 + $0x78] sm:$0xff]
      %v2971 = vld [vmem:[%s2954 + $0x80] sm:$0xff]
      %v2972 = vld [vmem:[%s2954 + $0x88] sm:$0xff]
      %v2973 = vld [vmem:[%s2954 + $0x90] sm:$0xff]
      %v2974 = vld [vmem:[%s2954 + $0x98] sm:$0xff]
      %v2975 = vld [vmem:[%s2954 + $0xa0] sm:$0xff]
      %v2976 = vld [vmem:[%s2954 + $0xa8] sm:$0xff]
      %v2977 = vld [vmem:[%s2954 + $0xb0] sm:$0xff]
      %v2978 = vld [vmem:[%s2954 + $0xb8] sm:$0xff]
      %v2979 = vld [vmem:[%s2954 + $0xc0] sm:$0xff]
      %v2980 = vld [vmem:[%s2954 + $0xc8] sm:$0xff]
      %v2981 = vld [vmem:[%s2954 + $0xd0] sm:$0xff]
      %v2982 = vld [vmem:[%s2954 + $0xd8] sm:$0xff]
      %v2983 = vld [vmem:[%s2954 + $0xe0] sm:$0xff]
      %v2984 = vld [vmem:[%s2954 + $0xe8] sm:$0xff]
      %v2985 = vld [vmem:[%s2954 + $0xf0] sm:$0xff]
      %v2986 = vld [vmem:[%s2954 + $0xf8] sm:$0xff]
      %v2987 = vld [vmem:[%s2954 + $0x100] sm:$0xff]
      %v2988 = vld [vmem:[%s2954 + $0x108] sm:$0xff]
      %v2989 = vld [vmem:[%s2954 + $0x110] sm:$0xff]
      %v2990 = vld [vmem:[%s2954 + $0x118] sm:$0xff]
      %v2991 = vld [vmem:[%s2954 + $0x120] sm:$0xff]
      %v2992 = vld [vmem:[%s2954 + $0x128] sm:$0xff]
      %v2993 = vld [vmem:[%s2954 + $0x130] sm:$0xff]
      %v2994 = vld [vmem:[%s2954 + $0x138] sm:$0xff]
      %v2995 = vld [vmem:[%s2954 + $0x140] sm:$0xff]
      %v2996 = vld [vmem:[%s2954 + $0x148] sm:$0xff]
      %v2997 = vld [vmem:[%s2954 + $0x150] sm:$0xff]
      %v2998 = vld [vmem:[%s2954 + $0x158] sm:$0xff]
      %v2999 = vld [vmem:[%s2954 + $0x160] sm:$0xff]
      %v3000 = vld [vmem:[%s2954 + $0x168] sm:$0xff]
      %v3001 = vld [vmem:[%s2954 + $0x170] sm:$0xff]
      %v3002 = vld [vmem:[%s2954 + $0x178] sm:$0xff]
      %v3003 = vld [vmem:[%s2954 + $0x180] sm:$0xff]
      %v3004 = vld [vmem:[%s2954 + $0x188] sm:$0xff]
      %v3005 = vld [vmem:[%s2954 + $0x190] sm:$0xff]
      %v3006 = vld [vmem:[%s2954 + $0x198] sm:$0xff]
      %v3007 = vld [vmem:[%s2954 + $0x1a0] sm:$0xff]
      %v3008 = vld [vmem:[%s2954 + $0x1a8] sm:$0xff]
      %v3009 = vld [vmem:[%s2954 + $0x1b0] sm:$0xff]
      %v3010 = vld [vmem:[%s2954 + $0x1b8] sm:$0xff]
      %v3011 = vld [vmem:[%s2954 + $0x1c0] sm:$0xff]
      %v3012 = vld [vmem:[%s2954 + $0x1c8] sm:$0xff]
      %v3013 = vld [vmem:[%s2954 + $0x1d0] sm:$0xff]
      %v3014 = vld [vmem:[%s2954 + $0x1d8] sm:$0xff]
      %v3015 = vld [vmem:[%s2954 + $0x1e0] sm:$0xff]
      %v3016 = vld [vmem:[%s2954 + $0x1e8] sm:$0xff]
      %v3017 = vld [vmem:[%s2954 + $0x1f0] sm:$0xff]
      %v3018 = vld [vmem:[%s2954 + $0x1f8] sm:$0xff]
      %v3019 = vld [vmem:[%s2954 + $0x200] sm:$0xff]
      %v3020 = vld [vmem:[%s2954 + $0x208] sm:$0xff]
      %v3021 = vld [vmem:[%s2954 + $0x210] sm:$0xff]
      %v3022 = vld [vmem:[%s2954 + $0x218] sm:$0xff]
      %v3023 = vld [vmem:[%s2954 + $0x220] sm:$0xff]
      %v3024 = vld [vmem:[%s2954 + $0x228] sm:$0xff]
      %v3025 = vld [vmem:[%s2954 + $0x230] sm:$0xff]
      %v3026 = vld [vmem:[%s2954 + $0x238] sm:$0xff]
      %v3027 = vld [vmem:[%s2954 + $0x240] sm:$0xff]
      %v3028 = vld [vmem:[%s2954 + $0x248] sm:$0xff]
      %v3029 = vld [vmem:[%s2954 + $0x250] sm:$0xff]
      %v3030 = vld [vmem:[%s2954 + $0x258] sm:$0xff]
      %v3031 = vld [vmem:[%s2954 + $0x260] sm:$0xff]
      %v3032 = vld [vmem:[%s2954 + $0x268] sm:$0xff]
      %v3033 = vld [vmem:[%s2954 + $0x270] sm:$0xff]
      %v3034 = vld [vmem:[%s2954 + $0x278] sm:$0xff]
      %v3035 = vld [vmem:[%s2954 + $0x280] sm:$0xff]
      %v3036 = vld [vmem:[%s2954 + $0x288] sm:$0xff]
      %v3037 = vld [vmem:[%s2954 + $0x290] sm:$0xff]
      %v3038 = vld [vmem:[%s2954 + $0x298] sm:$0xff]
      %v3039 = vld [vmem:[%s2954 + $0x2a0] sm:$0xff]
      %v3040 = vld [vmem:[%s2954 + $0x2a8] sm:$0xff]
      %v3041 = vld [vmem:[%s2954 + $0x2b0] sm:$0xff]
      %v3042 = vld [vmem:[%s2954 + $0x2b8] sm:$0xff]
      %v3043 = vld [vmem:[%s2954 + $0x2c0] sm:$0xff]
      %v3044 = vld [vmem:[%s2954 + $0x2c8] sm:$0xff]
      %v3045 = vld [vmem:[%s2954 + $0x2d0] sm:$0xff]
      %v3046 = vld [vmem:[%s2954 + $0x2d8] sm:$0xff]
      %v3047 = vld [vmem:[%s2954 + $0x2e0] sm:$0xff]
      %v3048 = vld [vmem:[%s2954 + $0x2e8] sm:$0xff]
      %v3049 = vld [vmem:[%s2954 + $0x2f0] sm:$0xff]
      %v3050 = vld [vmem:[%s2954 + $0x2f8] sm:$0xff]
      %v3051 = vld [vmem:[%s2954 + $0x300] sm:$0xff]
      %v3052 = vld [vmem:[%s2954 + $0x308] sm:$0xff]
      %v3053 = vld [vmem:[%s2954 + $0x310] sm:$0xff]
      %v3054 = vld [vmem:[%s2954 + $0x318] sm:$0xff]
      %v3055 = vld [vmem:[%s2954 + $0x320] sm:$0xff]
      %v3056 = vld [vmem:[%s2954 + $0x328] sm:$0xff]
      %v3057 = vld [vmem:[%s2954 + $0x330] sm:$0xff]
      %v3058 = vld [vmem:[%s2954 + $0x338] sm:$0xff]
      %v3059 = vld [vmem:[%s2954 + $0x340] sm:$0xff]
      %v3060 = vld [vmem:[%s2954 + $0x348] sm:$0xff]
      %v3061 = vld [vmem:[%s2954 + $0x350] sm:$0xff]
      %v3062 = vld [vmem:[%s2954 + $0x358] sm:$0xff]
      %v3063 = vld [vmem:[%s2954 + $0x360] sm:$0xff]
      %v3064 = vld [vmem:[%s2954 + $0x368] sm:$0xff]
      %v3065 = vld [vmem:[%s2954 + $0x370] sm:$0xff]
      %v3066 = vld [vmem:[%s2954 + $0x378] sm:$0xff]
      %v3067 = vld [vmem:[%s2954 + $0x380] sm:$0xff]
      %v3068 = vld [vmem:[%s2954 + $0x388] sm:$0xff]
      %v3069 = vld [vmem:[%s2954 + $0x390] sm:$0xff]
      %v3070 = vld [vmem:[%s2954 + $0x398] sm:$0xff]
      %v3071 = vld [vmem:[%s2954 + $0x3a0] sm:$0xff]
      %v3072 = vld [vmem:[%s2954 + $0x3a8] sm:$0xff]
      %v3073 = vld [vmem:[%s2954 + $0x3b0] sm:$0xff]
      %v3074 = vld [vmem:[%s2954 + $0x3b8] sm:$0xff]
      %v3075 = vld [vmem:[%s2954 + $0x3c0] sm:$0xff]
      %v3076 = vld [vmem:[%s2954 + $0x3c8] sm:$0xff]
      %v3077 = vld [vmem:[%s2954 + $0x3d0] sm:$0xff]
      %v3078 = vld [vmem:[%s2954 + $0x3d8] sm:$0xff]
      %v3079 = vld [vmem:[%s2954 + $0x3e0] sm:$0xff]
      %v3080 = vld [vmem:[%s2954 + $0x3e8] sm:$0xff]
      %v3081 = vld [vmem:[%s2954 + $0x3f0] sm:$0xff]
      %v3082 = vld [vmem:[%s2954 + $0x3f8] sm:$0xff]
      %v3083 = vld [vmem:[%s2954 + $0x400] sm:$0xff]
      %v3084 = vld [vmem:[%s2954 + $0x408] sm:$0xff]
      %v3085 = vld [vmem:[%s2954 + $0x410] sm:$0xff]
      %v3086 = vld [vmem:[%s2954 + $0x418] sm:$0xff]
      %v3087 = vld [vmem:[%s2954 + $0x420] sm:$0xff]
      %v3088 = vld [vmem:[%s2954 + $0x428] sm:$0xff]
      %v3089 = vld [vmem:[%s2954 + $0x430] sm:$0xff]
      %v3090 = vld [vmem:[%s2954 + $0x438] sm:$0xff]
      %v3091 = vld [vmem:[%s2954 + $0x440] sm:$0xff]
      %v3092 = vld [vmem:[%s2954 + $0x448] sm:$0xff]
      %v3093 = vld [vmem:[%s2954 + $0x450] sm:$0xff]
      %v3094 = vld [vmem:[%s2954 + $0x458] sm:$0xff]
      %v3095 = vld [vmem:[%s2954 + $0x460] sm:$0xff]
      %v3096 = vld [vmem:[%s2954 + $0x468] sm:$0xff]
      %v3097 = vld [vmem:[%s2954 + $0x470] sm:$0xff]
      %v3098 = vld [vmem:[%s2954 + $0x478] sm:$0xff]
      %v3099 = vld [vmem:[%s2954 + $0x480] sm:$0xff]
      %v3100 = vld [vmem:[%s2954 + $0x488] sm:$0xff]
      %v3101 = vld [vmem:[%s2954 + $0x490] sm:$0xff]
      %v3102 = vld [vmem:[%s2954 + $0x498] sm:$0xff]
      %v3103 = vld [vmem:[%s2954 + $0x4a0] sm:$0xff]
      %v3104 = vld [vmem:[%s2954 + $0x4a8] sm:$0xff]
      %v3105 = vld [vmem:[%s2954 + $0x4b0] sm:$0xff]
      %v3106 = vld [vmem:[%s2954 + $0x4b8] sm:$0xff]
      %v3107 = vld [vmem:[%s2954 + $0x4c0] sm:$0xff]
      %v3108 = vld [vmem:[%s2954 + $0x4c8] sm:$0xff]
      %v3109 = vld [vmem:[%s2954 + $0x4d0] sm:$0xff]
      %v3110 = vld [vmem:[%s2954 + $0x4d8] sm:$0xff]
      %v3111 = vld [vmem:[%s2954 + $0x4e0] sm:$0xff]
      %v3112 = vld [vmem:[%s2954 + $0x4e8] sm:$0xff]
      %v3113 = vld [vmem:[%s2954 + $0x4f0] sm:$0xff]
      %v3114 = vld [vmem:[%s2954 + $0x4f8] sm:$0xff]
      %v3115 = vld [vmem:[%s2954 + $0x500] sm:$0xff]
      %v3116 = vld [vmem:[%s2954 + $0x508] sm:$0xff]
      %v3117 = vld [vmem:[%s2954 + $0x510] sm:$0xff]
      %v3118 = vld [vmem:[%s2954 + $0x518] sm:$0xff]
      %v3119 = vld [vmem:[%s2954 + $0x520] sm:$0xff]
      %v3120 = vld [vmem:[%s2954 + $0x528] sm:$0xff]
      %v3121 = vld [vmem:[%s2954 + $0x530] sm:$0xff]
      %v3122 = vld [vmem:[%s2954 + $0x538] sm:$0xff]
      %v3123 = vld [vmem:[%s2954 + $0x540] sm:$0xff]
      %v3124 = vld [vmem:[%s2954 + $0x548] sm:$0xff]
      %v3125 = vld [vmem:[%s2954 + $0x550] sm:$0xff]
      %v3126 = vld [vmem:[%s2954 + $0x558] sm:$0xff]
      %v3127 = vld [vmem:[%s2954 + $0x560] sm:$0xff]
      %v3128 = vld [vmem:[%s2954 + $0x568] sm:$0xff]
      %v3129 = vld [vmem:[%s2954 + $0x570] sm:$0xff]
      %v3130 = vld [vmem:[%s2954 + $0x578] sm:$0xff]
      %v3131 = vld [vmem:[%s2954 + $0x580] sm:$0xff]
      %v3132 = vld [vmem:[%s2954 + $0x588] sm:$0xff]
      %v3133 = vld [vmem:[%s2954 + $0x590] sm:$0xff]
      %v3134 = vld [vmem:[%s2954 + $0x598] sm:$0xff]
      %v3135 = vld [vmem:[%s2954 + $0x5a0] sm:$0xff]
      %v3136 = vld [vmem:[%s2954 + $0x5a8] sm:$0xff]
      %v3137 = vld [vmem:[%s2954 + $0x5b0] sm:$0xff]
      %v3138 = vld [vmem:[%s2954 + $0x5b8] sm:$0xff]
      %v3139 = vld [vmem:[%s2954 + $0x5c0] sm:$0xff]
      %v3140 = vld [vmem:[%s2954 + $0x5c8] sm:$0xff]
      %v3141 = vld [vmem:[%s2954 + $0x5d0] sm:$0xff]
      %v3142 = vld [vmem:[%s2954 + $0x5d8] sm:$0xff]
      %v3143 = vld [vmem:[%s2954 + $0x5e0] sm:$0xff]
      %v3144 = vld [vmem:[%s2954 + $0x5e8] sm:$0xff]
      %v3145 = vld [vmem:[%s2954 + $0x5f0] sm:$0xff]
      %v3146 = vld [vmem:[%s2954 + $0x5f8] sm:$0xff]
      %v3147 = vld [vmem:[%s2954 + $0x600] sm:$0xff]
      %v3148 = vld [vmem:[%s2954 + $0x608] sm:$0xff]
      %v3149 = vld [vmem:[%s2954 + $0x610] sm:$0xff]
      %v3150 = vld [vmem:[%s2954 + $0x618] sm:$0xff]
      %v3151 = vld [vmem:[%s2954 + $0x620] sm:$0xff]
      %v3152 = vld [vmem:[%s2954 + $0x628] sm:$0xff]
      %v3153 = vld [vmem:[%s2954 + $0x630] sm:$0xff]
      %v3154 = vld [vmem:[%s2954 + $0x638] sm:$0xff]
      %v3155 = vld [vmem:[%s2954 + $0x640] sm:$0xff]
      %v3156 = vld [vmem:[%s2954 + $0x648] sm:$0xff]
      %v3157 = vld [vmem:[%s2954 + $0x650] sm:$0xff]
      %v3158 = vld [vmem:[%s2954 + $0x658] sm:$0xff]
      %v3159 = vld [vmem:[%s2954 + $0x660] sm:$0xff]
      %v3160 = vld [vmem:[%s2954 + $0x668] sm:$0xff]
      %v3161 = vld [vmem:[%s2954 + $0x670] sm:$0xff]
      %v3162 = vld [vmem:[%s2954 + $0x678] sm:$0xff]
      %v3163 = vld [vmem:[%s2954 + $0x680] sm:$0xff]
      %v3164 = vld [vmem:[%s2954 + $0x688] sm:$0xff]
      %v3165 = vld [vmem:[%s2954 + $0x690] sm:$0xff]
      %v3166 = vld [vmem:[%s2954 + $0x698] sm:$0xff]
      %v3167 = vld [vmem:[%s2954 + $0x6a0] sm:$0xff]
      %v3168 = vld [vmem:[%s2954 + $0x6a8] sm:$0xff]
      %v3169 = vld [vmem:[%s2954 + $0x6b0] sm:$0xff]
      %v3170 = vld [vmem:[%s2954 + $0x6b8] sm:$0xff]
      %v3171 = vld [vmem:[%s2954 + $0x6c0] sm:$0xff]
      %v3172 = vld [vmem:[%s2954 + $0x6c8] sm:$0xff]
      %v3173 = vld [vmem:[%s2954 + $0x6d0] sm:$0xff]
      %v3174 = vld [vmem:[%s2954 + $0x6d8] sm:$0xff]
      %v3175 = vld [vmem:[%s2954 + $0x6e0] sm:$0xff]
      %v3176 = vld [vmem:[%s2954 + $0x6e8] sm:$0xff]
      %v3177 = vld [vmem:[%s2954 + $0x6f0] sm:$0xff]
      %v3178 = vld [vmem:[%s2954 + $0x6f8] sm:$0xff]
      %v3179 = vld [vmem:[%s2954 + $0x700] sm:$0xff]
      %v3180 = vld [vmem:[%s2954 + $0x708] sm:$0xff]
      %v3181 = vld [vmem:[%s2954 + $0x710] sm:$0xff]
      %v3182 = vld [vmem:[%s2954 + $0x718] sm:$0xff]
      %v3183 = vld [vmem:[%s2954 + $0x720] sm:$0xff]
      %v3184 = vld [vmem:[%s2954 + $0x728] sm:$0xff]
      %v3185 = vld [vmem:[%s2954 + $0x730] sm:$0xff]
      %v3186 = vld [vmem:[%s2954 + $0x738] sm:$0xff]
      %v3187 = vld [vmem:[%s2954 + $0x740] sm:$0xff]
      %v3188 = vld [vmem:[%s2954 + $0x748] sm:$0xff]
      %v3189 = vld [vmem:[%s2954 + $0x750] sm:$0xff]
      %v3190 = vld [vmem:[%s2954 + $0x758] sm:$0xff]
      %v3191 = vld [vmem:[%s2954 + $0x760] sm:$0xff]
      %v3192 = vld [vmem:[%s2954 + $0x768] sm:$0xff]
      %v3193 = vld [vmem:[%s2954 + $0x770] sm:$0xff]
      %v3194 = vld [vmem:[%s2954 + $0x778] sm:$0xff]
      %v3195 = vld [vmem:[%s2954 + $0x780] sm:$0xff]
      %v3196 = vld [vmem:[%s2954 + $0x788] sm:$0xff]
      %v3197 = vld [vmem:[%s2954 + $0x790] sm:$0xff]
      %v3198 = vld [vmem:[%s2954 + $0x798] sm:$0xff]
      %v3199 = vld [vmem:[%s2954 + $0x7a0] sm:$0xff]
      %v3200 = vld [vmem:[%s2954 + $0x7a8] sm:$0xff]
      %v3201 = vld [vmem:[%s2954 + $0x7b0] sm:$0xff]
      %v3202 = vld [vmem:[%s2954 + $0x7b8] sm:$0xff]
      %v3203 = vld [vmem:[%s2954 + $0x7c0] sm:$0xff]
      %v3204 = vld [vmem:[%s2954 + $0x7c8] sm:$0xff]
      %v3205 = vld [vmem:[%s2954 + $0x7d0] sm:$0xff]
      %v3206 = vld [vmem:[%s2954 + $0x7d8] sm:$0xff]
      %v3207 = vld [vmem:[%s2954 + $0x7e0] sm:$0xff]
      %v3208 = vld [vmem:[%s2954 + $0x7e8] sm:$0xff]
      %v3209 = vld [vmem:[%s2954 + $0x7f0] sm:$0xff]
      %v3210 = vld [vmem:[%s2954 + $0x7f8] sm:$0xff]
      %3211 = vmatprep.subr.mxu0 %v3016
      %3212 = vmatpush1.msra.mxu0 %v3015
      %3213 = vmatprep.subr.mxu0 %v3012
      %3214 = vmatpush1.msra.mxu0 %v3011
      %3215 = vmatprep.subr.mxu0 %v3008
      %3216 = vmatpush1.msra.mxu0 %v3007
      %3217 = vmatprep.subr.mxu0 %v3004
      %3218 = vmatpush1.msra.mxu0 %v3003
      %3219 = vmatprep.subr.mxu0 %v3000
      %3220 = vmatpush1.msra.mxu0 %v2999
      %3221 = vmatprep.subr.mxu0 %v2996
      %3222 = vmatpush1.msra.mxu0 %v2995
      %3223 = vmatprep.subr.mxu0 %v2992
      %3224 = vmatpush1.msra.mxu0 %v2991
      %3225 = vmatprep.subr.mxu0 %v2988
      %3226 = vmatpush1.msra.mxu0 %v2987
      %3227 = vmatprep.subr.mxu0 %v2984
      %3228 = vmatpush1.msra.mxu0 %v2983
      %3229 = vmatprep.subr.mxu0 %v2980
      %3230 = vmatpush1.msra.mxu0 %v2979
      %3231 = vmatprep.subr.mxu0 %v2976
      %3232 = vmatpush1.msra.mxu0 %v2975
      %3233 = vmatprep.subr.mxu0 %v2972
      %3234 = vmatpush1.msra.mxu0 %v2971
      %3235 = vmatprep.subr.mxu0 %v2968
      %3236 = vmatpush1.msra.mxu0 %v2967
      %3237 = vmatprep.subr.mxu0 %v2964
      %3238 = vmatpush1.msra.mxu0 %v2963
      %3239 = vmatprep.subr.mxu0 %v2960
      %3240 = vmatpush1.msra.mxu0 %v2959
      %3241 = vmatprep.subr.mxu0 %v2956
      %3242 = vmatpush1.msra.mxu0 %v2955
      %3243 = vmatprep.subr.mxu0 %v3080
      %3244 = vmatpush2.msra.mxu0 %v3079
      %3245 = vmatprep.subr.mxu0 %v3076
      %3246 = vmatpush2.msra.mxu0 %v3075
      %3247 = vmatprep.subr.mxu0 %v3072
      %3248 = vmatpush2.msra.mxu0 %v3071
      %3249 = vmatprep.subr.mxu0 %v3068
      %3250 = vmatpush2.msra.mxu0 %v3067
      %3251 = vmatprep.subr.mxu0 %v3064
      %3252 = vmatpush2.msra.mxu0 %v3063
      %3253 = vmatprep.subr.mxu0 %v3060
      %3254 = vmatpush2.msra.mxu0 %v3059
      %3255 = vmatprep.subr.mxu0 %v3056
      %3256 = vmatpush2.msra.mxu0 %v3055
      %3257 = vmatprep.subr.mxu0 %v3052
      %3258 = vmatpush2.msra.mxu0 %v3051
      %3259 = vmatprep.subr.mxu0 %v3048
      %3260 = vmatpush2.msra.mxu0 %v3047
      %3261 = vmatprep.subr.mxu0 %v3044
      %3262 = vmatpush2.msra.mxu0 %v3043
      %3263 = vmatprep.subr.mxu0 %v3040
      %3264 = vmatpush2.msra.mxu0 %v3039
      %3265 = vmatprep.subr.mxu0 %v3036
      %3266 = vmatpush2.msra.mxu0 %v3035
      %3267 = vmatprep.subr.mxu0 %v3032
      %3268 = vmatpush2.msra.mxu0 %v3031
      %3269 = vmatprep.subr.mxu0 %v3028
      %3270 = vmatpush2.msra.mxu0 %v3027
      %3271 = vmatprep.subr.mxu0 %v3024
      %3272 = vmatpush2.msra.mxu0 %v3023
      %3273 = vmatprep.subr.mxu0 %v3020
      %3274 = vmatpush2.msra.mxu0 %v3019
      %3275 = vmatprep.mubr.f32.mxu0 %v1577
      %3276 = vmatmul.mubr.f32.gmra.mxu0 %v1576
      %v3277 = vpop.f32.mrf.mxu0
      %v3278 = vadd.f32 0.0, %v3277
      %v3279 = vpop.f32.mrf.mxu0
      %v3280 = vadd.f32 0.0, %v3279
      %3281 = vdwg.mxu0
      %3282 = vmatprep.subr.mxu0 %v3144
      %3283 = vmatpush1.msra.mxu0 %v3143
      %3284 = vmatprep.subr.mxu0 %v3140
      %3285 = vmatpush1.msra.mxu0 %v3139
      %3286 = vmatprep.subr.mxu0 %v3136
      %3287 = vmatpush1.msra.mxu0 %v3135
      %3288 = vmatprep.subr.mxu0 %v3132
      %3289 = vmatpush1.msra.mxu0 %v3131
      %3290 = vmatprep.subr.mxu0 %v3128
      %3291 = vmatpush1.msra.mxu0 %v3127
      %3292 = vmatprep.subr.mxu0 %v3124
      %3293 = vmatpush1.msra.mxu0 %v3123
      %3294 = vmatprep.subr.mxu0 %v3120
      %3295 = vmatpush1.msra.mxu0 %v3119
      %3296 = vmatprep.subr.mxu0 %v3116
      %3297 = vmatpush1.msra.mxu0 %v3115
      %3298 = vmatprep.subr.mxu0 %v3112
      %3299 = vmatpush1.msra.mxu0 %v3111
      %3300 = vmatprep.subr.mxu0 %v3108
      %3301 = vmatpush1.msra.mxu0 %v3107
      %3302 = vmatprep.subr.mxu0 %v3104
      %3303 = vmatpush1.msra.mxu0 %v3103
      %3304 = vmatprep.subr.mxu0 %v3100
      %3305 = vmatpush1.msra.mxu0 %v3099
      %3306 = vmatprep.subr.mxu0 %v3096
      %3307 = vmatpush1.msra.mxu0 %v3095
      %3308 = vmatprep.subr.mxu0 %v3092
      %3309 = vmatpush1.msra.mxu0 %v3091
      %3310 = vmatprep.subr.mxu0 %v3088
      %3311 = vmatpush1.msra.mxu0 %v3087
      %3312 = vmatprep.subr.mxu0 %v3084
      %3313 = vmatpush1.msra.mxu0 %v3083
      %3314 = vmatprep.subr.mxu0 %v3208
      %3315 = vmatpush2.msra.mxu0 %v3207
      %3316 = vmatprep.subr.mxu0 %v3204
      %3317 = vmatpush2.msra.mxu0 %v3203
      %3318 = vmatprep.subr.mxu0 %v3200
      %3319 = vmatpush2.msra.mxu0 %v3199
      %3320 = vmatprep.subr.mxu0 %v3196
      %3321 = vmatpush2.msra.mxu0 %v3195
      %3322 = vmatprep.subr.mxu0 %v3192
      %3323 = vmatpush2.msra.mxu0 %v3191
      %3324 = vmatprep.subr.mxu0 %v3188
      %3325 = vmatpush2.msra.mxu0 %v3187
      %3326 = vmatprep.subr.mxu0 %v3184
      %3327 = vmatpush2.msra.mxu0 %v3183
      %3328 = vmatprep.subr.mxu0 %v3180
      %3329 = vmatpush2.msra.mxu0 %v3179
      %3330 = vmatprep.subr.mxu0 %v3176
      %3331 = vmatpush2.msra.mxu0 %v3175
      %3332 = vmatprep.subr.mxu0 %v3172
      %3333 = vmatpush2.msra.mxu0 %v3171
      %3334 = vmatprep.subr.mxu0 %v3168
      %3335 = vmatpush2.msra.mxu0 %v3167
      %3336 = vmatprep.subr.mxu0 %v3164
      %3337 = vmatpush2.msra.mxu0 %v3163
      %3338 = vmatprep.subr.mxu0 %v3160
      %3339 = vmatpush2.msra.mxu0 %v3159
      %3340 = vmatprep.subr.mxu0 %v3156
      %3341 = vmatpush2.msra.mxu0 %v3155
      %3342 = vmatprep.subr.mxu0 %v3152
      %3343 = vmatpush2.msra.mxu0 %v3151
      %3344 = vmatprep.subr.mxu0 %v3148
      %3345 = vmatpush2.msra.mxu0 %v3147
      %3346 = vmatprep.mubr.f32.mxu0 %v1579
      %3347 = vmatmul.mubr.f32.gmra.mxu0 %v1578
      %v3348 = vpop.f32.mrf.mxu0
      %v3349 = vadd.f32 %v3278, %v3348
      %v3350 = vpop.f32.mrf.mxu0
      %v3351 = vadd.f32 %v3280, %v3350
      %3352 = vdwg.mxu0
      %3353 = vmatprep.subr.mxu0 %v3018
      %3354 = vmatpush1.msra.mxu0 %v3017
      %3355 = vmatprep.subr.mxu0 %v3014
      %3356 = vmatpush1.msra.mxu0 %v3013
      %3357 = vmatprep.subr.mxu0 %v3010
      %3358 = vmatpush1.msra.mxu0 %v3009
      %3359 = vmatprep.subr.mxu0 %v3006
      %3360 = vmatpush1.msra.mxu0 %v3005
      %3361 = vmatprep.subr.mxu0 %v3002
      %3362 = vmatpush1.msra.mxu0 %v3001
      %3363 = vmatprep.subr.mxu0 %v2998
      %3364 = vmatpush1.msra.mxu0 %v2997
      %3365 = vmatprep.subr.mxu0 %v2994
      %3366 = vmatpush1.msra.mxu0 %v2993
      %3367 = vmatprep.subr.mxu0 %v2990
      %3368 = vmatpush1.msra.mxu0 %v2989
      %3369 = vmatprep.subr.mxu0 %v2986
      %3370 = vmatpush1.msra.mxu0 %v2985
      %3371 = vmatprep.subr.mxu0 %v2982
      %3372 = vmatpush1.msra.mxu0 %v2981
      %3373 = vmatprep.subr.mxu0 %v2978
      %3374 = vmatpush1.msra.mxu0 %v2977
      %3375 = vmatprep.subr.mxu0 %v2974
      %3376 = vmatpush1.msra.mxu0 %v2973
      %3377 = vmatprep.subr.mxu0 %v2970
      %3378 = vmatpush1.msra.mxu0 %v2969
      %3379 = vmatprep.subr.mxu0 %v2966
      %3380 = vmatpush1.msra.mxu0 %v2965
      %3381 = vmatprep.subr.mxu0 %v2962
      %3382 = vmatpush1.msra.mxu0 %v2961
      %3383 = vmatprep.subr.mxu0 %v2958
      %3384 = vmatpush1.msra.mxu0 %v2957
      %3385 = vmatprep.subr.mxu0 %v3082
      %3386 = vmatpush2.msra.mxu0 %v3081
      %3387 = vmatprep.subr.mxu0 %v3078
      %3388 = vmatpush2.msra.mxu0 %v3077
      %3389 = vmatprep.subr.mxu0 %v3074
      %3390 = vmatpush2.msra.mxu0 %v3073
      %3391 = vmatprep.subr.mxu0 %v3070
      %3392 = vmatpush2.msra.mxu0 %v3069
      %3393 = vmatprep.subr.mxu0 %v3066
      %3394 = vmatpush2.msra.mxu0 %v3065
      %3395 = vmatprep.subr.mxu0 %v3062
      %3396 = vmatpush2.msra.mxu0 %v3061
      %3397 = vmatprep.subr.mxu0 %v3058
      %3398 = vmatpush2.msra.mxu0 %v3057
      %3399 = vmatprep.subr.mxu0 %v3054
      %3400 = vmatpush2.msra.mxu0 %v3053
      %3401 = vmatprep.subr.mxu0 %v3050
      %3402 = vmatpush2.msra.mxu0 %v3049
      %3403 = vmatprep.subr.mxu0 %v3046
      %3404 = vmatpush2.msra.mxu0 %v3045
      %3405 = vmatprep.subr.mxu0 %v3042
      %3406 = vmatpush2.msra.mxu0 %v3041
      %3407 = vmatprep.subr.mxu0 %v3038
      %3408 = vmatpush2.msra.mxu0 %v3037
      %3409 = vmatprep.subr.mxu0 %v3034
      %3410 = vmatpush2.msra.mxu0 %v3033
      %3411 = vmatprep.subr.mxu0 %v3030
      %3412 = vmatpush2.msra.mxu0 %v3029
      %3413 = vmatprep.subr.mxu0 %v3026
      %3414 = vmatpush2.msra.mxu0 %v3025
      %3415 = vmatprep.subr.mxu0 %v3022
      %3416 = vmatpush2.msra.mxu0 %v3021
      %3417 = vmatprep.mubr.f32.mxu0 %v1577
      %3418 = vmatmul.mubr.f32.gmra.mxu0 %v1576
      %v3419 = vpop.f32.mrf.mxu0
      %v3420 = vadd.f32 0.0, %v3419
      %v3421 = vpop.f32.mrf.mxu0
      %v3422 = vadd.f32 0.0, %v3421
      %3423 = vdwg.mxu0
      %3424 = vmatprep.subr.mxu0 %v3146
      %3425 = vmatpush1.msra.mxu0 %v3145
      %3426 = vmatprep.subr.mxu0 %v3142
      %3427 = vmatpush1.msra.mxu0 %v3141
      %3428 = vmatprep.subr.mxu0 %v3138
      %3429 = vmatpush1.msra.mxu0 %v3137
      %3430 = vmatprep.subr.mxu0 %v3134
      %3431 = vmatpush1.msra.mxu0 %v3133
      %3432 = vmatprep.subr.mxu0 %v3130
      %3433 = vmatpush1.msra.mxu0 %v3129
      %3434 = vmatprep.subr.mxu0 %v3126
      %3435 = vmatpush1.msra.mxu0 %v3125
      %3436 = vmatprep.subr.mxu0 %v3122
      %3437 = vmatpush1.msra.mxu0 %v3121
      %3438 = vmatprep.subr.mxu0 %v3118
      %3439 = vmatpush1.msra.mxu0 %v3117
      %3440 = vmatprep.subr.mxu0 %v3114
      %3441 = vmatpush1.msra.mxu0 %v3113
      %3442 = vmatprep.subr.mxu0 %v3110
      %3443 = vmatpush1.msra.mxu0 %v3109
      %3444 = vmatprep.subr.mxu0 %v3106
      %3445 = vmatpush1.msra.mxu0 %v3105
      %3446 = vmatprep.subr.mxu0 %v3102
      %3447 = vmatpush1.msra.mxu0 %v3101
      %3448 = vmatprep.subr.mxu0 %v3098
      %3449 = vmatpush1.msra.mxu0 %v3097
      %3450 = vmatprep.subr.mxu0 %v3094
      %3451 = vmatpush1.msra.mxu0 %v3093
      %3452 = vmatprep.subr.mxu0 %v3090
      %3453 = vmatpush1.msra.mxu0 %v3089
      %3454 = vmatprep.subr.mxu0 %v3086
      %3455 = vmatpush1.msra.mxu0 %v3085
      %3456 = vmatprep.subr.mxu0 %v3210
      %3457 = vmatpush2.msra.mxu0 %v3209
      %3458 = vmatprep.subr.mxu0 %v3206
      %3459 = vmatpush2.msra.mxu0 %v3205
      %3460 = vmatprep.subr.mxu0 %v3202
      %3461 = vmatpush2.msra.mxu0 %v3201
      %3462 = vmatprep.subr.mxu0 %v3198
      %3463 = vmatpush2.msra.mxu0 %v3197
      %3464 = vmatprep.subr.mxu0 %v3194
      %3465 = vmatpush2.msra.mxu0 %v3193
      %3466 = vmatprep.subr.mxu0 %v3190
      %3467 = vmatpush2.msra.mxu0 %v3189
      %3468 = vmatprep.subr.mxu0 %v3186
      %3469 = vmatpush2.msra.mxu0 %v3185
      %3470 = vmatprep.subr.mxu0 %v3182
      %3471 = vmatpush2.msra.mxu0 %v3181
      %3472 = vmatprep.subr.mxu0 %v3178
      %3473 = vmatpush2.msra.mxu0 %v3177
      %3474 = vmatprep.subr.mxu0 %v3174
      %3475 = vmatpush2.msra.mxu0 %v3173
      %3476 = vmatprep.subr.mxu0 %v3170
      %3477 = vmatpush2.msra.mxu0 %v3169
      %3478 = vmatprep.subr.mxu0 %v3166
      %3479 = vmatpush2.msra.mxu0 %v3165
      %3480 = vmatprep.subr.mxu0 %v3162
      %3481 = vmatpush2.msra.mxu0 %v3161
      %3482 = vmatprep.subr.mxu0 %v3158
      %3483 = vmatpush2.msra.mxu0 %v3157
      %3484 = vmatprep.subr.mxu0 %v3154
      %3485 = vmatpush2.msra.mxu0 %v3153
      %3486 = vmatprep.subr.mxu0 %v3150
      %3487 = vmatpush2.msra.mxu0 %v3149
      %3488 = vmatprep.mubr.f32.mxu0 %v1579
      %3489 = vmatmul.mubr.f32.gmra.mxu0 %v1578
      %v3490 = vpop.f32.mrf.mxu0
      %v3491 = vadd.f32 %v3420, %v3490
      %v3492 = vpop.f32.mrf.mxu0
      %v3493 = vadd.f32 %v3422, %v3492
      %3494 = vdwg.mxu0
      %v3495 = vadd.f32 %v2808, %v3349
      %v3496 = vadd.f32 %v2810, %v3351
      %v3497 = vadd.f32 %v2950, %v3491
      %v3498 = vadd.f32 %v2952, %v3493
      %3499 = vmatprep.subr.mxu0 %v552
      %3500 = vmatpush1.msra.mxu0 %v551
      %3501 = vmatprep.subr.mxu0 %v548
      %3502 = vmatpush1.msra.mxu0 %v547
      %3503 = vmatprep.subr.mxu0 %v544
      %3504 = vmatpush1.msra.mxu0 %v543
      %3505 = vmatprep.subr.mxu0 %v540
      %3506 = vmatpush1.msra.mxu0 %v539
      %3507 = vmatprep.subr.mxu0 %v536
      %3508 = vmatpush1.msra.mxu0 %v535
      %3509 = vmatprep.subr.mxu0 %v532
      %3510 = vmatpush1.msra.mxu0 %v531
      %3511 = vmatprep.subr.mxu0 %v528
      %3512 = vmatpush1.msra.mxu0 %v527
      %3513 = vmatprep.subr.mxu0 %v524
      %3514 = vmatpush1.msra.mxu0 %v523
      %3515 = vmatprep.subr.mxu0 %v520
      %3516 = vmatpush1.msra.mxu0 %v519
      %3517 = vmatprep.subr.mxu0 %v516
      %3518 = vmatpush1.msra.mxu0 %v515
      %3519 = vmatprep.subr.mxu0 %v512
      %3520 = vmatpush1.msra.mxu0 %v511
      %3521 = vmatprep.subr.mxu0 %v508
      %3522 = vmatpush1.msra.mxu0 %v507
      %3523 = vmatprep.subr.mxu0 %v504
      %3524 = vmatpush1.msra.mxu0 %v503
      %3525 = vmatprep.subr.mxu0 %v500
      %3526 = vmatpush1.msra.mxu0 %v499
      %3527 = vmatprep.subr.mxu0 %v496
      %3528 = vmatpush1.msra.mxu0 %v495
      %3529 = vmatprep.subr.mxu0 %v492
      %3530 = vmatpush1.msra.mxu0 %v491
      %3531 = vmatprep.subr.mxu0 %v616
      %3532 = vmatpush2.msra.mxu0 %v615
      %3533 = vmatprep.subr.mxu0 %v612
      %3534 = vmatpush2.msra.mxu0 %v611
      %3535 = vmatprep.subr.mxu0 %v608
      %3536 = vmatpush2.msra.mxu0 %v607
      %3537 = vmatprep.subr.mxu0 %v604
      %3538 = vmatpush2.msra.mxu0 %v603
      %3539 = vmatprep.subr.mxu0 %v600
      %3540 = vmatpush2.msra.mxu0 %v599
      %3541 = vmatprep.subr.mxu0 %v596
      %3542 = vmatpush2.msra.mxu0 %v595
      %3543 = vmatprep.subr.mxu0 %v592
      %3544 = vmatpush2.msra.mxu0 %v591
      %3545 = vmatprep.subr.mxu0 %v588
      %3546 = vmatpush2.msra.mxu0 %v587
      %3547 = vmatprep.subr.mxu0 %v584
      %3548 = vmatpush2.msra.mxu0 %v583
      %3549 = vmatprep.subr.mxu0 %v580
      %3550 = vmatpush2.msra.mxu0 %v579
      %3551 = vmatprep.subr.mxu0 %v576
      %3552 = vmatpush2.msra.mxu0 %v575
      %3553 = vmatprep.subr.mxu0 %v572
      %3554 = vmatpush2.msra.mxu0 %v571
      %3555 = vmatprep.subr.mxu0 %v568
      %3556 = vmatpush2.msra.mxu0 %v567
      %3557 = vmatprep.subr.mxu0 %v564
      %3558 = vmatpush2.msra.mxu0 %v563
      %3559 = vmatprep.subr.mxu0 %v560
      %3560 = vmatpush2.msra.mxu0 %v559
      %3561 = vmatprep.subr.mxu0 %v556
      %3562 = vmatpush2.msra.mxu0 %v555
      %3563 = vmatprep.mubr.f32.mxu0 %v1577
      %3564 = vmatmul.mubr.f32.gmra.mxu0 %v1576
      %v3565 = vpop.f32.mrf.mxu0
      %v3566 = vadd.f32 0.0, %v3565
      %v3567 = vpop.f32.mrf.mxu0
      %v3568 = vadd.f32 0.0, %v3567
      %3569 = vdwg.mxu0
      %3570 = vmatprep.subr.mxu0 %v680
      %3571 = vmatpush1.msra.mxu0 %v679
      %3572 = vmatprep.subr.mxu0 %v676
      %3573 = vmatpush1.msra.mxu0 %v675
      %3574 = vmatprep.subr.mxu0 %v672
      %3575 = vmatpush1.msra.mxu0 %v671
      %3576 = vmatprep.subr.mxu0 %v668
      %3577 = vmatpush1.msra.mxu0 %v667
      %3578 = vmatprep.subr.mxu0 %v664
      %3579 = vmatpush1.msra.mxu0 %v663
      %3580 = vmatprep.subr.mxu0 %v660
      %3581 = vmatpush1.msra.mxu0 %v659
      %3582 = vmatprep.subr.mxu0 %v656
      %3583 = vmatpush1.msra.mxu0 %v655
      %3584 = vmatprep.subr.mxu0 %v652
      %3585 = vmatpush1.msra.mxu0 %v651
      %3586 = vmatprep.subr.mxu0 %v648
      %3587 = vmatpush1.msra.mxu0 %v647
      %3588 = vmatprep.subr.mxu0 %v644
      %3589 = vmatpush1.msra.mxu0 %v643
      %3590 = vmatprep.subr.mxu0 %v640
      %3591 = vmatpush1.msra.mxu0 %v639
      %3592 = vmatprep.subr.mxu0 %v636
      %3593 = vmatpush1.msra.mxu0 %v635
      %3594 = vmatprep.subr.mxu0 %v632
      %3595 = vmatpush1.msra.mxu0 %v631
      %3596 = vmatprep.subr.mxu0 %v628
      %3597 = vmatpush1.msra.mxu0 %v627
      %3598 = vmatprep.subr.mxu0 %v624
      %3599 = vmatpush1.msra.mxu0 %v623
      %3600 = vmatprep.subr.mxu0 %v620
      %3601 = vmatpush1.msra.mxu0 %v619
      %3602 = vmatprep.subr.mxu0 %v744
      %3603 = vmatpush2.msra.mxu0 %v743
      %3604 = vmatprep.subr.mxu0 %v740
      %3605 = vmatpush2.msra.mxu0 %v739
      %3606 = vmatprep.subr.mxu0 %v736
      %3607 = vmatpush2.msra.mxu0 %v735
      %3608 = vmatprep.subr.mxu0 %v732
      %3609 = vmatpush2.msra.mxu0 %v731
      %3610 = vmatprep.subr.mxu0 %v728
      %3611 = vmatpush2.msra.mxu0 %v727
      %3612 = vmatprep.subr.mxu0 %v724
      %3613 = vmatpush2.msra.mxu0 %v723
      %3614 = vmatprep.subr.mxu0 %v720
      %3615 = vmatpush2.msra.mxu0 %v719
      %3616 = vmatprep.subr.mxu0 %v716
      %3617 = vmatpush2.msra.mxu0 %v715
      %3618 = vmatprep.subr.mxu0 %v712
      %3619 = vmatpush2.msra.mxu0 %v711
      %3620 = vmatprep.subr.mxu0 %v708
      %3621 = vmatpush2.msra.mxu0 %v707
      %3622 = vmatprep.subr.mxu0 %v704
      %3623 = vmatpush2.msra.mxu0 %v703
      %3624 = vmatprep.subr.mxu0 %v700
      %3625 = vmatpush2.msra.mxu0 %v699
      %3626 = vmatprep.subr.mxu0 %v696
      %3627 = vmatpush2.msra.mxu0 %v695
      %3628 = vmatprep.subr.mxu0 %v692
      %3629 = vmatpush2.msra.mxu0 %v691
      %3630 = vmatprep.subr.mxu0 %v688
      %3631 = vmatpush2.msra.mxu0 %v687
      %3632 = vmatprep.subr.mxu0 %v684
      %3633 = vmatpush2.msra.mxu0 %v683
      %3634 = vmatprep.mubr.f32.mxu0 %v1579
      %3635 = vmatmul.mubr.f32.gmra.mxu0 %v1578
      %v3636 = vpop.f32.mrf.mxu0
      %v3637 = vadd.f32 %v3566, %v3636
      %v3638 = vpop.f32.mrf.mxu0
      %v3639 = vadd.f32 %v3568, %v3638
      %3640 = vdwg.mxu0
      %3641 = vmatprep.subr.mxu0 %v554
      %3642 = vmatpush1.msra.mxu0 %v553
      %3643 = vmatprep.subr.mxu0 %v550
      %3644 = vmatpush1.msra.mxu0 %v549
      %3645 = vmatprep.subr.mxu0 %v546
      %3646 = vmatpush1.msra.mxu0 %v545
      %3647 = vmatprep.subr.mxu0 %v542
      %3648 = vmatpush1.msra.mxu0 %v541
      %3649 = vmatprep.subr.mxu0 %v538
      %3650 = vmatpush1.msra.mxu0 %v537
      %3651 = vmatprep.subr.mxu0 %v534
      %3652 = vmatpush1.msra.mxu0 %v533
      %3653 = vmatprep.subr.mxu0 %v530
      %3654 = vmatpush1.msra.mxu0 %v529
      %3655 = vmatprep.subr.mxu0 %v526
      %3656 = vmatpush1.msra.mxu0 %v525
      %3657 = vmatprep.subr.mxu0 %v522
      %3658 = vmatpush1.msra.mxu0 %v521
      %3659 = vmatprep.subr.mxu0 %v518
      %3660 = vmatpush1.msra.mxu0 %v517
      %3661 = vmatprep.subr.mxu0 %v514
      %3662 = vmatpush1.msra.mxu0 %v513
      %3663 = vmatprep.subr.mxu0 %v510
      %3664 = vmatpush1.msra.mxu0 %v509
      %3665 = vmatprep.subr.mxu0 %v506
      %3666 = vmatpush1.msra.mxu0 %v505
      %3667 = vmatprep.subr.mxu0 %v502
      %3668 = vmatpush1.msra.mxu0 %v501
      %3669 = vmatprep.subr.mxu0 %v498
      %3670 = vmatpush1.msra.mxu0 %v497
      %3671 = vmatprep.subr.mxu0 %v494
      %3672 = vmatpush1.msra.mxu0 %v493
      %3673 = vmatprep.subr.mxu0 %v618
      %3674 = vmatpush2.msra.mxu0 %v617
      %3675 = vmatprep.subr.mxu0 %v614
      %3676 = vmatpush2.msra.mxu0 %v613
      %3677 = vmatprep.subr.mxu0 %v610
      %3678 = vmatpush2.msra.mxu0 %v609
      %3679 = vmatprep.subr.mxu0 %v606
      %3680 = vmatpush2.msra.mxu0 %v605
      %3681 = vmatprep.subr.mxu0 %v602
      %3682 = vmatpush2.msra.mxu0 %v601
      %3683 = vmatprep.subr.mxu0 %v598
      %3684 = vmatpush2.msra.mxu0 %v597
      %3685 = vmatprep.subr.mxu0 %v594
      %3686 = vmatpush2.msra.mxu0 %v593
      %3687 = vmatprep.subr.mxu0 %v590
      %3688 = vmatpush2.msra.mxu0 %v589
      %3689 = vmatprep.subr.mxu0 %v586
      %3690 = vmatpush2.msra.mxu0 %v585
      %3691 = vmatprep.subr.mxu0 %v582
      %3692 = vmatpush2.msra.mxu0 %v581
      %3693 = vmatprep.subr.mxu0 %v578
      %3694 = vmatpush2.msra.mxu0 %v577
      %3695 = vmatprep.subr.mxu0 %v574
      %3696 = vmatpush2.msra.mxu0 %v573
      %3697 = vmatprep.subr.mxu0 %v570
      %3698 = vmatpush2.msra.mxu0 %v569
      %3699 = vmatprep.subr.mxu0 %v566
      %3700 = vmatpush2.msra.mxu0 %v565
      %3701 = vmatprep.subr.mxu0 %v562
      %3702 = vmatpush2.msra.mxu0 %v561
      %3703 = vmatprep.subr.mxu0 %v558
      %3704 = vmatpush2.msra.mxu0 %v557
      %3705 = vmatprep.mubr.f32.mxu0 %v1577
      %3706 = vmatmul.mubr.f32.gmra.mxu0 %v1576
      %v3707 = vpop.f32.mrf.mxu0
      %v3708 = vadd.f32 0.0, %v3707
      %v3709 = vpop.f32.mrf.mxu0
      %v3710 = vadd.f32 0.0, %v3709
      %3711 = vdwg.mxu0
      %3712 = vmatprep.subr.mxu0 %v682
      %3713 = vmatpush1.msra.mxu0 %v681
      %3714 = vmatprep.subr.mxu0 %v678
      %3715 = vmatpush1.msra.mxu0 %v677
      %3716 = vmatprep.subr.mxu0 %v674
      %3717 = vmatpush1.msra.mxu0 %v673
      %3718 = vmatprep.subr.mxu0 %v670
      %3719 = vmatpush1.msra.mxu0 %v669
      %3720 = vmatprep.subr.mxu0 %v666
      %3721 = vmatpush1.msra.mxu0 %v665
      %3722 = vmatprep.subr.mxu0 %v662
      %3723 = vmatpush1.msra.mxu0 %v661
      %3724 = vmatprep.subr.mxu0 %v658
      %3725 = vmatpush1.msra.mxu0 %v657
      %3726 = vmatprep.subr.mxu0 %v654
      %3727 = vmatpush1.msra.mxu0 %v653
      %3728 = vmatprep.subr.mxu0 %v650
      %3729 = vmatpush1.msra.mxu0 %v649
      %3730 = vmatprep.subr.mxu0 %v646
      %3731 = vmatpush1.msra.mxu0 %v645
      %3732 = vmatprep.subr.mxu0 %v642
      %3733 = vmatpush1.msra.mxu0 %v641
      %3734 = vmatprep.subr.mxu0 %v638
      %3735 = vmatpush1.msra.mxu0 %v637
      %3736 = vmatprep.subr.mxu0 %v634
      %3737 = vmatpush1.msra.mxu0 %v633
      %3738 = vmatprep.subr.mxu0 %v630
      %3739 = vmatpush1.msra.mxu0 %v629
      %3740 = vmatprep.subr.mxu0 %v626
      %3741 = vmatpush1.msra.mxu0 %v625
      %3742 = vmatprep.subr.mxu0 %v622
      %3743 = vmatpush1.msra.mxu0 %v621
      %3744 = vmatprep.subr.mxu0 %v746
      %3745 = vmatpush2.msra.mxu0 %v745
      %3746 = vmatprep.subr.mxu0 %v742
      %3747 = vmatpush2.msra.mxu0 %v741
      %3748 = vmatprep.subr.mxu0 %v738
      %3749 = vmatpush2.msra.mxu0 %v737
      %3750 = vmatprep.subr.mxu0 %v734
      %3751 = vmatpush2.msra.mxu0 %v733
      %3752 = vmatprep.subr.mxu0 %v730
      %3753 = vmatpush2.msra.mxu0 %v729
      %3754 = vmatprep.subr.mxu0 %v726
      %3755 = vmatpush2.msra.mxu0 %v725
      %3756 = vmatprep.subr.mxu0 %v722
      %3757 = vmatpush2.msra.mxu0 %v721
      %3758 = vmatprep.subr.mxu0 %v718
      %3759 = vmatpush2.msra.mxu0 %v717
      %3760 = vmatprep.subr.mxu0 %v714
      %3761 = vmatpush2.msra.mxu0 %v713
      %3762 = vmatprep.subr.mxu0 %v710
      %3763 = vmatpush2.msra.mxu0 %v709
      %3764 = vmatprep.subr.mxu0 %v706
      %3765 = vmatpush2.msra.mxu0 %v705
      %3766 = vmatprep.subr.mxu0 %v702
      %3767 = vmatpush2.msra.mxu0 %v701
      %3768 = vmatprep.subr.mxu0 %v698
      %3769 = vmatpush2.msra.mxu0 %v697
      %3770 = vmatprep.subr.mxu0 %v694
      %3771 = vmatpush2.msra.mxu0 %v693
      %3772 = vmatprep.subr.mxu0 %v690
      %3773 = vmatpush2.msra.mxu0 %v689
      %3774 = vmatprep.subr.mxu0 %v686
      %3775 = vmatpush2.msra.mxu0 %v685
      %3776 = vmatprep.mubr.f32.mxu0 %v1579
      %3777 = vmatmul.mubr.f32.gmra.mxu0 %v1578
      %v3778 = vpop.f32.mrf.mxu0
      %v3779 = vadd.f32 %v3708, %v3778
      %v3780 = vpop.f32.mrf.mxu0
      %v3781 = vadd.f32 %v3710, %v3780
      %3782 = vdwg.mxu0
      %3783 = vmatprep.subr.mxu0 %v295
      %3784 = vmatpush1.msra.mxu0 %v294
      %3785 = vmatprep.subr.mxu0 %v291
      %3786 = vmatpush1.msra.mxu0 %v290
      %3787 = vmatprep.subr.mxu0 %v287
      %3788 = vmatpush1.msra.mxu0 %v286
      %3789 = vmatprep.subr.mxu0 %v283
      %3790 = vmatpush1.msra.mxu0 %v282
      %3791 = vmatprep.subr.mxu0 %v279
      %3792 = vmatpush1.msra.mxu0 %v278
      %3793 = vmatprep.subr.mxu0 %v275
      %3794 = vmatpush1.msra.mxu0 %v274
      %3795 = vmatprep.subr.mxu0 %v271
      %3796 = vmatpush1.msra.mxu0 %v270
      %3797 = vmatprep.subr.mxu0 %v267
      %3798 = vmatpush1.msra.mxu0 %v266
      %3799 = vmatprep.subr.mxu0 %v263
      %3800 = vmatpush1.msra.mxu0 %v262
      %3801 = vmatprep.subr.mxu0 %v259
      %3802 = vmatpush1.msra.mxu0 %v258
      %3803 = vmatprep.subr.mxu0 %v255
      %3804 = vmatpush1.msra.mxu0 %v254
      %3805 = vmatprep.subr.mxu0 %v251
      %3806 = vmatpush1.msra.mxu0 %v250
      %3807 = vmatprep.subr.mxu0 %v247
      %3808 = vmatpush1.msra.mxu0 %v246
      %3809 = vmatprep.subr.mxu0 %v243
      %3810 = vmatpush1.msra.mxu0 %v242
      %3811 = vmatprep.subr.mxu0 %v239
      %3812 = vmatpush1.msra.mxu0 %v238
      %3813 = vmatprep.subr.mxu0 %v235
      %3814 = vmatpush1.msra.mxu0 %v234
      %3815 = vmatprep.subr.mxu0 %v359
      %3816 = vmatpush2.msra.mxu0 %v358
      %3817 = vmatprep.subr.mxu0 %v355
      %3818 = vmatpush2.msra.mxu0 %v354
      %3819 = vmatprep.subr.mxu0 %v351
      %3820 = vmatpush2.msra.mxu0 %v350
      %3821 = vmatprep.subr.mxu0 %v347
      %3822 = vmatpush2.msra.mxu0 %v346
      %3823 = vmatprep.subr.mxu0 %v343
      %3824 = vmatpush2.msra.mxu0 %v342
      %3825 = vmatprep.subr.mxu0 %v339
      %3826 = vmatpush2.msra.mxu0 %v338
      %3827 = vmatprep.subr.mxu0 %v335
      %3828 = vmatpush2.msra.mxu0 %v334
      %3829 = vmatprep.subr.mxu0 %v331
      %3830 = vmatpush2.msra.mxu0 %v330
      %3831 = vmatprep.subr.mxu0 %v327
      %3832 = vmatpush2.msra.mxu0 %v326
      %3833 = vmatprep.subr.mxu0 %v323
      %3834 = vmatpush2.msra.mxu0 %v322
      %3835 = vmatprep.subr.mxu0 %v319
      %3836 = vmatpush2.msra.mxu0 %v318
      %3837 = vmatprep.subr.mxu0 %v315
      %3838 = vmatpush2.msra.mxu0 %v314
      %3839 = vmatprep.subr.mxu0 %v311
      %3840 = vmatpush2.msra.mxu0 %v310
      %3841 = vmatprep.subr.mxu0 %v307
      %3842 = vmatpush2.msra.mxu0 %v306
      %3843 = vmatprep.subr.mxu0 %v303
      %3844 = vmatpush2.msra.mxu0 %v302
      %3845 = vmatprep.subr.mxu0 %v299
      %3846 = vmatpush2.msra.mxu0 %v298
      %3847 = vmatprep.mubr.f32.mxu0 %v227
      %3848 = vmatmul.mubr.f32.gmra.mxu0 %v226
      %v3849 = vpop.f32.mrf.mxu0
      %v3850 = vadd.f32 %v3637, %v3849
      %v3851 = vpop.f32.mrf.mxu0
      %v3852 = vadd.f32 %v3639, %v3851
      %3853 = vdwg.mxu0
      %3854 = vmatprep.subr.mxu0 %v423
      %3855 = vmatpush1.msra.mxu0 %v422
      %3856 = vmatprep.subr.mxu0 %v419
      %3857 = vmatpush1.msra.mxu0 %v418
      %3858 = vmatprep.subr.mxu0 %v415
      %3859 = vmatpush1.msra.mxu0 %v414
      %3860 = vmatprep.subr.mxu0 %v411
      %3861 = vmatpush1.msra.mxu0 %v410
      %3862 = vmatprep.subr.mxu0 %v407
      %3863 = vmatpush1.msra.mxu0 %v406
      %3864 = vmatprep.subr.mxu0 %v403
      %3865 = vmatpush1.msra.mxu0 %v402
      %3866 = vmatprep.subr.mxu0 %v399
      %3867 = vmatpush1.msra.mxu0 %v398
      %3868 = vmatprep.subr.mxu0 %v395
      %3869 = vmatpush1.msra.mxu0 %v394
      %3870 = vmatprep.subr.mxu0 %v391
      %3871 = vmatpush1.msra.mxu0 %v390
      %3872 = vmatprep.subr.mxu0 %v387
      %3873 = vmatpush1.msra.mxu0 %v386
      %3874 = vmatprep.subr.mxu0 %v383
      %3875 = vmatpush1.msra.mxu0 %v382
      %3876 = vmatprep.subr.mxu0 %v379
      %3877 = vmatpush1.msra.mxu0 %v378
      %3878 = vmatprep.subr.mxu0 %v375
      %3879 = vmatpush1.msra.mxu0 %v374
      %3880 = vmatprep.subr.mxu0 %v371
      %3881 = vmatpush1.msra.mxu0 %v370
      %3882 = vmatprep.subr.mxu0 %v367
      %3883 = vmatpush1.msra.mxu0 %v366
      %3884 = vmatprep.subr.mxu0 %v363
      %3885 = vmatpush1.msra.mxu0 %v362
      %3886 = vmatprep.subr.mxu0 %v487
      %3887 = vmatpush2.msra.mxu0 %v486
      %3888 = vmatprep.subr.mxu0 %v483
      %3889 = vmatpush2.msra.mxu0 %v482
      %3890 = vmatprep.subr.mxu0 %v479
      %3891 = vmatpush2.msra.mxu0 %v478
      %3892 = vmatprep.subr.mxu0 %v475
      %3893 = vmatpush2.msra.mxu0 %v474
      %3894 = vmatprep.subr.mxu0 %v471
      %3895 = vmatpush2.msra.mxu0 %v470
      %3896 = vmatprep.subr.mxu0 %v467
      %3897 = vmatpush2.msra.mxu0 %v466
      %3898 = vmatprep.subr.mxu0 %v463
      %3899 = vmatpush2.msra.mxu0 %v462
      %3900 = vmatprep.subr.mxu0 %v459
      %3901 = vmatpush2.msra.mxu0 %v458
      %3902 = vmatprep.subr.mxu0 %v455
      %3903 = vmatpush2.msra.mxu0 %v454
      %3904 = vmatprep.subr.mxu0 %v451
      %3905 = vmatpush2.msra.mxu0 %v450
      %3906 = vmatprep.subr.mxu0 %v447
      %3907 = vmatpush2.msra.mxu0 %v446
      %3908 = vmatprep.subr.mxu0 %v443
      %3909 = vmatpush2.msra.mxu0 %v442
      %3910 = vmatprep.subr.mxu0 %v439
      %3911 = vmatpush2.msra.mxu0 %v438
      %3912 = vmatprep.subr.mxu0 %v435
      %3913 = vmatpush2.msra.mxu0 %v434
      %3914 = vmatprep.subr.mxu0 %v431
      %3915 = vmatpush2.msra.mxu0 %v430
      %3916 = vmatprep.subr.mxu0 %v427
      %3917 = vmatpush2.msra.mxu0 %v426
      %3918 = vmatprep.mubr.f32.mxu0 %v229
      %3919 = vmatmul.mubr.f32.gmra.mxu0 %v228
      %v3920 = vpop.f32.mrf.mxu0
      %v3921 = vadd.f32 %v3850, %v3920
      %v3922 = vpop.f32.mrf.mxu0
      %v3923 = vadd.f32 %v3852, %v3922
      %3924 = vdwg.mxu0
      %3925 = vmatprep.subr.mxu0 %v297
      %3926 = vmatpush1.msra.mxu0 %v296
      %3927 = vmatprep.subr.mxu0 %v293
      %3928 = vmatpush1.msra.mxu0 %v292
      %3929 = vmatprep.subr.mxu0 %v289
      %3930 = vmatpush1.msra.mxu0 %v288
      %3931 = vmatprep.subr.mxu0 %v285
      %3932 = vmatpush1.msra.mxu0 %v284
      %3933 = vmatprep.subr.mxu0 %v281
      %3934 = vmatpush1.msra.mxu0 %v280
      %3935 = vmatprep.subr.mxu0 %v277
      %3936 = vmatpush1.msra.mxu0 %v276
      %3937 = vmatprep.subr.mxu0 %v273
      %3938 = vmatpush1.msra.mxu0 %v272
      %3939 = vmatprep.subr.mxu0 %v269
      %3940 = vmatpush1.msra.mxu0 %v268
      %3941 = vmatprep.subr.mxu0 %v265
      %3942 = vmatpush1.msra.mxu0 %v264
      %3943 = vmatprep.subr.mxu0 %v261
      %3944 = vmatpush1.msra.mxu0 %v260
      %3945 = vmatprep.subr.mxu0 %v257
      %3946 = vmatpush1.msra.mxu0 %v256
      %3947 = vmatprep.subr.mxu0 %v253
      %3948 = vmatpush1.msra.mxu0 %v252
      %3949 = vmatprep.subr.mxu0 %v249
      %3950 = vmatpush1.msra.mxu0 %v248
      %3951 = vmatprep.subr.mxu0 %v245
      %3952 = vmatpush1.msra.mxu0 %v244
      %3953 = vmatprep.subr.mxu0 %v241
      %3954 = vmatpush1.msra.mxu0 %v240
      %3955 = vmatprep.subr.mxu0 %v237
      %3956 = vmatpush1.msra.mxu0 %v236
      %3957 = vmatprep.subr.mxu0 %v361
      %3958 = vmatpush2.msra.mxu0 %v360
      %3959 = vmatprep.subr.mxu0 %v357
      %3960 = vmatpush2.msra.mxu0 %v356
      %3961 = vmatprep.subr.mxu0 %v353
      %3962 = vmatpush2.msra.mxu0 %v352
      %3963 = vmatprep.subr.mxu0 %v349
      %3964 = vmatpush2.msra.mxu0 %v348
      %3965 = vmatprep.subr.mxu0 %v345
      %3966 = vmatpush2.msra.mxu0 %v344
      %3967 = vmatprep.subr.mxu0 %v341
      %3968 = vmatpush2.msra.mxu0 %v340
      %3969 = vmatprep.subr.mxu0 %v337
      %3970 = vmatpush2.msra.mxu0 %v336
      %3971 = vmatprep.subr.mxu0 %v333
      %3972 = vmatpush2.msra.mxu0 %v332
      %3973 = vmatprep.subr.mxu0 %v329
      %3974 = vmatpush2.msra.mxu0 %v328
      %3975 = vmatprep.subr.mxu0 %v325
      %3976 = vmatpush2.msra.mxu0 %v324
      %3977 = vmatprep.subr.mxu0 %v321
      %3978 = vmatpush2.msra.mxu0 %v320
      %3979 = vmatprep.subr.mxu0 %v317
      %3980 = vmatpush2.msra.mxu0 %v316
      %3981 = vmatprep.subr.mxu0 %v313
      %3982 = vmatpush2.msra.mxu0 %v312
      %3983 = vmatprep.subr.mxu0 %v309
      %3984 = vmatpush2.msra.mxu0 %v308
      %3985 = vmatprep.subr.mxu0 %v305
      %3986 = vmatpush2.msra.mxu0 %v304
      %3987 = vmatprep.subr.mxu0 %v301
      %3988 = vmatpush2.msra.mxu0 %v300
      %3989 = vmatprep.mubr.f32.mxu0 %v227
      %3990 = vmatmul.mubr.f32.gmra.mxu0 %v226
      %v3991 = vpop.f32.mrf.mxu0
      %v3992 = vadd.f32 %v3779, %v3991
      %v3993 = vpop.f32.mrf.mxu0
      %v3994 = vadd.f32 %v3781, %v3993
      %3995 = vdwg.mxu0
      %3996 = vmatprep.subr.mxu0 %v425
      %3997 = vmatpush1.msra.mxu0 %v424
      %3998 = vmatprep.subr.mxu0 %v421
      %3999 = vmatpush1.msra.mxu0 %v420
      %4000 = vmatprep.subr.mxu0 %v417
      %4001 = vmatpush1.msra.mxu0 %v416
      %4002 = vmatprep.subr.mxu0 %v413
      %4003 = vmatpush1.msra.mxu0 %v412
      %4004 = vmatprep.subr.mxu0 %v409
      %4005 = vmatpush1.msra.mxu0 %v408
      %4006 = vmatprep.subr.mxu0 %v405
      %4007 = vmatpush1.msra.mxu0 %v404
      %4008 = vmatprep.subr.mxu0 %v401
      %4009 = vmatpush1.msra.mxu0 %v400
      %4010 = vmatprep.subr.mxu0 %v397
      %4011 = vmatpush1.msra.mxu0 %v396
      %4012 = vmatprep.subr.mxu0 %v393
      %4013 = vmatpush1.msra.mxu0 %v392
      %4014 = vmatprep.subr.mxu0 %v389
      %4015 = vmatpush1.msra.mxu0 %v388
      %4016 = vmatprep.subr.mxu0 %v385
      %4017 = vmatpush1.msra.mxu0 %v384
      %4018 = vmatprep.subr.mxu0 %v381
      %4019 = vmatpush1.msra.mxu0 %v380
      %4020 = vmatprep.subr.mxu0 %v377
      %4021 = vmatpush1.msra.mxu0 %v376
      %4022 = vmatprep.subr.mxu0 %v373
      %4023 = vmatpush1.msra.mxu0 %v372
      %4024 = vmatprep.subr.mxu0 %v369
      %4025 = vmatpush1.msra.mxu0 %v368
      %4026 = vmatprep.subr.mxu0 %v365
      %4027 = vmatpush1.msra.mxu0 %v364
      %4028 = vmatprep.subr.mxu0 %v489
      %4029 = vmatpush2.msra.mxu0 %v488
      %4030 = vmatprep.subr.mxu0 %v485
      %4031 = vmatpush2.msra.mxu0 %v484
      %4032 = vmatprep.subr.mxu0 %v481
      %4033 = vmatpush2.msra.mxu0 %v480
      %4034 = vmatprep.subr.mxu0 %v477
      %4035 = vmatpush2.msra.mxu0 %v476
      %4036 = vmatprep.subr.mxu0 %v473
      %4037 = vmatpush2.msra.mxu0 %v472
      %4038 = vmatprep.subr.mxu0 %v469
      %4039 = vmatpush2.msra.mxu0 %v468
      %4040 = vmatprep.subr.mxu0 %v465
      %4041 = vmatpush2.msra.mxu0 %v464
      %4042 = vmatprep.subr.mxu0 %v461
      %4043 = vmatpush2.msra.mxu0 %v460
      %4044 = vmatprep.subr.mxu0 %v457
      %4045 = vmatpush2.msra.mxu0 %v456
      %4046 = vmatprep.subr.mxu0 %v453
      %4047 = vmatpush2.msra.mxu0 %v452
      %4048 = vmatprep.subr.mxu0 %v449
      %4049 = vmatpush2.msra.mxu0 %v448
      %4050 = vmatprep.subr.mxu0 %v445
      %4051 = vmatpush2.msra.mxu0 %v444
      %4052 = vmatprep.subr.mxu0 %v441
      %4053 = vmatpush2.msra.mxu0 %v440
      %4054 = vmatprep.subr.mxu0 %v437
      %4055 = vmatpush2.msra.mxu0 %v436
      %4056 = vmatprep.subr.mxu0 %v433
      %4057 = vmatpush2.msra.mxu0 %v432
      %4058 = vmatprep.subr.mxu0 %v429
      %4059 = vmatpush2.msra.mxu0 %v428
      %4060 = vmatprep.mubr.f32.mxu0 %v229
      %4061 = vmatmul.mubr.f32.gmra.mxu0 %v228
      %v4062 = vpop.f32.mrf.mxu0
      %v4063 = vadd.f32 %v3992, %v4062
      %v4064 = vpop.f32.mrf.mxu0
      %v4065 = vadd.f32 %v3994, %v4064
      %4066 = vdwg.mxu0
      %v4071 = vrot.slane %v230, 1
      %v4072 = vrot.slane %v231, 1
      %v4073 = vrot.slane %v232, 1
      %v4074 = vrot.slane %v233, 1
      %4079 = vmatprep.subr.mxu0 %v1377
      %4080 = vmatpush1.msra.mxu0 %v1376
      %4081 = vmatprep.subr.mxu0 %v1373
      %4082 = vmatpush1.msra.mxu0 %v1372
      %4083 = vmatprep.subr.mxu0 %v1369
      %4084 = vmatpush1.msra.mxu0 %v1368
      %4085 = vmatprep.subr.mxu0 %v1365
      %4086 = vmatpush1.msra.mxu0 %v1364
      %4087 = vmatprep.subr.mxu0 %v1361
      %4088 = vmatpush1.msra.mxu0 %v1360
      %4089 = vmatprep.subr.mxu0 %v1357
      %4090 = vmatpush1.msra.mxu0 %v1356
      %4091 = vmatprep.subr.mxu0 %v1353
      %4092 = vmatpush1.msra.mxu0 %v1352
      %4093 = vmatprep.subr.mxu0 %v1349
      %4094 = vmatpush1.msra.mxu0 %v1348
      %4095 = vmatprep.subr.mxu0 %v1345
      %4096 = vmatpush1.msra.mxu0 %v1344
      %4097 = vmatprep.subr.mxu0 %v1341
      %4098 = vmatpush1.msra.mxu0 %v1340
      %4099 = vmatprep.subr.mxu0 %v1337
      %4100 = vmatpush1.msra.mxu0 %v1336
      %4101 = vmatprep.subr.mxu0 %v1333
      %4102 = vmatpush1.msra.mxu0 %v1332
      %4103 = vmatprep.subr.mxu0 %v1329
      %4104 = vmatpush1.msra.mxu0 %v1328
      %4105 = vmatprep.subr.mxu0 %v1325
      %4106 = vmatpush1.msra.mxu0 %v1324
      %4107 = vmatprep.subr.mxu0 %v1321
      %4108 = vmatpush1.msra.mxu0 %v1320
      %4109 = vmatprep.subr.mxu0 %v1317
      %4110 = vmatpush1.msra.mxu0 %v1316
      %4111 = vmatprep.subr.mxu0 %v1441
      %4112 = vmatpush2.msra.mxu0 %v1440
      %4113 = vmatprep.subr.mxu0 %v1437
      %4114 = vmatpush2.msra.mxu0 %v1436
      %4115 = vmatprep.subr.mxu0 %v1433
      %4116 = vmatpush2.msra.mxu0 %v1432
      %4117 = vmatprep.subr.mxu0 %v1429
      %4118 = vmatpush2.msra.mxu0 %v1428
      %4119 = vmatprep.subr.mxu0 %v1425
      %4120 = vmatpush2.msra.mxu0 %v1424
      %4121 = vmatprep.subr.mxu0 %v1421
      %4122 = vmatpush2.msra.mxu0 %v1420
      %4123 = vmatprep.subr.mxu0 %v1417
      %4124 = vmatpush2.msra.mxu0 %v1416
      %4125 = vmatprep.subr.mxu0 %v1413
      %4126 = vmatpush2.msra.mxu0 %v1412
      %4127 = vmatprep.subr.mxu0 %v1409
      %4128 = vmatpush2.msra.mxu0 %v1408
      %4129 = vmatprep.subr.mxu0 %v1405
      %4130 = vmatpush2.msra.mxu0 %v1404
      %4131 = vmatprep.subr.mxu0 %v1401
      %4132 = vmatpush2.msra.mxu0 %v1400
      %4133 = vmatprep.subr.mxu0 %v1397
      %4134 = vmatpush2.msra.mxu0 %v1396
      %4135 = vmatprep.subr.mxu0 %v1393
      %4136 = vmatpush2.msra.mxu0 %v1392
      %4137 = vmatprep.subr.mxu0 %v1389
      %4138 = vmatpush2.msra.mxu0 %v1388
      %4139 = vmatprep.subr.mxu0 %v1385
      %4140 = vmatpush2.msra.mxu0 %v1384
      %4141 = vmatprep.subr.mxu0 %v1381
      %4142 = vmatpush2.msra.mxu0 %v1380
      %4143 = vmatprep.mubr.f32.mxu0 %v4072
      %4144 = vmatmul.mubr.f32.gmra.mxu0 %v4071
      %v4145 = vpop.f32.mrf.mxu0
      %v4146 = vadd.f32 0.0, %v4145
      %v4147 = vpop.f32.mrf.mxu0
      %v4148 = vadd.f32 0.0, %v4147
      %4149 = vdwg.mxu0
      %4150 = vmatprep.subr.mxu0 %v1505
      %4151 = vmatpush1.msra.mxu0 %v1504
      %4152 = vmatprep.subr.mxu0 %v1501
      %4153 = vmatpush1.msra.mxu0 %v1500
      %4154 = vmatprep.subr.mxu0 %v1497
      %4155 = vmatpush1.msra.mxu0 %v1496
      %4156 = vmatprep.subr.mxu0 %v1493
      %4157 = vmatpush1.msra.mxu0 %v1492
      %4158 = vmatprep.subr.mxu0 %v1489
      %4159 = vmatpush1.msra.mxu0 %v1488
      %4160 = vmatprep.subr.mxu0 %v1485
      %4161 = vmatpush1.msra.mxu0 %v1484
      %4162 = vmatprep.subr.mxu0 %v1481
      %4163 = vmatpush1.msra.mxu0 %v1480
      %4164 = vmatprep.subr.mxu0 %v1477
      %4165 = vmatpush1.msra.mxu0 %v1476
      %4166 = vmatprep.subr.mxu0 %v1473
      %4167 = vmatpush1.msra.mxu0 %v1472
      %4168 = vmatprep.subr.mxu0 %v1469
      %4169 = vmatpush1.msra.mxu0 %v1468
      %4170 = vmatprep.subr.mxu0 %v1465
      %4171 = vmatpush1.msra.mxu0 %v1464
      %4172 = vmatprep.subr.mxu0 %v1461
      %4173 = vmatpush1.msra.mxu0 %v1460
      %4174 = vmatprep.subr.mxu0 %v1457
      %4175 = vmatpush1.msra.mxu0 %v1456
      %4176 = vmatprep.subr.mxu0 %v1453
      %4177 = vmatpush1.msra.mxu0 %v1452
      %4178 = vmatprep.subr.mxu0 %v1449
      %4179 = vmatpush1.msra.mxu0 %v1448
      %4180 = vmatprep.subr.mxu0 %v1445
      %4181 = vmatpush1.msra.mxu0 %v1444
      %4182 = vmatprep.subr.mxu0 %v1569
      %4183 = vmatpush2.msra.mxu0 %v1568
      %4184 = vmatprep.subr.mxu0 %v1565
      %4185 = vmatpush2.msra.mxu0 %v1564
      %4186 = vmatprep.subr.mxu0 %v1561
      %4187 = vmatpush2.msra.mxu0 %v1560
      %4188 = vmatprep.subr.mxu0 %v1557
      %4189 = vmatpush2.msra.mxu0 %v1556
      %4190 = vmatprep.subr.mxu0 %v1553
      %4191 = vmatpush2.msra.mxu0 %v1552
      %4192 = vmatprep.subr.mxu0 %v1549
      %4193 = vmatpush2.msra.mxu0 %v1548
      %4194 = vmatprep.subr.mxu0 %v1545
      %4195 = vmatpush2.msra.mxu0 %v1544
      %4196 = vmatprep.subr.mxu0 %v1541
      %4197 = vmatpush2.msra.mxu0 %v1540
      %4198 = vmatprep.subr.mxu0 %v1537
      %4199 = vmatpush2.msra.mxu0 %v1536
      %4200 = vmatprep.subr.mxu0 %v1533
      %4201 = vmatpush2.msra.mxu0 %v1532
      %4202 = vmatprep.subr.mxu0 %v1529
      %4203 = vmatpush2.msra.mxu0 %v1528
      %4204 = vmatprep.subr.mxu0 %v1525
      %4205 = vmatpush2.msra.mxu0 %v1524
      %4206 = vmatprep.subr.mxu0 %v1521
      %4207 = vmatpush2.msra.mxu0 %v1520
      %4208 = vmatprep.subr.mxu0 %v1517
      %4209 = vmatpush2.msra.mxu0 %v1516
      %4210 = vmatprep.subr.mxu0 %v1513
      %4211 = vmatpush2.msra.mxu0 %v1512
      %4212 = vmatprep.subr.mxu0 %v1509
      %4213 = vmatpush2.msra.mxu0 %v1508
      %4214 = vmatprep.mubr.f32.mxu0 %v4074
      %4215 = vmatmul.mubr.f32.gmra.mxu0 %v4073
      %v4216 = vpop.f32.mrf.mxu0
      %v4217 = vadd.f32 %v4146, %v4216
      %v4218 = vpop.f32.mrf.mxu0
      %v4219 = vadd.f32 %v4148, %v4218
      %4220 = vdwg.mxu0
      %4221 = vmatprep.subr.mxu0 %v1379
      %4222 = vmatpush1.msra.mxu0 %v1378
      %4223 = vmatprep.subr.mxu0 %v1375
      %4224 = vmatpush1.msra.mxu0 %v1374
      %4225 = vmatprep.subr.mxu0 %v1371
      %4226 = vmatpush1.msra.mxu0 %v1370
      %4227 = vmatprep.subr.mxu0 %v1367
      %4228 = vmatpush1.msra.mxu0 %v1366
      %4229 = vmatprep.subr.mxu0 %v1363
      %4230 = vmatpush1.msra.mxu0 %v1362
      %4231 = vmatprep.subr.mxu0 %v1359
      %4232 = vmatpush1.msra.mxu0 %v1358
      %4233 = vmatprep.subr.mxu0 %v1355
      %4234 = vmatpush1.msra.mxu0 %v1354
      %4235 = vmatprep.subr.mxu0 %v1351
      %4236 = vmatpush1.msra.mxu0 %v1350
      %4237 = vmatprep.subr.mxu0 %v1347
      %4238 = vmatpush1.msra.mxu0 %v1346
      %4239 = vmatprep.subr.mxu0 %v1343
      %4240 = vmatpush1.msra.mxu0 %v1342
      %4241 = vmatprep.subr.mxu0 %v1339
      %4242 = vmatpush1.msra.mxu0 %v1338
      %4243 = vmatprep.subr.mxu0 %v1335
      %4244 = vmatpush1.msra.mxu0 %v1334
      %4245 = vmatprep.subr.mxu0 %v1331
      %4246 = vmatpush1.msra.mxu0 %v1330
      %4247 = vmatprep.subr.mxu0 %v1327
      %4248 = vmatpush1.msra.mxu0 %v1326
      %4249 = vmatprep.subr.mxu0 %v1323
      %4250 = vmatpush1.msra.mxu0 %v1322
      %4251 = vmatprep.subr.mxu0 %v1319
      %4252 = vmatpush1.msra.mxu0 %v1318
      %4253 = vmatprep.subr.mxu0 %v1443
      %4254 = vmatpush2.msra.mxu0 %v1442
      %4255 = vmatprep.subr.mxu0 %v1439
      %4256 = vmatpush2.msra.mxu0 %v1438
      %4257 = vmatprep.subr.mxu0 %v1435
      %4258 = vmatpush2.msra.mxu0 %v1434
      %4259 = vmatprep.subr.mxu0 %v1431
      %4260 = vmatpush2.msra.mxu0 %v1430
      %4261 = vmatprep.subr.mxu0 %v1427
      %4262 = vmatpush2.msra.mxu0 %v1426
      %4263 = vmatprep.subr.mxu0 %v1423
      %4264 = vmatpush2.msra.mxu0 %v1422
      %4265 = vmatprep.subr.mxu0 %v1419
      %4266 = vmatpush2.msra.mxu0 %v1418
      %4267 = vmatprep.subr.mxu0 %v1415
      %4268 = vmatpush2.msra.mxu0 %v1414
      %4269 = vmatprep.subr.mxu0 %v1411
      %4270 = vmatpush2.msra.mxu0 %v1410
      %4271 = vmatprep.subr.mxu0 %v1407
      %4272 = vmatpush2.msra.mxu0 %v1406
      %4273 = vmatprep.subr.mxu0 %v1403
      %4274 = vmatpush2.msra.mxu0 %v1402
      %4275 = vmatprep.subr.mxu0 %v1399
      %4276 = vmatpush2.msra.mxu0 %v1398
      %4277 = vmatprep.subr.mxu0 %v1395
      %4278 = vmatpush2.msra.mxu0 %v1394
      %4279 = vmatprep.subr.mxu0 %v1391
      %4280 = vmatpush2.msra.mxu0 %v1390
      %4281 = vmatprep.subr.mxu0 %v1387
      %4282 = vmatpush2.msra.mxu0 %v1386
      %4283 = vmatprep.subr.mxu0 %v1383
      %4284 = vmatpush2.msra.mxu0 %v1382
      %4285 = vmatprep.mubr.f32.mxu0 %v4072
      %4286 = vmatmul.mubr.f32.gmra.mxu0 %v4071
      %v4287 = vpop.f32.mrf.mxu0
      %v4288 = vadd.f32 0.0, %v4287
      %v4289 = vpop.f32.mrf.mxu0
      %v4290 = vadd.f32 0.0, %v4289
      %4291 = vdwg.mxu0
      %4292 = vmatprep.subr.mxu0 %v1507
      %4293 = vmatpush1.msra.mxu0 %v1506
      %4294 = vmatprep.subr.mxu0 %v1503
      %4295 = vmatpush1.msra.mxu0 %v1502
      %4296 = vmatprep.subr.mxu0 %v1499
      %4297 = vmatpush1.msra.mxu0 %v1498
      %4298 = vmatprep.subr.mxu0 %v1495
      %4299 = vmatpush1.msra.mxu0 %v1494
      %4300 = vmatprep.subr.mxu0 %v1491
      %4301 = vmatpush1.msra.mxu0 %v1490
      %4302 = vmatprep.subr.mxu0 %v1487
      %4303 = vmatpush1.msra.mxu0 %v1486
      %4304 = vmatprep.subr.mxu0 %v1483
      %4305 = vmatpush1.msra.mxu0 %v1482
      %4306 = vmatprep.subr.mxu0 %v1479
      %4307 = vmatpush1.msra.mxu0 %v1478
      %4308 = vmatprep.subr.mxu0 %v1475
      %4309 = vmatpush1.msra.mxu0 %v1474
      %4310 = vmatprep.subr.mxu0 %v1471
      %4311 = vmatpush1.msra.mxu0 %v1470
      %4312 = vmatprep.subr.mxu0 %v1467
      %4313 = vmatpush1.msra.mxu0 %v1466
      %4314 = vmatprep.subr.mxu0 %v1463
      %4315 = vmatpush1.msra.mxu0 %v1462
      %4316 = vmatprep.subr.mxu0 %v1459
      %4317 = vmatpush1.msra.mxu0 %v1458
      %4318 = vmatprep.subr.mxu0 %v1455
      %4319 = vmatpush1.msra.mxu0 %v1454
      %4320 = vmatprep.subr.mxu0 %v1451
      %4321 = vmatpush1.msra.mxu0 %v1450
      %4322 = vmatprep.subr.mxu0 %v1447
      %4323 = vmatpush1.msra.mxu0 %v1446
      %4324 = vmatprep.subr.mxu0 %v1571
      %4325 = vmatpush2.msra.mxu0 %v1570
      %4326 = vmatprep.subr.mxu0 %v1567
      %4327 = vmatpush2.msra.mxu0 %v1566
      %4328 = vmatprep.subr.mxu0 %v1563
      %4329 = vmatpush2.msra.mxu0 %v1562
      %4330 = vmatprep.subr.mxu0 %v1559
      %4331 = vmatpush2.msra.mxu0 %v1558
      %4332 = vmatprep.subr.mxu0 %v1555
      %4333 = vmatpush2.msra.mxu0 %v1554
      %4334 = vmatprep.subr.mxu0 %v1551
      %4335 = vmatpush2.msra.mxu0 %v1550
      %4336 = vmatprep.subr.mxu0 %v1547
      %4337 = vmatpush2.msra.mxu0 %v1546
      %4338 = vmatprep.subr.mxu0 %v1543
      %4339 = vmatpush2.msra.mxu0 %v1542
      %4340 = vmatprep.subr.mxu0 %v1539
      %4341 = vmatpush2.msra.mxu0 %v1538
      %4342 = vmatprep.subr.mxu0 %v1535
      %4343 = vmatpush2.msra.mxu0 %v1534
      %4344 = vmatprep.subr.mxu0 %v1531
      %4345 = vmatpush2.msra.mxu0 %v1530
      %4346 = vmatprep.subr.mxu0 %v1527
      %4347 = vmatpush2.msra.mxu0 %v1526
      %4348 = vmatprep.subr.mxu0 %v1523
      %4349 = vmatpush2.msra.mxu0 %v1522
      %4350 = vmatprep.subr.mxu0 %v1519
      %4351 = vmatpush2.msra.mxu0 %v1518
      %4352 = vmatprep.subr.mxu0 %v1515
      %4353 = vmatpush2.msra.mxu0 %v1514
      %4354 = vmatprep.subr.mxu0 %v1511
      %4355 = vmatpush2.msra.mxu0 %v1510
      %4356 = vmatprep.mubr.f32.mxu0 %v4074
      %4357 = vmatmul.mubr.f32.gmra.mxu0 %v4073
      %v4358 = vpop.f32.mrf.mxu0
      %v4359 = vadd.f32 %v4288, %v4358
      %v4360 = vpop.f32.mrf.mxu0
      %v4361 = vadd.f32 %v4290, %v4360
      %4362 = vdwg.mxu0
      %v4363 = vadd.f32 %v3921, %v4217
      %v4364 = vadd.f32 %v3923, %v4219
      %v4365 = vadd.f32 %v4063, %v4359
      %v4366 = vadd.f32 %v4065, %v4361
      %4367 = vmatprep.subr.mxu0 %v2191
      %4368 = vmatpush1.msra.mxu0 %v2190
      %4369 = vmatprep.subr.mxu0 %v2187
      %4370 = vmatpush1.msra.mxu0 %v2186
      %4371 = vmatprep.subr.mxu0 %v2183
      %4372 = vmatpush1.msra.mxu0 %v2182
      %4373 = vmatprep.subr.mxu0 %v2179
      %4374 = vmatpush1.msra.mxu0 %v2178
      %4375 = vmatprep.subr.mxu0 %v2175
      %4376 = vmatpush1.msra.mxu0 %v2174
      %4377 = vmatprep.subr.mxu0 %v2171
      %4378 = vmatpush1.msra.mxu0 %v2170
      %4379 = vmatprep.subr.mxu0 %v2167
      %4380 = vmatpush1.msra.mxu0 %v2166
      %4381 = vmatprep.subr.mxu0 %v2163
      %4382 = vmatpush1.msra.mxu0 %v2162
      %4383 = vmatprep.subr.mxu0 %v2159
      %4384 = vmatpush1.msra.mxu0 %v2158
      %4385 = vmatprep.subr.mxu0 %v2155
      %4386 = vmatpush1.msra.mxu0 %v2154
      %4387 = vmatprep.subr.mxu0 %v2151
      %4388 = vmatpush1.msra.mxu0 %v2150
      %4389 = vmatprep.subr.mxu0 %v2147
      %4390 = vmatpush1.msra.mxu0 %v2146
      %4391 = vmatprep.subr.mxu0 %v2143
      %4392 = vmatpush1.msra.mxu0 %v2142
      %4393 = vmatprep.subr.mxu0 %v2139
      %4394 = vmatpush1.msra.mxu0 %v2138
      %4395 = vmatprep.subr.mxu0 %v2135
      %4396 = vmatpush1.msra.mxu0 %v2134
      %4397 = vmatprep.subr.mxu0 %v2131
      %4398 = vmatpush1.msra.mxu0 %v2130
      %4399 = vmatprep.subr.mxu0 %v2255
      %4400 = vmatpush2.msra.mxu0 %v2254
      %4401 = vmatprep.subr.mxu0 %v2251
      %4402 = vmatpush2.msra.mxu0 %v2250
      %4403 = vmatprep.subr.mxu0 %v2247
      %4404 = vmatpush2.msra.mxu0 %v2246
      %4405 = vmatprep.subr.mxu0 %v2243
      %4406 = vmatpush2.msra.mxu0 %v2242
      %4407 = vmatprep.subr.mxu0 %v2239
      %4408 = vmatpush2.msra.mxu0 %v2238
      %4409 = vmatprep.subr.mxu0 %v2235
      %4410 = vmatpush2.msra.mxu0 %v2234
      %4411 = vmatprep.subr.mxu0 %v2231
      %4412 = vmatpush2.msra.mxu0 %v2230
      %4413 = vmatprep.subr.mxu0 %v2227
      %4414 = vmatpush2.msra.mxu0 %v2226
      %4415 = vmatprep.subr.mxu0 %v2223
      %4416 = vmatpush2.msra.mxu0 %v2222
      %4417 = vmatprep.subr.mxu0 %v2219
      %4418 = vmatpush2.msra.mxu0 %v2218
      %4419 = vmatprep.subr.mxu0 %v2215
      %4420 = vmatpush2.msra.mxu0 %v2214
      %4421 = vmatprep.subr.mxu0 %v2211
      %4422 = vmatpush2.msra.mxu0 %v2210
      %4423 = vmatprep.subr.mxu0 %v2207
      %4424 = vmatpush2.msra.mxu0 %v2206
      %4425 = vmatprep.subr.mxu0 %v2203
      %4426 = vmatpush2.msra.mxu0 %v2202
      %4427 = vmatprep.subr.mxu0 %v2199
      %4428 = vmatpush2.msra.mxu0 %v2198
      %4429 = vmatprep.subr.mxu0 %v2195
      %4430 = vmatpush2.msra.mxu0 %v2194
      %4431 = vmatprep.mubr.f32.mxu0 %v1577
      %4432 = vmatmul.mubr.f32.gmra.mxu0 %v1576
      %v4433 = vpop.f32.mrf.mxu0
      %v4434 = vadd.f32 0.0, %v4433
      %v4435 = vpop.f32.mrf.mxu0
      %v4436 = vadd.f32 0.0, %v4435
      %4437 = vdwg.mxu0
      %4438 = vmatprep.subr.mxu0 %v2319
      %4439 = vmatpush1.msra.mxu0 %v2318
      %4440 = vmatprep.subr.mxu0 %v2315
      %4441 = vmatpush1.msra.mxu0 %v2314
      %4442 = vmatprep.subr.mxu0 %v2311
      %4443 = vmatpush1.msra.mxu0 %v2310
      %4444 = vmatprep.subr.mxu0 %v2307
      %4445 = vmatpush1.msra.mxu0 %v2306
      %4446 = vmatprep.subr.mxu0 %v2303
      %4447 = vmatpush1.msra.mxu0 %v2302
      %4448 = vmatprep.subr.mxu0 %v2299
      %4449 = vmatpush1.msra.mxu0 %v2298
      %4450 = vmatprep.subr.mxu0 %v2295
      %4451 = vmatpush1.msra.mxu0 %v2294
      %4452 = vmatprep.subr.mxu0 %v2291
      %4453 = vmatpush1.msra.mxu0 %v2290
      %4454 = vmatprep.subr.mxu0 %v2287
      %4455 = vmatpush1.msra.mxu0 %v2286
      %4456 = vmatprep.subr.mxu0 %v2283
      %4457 = vmatpush1.msra.mxu0 %v2282
      %4458 = vmatprep.subr.mxu0 %v2279
      %4459 = vmatpush1.msra.mxu0 %v2278
      %4460 = vmatprep.subr.mxu0 %v2275
      %4461 = vmatpush1.msra.mxu0 %v2274
      %4462 = vmatprep.subr.mxu0 %v2271
      %4463 = vmatpush1.msra.mxu0 %v2270
      %4464 = vmatprep.subr.mxu0 %v2267
      %4465 = vmatpush1.msra.mxu0 %v2266
      %4466 = vmatprep.subr.mxu0 %v2263
      %4467 = vmatpush1.msra.mxu0 %v2262
      %4468 = vmatprep.subr.mxu0 %v2259
      %4469 = vmatpush1.msra.mxu0 %v2258
      %4470 = vmatprep.subr.mxu0 %v2383
      %4471 = vmatpush2.msra.mxu0 %v2382
      %4472 = vmatprep.subr.mxu0 %v2379
      %4473 = vmatpush2.msra.mxu0 %v2378
      %4474 = vmatprep.subr.mxu0 %v2375
      %4475 = vmatpush2.msra.mxu0 %v2374
      %4476 = vmatprep.subr.mxu0 %v2371
      %4477 = vmatpush2.msra.mxu0 %v2370
      %4478 = vmatprep.subr.mxu0 %v2367
      %4479 = vmatpush2.msra.mxu0 %v2366
      %4480 = vmatprep.subr.mxu0 %v2363
      %4481 = vmatpush2.msra.mxu0 %v2362
      %4482 = vmatprep.subr.mxu0 %v2359
      %4483 = vmatpush2.msra.mxu0 %v2358
      %4484 = vmatprep.subr.mxu0 %v2355
      %4485 = vmatpush2.msra.mxu0 %v2354
      %4486 = vmatprep.subr.mxu0 %v2351
      %4487 = vmatpush2.msra.mxu0 %v2350
      %4488 = vmatprep.subr.mxu0 %v2347
      %4489 = vmatpush2.msra.mxu0 %v2346
      %4490 = vmatprep.subr.mxu0 %v2343
      %4491 = vmatpush2.msra.mxu0 %v2342
      %4492 = vmatprep.subr.mxu0 %v2339
      %4493 = vmatpush2.msra.mxu0 %v2338
      %4494 = vmatprep.subr.mxu0 %v2335
      %4495 = vmatpush2.msra.mxu0 %v2334
      %4496 = vmatprep.subr.mxu0 %v2331
      %4497 = vmatpush2.msra.mxu0 %v2330
      %4498 = vmatprep.subr.mxu0 %v2327
      %4499 = vmatpush2.msra.mxu0 %v2326
      %4500 = vmatprep.subr.mxu0 %v2323
      %4501 = vmatpush2.msra.mxu0 %v2322
      %4502 = vmatprep.mubr.f32.mxu0 %v1579
      %4503 = vmatmul.mubr.f32.gmra.mxu0 %v1578
      %v4504 = vpop.f32.mrf.mxu0
      %v4505 = vadd.f32 %v4434, %v4504
      %v4506 = vpop.f32.mrf.mxu0
      %v4507 = vadd.f32 %v4436, %v4506
      %4508 = vdwg.mxu0
      %4509 = vmatprep.subr.mxu0 %v2193
      %4510 = vmatpush1.msra.mxu0 %v2192
      %4511 = vmatprep.subr.mxu0 %v2189
      %4512 = vmatpush1.msra.mxu0 %v2188
      %4513 = vmatprep.subr.mxu0 %v2185
      %4514 = vmatpush1.msra.mxu0 %v2184
      %4515 = vmatprep.subr.mxu0 %v2181
      %4516 = vmatpush1.msra.mxu0 %v2180
      %4517 = vmatprep.subr.mxu0 %v2177
      %4518 = vmatpush1.msra.mxu0 %v2176
      %4519 = vmatprep.subr.mxu0 %v2173
      %4520 = vmatpush1.msra.mxu0 %v2172
      %4521 = vmatprep.subr.mxu0 %v2169
      %4522 = vmatpush1.msra.mxu0 %v2168
      %4523 = vmatprep.subr.mxu0 %v2165
      %4524 = vmatpush1.msra.mxu0 %v2164
      %4525 = vmatprep.subr.mxu0 %v2161
      %4526 = vmatpush1.msra.mxu0 %v2160
      %4527 = vmatprep.subr.mxu0 %v2157
      %4528 = vmatpush1.msra.mxu0 %v2156
      %4529 = vmatprep.subr.mxu0 %v2153
      %4530 = vmatpush1.msra.mxu0 %v2152
      %4531 = vmatprep.subr.mxu0 %v2149
      %4532 = vmatpush1.msra.mxu0 %v2148
      %4533 = vmatprep.subr.mxu0 %v2145
      %4534 = vmatpush1.msra.mxu0 %v2144
      %4535 = vmatprep.subr.mxu0 %v2141
      %4536 = vmatpush1.msra.mxu0 %v2140
      %4537 = vmatprep.subr.mxu0 %v2137
      %4538 = vmatpush1.msra.mxu0 %v2136
      %4539 = vmatprep.subr.mxu0 %v2133
      %4540 = vmatpush1.msra.mxu0 %v2132
      %4541 = vmatprep.subr.mxu0 %v2257
      %4542 = vmatpush2.msra.mxu0 %v2256
      %4543 = vmatprep.subr.mxu0 %v2253
      %4544 = vmatpush2.msra.mxu0 %v2252
      %4545 = vmatprep.subr.mxu0 %v2249
      %4546 = vmatpush2.msra.mxu0 %v2248
      %4547 = vmatprep.subr.mxu0 %v2245
      %4548 = vmatpush2.msra.mxu0 %v2244
      %4549 = vmatprep.subr.mxu0 %v2241
      %4550 = vmatpush2.msra.mxu0 %v2240
      %4551 = vmatprep.subr.mxu0 %v2237
      %4552 = vmatpush2.msra.mxu0 %v2236
      %4553 = vmatprep.subr.mxu0 %v2233
      %4554 = vmatpush2.msra.mxu0 %v2232
      %4555 = vmatprep.subr.mxu0 %v2229
      %4556 = vmatpush2.msra.mxu0 %v2228
      %4557 = vmatprep.subr.mxu0 %v2225
      %4558 = vmatpush2.msra.mxu0 %v2224
      %4559 = vmatprep.subr.mxu0 %v2221
      %4560 = vmatpush2.msra.mxu0 %v2220
      %4561 = vmatprep.subr.mxu0 %v2217
      %4562 = vmatpush2.msra.mxu0 %v2216
      %4563 = vmatprep.subr.mxu0 %v2213
      %4564 = vmatpush2.msra.mxu0 %v2212
      %4565 = vmatprep.subr.mxu0 %v2209
      %4566 = vmatpush2.msra.mxu0 %v2208
      %4567 = vmatprep.subr.mxu0 %v2205
      %4568 = vmatpush2.msra.mxu0 %v2204
      %4569 = vmatprep.subr.mxu0 %v2201
      %4570 = vmatpush2.msra.mxu0 %v2200
      %4571 = vmatprep.subr.mxu0 %v2197
      %4572 = vmatpush2.msra.mxu0 %v2196
      %4573 = vmatprep.mubr.f32.mxu0 %v1577
      %4574 = vmatmul.mubr.f32.gmra.mxu0 %v1576
      %v4575 = vpop.f32.mrf.mxu0
      %v4576 = vadd.f32 0.0, %v4575
      %v4577 = vpop.f32.mrf.mxu0
      %v4578 = vadd.f32 0.0, %v4577
      %4579 = vdwg.mxu0
      %4580 = vmatprep.subr.mxu0 %v2321
      %4581 = vmatpush1.msra.mxu0 %v2320
      %4582 = vmatprep.subr.mxu0 %v2317
      %4583 = vmatpush1.msra.mxu0 %v2316
      %4584 = vmatprep.subr.mxu0 %v2313
      %4585 = vmatpush1.msra.mxu0 %v2312
      %4586 = vmatprep.subr.mxu0 %v2309
      %4587 = vmatpush1.msra.mxu0 %v2308
      %4588 = vmatprep.subr.mxu0 %v2305
      %4589 = vmatpush1.msra.mxu0 %v2304
      %4590 = vmatprep.subr.mxu0 %v2301
      %4591 = vmatpush1.msra.mxu0 %v2300
      %4592 = vmatprep.subr.mxu0 %v2297
      %4593 = vmatpush1.msra.mxu0 %v2296
      %4594 = vmatprep.subr.mxu0 %v2293
      %4595 = vmatpush1.msra.mxu0 %v2292
      %4596 = vmatprep.subr.mxu0 %v2289
      %4597 = vmatpush1.msra.mxu0 %v2288
      %4598 = vmatprep.subr.mxu0 %v2285
      %4599 = vmatpush1.msra.mxu0 %v2284
      %4600 = vmatprep.subr.mxu0 %v2281
      %4601 = vmatpush1.msra.mxu0 %v2280
      %4602 = vmatprep.subr.mxu0 %v2277
      %4603 = vmatpush1.msra.mxu0 %v2276
      %4604 = vmatprep.subr.mxu0 %v2273
      %4605 = vmatpush1.msra.mxu0 %v2272
      %4606 = vmatprep.subr.mxu0 %v2269
      %4607 = vmatpush1.msra.mxu0 %v2268
      %4608 = vmatprep.subr.mxu0 %v2265
      %4609 = vmatpush1.msra.mxu0 %v2264
      %4610 = vmatprep.subr.mxu0 %v2261
      %4611 = vmatpush1.msra.mxu0 %v2260
      %4612 = vmatprep.subr.mxu0 %v2385
      %4613 = vmatpush2.msra.mxu0 %v2384
      %4614 = vmatprep.subr.mxu0 %v2381
      %4615 = vmatpush2.msra.mxu0 %v2380
      %4616 = vmatprep.subr.mxu0 %v2377
      %4617 = vmatpush2.msra.mxu0 %v2376
      %4618 = vmatprep.subr.mxu0 %v2373
      %4619 = vmatpush2.msra.mxu0 %v2372
      %4620 = vmatprep.subr.mxu0 %v2369
      %4621 = vmatpush2.msra.mxu0 %v2368
      %4622 = vmatprep.subr.mxu0 %v2365
      %4623 = vmatpush2.msra.mxu0 %v2364
      %4624 = vmatprep.subr.mxu0 %v2361
      %4625 = vmatpush2.msra.mxu0 %v2360
      %4626 = vmatprep.subr.mxu0 %v2357
      %4627 = vmatpush2.msra.mxu0 %v2356
      %4628 = vmatprep.subr.mxu0 %v2353
      %4629 = vmatpush2.msra.mxu0 %v2352
      %4630 = vmatprep.subr.mxu0 %v2349
      %4631 = vmatpush2.msra.mxu0 %v2348
      %4632 = vmatprep.subr.mxu0 %v2345
      %4633 = vmatpush2.msra.mxu0 %v2344
      %4634 = vmatprep.subr.mxu0 %v2341
      %4635 = vmatpush2.msra.mxu0 %v2340
      %4636 = vmatprep.subr.mxu0 %v2337
      %4637 = vmatpush2.msra.mxu0 %v2336
      %4638 = vmatprep.subr.mxu0 %v2333
      %4639 = vmatpush2.msra.mxu0 %v2332
      %4640 = vmatprep.subr.mxu0 %v2329
      %4641 = vmatpush2.msra.mxu0 %v2328
      %4642 = vmatprep.subr.mxu0 %v2325
      %4643 = vmatpush2.msra.mxu0 %v2324
      %4644 = vmatprep.mubr.f32.mxu0 %v1579
      %4645 = vmatmul.mubr.f32.gmra.mxu0 %v1578
      %v4646 = vpop.f32.mrf.mxu0
      %v4647 = vadd.f32 %v4576, %v4646
      %v4648 = vpop.f32.mrf.mxu0
      %v4649 = vadd.f32 %v4578, %v4648
      %4650 = vdwg.mxu0
      %4651 = vmatprep.subr.mxu0 %v1934
      %4652 = vmatpush1.msra.mxu0 %v1933
      %4653 = vmatprep.subr.mxu0 %v1930
      %4654 = vmatpush1.msra.mxu0 %v1929
      %4655 = vmatprep.subr.mxu0 %v1926
      %4656 = vmatpush1.msra.mxu0 %v1925
      %4657 = vmatprep.subr.mxu0 %v1922
      %4658 = vmatpush1.msra.mxu0 %v1921
      %4659 = vmatprep.subr.mxu0 %v1918
      %4660 = vmatpush1.msra.mxu0 %v1917
      %4661 = vmatprep.subr.mxu0 %v1914
      %4662 = vmatpush1.msra.mxu0 %v1913
      %4663 = vmatprep.subr.mxu0 %v1910
      %4664 = vmatpush1.msra.mxu0 %v1909
      %4665 = vmatprep.subr.mxu0 %v1906
      %4666 = vmatpush1.msra.mxu0 %v1905
      %4667 = vmatprep.subr.mxu0 %v1902
      %4668 = vmatpush1.msra.mxu0 %v1901
      %4669 = vmatprep.subr.mxu0 %v1898
      %4670 = vmatpush1.msra.mxu0 %v1897
      %4671 = vmatprep.subr.mxu0 %v1894
      %4672 = vmatpush1.msra.mxu0 %v1893
      %4673 = vmatprep.subr.mxu0 %v1890
      %4674 = vmatpush1.msra.mxu0 %v1889
      %4675 = vmatprep.subr.mxu0 %v1886
      %4676 = vmatpush1.msra.mxu0 %v1885
      %4677 = vmatprep.subr.mxu0 %v1882
      %4678 = vmatpush1.msra.mxu0 %v1881
      %4679 = vmatprep.subr.mxu0 %v1878
      %4680 = vmatpush1.msra.mxu0 %v1877
      %4681 = vmatprep.subr.mxu0 %v1874
      %4682 = vmatpush1.msra.mxu0 %v1873
      %4683 = vmatprep.subr.mxu0 %v1998
      %4684 = vmatpush2.msra.mxu0 %v1997
      %4685 = vmatprep.subr.mxu0 %v1994
      %4686 = vmatpush2.msra.mxu0 %v1993
      %4687 = vmatprep.subr.mxu0 %v1990
      %4688 = vmatpush2.msra.mxu0 %v1989
      %4689 = vmatprep.subr.mxu0 %v1986
      %4690 = vmatpush2.msra.mxu0 %v1985
      %4691 = vmatprep.subr.mxu0 %v1982
      %4692 = vmatpush2.msra.mxu0 %v1981
      %4693 = vmatprep.subr.mxu0 %v1978
      %4694 = vmatpush2.msra.mxu0 %v1977
      %4695 = vmatprep.subr.mxu0 %v1974
      %4696 = vmatpush2.msra.mxu0 %v1973
      %4697 = vmatprep.subr.mxu0 %v1970
      %4698 = vmatpush2.msra.mxu0 %v1969
      %4699 = vmatprep.subr.mxu0 %v1966
      %4700 = vmatpush2.msra.mxu0 %v1965
      %4701 = vmatprep.subr.mxu0 %v1962
      %4702 = vmatpush2.msra.mxu0 %v1961
      %4703 = vmatprep.subr.mxu0 %v1958
      %4704 = vmatpush2.msra.mxu0 %v1957
      %4705 = vmatprep.subr.mxu0 %v1954
      %4706 = vmatpush2.msra.mxu0 %v1953
      %4707 = vmatprep.subr.mxu0 %v1950
      %4708 = vmatpush2.msra.mxu0 %v1949
      %4709 = vmatprep.subr.mxu0 %v1946
      %4710 = vmatpush2.msra.mxu0 %v1945
      %4711 = vmatprep.subr.mxu0 %v1942
      %4712 = vmatpush2.msra.mxu0 %v1941
      %4713 = vmatprep.subr.mxu0 %v1938
      %4714 = vmatpush2.msra.mxu0 %v1937
      %4715 = vmatprep.mubr.f32.mxu0 %v227
      %4716 = vmatmul.mubr.f32.gmra.mxu0 %v226
      %v4717 = vpop.f32.mrf.mxu0
      %v4718 = vadd.f32 %v4505, %v4717
      %v4719 = vpop.f32.mrf.mxu0
      %v4720 = vadd.f32 %v4507, %v4719
      %4721 = vdwg.mxu0
      %4722 = vmatprep.subr.mxu0 %v2062
      %4723 = vmatpush1.msra.mxu0 %v2061
      %4724 = vmatprep.subr.mxu0 %v2058
      %4725 = vmatpush1.msra.mxu0 %v2057
      %4726 = vmatprep.subr.mxu0 %v2054
      %4727 = vmatpush1.msra.mxu0 %v2053
      %4728 = vmatprep.subr.mxu0 %v2050
      %4729 = vmatpush1.msra.mxu0 %v2049
      %4730 = vmatprep.subr.mxu0 %v2046
      %4731 = vmatpush1.msra.mxu0 %v2045
      %4732 = vmatprep.subr.mxu0 %v2042
      %4733 = vmatpush1.msra.mxu0 %v2041
      %4734 = vmatprep.subr.mxu0 %v2038
      %4735 = vmatpush1.msra.mxu0 %v2037
      %4736 = vmatprep.subr.mxu0 %v2034
      %4737 = vmatpush1.msra.mxu0 %v2033
      %4738 = vmatprep.subr.mxu0 %v2030
      %4739 = vmatpush1.msra.mxu0 %v2029
      %4740 = vmatprep.subr.mxu0 %v2026
      %4741 = vmatpush1.msra.mxu0 %v2025
      %4742 = vmatprep.subr.mxu0 %v2022
      %4743 = vmatpush1.msra.mxu0 %v2021
      %4744 = vmatprep.subr.mxu0 %v2018
      %4745 = vmatpush1.msra.mxu0 %v2017
      %4746 = vmatprep.subr.mxu0 %v2014
      %4747 = vmatpush1.msra.mxu0 %v2013
      %4748 = vmatprep.subr.mxu0 %v2010
      %4749 = vmatpush1.msra.mxu0 %v2009
      %4750 = vmatprep.subr.mxu0 %v2006
      %4751 = vmatpush1.msra.mxu0 %v2005
      %4752 = vmatprep.subr.mxu0 %v2002
      %4753 = vmatpush1.msra.mxu0 %v2001
      %4754 = vmatprep.subr.mxu0 %v2126
      %4755 = vmatpush2.msra.mxu0 %v2125
      %4756 = vmatprep.subr.mxu0 %v2122
      %4757 = vmatpush2.msra.mxu0 %v2121
      %4758 = vmatprep.subr.mxu0 %v2118
      %4759 = vmatpush2.msra.mxu0 %v2117
      %4760 = vmatprep.subr.mxu0 %v2114
      %4761 = vmatpush2.msra.mxu0 %v2113
      %4762 = vmatprep.subr.mxu0 %v2110
      %4763 = vmatpush2.msra.mxu0 %v2109
      %4764 = vmatprep.subr.mxu0 %v2106
      %4765 = vmatpush2.msra.mxu0 %v2105
      %4766 = vmatprep.subr.mxu0 %v2102
      %4767 = vmatpush2.msra.mxu0 %v2101
      %4768 = vmatprep.subr.mxu0 %v2098
      %4769 = vmatpush2.msra.mxu0 %v2097
      %4770 = vmatprep.subr.mxu0 %v2094
      %4771 = vmatpush2.msra.mxu0 %v2093
      %4772 = vmatprep.subr.mxu0 %v2090
      %4773 = vmatpush2.msra.mxu0 %v2089
      %4774 = vmatprep.subr.mxu0 %v2086
      %4775 = vmatpush2.msra.mxu0 %v2085
      %4776 = vmatprep.subr.mxu0 %v2082
      %4777 = vmatpush2.msra.mxu0 %v2081
      %4778 = vmatprep.subr.mxu0 %v2078
      %4779 = vmatpush2.msra.mxu0 %v2077
      %4780 = vmatprep.subr.mxu0 %v2074
      %4781 = vmatpush2.msra.mxu0 %v2073
      %4782 = vmatprep.subr.mxu0 %v2070
      %4783 = vmatpush2.msra.mxu0 %v2069
      %4784 = vmatprep.subr.mxu0 %v2066
      %4785 = vmatpush2.msra.mxu0 %v2065
      %4786 = vmatprep.mubr.f32.mxu0 %v229
      %4787 = vmatmul.mubr.f32.gmra.mxu0 %v228
      %v4788 = vpop.f32.mrf.mxu0
      %v4789 = vadd.f32 %v4718, %v4788
      %v4790 = vpop.f32.mrf.mxu0
      %v4791 = vadd.f32 %v4720, %v4790
      %4792 = vdwg.mxu0
      %4793 = vmatprep.subr.mxu0 %v1936
      %4794 = vmatpush1.msra.mxu0 %v1935
      %4795 = vmatprep.subr.mxu0 %v1932
      %4796 = vmatpush1.msra.mxu0 %v1931
      %4797 = vmatprep.subr.mxu0 %v1928
      %4798 = vmatpush1.msra.mxu0 %v1927
      %4799 = vmatprep.subr.mxu0 %v1924
      %4800 = vmatpush1.msra.mxu0 %v1923
      %4801 = vmatprep.subr.mxu0 %v1920
      %4802 = vmatpush1.msra.mxu0 %v1919
      %4803 = vmatprep.subr.mxu0 %v1916
      %4804 = vmatpush1.msra.mxu0 %v1915
      %4805 = vmatprep.subr.mxu0 %v1912
      %4806 = vmatpush1.msra.mxu0 %v1911
      %4807 = vmatprep.subr.mxu0 %v1908
      %4808 = vmatpush1.msra.mxu0 %v1907
      %4809 = vmatprep.subr.mxu0 %v1904
      %4810 = vmatpush1.msra.mxu0 %v1903
      %4811 = vmatprep.subr.mxu0 %v1900
      %4812 = vmatpush1.msra.mxu0 %v1899
      %4813 = vmatprep.subr.mxu0 %v1896
      %4814 = vmatpush1.msra.mxu0 %v1895
      %4815 = vmatprep.subr.mxu0 %v1892
      %4816 = vmatpush1.msra.mxu0 %v1891
      %4817 = vmatprep.subr.mxu0 %v1888
      %4818 = vmatpush1.msra.mxu0 %v1887
      %4819 = vmatprep.subr.mxu0 %v1884
      %4820 = vmatpush1.msra.mxu0 %v1883
      %4821 = vmatprep.subr.mxu0 %v1880
      %4822 = vmatpush1.msra.mxu0 %v1879
      %4823 = vmatprep.subr.mxu0 %v1876
      %4824 = vmatpush1.msra.mxu0 %v1875
      %4825 = vmatprep.subr.mxu0 %v2000
      %4826 = vmatpush2.msra.mxu0 %v1999
      %4827 = vmatprep.subr.mxu0 %v1996
      %4828 = vmatpush2.msra.mxu0 %v1995
      %4829 = vmatprep.subr.mxu0 %v1992
      %4830 = vmatpush2.msra.mxu0 %v1991
      %4831 = vmatprep.subr.mxu0 %v1988
      %4832 = vmatpush2.msra.mxu0 %v1987
      %4833 = vmatprep.subr.mxu0 %v1984
      %4834 = vmatpush2.msra.mxu0 %v1983
      %4835 = vmatprep.subr.mxu0 %v1980
      %4836 = vmatpush2.msra.mxu0 %v1979
      %4837 = vmatprep.subr.mxu0 %v1976
      %4838 = vmatpush2.msra.mxu0 %v1975
      %4839 = vmatprep.subr.mxu0 %v1972
      %4840 = vmatpush2.msra.mxu0 %v1971
      %4841 = vmatprep.subr.mxu0 %v1968
      %4842 = vmatpush2.msra.mxu0 %v1967
      %4843 = vmatprep.subr.mxu0 %v1964
      %4844 = vmatpush2.msra.mxu0 %v1963
      %4845 = vmatprep.subr.mxu0 %v1960
      %4846 = vmatpush2.msra.mxu0 %v1959
      %4847 = vmatprep.subr.mxu0 %v1956
      %4848 = vmatpush2.msra.mxu0 %v1955
      %4849 = vmatprep.subr.mxu0 %v1952
      %4850 = vmatpush2.msra.mxu0 %v1951
      %4851 = vmatprep.subr.mxu0 %v1948
      %4852 = vmatpush2.msra.mxu0 %v1947
      %4853 = vmatprep.subr.mxu0 %v1944
      %4854 = vmatpush2.msra.mxu0 %v1943
      %4855 = vmatprep.subr.mxu0 %v1940
      %4856 = vmatpush2.msra.mxu0 %v1939
      %4857 = vmatprep.mubr.f32.mxu0 %v227
      %4858 = vmatmul.mubr.f32.gmra.mxu0 %v226
      %v4859 = vpop.f32.mrf.mxu0
      %v4860 = vadd.f32 %v4647, %v4859
      %v4861 = vpop.f32.mrf.mxu0
      %v4862 = vadd.f32 %v4649, %v4861
      %4863 = vdwg.mxu0
      %4864 = vmatprep.subr.mxu0 %v2064
      %4865 = vmatpush1.msra.mxu0 %v2063
      %4866 = vmatprep.subr.mxu0 %v2060
      %4867 = vmatpush1.msra.mxu0 %v2059
      %4868 = vmatprep.subr.mxu0 %v2056
      %4869 = vmatpush1.msra.mxu0 %v2055
      %4870 = vmatprep.subr.mxu0 %v2052
      %4871 = vmatpush1.msra.mxu0 %v2051
      %4872 = vmatprep.subr.mxu0 %v2048
      %4873 = vmatpush1.msra.mxu0 %v2047
      %4874 = vmatprep.subr.mxu0 %v2044
      %4875 = vmatpush1.msra.mxu0 %v2043
      %4876 = vmatprep.subr.mxu0 %v2040
      %4877 = vmatpush1.msra.mxu0 %v2039
      %4878 = vmatprep.subr.mxu0 %v2036
      %4879 = vmatpush1.msra.mxu0 %v2035
      %4880 = vmatprep.subr.mxu0 %v2032
      %4881 = vmatpush1.msra.mxu0 %v2031
      %4882 = vmatprep.subr.mxu0 %v2028
      %4883 = vmatpush1.msra.mxu0 %v2027
      %4884 = vmatprep.subr.mxu0 %v2024
      %4885 = vmatpush1.msra.mxu0 %v2023
      %4886 = vmatprep.subr.mxu0 %v2020
      %4887 = vmatpush1.msra.mxu0 %v2019
      %4888 = vmatprep.subr.mxu0 %v2016
      %4889 = vmatpush1.msra.mxu0 %v2015
      %4890 = vmatprep.subr.mxu0 %v2012
      %4891 = vmatpush1.msra.mxu0 %v2011
      %4892 = vmatprep.subr.mxu0 %v2008
      %4893 = vmatpush1.msra.mxu0 %v2007
      %4894 = vmatprep.subr.mxu0 %v2004
      %4895 = vmatpush1.msra.mxu0 %v2003
      %4896 = vmatprep.subr.mxu0 %v2128
      %4897 = vmatpush2.msra.mxu0 %v2127
      %4898 = vmatprep.subr.mxu0 %v2124
      %4899 = vmatpush2.msra.mxu0 %v2123
      %4900 = vmatprep.subr.mxu0 %v2120
      %4901 = vmatpush2.msra.mxu0 %v2119
      %4902 = vmatprep.subr.mxu0 %v2116
      %4903 = vmatpush2.msra.mxu0 %v2115
      %4904 = vmatprep.subr.mxu0 %v2112
      %4905 = vmatpush2.msra.mxu0 %v2111
      %4906 = vmatprep.subr.mxu0 %v2108
      %4907 = vmatpush2.msra.mxu0 %v2107
      %4908 = vmatprep.subr.mxu0 %v2104
      %4909 = vmatpush2.msra.mxu0 %v2103
      %4910 = vmatprep.subr.mxu0 %v2100
      %4911 = vmatpush2.msra.mxu0 %v2099
      %4912 = vmatprep.subr.mxu0 %v2096
      %4913 = vmatpush2.msra.mxu0 %v2095
      %4914 = vmatprep.subr.mxu0 %v2092
      %4915 = vmatpush2.msra.mxu0 %v2091
      %4916 = vmatprep.subr.mxu0 %v2088
      %4917 = vmatpush2.msra.mxu0 %v2087
      %4918 = vmatprep.subr.mxu0 %v2084
      %4919 = vmatpush2.msra.mxu0 %v2083
      %4920 = vmatprep.subr.mxu0 %v2080
      %4921 = vmatpush2.msra.mxu0 %v2079
      %4922 = vmatprep.subr.mxu0 %v2076
      %4923 = vmatpush2.msra.mxu0 %v2075
      %4924 = vmatprep.subr.mxu0 %v2072
      %4925 = vmatpush2.msra.mxu0 %v2071
      %4926 = vmatprep.subr.mxu0 %v2068
      %4927 = vmatpush2.msra.mxu0 %v2067
      %4928 = vmatprep.mubr.f32.mxu0 %v229
      %4929 = vmatmul.mubr.f32.gmra.mxu0 %v228
      %v4930 = vpop.f32.mrf.mxu0
      %v4931 = vadd.f32 %v4860, %v4930
      %v4932 = vpop.f32.mrf.mxu0
      %v4933 = vadd.f32 %v4862, %v4932
      %4934 = vdwg.mxu0
      %4935 = vmatprep.subr.mxu0 %v3016
      %4936 = vmatpush1.msra.mxu0 %v3015
      %4937 = vmatprep.subr.mxu0 %v3012
      %4938 = vmatpush1.msra.mxu0 %v3011
      %4939 = vmatprep.subr.mxu0 %v3008
      %4940 = vmatpush1.msra.mxu0 %v3007
      %4941 = vmatprep.subr.mxu0 %v3004
      %4942 = vmatpush1.msra.mxu0 %v3003
      %4943 = vmatprep.subr.mxu0 %v3000
      %4944 = vmatpush1.msra.mxu0 %v2999
      %4945 = vmatprep.subr.mxu0 %v2996
      %4946 = vmatpush1.msra.mxu0 %v2995
      %4947 = vmatprep.subr.mxu0 %v2992
      %4948 = vmatpush1.msra.mxu0 %v2991
      %4949 = vmatprep.subr.mxu0 %v2988
      %4950 = vmatpush1.msra.mxu0 %v2987
      %4951 = vmatprep.subr.mxu0 %v2984
      %4952 = vmatpush1.msra.mxu0 %v2983
      %4953 = vmatprep.subr.mxu0 %v2980
      %4954 = vmatpush1.msra.mxu0 %v2979
      %4955 = vmatprep.subr.mxu0 %v2976
      %4956 = vmatpush1.msra.mxu0 %v2975
      %4957 = vmatprep.subr.mxu0 %v2972
      %4958 = vmatpush1.msra.mxu0 %v2971
      %4959 = vmatprep.subr.mxu0 %v2968
      %4960 = vmatpush1.msra.mxu0 %v2967
      %4961 = vmatprep.subr.mxu0 %v2964
      %4962 = vmatpush1.msra.mxu0 %v2963
      %4963 = vmatprep.subr.mxu0 %v2960
      %4964 = vmatpush1.msra.mxu0 %v2959
      %4965 = vmatprep.subr.mxu0 %v2956
      %4966 = vmatpush1.msra.mxu0 %v2955
      %4967 = vmatprep.subr.mxu0 %v3080
      %4968 = vmatpush2.msra.mxu0 %v3079
      %4969 = vmatprep.subr.mxu0 %v3076
      %4970 = vmatpush2.msra.mxu0 %v3075
      %4971 = vmatprep.subr.mxu0 %v3072
      %4972 = vmatpush2.msra.mxu0 %v3071
      %4973 = vmatprep.subr.mxu0 %v3068
      %4974 = vmatpush2.msra.mxu0 %v3067
      %4975 = vmatprep.subr.mxu0 %v3064
      %4976 = vmatpush2.msra.mxu0 %v3063
      %4977 = vmatprep.subr.mxu0 %v3060
      %4978 = vmatpush2.msra.mxu0 %v3059
      %4979 = vmatprep.subr.mxu0 %v3056
      %4980 = vmatpush2.msra.mxu0 %v3055
      %4981 = vmatprep.subr.mxu0 %v3052
      %4982 = vmatpush2.msra.mxu0 %v3051
      %4983 = vmatprep.subr.mxu0 %v3048
      %4984 = vmatpush2.msra.mxu0 %v3047
      %4985 = vmatprep.subr.mxu0 %v3044
      %4986 = vmatpush2.msra.mxu0 %v3043
      %4987 = vmatprep.subr.mxu0 %v3040
      %4988 = vmatpush2.msra.mxu0 %v3039
      %4989 = vmatprep.subr.mxu0 %v3036
      %4990 = vmatpush2.msra.mxu0 %v3035
      %4991 = vmatprep.subr.mxu0 %v3032
      %4992 = vmatpush2.msra.mxu0 %v3031
      %4993 = vmatprep.subr.mxu0 %v3028
      %4994 = vmatpush2.msra.mxu0 %v3027
      %4995 = vmatprep.subr.mxu0 %v3024
      %4996 = vmatpush2.msra.mxu0 %v3023
      %4997 = vmatprep.subr.mxu0 %v3020
      %4998 = vmatpush2.msra.mxu0 %v3019
      %4999 = vmatprep.mubr.f32.mxu0 %v4072
      %5000 = vmatmul.mubr.f32.gmra.mxu0 %v4071
      %v5001 = vpop.f32.mrf.mxu0
      %v5002 = vadd.f32 0.0, %v5001
      %v5003 = vpop.f32.mrf.mxu0
      %v5004 = vadd.f32 0.0, %v5003
      %5005 = vdwg.mxu0
      %5006 = vmatprep.subr.mxu0 %v3144
      %5007 = vmatpush1.msra.mxu0 %v3143
      %5008 = vmatprep.subr.mxu0 %v3140
      %5009 = vmatpush1.msra.mxu0 %v3139
      %5010 = vmatprep.subr.mxu0 %v3136
      %5011 = vmatpush1.msra.mxu0 %v3135
      %5012 = vmatprep.subr.mxu0 %v3132
      %5013 = vmatpush1.msra.mxu0 %v3131
      %5014 = vmatprep.subr.mxu0 %v3128
      %5015 = vmatpush1.msra.mxu0 %v3127
      %5016 = vmatprep.subr.mxu0 %v3124
      %5017 = vmatpush1.msra.mxu0 %v3123
      %5018 = vmatprep.subr.mxu0 %v3120
      %5019 = vmatpush1.msra.mxu0 %v3119
      %5020 = vmatprep.subr.mxu0 %v3116
      %5021 = vmatpush1.msra.mxu0 %v3115
      %5022 = vmatprep.subr.mxu0 %v3112
      %5023 = vmatpush1.msra.mxu0 %v3111
      %5024 = vmatprep.subr.mxu0 %v3108
      %5025 = vmatpush1.msra.mxu0 %v3107
      %5026 = vmatprep.subr.mxu0 %v3104
      %5027 = vmatpush1.msra.mxu0 %v3103
      %5028 = vmatprep.subr.mxu0 %v3100
      %5029 = vmatpush1.msra.mxu0 %v3099
      %5030 = vmatprep.subr.mxu0 %v3096
      %5031 = vmatpush1.msra.mxu0 %v3095
      %5032 = vmatprep.subr.mxu0 %v3092
      %5033 = vmatpush1.msra.mxu0 %v3091
      %5034 = vmatprep.subr.mxu0 %v3088
      %5035 = vmatpush1.msra.mxu0 %v3087
      %5036 = vmatprep.subr.mxu0 %v3084
      %5037 = vmatpush1.msra.mxu0 %v3083
      %5038 = vmatprep.subr.mxu0 %v3208
      %5039 = vmatpush2.msra.mxu0 %v3207
      %5040 = vmatprep.subr.mxu0 %v3204
      %5041 = vmatpush2.msra.mxu0 %v3203
      %5042 = vmatprep.subr.mxu0 %v3200
      %5043 = vmatpush2.msra.mxu0 %v3199
      %5044 = vmatprep.subr.mxu0 %v3196
      %5045 = vmatpush2.msra.mxu0 %v3195
      %5046 = vmatprep.subr.mxu0 %v3192
      %5047 = vmatpush2.msra.mxu0 %v3191
      %5048 = vmatprep.subr.mxu0 %v3188
      %5049 = vmatpush2.msra.mxu0 %v3187
      %5050 = vmatprep.subr.mxu0 %v3184
      %5051 = vmatpush2.msra.mxu0 %v3183
      %5052 = vmatprep.subr.mxu0 %v3180
      %5053 = vmatpush2.msra.mxu0 %v3179
      %5054 = vmatprep.subr.mxu0 %v3176
      %5055 = vmatpush2.msra.mxu0 %v3175
      %5056 = vmatprep.subr.mxu0 %v3172
      %5057 = vmatpush2.msra.mxu0 %v3171
      %5058 = vmatprep.subr.mxu0 %v3168
      %5059 = vmatpush2.msra.mxu0 %v3167
      %5060 = vmatprep.subr.mxu0 %v3164
      %5061 = vmatpush2.msra.mxu0 %v3163
      %5062 = vmatprep.subr.mxu0 %v3160
      %5063 = vmatpush2.msra.mxu0 %v3159
      %5064 = vmatprep.subr.mxu0 %v3156
      %5065 = vmatpush2.msra.mxu0 %v3155
      %5066 = vmatprep.subr.mxu0 %v3152
      %5067 = vmatpush2.msra.mxu0 %v3151
      %5068 = vmatprep.subr.mxu0 %v3148
      %5069 = vmatpush2.msra.mxu0 %v3147
      %5070 = vmatprep.mubr.f32.mxu0 %v4074
      %5071 = vmatmul.mubr.f32.gmra.mxu0 %v4073
      %v5072 = vpop.f32.mrf.mxu0
      %v5073 = vadd.f32 %v5002, %v5072
      %v5074 = vpop.f32.mrf.mxu0
      %v5075 = vadd.f32 %v5004, %v5074
      %5076 = vdwg.mxu0
      %5077 = vmatprep.subr.mxu0 %v3018
      %5078 = vmatpush1.msra.mxu0 %v3017
      %5079 = vmatprep.subr.mxu0 %v3014
      %5080 = vmatpush1.msra.mxu0 %v3013
      %5081 = vmatprep.subr.mxu0 %v3010
      %5082 = vmatpush1.msra.mxu0 %v3009
      %5083 = vmatprep.subr.mxu0 %v3006
      %5084 = vmatpush1.msra.mxu0 %v3005
      %5085 = vmatprep.subr.mxu0 %v3002
      %5086 = vmatpush1.msra.mxu0 %v3001
      %5087 = vmatprep.subr.mxu0 %v2998
      %5088 = vmatpush1.msra.mxu0 %v2997
      %5089 = vmatprep.subr.mxu0 %v2994
      %5090 = vmatpush1.msra.mxu0 %v2993
      %5091 = vmatprep.subr.mxu0 %v2990
      %5092 = vmatpush1.msra.mxu0 %v2989
      %5093 = vmatprep.subr.mxu0 %v2986
      %5094 = vmatpush1.msra.mxu0 %v2985
      %5095 = vmatprep.subr.mxu0 %v2982
      %5096 = vmatpush1.msra.mxu0 %v2981
      %5097 = vmatprep.subr.mxu0 %v2978
      %5098 = vmatpush1.msra.mxu0 %v2977
      %5099 = vmatprep.subr.mxu0 %v2974
      %5100 = vmatpush1.msra.mxu0 %v2973
      %5101 = vmatprep.subr.mxu0 %v2970
      %5102 = vmatpush1.msra.mxu0 %v2969
      %5103 = vmatprep.subr.mxu0 %v2966
      %5104 = vmatpush1.msra.mxu0 %v2965
      %5105 = vmatprep.subr.mxu0 %v2962
      %5106 = vmatpush1.msra.mxu0 %v2961
      %5107 = vmatprep.subr.mxu0 %v2958
      %5108 = vmatpush1.msra.mxu0 %v2957
      %5109 = vmatprep.subr.mxu0 %v3082
      %5110 = vmatpush2.msra.mxu0 %v3081
      %5111 = vmatprep.subr.mxu0 %v3078
      %5112 = vmatpush2.msra.mxu0 %v3077
      %5113 = vmatprep.subr.mxu0 %v3074
      %5114 = vmatpush2.msra.mxu0 %v3073
      %5115 = vmatprep.subr.mxu0 %v3070
      %5116 = vmatpush2.msra.mxu0 %v3069
      %5117 = vmatprep.subr.mxu0 %v3066
      %5118 = vmatpush2.msra.mxu0 %v3065
      %5119 = vmatprep.subr.mxu0 %v3062
      %5120 = vmatpush2.msra.mxu0 %v3061
      %5121 = vmatprep.subr.mxu0 %v3058
      %5122 = vmatpush2.msra.mxu0 %v3057
      %5123 = vmatprep.subr.mxu0 %v3054
      %5124 = vmatpush2.msra.mxu0 %v3053
      %5125 = vmatprep.subr.mxu0 %v3050
      %5126 = vmatpush2.msra.mxu0 %v3049
      %5127 = vmatprep.subr.mxu0 %v3046
      %5128 = vmatpush2.msra.mxu0 %v3045
      %5129 = vmatprep.subr.mxu0 %v3042
      %5130 = vmatpush2.msra.mxu0 %v3041
      %5131 = vmatprep.subr.mxu0 %v3038
      %5132 = vmatpush2.msra.mxu0 %v3037
      %5133 = vmatprep.subr.mxu0 %v3034
      %5134 = vmatpush2.msra.mxu0 %v3033
      %5135 = vmatprep.subr.mxu0 %v3030
      %5136 = vmatpush2.msra.mxu0 %v3029
      %5137 = vmatprep.subr.mxu0 %v3026
      %5138 = vmatpush2.msra.mxu0 %v3025
      %5139 = vmatprep.subr.mxu0 %v3022
      %5140 = vmatpush2.msra.mxu0 %v3021
      %5141 = vmatprep.mubr.f32.mxu0 %v4072
      %5142 = vmatmul.mubr.f32.gmra.mxu0 %v4071
      %v5143 = vpop.f32.mrf.mxu0
      %v5144 = vadd.f32 0.0, %v5143
      %v5145 = vpop.f32.mrf.mxu0
      %v5146 = vadd.f32 0.0, %v5145
      %5147 = vdwg.mxu0
      %5148 = vmatprep.subr.mxu0 %v3146
      %5149 = vmatpush1.msra.mxu0 %v3145
      %5150 = vmatprep.subr.mxu0 %v3142
      %5151 = vmatpush1.msra.mxu0 %v3141
      %5152 = vmatprep.subr.mxu0 %v3138
      %5153 = vmatpush1.msra.mxu0 %v3137
      %5154 = vmatprep.subr.mxu0 %v3134
      %5155 = vmatpush1.msra.mxu0 %v3133
      %5156 = vmatprep.subr.mxu0 %v3130
      %5157 = vmatpush1.msra.mxu0 %v3129
      %5158 = vmatprep.subr.mxu0 %v3126
      %5159 = vmatpush1.msra.mxu0 %v3125
      %5160 = vmatprep.subr.mxu0 %v3122
      %5161 = vmatpush1.msra.mxu0 %v3121
      %5162 = vmatprep.subr.mxu0 %v3118
      %5163 = vmatpush1.msra.mxu0 %v3117
      %5164 = vmatprep.subr.mxu0 %v3114
      %5165 = vmatpush1.msra.mxu0 %v3113
      %5166 = vmatprep.subr.mxu0 %v3110
      %5167 = vmatpush1.msra.mxu0 %v3109
      %5168 = vmatprep.subr.mxu0 %v3106
      %5169 = vmatpush1.msra.mxu0 %v3105
      %5170 = vmatprep.subr.mxu0 %v3102
      %5171 = vmatpush1.msra.mxu0 %v3101
      %5172 = vmatprep.subr.mxu0 %v3098
      %5173 = vmatpush1.msra.mxu0 %v3097
      %5174 = vmatprep.subr.mxu0 %v3094
      %5175 = vmatpush1.msra.mxu0 %v3093
      %5176 = vmatprep.subr.mxu0 %v3090
      %5177 = vmatpush1.msra.mxu0 %v3089
      %5178 = vmatprep.subr.mxu0 %v3086
      %5179 = vmatpush1.msra.mxu0 %v3085
      %5180 = vmatprep.subr.mxu0 %v3210
      %5181 = vmatpush2.msra.mxu0 %v3209
      %5182 = vmatprep.subr.mxu0 %v3206
      %5183 = vmatpush2.msra.mxu0 %v3205
      %5184 = vmatprep.subr.mxu0 %v3202
      %5185 = vmatpush2.msra.mxu0 %v3201
      %5186 = vmatprep.subr.mxu0 %v3198
      %5187 = vmatpush2.msra.mxu0 %v3197
      %5188 = vmatprep.subr.mxu0 %v3194
      %5189 = vmatpush2.msra.mxu0 %v3193
      %5190 = vmatprep.subr.mxu0 %v3190
      %5191 = vmatpush2.msra.mxu0 %v3189
      %5192 = vmatprep.subr.mxu0 %v3186
      %5193 = vmatpush2.msra.mxu0 %v3185
      %5194 = vmatprep.subr.mxu0 %v3182
      %5195 = vmatpush2.msra.mxu0 %v3181
      %5196 = vmatprep.subr.mxu0 %v3178
      %5197 = vmatpush2.msra.mxu0 %v3177
      %5198 = vmatprep.subr.mxu0 %v3174
      %5199 = vmatpush2.msra.mxu0 %v3173
      %5200 = vmatprep.subr.mxu0 %v3170
      %5201 = vmatpush2.msra.mxu0 %v3169
      %5202 = vmatprep.subr.mxu0 %v3166
      %5203 = vmatpush2.msra.mxu0 %v3165
      %5204 = vmatprep.subr.mxu0 %v3162
      %5205 = vmatpush2.msra.mxu0 %v3161
      %5206 = vmatprep.subr.mxu0 %v3158
      %5207 = vmatpush2.msra.mxu0 %v3157
      %5208 = vmatprep.subr.mxu0 %v3154
      %5209 = vmatpush2.msra.mxu0 %v3153
      %5210 = vmatprep.subr.mxu0 %v3150
      %5211 = vmatpush2.msra.mxu0 %v3149
      %5212 = vmatprep.mubr.f32.mxu0 %v4074
      %5213 = vmatmul.mubr.f32.gmra.mxu0 %v4073
      %v5214 = vpop.f32.mrf.mxu0
      %v5215 = vadd.f32 %v5144, %v5214
      %v5216 = vpop.f32.mrf.mxu0
      %v5217 = vadd.f32 %v5146, %v5216
      %5218 = vdwg.mxu0
      %v5219 = vadd.f32 %v4789, %v5073
      %v5220 = vadd.f32 %v4791, %v5075
      %v5221 = vadd.f32 %v4931, %v5215
      %v5222 = vadd.f32 %v4933, %v5217
      %v5223 = vmax.f32 %v1868, %v3495
      %v5224 = vmax.f32 %v1869, %v3496
      %v5225 = vmax.f32 %v1870, %v3497
      %v5226 = vmax.f32 %v1871, %v3498
      %v5227 = vmax.f32 %v4363, %v5219
      %v5228 = vmax.f32 %v4364, %v5220
      %v5229 = vmax.f32 %v4365, %v5221
      %v5230 = vmax.f32 %v4366, %v5222
      %v5231 = vmax.f32 %v5223, %v5227
      %v5232 = vmax.f32 %v5224, %v5228
      %v5233 = vmax.f32 %v5225, %v5229
      %v5234 = vmax.f32 %v5226, %v5230
      %v5235 = vld [vmem:[%s3] sm:$0xf]
      %v5237 = vlaneseq
      %v5238 = vshrl.u32 %v5237, 7
      %v5239 = vsub.s32 0, %v5238
      %v5240 = vrot.slane %v5235, %v5239
      %v5241 = vlaneseq
      %v5242 = vshrl.u32 %v5241, 7
      %v5243 = vsub.s32 1, %v5242
      %v5244 = vrot.slane %v5235, %v5243
      %v5245 = vlaneseq
      %v5246 = vshrl.u32 %v5245, 7
      %v5247 = vsub.s32 2, %v5246
      %v5248 = vrot.slane %v5235, %v5247
      %v5249 = vlaneseq
      %v5250 = vshrl.u32 %v5249, 7
      %v5251 = vsub.s32 3, %v5250
      %v5252 = vrot.slane %v5235, %v5251
      %v5257 = vadd.f32 %v5231, %v5240
      %v5258 = vadd.f32 %v5232, %v5244
      %v5259 = vadd.f32 %v5233, %v5248
      %v5260 = vadd.f32 %v5234, %v5252
      %v5261 = vmax.f32 %v5257, 0.0
      %v5262 = vmax.f32 %v5258, 0.0
      %v5263 = vmax.f32 %v5259, 0.0
      %v5264 = vmax.f32 %v5260, 0.0
      %5265 = vst [vmem:[%s217] sm:$0x7f] %v5261
      %5266 = vst [vmem:[%s217 + $0x8] sm:$0x7f] %v5262
      %5267 = vst [vmem:[%s217 + $0x10] sm:$0x7f] %v5263
      %vm5268 = vcmask 522240
      %5269 = vst.msk [vmem:[%s217 + $0x18] sm:$0x7f] %vm5268, %v5264
      %p5270 = scmp.lt.s32.totalorder %s15, 1
      %s5271 = scalar_select %p5270, %s15, 1
      %s5272 = smul.addr %s5271, 4
      %s5273 = smul.addr %s5272, 8
      %s5274 = scalar_lea.vmem %s4, %s5273
      // Predicated region
      $region37: #{cnn_b_forward.4} parent=35 // pred_check
        %p5275 = pneg %p127
      $region38: #{cnn_b_forward.4} parent=35 // pred_check_branch
        %5277 = sbr.rel (%p5275) target = $region40
      $region39: #{cnn_b_forward.4} parent=35 // pred_region
        _
      $region40: #{cnn_b_forward.4} parent=35 // pred_fallthru
        _
    $region36: #{cnn_b_forward.4} parent=5 // pred_fallthru
      _
    %p5278 = scmp.le.s32.totalorder 2, %s10
    // Predicated region
    $region41: #{cnn_b_forward.4} parent=5 // pred_check
      %p5279 = pneg %p5278
    $region42: #{cnn_b_forward.4} parent=5 // pred_check_branch
      %5281 = sbr.rel (%p5279) target = $region44
    $region43: #{cnn_b_forward.4} parent=5 // pred_region
      %s5282 = ssub.s32 %s10, 2
      // Predicated region
      $region45: #{cnn_b_forward.4} parent=43 // pred_check
        %p5283 = pneg %p133
      $region46: #{cnn_b_forward.4} parent=43 // pred_check_branch
        %5285 = sbr.rel (%p5283) target = $region48
      $region47: #{cnn_b_forward.4} parent=43 // pred_region
        %p5286 = scmp.lt.s32.totalorder %s16, 1
        %s5287 = scalar_select %p5286, %s16, 1
        %s5288 = smul.addr %s5287, 4
        %s5289 = smul.addr %s5288, 8
        %s5290 = scalar_lea.vmem %s4, %s5289
      $region48: #{cnn_b_forward.4} parent=43 // pred_fallthru
        _
    $region44: #{cnn_b_forward.4} parent=5 // pred_fallthru
      _
  $region6: #{cnn_b_forward.4} parent=0 // loop_footer
    %s14 = sadd.s32 1, %s10
  $region7: #{cnn_b_forward.4} parent=0 // loop_footer_branch
    %9 = sbr.rel target = $region3
  $region8: #{cnn_b_forward.4} parent=0 // loop_exit
    _

</llo_original>
